<compile_context>
chip_gen: v6e
topology: v6e:2x2x1
jax: 0.10.0
libtpu: 0.0.40
codegen_flags: <defaults>
</compile_context>

<pallas_src>
import functools

import jax
import jax.numpy as jnp
from jax import lax
from jax.experimental import pallas as pl
from jax.experimental.pallas import tpu as pltpu

BN_EPS = 1e-5
LANES = 128


def _residual_block_kernel(x_ref, w1_ref, w2_ref, b1_ref, b2_ref, o_ref, *, H, W):
    # x_ref : (Nb*H*W, Cp) f32   channels-last, lane-padded slab of Nb images
    # w*_ref: (9*Cp, Cp)   bf16  im2col weights; BN scale (and res_scale) pre-folded
    # b*_ref: (1, Cp)      f32   folded conv-bias + BN bias (b2 already * res_scale)
    # o_ref : (Nb*H*W, Cp) f32
    HW = H * W

    x = x_ref[...]                                         # (ROWS, Cp) f32
    ROWS = x.shape[0]

    # Border-validity masks, shared by both convs, computed once.  Row r of the slab
    # is pixel (h, w) = ((r % HW) // W, r % W) of image r // HW; rolled taps that
    # would cross an image (or slab) boundary land exactly on masked positions.
    row = lax.broadcasted_iota(jnp.int32, x.shape, 0)
    rim = row % HW
    col = row % W
    h_ok = {0: rim >= W, 1: None, 2: rim < (H - 1) * W}    # tap reads h-1 / h / h+1
    w_ok = {0: col != 0, 1: None, 2: col != (W - 1)}       # tap reads w-1 / w / w+1

    def im2col(a):
        # a: (ROWS, Cp) f32 -> (ROWS, 9*Cp) bf16 patches.  Shifted taps come from XLU
        # rolls along the sublane axis; "same" padding is realized by zeroing the
        # out-of-bounds taps with the masks above (no padded scratch, no offset
        # sublane slices, nothing to zero-fill per step).
        taps = []
        for dy in range(3):
            for dx in range(3):
                shift = ((1 - dy) * W + (1 - dx)) % ROWS
                t = a if shift == 0 else pltpu.roll(a, shift, 0)
                hm, wm = h_ok[dy], w_ok[dx]
                if hm is None:
                    mask = wm
                elif wm is None:
                    mask = hm
                else:
                    mask = jnp.logical_and(hm, wm)
                if mask is not None:
                    t = jnp.where(mask, t, 0.0)
                taps.append(t.astype(jnp.bfloat16))
        return jnp.concatenate(taps, axis=-1)              # (ROWS, 9*Cp) bf16

    # conv1 (+ folded BN1) + ReLU  -- single MXU matmul, f32 accumulation.
    acc1 = jnp.dot(im2col(x), w1_ref[...], preferred_element_type=jnp.float32)
    y1 = jnp.maximum(acc1 + b1_ref[...], 0.0)              # (ROWS, Cp) f32

    # conv2 (+ folded BN2 * res_scale) + residual.
    acc2 = jnp.dot(im2col(y1), w2_ref[...], preferred_element_type=jnp.float32)
    o_ref[...] = (acc2 + b2_ref[...] + x).astype(o_ref.dtype)


def _pick_batch_block(N, HW, Cp, budget_bytes=24 * 1024 * 1024):
    """Largest Nb dividing N whose per-step VMEM footprint fits the budget."""
    per_img = HW * Cp * 4 * 2 * 2          # x & out blocks, f32, double-buffered
    per_img += HW * 9 * Cp * 2             # im2col patch slab, bf16
    per_img += HW * Cp * 4 * 2             # y1 + f32 accumulator temporaries
    fixed = 2 * (9 * Cp * Cp * 2) * 2      # two weight mats, bf16, double-buffered
    nb = max(1, min(N, (budget_bytes - fixed) // max(per_img, 1)))
    while N % nb:                          # keep the grid exact (no ragged tail)
        nb -= 1
    return int(nb)


def residual_block(x_nchw, params, res_scale=1.0):
    """Pallas ResidualBlock forward. x_nchw: (N, C, H, W) f32 -> (N, C, H, W) f32."""
    (w1, b1c, g1, be1, m1, v1,
     w2, b2c, g2, be2, m2, v2) = params

    N, C, H, W = x_nchw.shape
    HW = H * W
    Cp = ((C + LANES - 1) // LANES) * LANES                # lane-dense channel count
    Nb = _pick_batch_block(N, HW, Cp)
    ROWS = Nb * HW

    # Fold conv bias + eval-mode BatchNorm (and res_scale for branch 2) on the host.
    s1 = g1 / jnp.sqrt(v1 + BN_EPS)
    s2 = g2 / jnp.sqrt(v2 + BN_EPS)
    bias1 = (b1c - m1) * s1 + be1
    bias2 = ((b2c - m2) * s2 + be2) * res_scale

    # torch Conv2d weight (out, in, kh, kw) -> (kh, kw, in, out), scale the out axis
    # by the folded BN scale, then pack tap-major into a single (9*Cp, Cp) matrix.
    def pack_weight(w, out_scale):
        wf = jnp.transpose(w, (2, 3, 1, 0)) * out_scale            # (3,3,C,C)
        wf = wf.reshape(9, C, C)
        wf = jnp.pad(wf, ((0, 0), (0, Cp - C), (0, Cp - C)))       # pad in/out chans
        return wf.reshape(9 * Cp, Cp).astype(jnp.bfloat16)

    w1k = pack_weight(w1, s1)
    w2k = pack_weight(w2, s2 * res_scale)
    b1k = jnp.pad(bias1, (0, Cp - C)).reshape(1, Cp).astype(jnp.float32)
    b2k = jnp.pad(bias2, (0, Cp - C)).reshape(1, Cp).astype(jnp.float32)

    # NCHW -> (N*H*W, Cp): channels on the lane dim (padded to a 128-multiple),
    # N*H*W dense on the sublane dim.  x stays f32 so the residual add is exact.
    x = jnp.transpose(x_nchw, (0, 2, 3, 1)).astype(jnp.float32)
    x = jnp.pad(x, ((0, 0), (0, 0), (0, 0), (0, Cp - C))).reshape(N * HW, Cp)

    kernel = functools.partial(_residual_block_kernel, H=H, W=W)

    out = pl.pallas_call(
        kernel,
        out_shape=jax.ShapeDtypeStruct((N * HW, Cp), jnp.float32),
        grid_spec=pltpu.PrefetchScalarGridSpec(
            num_scalar_prefetch=0,
            grid=(N // Nb,),
            in_specs=[
                pl.BlockSpec((ROWS, Cp), lambda b: (b, 0)),
                pl.BlockSpec((9 * Cp, Cp), lambda b: (0, 0)),
                pl.BlockSpec((9 * Cp, Cp), lambda b: (0, 0)),
                pl.BlockSpec((1, Cp), lambda b: (0, 0)),
                pl.BlockSpec((1, Cp), lambda b: (0, 0)),
            ],
            out_specs=pl.BlockSpec((ROWS, Cp), lambda b: (b, 0)),
        ),
        compiler_params=pltpu.CompilerParams(
            dimension_semantics=("parallel",),
            vmem_limit_bytes=64 * 1024 * 1024,
        ),
    )(x, w1k, w2k, b1k, b2k)

    out = out.reshape(N, H, W, Cp)[..., :C]
    return jnp.transpose(out, (0, 3, 1, 2))                # NHWC -> NCHW


def residual_block_reference(x, params, res_scale=1.0):
    """Pure-JAX f32 reference (NCHW), mirrors the PyTorch forward in eval mode."""
    (w1, b1c, g1, be1, m1, v1,
     w2, b2c, g2, be2, m2, v2) = params

    def conv(x, w, b):
        y = lax.conv_general_dilated(
            x, w, window_strides=(1, 1), padding=((1, 1), (1, 1)),
            dimension_numbers=('NCHW', 'OIHW', 'NCHW'),
            precision=lax.Precision.HIGHEST)
        return y + b[None, :, None, None]

    def bn(x, g, be, m, v):
        return ((x - m[None, :, None, None])
                / jnp.sqrt(v[None, :, None, None] + BN_EPS)
                * g[None, :, None, None] + be[None, :, None, None])

    out = jax.nn.relu(bn(conv(x, w1, b1c), g1, be1, m1, v1))
    out = bn(conv(out, w2, b2c), g2, be2, m2, v2)
    return out * res_scale + x


if __name__ == "__main__":
    N, C, H, W = 2, 4, 16, 16
    key = jax.random.PRNGKey(0)
    ks = jax.random.split(key, 13)

    x = jax.random.normal(ks[0], (N, C, H, W), jnp.float32)

    # conv1 + BN1 params
    w1 = 0.1 * jax.random.normal(ks[1], (C, C, 3, 3), jnp.float32)
    b1 = 0.1 * jax.random.normal(ks[2], (C,), jnp.float32)
    g1 = 1.0 + 0.1 * jax.random.normal(ks[3], (C,), jnp.float32)
    be1 = 0.1 * jax.random.normal(ks[4], (C,), jnp.float32)
    m1 = 0.1 * jax.random.normal(ks[5], (C,), jnp.float32)
    v1 = 0.5 + jnp.abs(jax.random.normal(ks[6], (C,), jnp.float32))

    # conv2 + BN2 params
    w2 = 0.1 * jax.random.normal(ks[7], (C, C, 3, 3), jnp.float32)
    b2 = 0.1 * jax.random.normal(ks[8], (C,), jnp.float32)
    g2 = 1.0 + 0.1 * jax.random.normal(ks[9], (C,), jnp.float32)
    be2 = 0.1 * jax.random.normal(ks[10], (C,), jnp.float32)
    m2 = 0.1 * jax.random.normal(ks[11], (C,), jnp.float32)
    v2 = 0.5 + jnp.abs(jax.random.normal(ks[12], (C,), jnp.float32))

    params = (w1, b1, g1, be1, m1, v1, w2, b2, g2, be2, m2, v2)

    out = jax.block_until_ready(residual_block(x, params, res_scale=1.0))
    ref = jax.block_until_ready(residual_block_reference(x, params, res_scale=1.0))

    assert out.shape == x.shape and out.dtype == x.dtype
    # bf16 MXU operands (f32 accumulation / residual) -> relaxed tolerance vs f32 ref.
    err = jnp.max(jnp.abs(out - ref))
    assert jnp.allclose(out, ref, atol=2e-2, rtol=2e-2), f"max abs err = {err}"
    print("KERNEL_OK")
</pallas_src>

<mosaic_0001>
module attributes {stable_mosaic.version = 11 : i64} {
  func.func @_residual_block_kernel(%arg0: i32, %arg1: memref<512x128xf32, #tpu.memory_space<vmem>>, %arg2: memref<1152x128xbf16, #tpu.memory_space<vmem>>, %arg3: memref<1152x128xbf16, #tpu.memory_space<vmem>>, %arg4: memref<1x128xf32, #tpu.memory_space<vmem>>, %arg5: memref<1x128xf32, #tpu.memory_space<vmem>>, %arg6: memref<512x128xf32, #tpu.memory_space<vmem>>) attributes {dimension_semantics = [#tpu.dimension_semantics<parallel>], iteration_bounds = array<i64: 1>, scalar_prefetch = 0 : i64, scratch_operands = 0 : i64, tpu.core_type = #tpu.core_type<tc>, window_params = [{transform_indices = @transform_0, window_bounds = array<i64: 512, 128>}, {pipeline_mode = #tpu.pipeline_mode<synchronous>, transform_indices = @transform_1, window_bounds = array<i64: 1152, 128>}, {pipeline_mode = #tpu.pipeline_mode<synchronous>, transform_indices = @transform_2, window_bounds = array<i64: 1152, 128>}, {pipeline_mode = #tpu.pipeline_mode<synchronous>, transform_indices = @transform_3, window_bounds = array<i64: 1, 128>}, {pipeline_mode = #tpu.pipeline_mode<synchronous>, transform_indices = @transform_4, window_bounds = array<i64: 1, 128>}, {transform_indices = @transform_5, window_bounds = array<i64: 512, 128>}]} {
    %c0 = arith.constant 0 : index
    %c0_0 = arith.constant 0 : index
    %0 = vector.load %arg1[%c0, %c0_0] : memref<512x128xf32, #tpu.memory_space<vmem>>, vector<512x128xf32>
    %1 = tpu.iota {dimensions = array<i32: 0>} : vector<512x128xi32>
    %c256_i32 = arith.constant 256 : i32
    %c0_i32 = arith.constant 0 : i32
    %2 = arith.cmpi eq, %c256_i32, %c0_i32 : i32
    %c1_i32 = arith.constant 1 : i32
    %3 = arith.select %2, %c1_i32, %c256_i32 : i32
    %4 = vector.broadcast %3 : i32 to vector<512x128xi32>
    %5 = arith.remsi %1, %4 : vector<512x128xi32>
    %c0_i32_1 = arith.constant 0 : i32
    %6 = vector.broadcast %c0_i32_1 : i32 to vector<512x128xi32>
    %7 = arith.cmpi ne, %5, %6 : vector<512x128xi32>
    %c0_i32_2 = arith.constant 0 : i32
    %8 = vector.broadcast %c0_i32_2 : i32 to vector<512x128xi32>
    %9 = arith.cmpi slt, %5, %8 : vector<512x128xi32>
    %c0_i32_3 = arith.constant 0 : i32
    %10 = arith.cmpi slt, %3, %c0_i32_3 : i32
    %11 = vector.broadcast %10 : i1 to vector<512x128xi1>
    %12 = vector.broadcast %11 : vector<512x128xi1> to vector<512x128xi1>
    %13 = arith.xori %9, %12 : vector<512x128xi1>
    %14 = arith.andi %13, %7 : vector<512x128xi1>
    %15 = vector.broadcast %3 : i32 to vector<512x128xi32>
    %16 = arith.addi %5, %15 : vector<512x128xi32>
    %17 = arith.select %14, %16, %5 : vector<512x128xi1>, vector<512x128xi32>
    %c16_i32 = arith.constant 16 : i32
    %c0_i32_4 = arith.constant 0 : i32
    %18 = arith.cmpi eq, %c16_i32, %c0_i32_4 : i32
    %c1_i32_5 = arith.constant 1 : i32
    %19 = arith.select %18, %c1_i32_5, %c16_i32 : i32
    %20 = vector.broadcast %19 : i32 to vector<512x128xi32>
    %21 = arith.remsi %1, %20 : vector<512x128xi32>
    %c0_i32_6 = arith.constant 0 : i32
    %22 = vector.broadcast %c0_i32_6 : i32 to vector<512x128xi32>
    %23 = arith.cmpi ne, %21, %22 : vector<512x128xi32>
    %c0_i32_7 = arith.constant 0 : i32
    %24 = vector.broadcast %c0_i32_7 : i32 to vector<512x128xi32>
    %25 = arith.cmpi slt, %21, %24 : vector<512x128xi32>
    %c0_i32_8 = arith.constant 0 : i32
    %26 = arith.cmpi slt, %19, %c0_i32_8 : i32
    %27 = vector.broadcast %26 : i1 to vector<512x128xi1>
    %28 = vector.broadcast %27 : vector<512x128xi1> to vector<512x128xi1>
    %29 = arith.xori %25, %28 : vector<512x128xi1>
    %30 = arith.andi %29, %23 : vector<512x128xi1>
    %31 = vector.broadcast %19 : i32 to vector<512x128xi32>
    %32 = arith.addi %21, %31 : vector<512x128xi32>
    %33 = arith.select %30, %32, %21 : vector<512x128xi1>, vector<512x128xi32>
    %c16_i32_9 = arith.constant 16 : i32
    %34 = vector.broadcast %c16_i32_9 : i32 to vector<512x128xi32>
    %35 = arith.cmpi sge, %17, %34 : vector<512x128xi32>
    %c240_i32 = arith.constant 240 : i32
    %36 = vector.broadcast %c240_i32 : i32 to vector<512x128xi32>
    %37 = arith.cmpi slt, %17, %36 : vector<512x128xi32>
    %c0_i32_10 = arith.constant 0 : i32
    %38 = vector.broadcast %c0_i32_10 : i32 to vector<512x128xi32>
    %39 = arith.cmpi ne, %33, %38 : vector<512x128xi32>
    %c15_i32 = arith.constant 15 : i32
    %40 = vector.broadcast %c15_i32 : i32 to vector<512x128xi32>
    %41 = arith.cmpi ne, %33, %40 : vector<512x128xi32>
    %c17_i32 = arith.constant 17 : i32
    %42 = tpu.dynamic_rotate %0 by %c17_i32 dim 0 : vector<512x128xf32>, i32 -> vector<512x128xf32>
    %43 = arith.andi %35, %39 : vector<512x128xi1>
    %cst = arith.constant 0.000000e+00 : f32
    %44 = vector.broadcast %cst : f32 to vector<512x128xf32>
    %45 = arith.select %43, %42, %44 : vector<512x128xi1>, vector<512x128xf32>
    %46 = arith.truncf %45 : vector<512x128xf32> to vector<512x128xbf16>
    %c16_i32_11 = arith.constant 16 : i32
    %47 = tpu.dynamic_rotate %0 by %c16_i32_11 dim 0 : vector<512x128xf32>, i32 -> vector<512x128xf32>
    %cst_12 = arith.constant 0.000000e+00 : f32
    %48 = vector.broadcast %cst_12 : f32 to vector<512x128xf32>
    %49 = arith.select %35, %47, %48 : vector<512x128xi1>, vector<512x128xf32>
    %50 = arith.truncf %49 : vector<512x128xf32> to vector<512x128xbf16>
    %c15_i32_13 = arith.constant 15 : i32
    %51 = tpu.dynamic_rotate %0 by %c15_i32_13 dim 0 : vector<512x128xf32>, i32 -> vector<512x128xf32>
    %52 = arith.andi %35, %41 : vector<512x128xi1>
    %cst_14 = arith.constant 0.000000e+00 : f32
    %53 = vector.broadcast %cst_14 : f32 to vector<512x128xf32>
    %54 = arith.select %52, %51, %53 : vector<512x128xi1>, vector<512x128xf32>
    %55 = arith.truncf %54 : vector<512x128xf32> to vector<512x128xbf16>
    %c1_i32_15 = arith.constant 1 : i32
    %56 = tpu.dynamic_rotate %0 by %c1_i32_15 dim 0 : vector<512x128xf32>, i32 -> vector<512x128xf32>
    %cst_16 = arith.constant 0.000000e+00 : f32
    %57 = vector.broadcast %cst_16 : f32 to vector<512x128xf32>
    %58 = arith.select %39, %56, %57 : vector<512x128xi1>, vector<512x128xf32>
    %59 = arith.truncf %58 : vector<512x128xf32> to vector<512x128xbf16>
    %60 = arith.truncf %0 : vector<512x128xf32> to vector<512x128xbf16>
    %c511_i32 = arith.constant 511 : i32
    %61 = tpu.dynamic_rotate %0 by %c511_i32 dim 0 : vector<512x128xf32>, i32 -> vector<512x128xf32>
    %cst_17 = arith.constant 0.000000e+00 : f32
    %62 = vector.broadcast %cst_17 : f32 to vector<512x128xf32>
    %63 = arith.select %41, %61, %62 : vector<512x128xi1>, vector<512x128xf32>
    %64 = arith.truncf %63 : vector<512x128xf32> to vector<512x128xbf16>
    %c497_i32 = arith.constant 497 : i32
    %65 = tpu.dynamic_rotate %0 by %c497_i32 dim 0 : vector<512x128xf32>, i32 -> vector<512x128xf32>
    %66 = arith.andi %37, %39 : vector<512x128xi1>
    %cst_18 = arith.constant 0.000000e+00 : f32
    %67 = vector.broadcast %cst_18 : f32 to vector<512x128xf32>
    %68 = arith.select %66, %65, %67 : vector<512x128xi1>, vector<512x128xf32>
    %69 = arith.truncf %68 : vector<512x128xf32> to vector<512x128xbf16>
    %c496_i32 = arith.constant 496 : i32
    %70 = tpu.dynamic_rotate %0 by %c496_i32 dim 0 : vector<512x128xf32>, i32 -> vector<512x128xf32>
    %cst_19 = arith.constant 0.000000e+00 : f32
    %71 = vector.broadcast %cst_19 : f32 to vector<512x128xf32>
    %72 = arith.select %37, %70, %71 : vector<512x128xi1>, vector<512x128xf32>
    %73 = arith.truncf %72 : vector<512x128xf32> to vector<512x128xbf16>
    %c495_i32 = arith.constant 495 : i32
    %74 = tpu.dynamic_rotate %0 by %c495_i32 dim 0 : vector<512x128xf32>, i32 -> vector<512x128xf32>
    %75 = arith.andi %37, %41 : vector<512x128xi1>
    %cst_20 = arith.constant 0.000000e+00 : f32
    %76 = vector.broadcast %cst_20 : f32 to vector<512x128xf32>
    %77 = arith.select %75, %74, %76 : vector<512x128xi1>, vector<512x128xf32>
    %78 = arith.truncf %77 : vector<512x128xf32> to vector<512x128xbf16>
    %79 = tpu.concatenate %46, %50, %55, %59, %60, %64, %69, %73, %78 in 1 : vector<512x128xbf16>, vector<512x128xbf16>, vector<512x128xbf16>, vector<512x128xbf16>, vector<512x128xbf16>, vector<512x128xbf16>, vector<512x128xbf16>, vector<512x128xbf16>, vector<512x128xbf16> -> vector<512x1152xbf16>
    %c0_21 = arith.constant 0 : index
    %c0_22 = arith.constant 0 : index
    %80 = vector.load %arg2[%c0_21, %c0_22] : memref<1152x128xbf16, #tpu.memory_space<vmem>>, vector<1152x128xbf16>
    %cst_23 = arith.constant dense<0.000000e+00> : vector<512x128xf32>
    %81 = tpu.matmul %79, %80, %cst_23 {dimension_numbers = #tpu.dot_dimension_numbers<[1], [0], [0], [1], [0, 0, 1, 1], [], []>} : vector<512x1152xbf16>, vector<1152x128xbf16>, vector<512x128xf32> -> vector<512x128xf32>
    %c0_24 = arith.constant 0 : index
    %c0_25 = arith.constant 0 : index
    %82 = vector.load %arg4[%c0_24, %c0_25] : memref<1x128xf32, #tpu.memory_space<vmem>>, vector<1x128xf32>
    %83 = vector.broadcast %82 : vector<1x128xf32> to vector<512x128xf32>
    %84 = arith.addf %81, %83 : vector<512x128xf32>
    %cst_26 = arith.constant 0.000000e+00 : f32
    %85 = vector.broadcast %cst_26 : f32 to vector<512x128xf32>
    %86 = arith.maximumf %84, %85 : vector<512x128xf32>
    %c17_i32_27 = arith.constant 17 : i32
    %87 = tpu.dynamic_rotate %86 by %c17_i32_27 dim 0 : vector<512x128xf32>, i32 -> vector<512x128xf32>
    %88 = arith.andi %35, %39 : vector<512x128xi1>
    %cst_28 = arith.constant 0.000000e+00 : f32
    %89 = vector.broadcast %cst_28 : f32 to vector<512x128xf32>
    %90 = arith.select %88, %87, %89 : vector<512x128xi1>, vector<512x128xf32>
    %91 = arith.truncf %90 : vector<512x128xf32> to vector<512x128xbf16>
    %c16_i32_29 = arith.constant 16 : i32
    %92 = tpu.dynamic_rotate %86 by %c16_i32_29 dim 0 : vector<512x128xf32>, i32 -> vector<512x128xf32>
    %cst_30 = arith.constant 0.000000e+00 : f32
    %93 = vector.broadcast %cst_30 : f32 to vector<512x128xf32>
    %94 = arith.select %35, %92, %93 : vector<512x128xi1>, vector<512x128xf32>
    %95 = arith.truncf %94 : vector<512x128xf32> to vector<512x128xbf16>
    %c15_i32_31 = arith.constant 15 : i32
    %96 = tpu.dynamic_rotate %86 by %c15_i32_31 dim 0 : vector<512x128xf32>, i32 -> vector<512x128xf32>
    %97 = arith.andi %35, %41 : vector<512x128xi1>
    %cst_32 = arith.constant 0.000000e+00 : f32
    %98 = vector.broadcast %cst_32 : f32 to vector<512x128xf32>
    %99 = arith.select %97, %96, %98 : vector<512x128xi1>, vector<512x128xf32>
    %100 = arith.truncf %99 : vector<512x128xf32> to vector<512x128xbf16>
    %c1_i32_33 = arith.constant 1 : i32
    %101 = tpu.dynamic_rotate %86 by %c1_i32_33 dim 0 : vector<512x128xf32>, i32 -> vector<512x128xf32>
    %cst_34 = arith.constant 0.000000e+00 : f32
    %102 = vector.broadcast %cst_34 : f32 to vector<512x128xf32>
    %103 = arith.select %39, %101, %102 : vector<512x128xi1>, vector<512x128xf32>
    %104 = arith.truncf %103 : vector<512x128xf32> to vector<512x128xbf16>
    %105 = arith.truncf %86 : vector<512x128xf32> to vector<512x128xbf16>
    %c511_i32_35 = arith.constant 511 : i32
    %106 = tpu.dynamic_rotate %86 by %c511_i32_35 dim 0 : vector<512x128xf32>, i32 -> vector<512x128xf32>
    %cst_36 = arith.constant 0.000000e+00 : f32
    %107 = vector.broadcast %cst_36 : f32 to vector<512x128xf32>
    %108 = arith.select %41, %106, %107 : vector<512x128xi1>, vector<512x128xf32>
    %109 = arith.truncf %108 : vector<512x128xf32> to vector<512x128xbf16>
    %c497_i32_37 = arith.constant 497 : i32
    %110 = tpu.dynamic_rotate %86 by %c497_i32_37 dim 0 : vector<512x128xf32>, i32 -> vector<512x128xf32>
    %111 = arith.andi %37, %39 : vector<512x128xi1>
    %cst_38 = arith.constant 0.000000e+00 : f32
    %112 = vector.broadcast %cst_38 : f32 to vector<512x128xf32>
    %113 = arith.select %111, %110, %112 : vector<512x128xi1>, vector<512x128xf32>
    %114 = arith.truncf %113 : vector<512x128xf32> to vector<512x128xbf16>
    %c496_i32_39 = arith.constant 496 : i32
    %115 = tpu.dynamic_rotate %86 by %c496_i32_39 dim 0 : vector<512x128xf32>, i32 -> vector<512x128xf32>
    %cst_40 = arith.constant 0.000000e+00 : f32
    %116 = vector.broadcast %cst_40 : f32 to vector<512x128xf32>
    %117 = arith.select %37, %115, %116 : vector<512x128xi1>, vector<512x128xf32>
    %118 = arith.truncf %117 : vector<512x128xf32> to vector<512x128xbf16>
    %c495_i32_41 = arith.constant 495 : i32
    %119 = tpu.dynamic_rotate %86 by %c495_i32_41 dim 0 : vector<512x128xf32>, i32 -> vector<512x128xf32>
    %120 = arith.andi %37, %41 : vector<512x128xi1>
    %cst_42 = arith.constant 0.000000e+00 : f32
    %121 = vector.broadcast %cst_42 : f32 to vector<512x128xf32>
    %122 = arith.select %120, %119, %121 : vector<512x128xi1>, vector<512x128xf32>
    %123 = arith.truncf %122 : vector<512x128xf32> to vector<512x128xbf16>
    %124 = tpu.concatenate %91, %95, %100, %104, %105, %109, %114, %118, %123 in 1 : vector<512x128xbf16>, vector<512x128xbf16>, vector<512x128xbf16>, vector<512x128xbf16>, vector<512x128xbf16>, vector<512x128xbf16>, vector<512x128xbf16>, vector<512x128xbf16>, vector<512x128xbf16> -> vector<512x1152xbf16>
    %c0_43 = arith.constant 0 : index
    %c0_44 = arith.constant 0 : index
    %125 = vector.load %arg3[%c0_43, %c0_44] : memref<1152x128xbf16, #tpu.memory_space<vmem>>, vector<1152x128xbf16>
    %cst_45 = arith.constant dense<0.000000e+00> : vector<512x128xf32>
    %126 = tpu.matmul %124, %125, %cst_45 {dimension_numbers = #tpu.dot_dimension_numbers<[1], [0], [0], [1], [0, 0, 1, 1], [], []>} : vector<512x1152xbf16>, vector<1152x128xbf16>, vector<512x128xf32> -> vector<512x128xf32>
    %c0_46 = arith.constant 0 : index
    %c0_47 = arith.constant 0 : index
    %127 = vector.load %arg5[%c0_46, %c0_47] : memref<1x128xf32, #tpu.memory_space<vmem>>, vector<1x128xf32>
    %128 = vector.broadcast %127 : vector<1x128xf32> to vector<512x128xf32>
    %129 = arith.addf %126, %128 : vector<512x128xf32>
    %130 = arith.addf %129, %0 : vector<512x128xf32>
    %c0_48 = arith.constant 0 : index
    %c0_49 = arith.constant 0 : index
    %131 = vector.load %arg6[%c0_48, %c0_49] : memref<512x128xf32, #tpu.memory_space<vmem>>, vector<512x128xf32>
    tpu.vector_store %arg6[%c0_48, %c0_49], %130 {strides = array<i32>} : memref<512x128xf32, #tpu.memory_space<vmem>>, vector<512x128xf32>,
    return
  }
  func.func @transform_0(%arg0: i32) -> (i32, i32) {
    %c0_i32 = arith.constant 0 : i32
    %c0_i32_0 = arith.constant 0 : i32
    return %arg0, %c0_i32 : i32, i32
  }
  func.func @transform_1(%arg0: i32) -> (i32, i32) {
    %c0_i32 = arith.constant 0 : i32
    %c0_i32_0 = arith.constant 0 : i32
    %c0_i32_1 = arith.constant 0 : i32
    return %c0_i32, %c0_i32_0 : i32, i32
  }
  func.func @transform_2(%arg0: i32) -> (i32, i32) {
    %c0_i32 = arith.constant 0 : i32
    %c0_i32_0 = arith.constant 0 : i32
    %c0_i32_1 = arith.constant 0 : i32
    return %c0_i32, %c0_i32_0 : i32, i32
  }
  func.func @transform_3(%arg0: i32) -> (i32, i32) {
    %c0_i32 = arith.constant 0 : i32
    %c0_i32_0 = arith.constant 0 : i32
    %c0_i32_1 = arith.constant 0 : i32
    return %c0_i32, %c0_i32_0 : i32, i32
  }
  func.func @transform_4(%arg0: i32) -> (i32, i32) {
    %c0_i32 = arith.constant 0 : i32
    %c0_i32_0 = arith.constant 0 : i32
    %c0_i32_1 = arith.constant 0 : i32
    return %c0_i32, %c0_i32_0 : i32, i32
  }
  func.func @transform_5(%arg0: i32) -> (i32, i32) {
    %c0_i32 = arith.constant 0 : i32
    %c0_i32_0 = arith.constant 0 : i32
    return %arg0, %c0_i32 : i32, i32
  }
}

</mosaic_0001>

<llo_original>
// kernel: tpu_custom_call.1
$region0: #{tpu_custom_call.1}
  #allocation0 [shape = 'u32[]', space=smem, size = 0x4, offset = 0x4, fixed_abs, tag = 'smem constant byte address 0x4 - core index']
  #allocation1 [shape = 'u32[144,128]{1,0:T(1,128)}', space=vmem, size = 0x12000, scoped, tag = 'internal scratch']
  %s0 = inlined_call_operand.hbm [shape: f32[512,128], index: 0, kind: input, shape index: {}]
  %s1 = inlined_call_operand.hbm [shape: bf16[1152,128], index: 1, kind: input, shape index: {}]
  %s2 = inlined_call_operand.hbm [shape: bf16[1152,128], index: 2, kind: input, shape index: {}]
  %s3 = inlined_call_operand.vmem [shape: f32[1,128], index: 3, kind: input, shape index: {}]
  %s4 = inlined_call_operand.vmem [shape: f32[1,128], index: 4, kind: input, shape index: {}]
  %s5 = inlined_call_operand.hbm [shape: f32[512,128], index: 5, kind: output, shape index: {}]
  %s6 = sld [smem:[#allocation0]]
  $region42: #{tpu_custom_call.1} parent=0
    _
  %s8 = ssub.s32 1, %s6
  %s9 = scalar_select 0, %s8, %s6
  $region1: #{tpu_custom_call.1} parent=0
    #allocation2 [shape = 'u8[262144]{0}', space=vmem, size = 0x40000, scoped, tag = 'input window, operand 0, single buffered']
    #allocation3 [shape = 's32[1]{0}', space=sflag, size = 0x4, scoped, tag = 'scoped memory for tpu_custom_call.1']
    #allocation4 [shape = 's32[1]{0}', space=sflag, size = 0x4, scoped, tag = 'scoped memory for tpu_custom_call.1']
    #allocation5 [shape = 'u8[294912]{0}', space=vmem, size = 0x48000, scoped, tag = 'input window, operand 1, single buffered']
    #allocation6 [shape = 's32[1]{0}', space=sflag, size = 0x4, scoped, tag = 'scoped memory for tpu_custom_call.1']
    #allocation7 [shape = 'u8[294912]{0}', space=vmem, size = 0x48000, scoped, tag = 'input window, operand 2, single buffered']
    #allocation8 [shape = 'u8[262144]{0}', space=vmem, size = 0x40000, scoped, tag = 'output window, operand 0, single buffered']
    %10 = vsyncpa [#allocation3], 0
    %11 = vsyncpa [#allocation6], 0
    %12 = vsyncpa [#allocation4], 0
    // Predicated region
    $region2: #{tpu_custom_call.1} parent=1 // pred_check
      _
    $region3: #{tpu_custom_call.1} parent=1 // pred_check_branch
      %14 = sbr.rel (0) target = $region5
    $region4: #{tpu_custom_call.1} parent=1 // pred_region
      %s16 = ssub.s32 8192, 8192
      %17 = vsyncadd [#allocation3], %s16
      %s18 = sshll.u32 [#allocation2], 4
      %s19 = int_to_ptr.vmem [resolvable:$true] %s18
      %24 = dma.hbm_to_vmem [thread:$0]  %s0, 8192, %s19, [#allocation3], 128, 128, 8
    $region5: #{tpu_custom_call.1} parent=1 // pred_fallthru
      _
    // Predicated region
    $region6: #{tpu_custom_call.1} parent=1 // pred_check
      _
    $region7: #{tpu_custom_call.1} parent=1 // pred_check_branch
      %26 = sbr.rel (0) target = $region9
    $region8: #{tpu_custom_call.1} parent=1 // pred_region
      %s28 = ssub.s32 9216, 9216
      %29 = vsyncadd [#allocation6], %s28
      %s30 = sshll.u32 [#allocation5], 4
      %s31 = int_to_ptr.vmem [resolvable:$true] %s30
      %36 = dma.hbm_to_vmem [thread:$0]  %s1, 9216, %s31, [#allocation6], 64, 64, 4
    $region9: #{tpu_custom_call.1} parent=1 // pred_fallthru
      _
    // Predicated region
    $region10: #{tpu_custom_call.1} parent=1 // pred_check
      _
    $region11: #{tpu_custom_call.1} parent=1 // pred_check_branch
      %38 = sbr.rel (0) target = $region13
    $region12: #{tpu_custom_call.1} parent=1 // pred_region
      %s40 = ssub.s32 9216, 9216
      %41 = vsyncadd [#allocation6], %s40
      %s42 = sshll.u32 [#allocation7], 4
      %s43 = int_to_ptr.vmem [resolvable:$true] %s42
      %48 = dma.hbm_to_vmem [thread:$0]  %s2, 9216, %s43, [#allocation6], 64, 64, 4
    $region13: #{tpu_custom_call.1} parent=1 // pred_fallthru
      _
    // Predicated region
    $region14: #{tpu_custom_call.1} parent=1 // pred_check
      _
    $region15: #{tpu_custom_call.1} parent=1 // pred_check_branch
      %50 = sbr.rel (0) target = $region17
    $region16: #{tpu_custom_call.1} parent=1 // pred_region
      _
    $region17: #{tpu_custom_call.1} parent=1 // pred_fallthru
      _
    // Predicated region
    $region18: #{tpu_custom_call.1} parent=1 // pred_check
      _
    $region19: #{tpu_custom_call.1} parent=1 // pred_check_branch
      %52 = sbr.rel (0) target = $region21
    $region20: #{tpu_custom_call.1} parent=1 // pred_region
      _
    $region21: #{tpu_custom_call.1} parent=1 // pred_fallthru
      _
    // Predicated region
    $region22: #{tpu_custom_call.1} parent=1 // pred_check
      _
    $region23: #{tpu_custom_call.1} parent=1 // pred_check_branch
      %54 = sbr.rel (0) target = $region25
    $region24: #{tpu_custom_call.1} parent=1 // pred_region
      %55 = dma.done [#allocation3], 8192
    $region25: #{tpu_custom_call.1} parent=1 // pred_fallthru
      _
    // Predicated region
    $region26: #{tpu_custom_call.1} parent=1 // pred_check
      _
    $region27: #{tpu_custom_call.1} parent=1 // pred_check_branch
      %57 = sbr.rel (0) target = $region29
    $region28: #{tpu_custom_call.1} parent=1 // pred_region
      %58 = dma.done [#allocation6], 9216
    $region29: #{tpu_custom_call.1} parent=1 // pred_fallthru
      _
    // Predicated region
    $region30: #{tpu_custom_call.1} parent=1 // pred_check
      _
    $region31: #{tpu_custom_call.1} parent=1 // pred_check_branch
      %60 = sbr.rel (0) target = $region33
    $region32: #{tpu_custom_call.1} parent=1 // pred_region
      %61 = dma.done [#allocation6], 9216
    $region33: #{tpu_custom_call.1} parent=1 // pred_fallthru
      _
    %v63 = vld [vmem:[#allocation2] sm:$0xff]
    %v64 = vld [vmem:[#allocation2 + $0x8] sm:$0xff]
    %v65 = vld [vmem:[#allocation2 + $0x10] sm:$0xff]
    %v66 = vld [vmem:[#allocation2 + $0x18] sm:$0xff]
    %v67 = vld [vmem:[#allocation2 + $0x20] sm:$0xff]
    %v68 = vld [vmem:[#allocation2 + $0x28] sm:$0xff]
    %v69 = vld [vmem:[#allocation2 + $0x30] sm:$0xff]
    %v70 = vld [vmem:[#allocation2 + $0x38] sm:$0xff]
    %v71 = vld [vmem:[#allocation2 + $0x40] sm:$0xff]
    %v72 = vld [vmem:[#allocation2 + $0x48] sm:$0xff]
    %v73 = vld [vmem:[#allocation2 + $0x50] sm:$0xff]
    %v74 = vld [vmem:[#allocation2 + $0x58] sm:$0xff]
    %v75 = vld [vmem:[#allocation2 + $0x60] sm:$0xff]
    %v76 = vld [vmem:[#allocation2 + $0x68] sm:$0xff]
    %v77 = vld [vmem:[#allocation2 + $0x70] sm:$0xff]
    %v78 = vld [vmem:[#allocation2 + $0x78] sm:$0xff]
    %v79 = vld [vmem:[#allocation2 + $0x80] sm:$0xff]
    %v80 = vld [vmem:[#allocation2 + $0x88] sm:$0xff]
    %v81 = vld [vmem:[#allocation2 + $0x90] sm:$0xff]
    %v82 = vld [vmem:[#allocation2 + $0x98] sm:$0xff]
    %v83 = vld [vmem:[#allocation2 + $0xa0] sm:$0xff]
    %v84 = vld [vmem:[#allocation2 + $0xa8] sm:$0xff]
    %v85 = vld [vmem:[#allocation2 + $0xb0] sm:$0xff]
    %v86 = vld [vmem:[#allocation2 + $0xb8] sm:$0xff]
    %v87 = vld [vmem:[#allocation2 + $0xc0] sm:$0xff]
    %v88 = vld [vmem:[#allocation2 + $0xc8] sm:$0xff]
    %v89 = vld [vmem:[#allocation2 + $0xd0] sm:$0xff]
    %v90 = vld [vmem:[#allocation2 + $0xd8] sm:$0xff]
    %v91 = vld [vmem:[#allocation2 + $0xe0] sm:$0xff]
    %v92 = vld [vmem:[#allocation2 + $0xe8] sm:$0xff]
    %v93 = vld [vmem:[#allocation2 + $0xf0] sm:$0xff]
    %v94 = vld [vmem:[#allocation2 + $0xf8] sm:$0xff]
    %v95 = vld [vmem:[#allocation2 + $0x100] sm:$0xff]
    %v96 = vld [vmem:[#allocation2 + $0x108] sm:$0xff]
    %v97 = vld [vmem:[#allocation2 + $0x110] sm:$0xff]
    %v98 = vld [vmem:[#allocation2 + $0x118] sm:$0xff]
    %v99 = vld [vmem:[#allocation2 + $0x120] sm:$0xff]
    %v100 = vld [vmem:[#allocation2 + $0x128] sm:$0xff]
    %v101 = vld [vmem:[#allocation2 + $0x130] sm:$0xff]
    %v102 = vld [vmem:[#allocation2 + $0x138] sm:$0xff]
    %v103 = vld [vmem:[#allocation2 + $0x140] sm:$0xff]
    %v104 = vld [vmem:[#allocation2 + $0x148] sm:$0xff]
    %v105 = vld [vmem:[#allocation2 + $0x150] sm:$0xff]
    %v106 = vld [vmem:[#allocation2 + $0x158] sm:$0xff]
    %v107 = vld [vmem:[#allocation2 + $0x160] sm:$0xff]
    %v108 = vld [vmem:[#allocation2 + $0x168] sm:$0xff]
    %v109 = vld [vmem:[#allocation2 + $0x170] sm:$0xff]
    %v110 = vld [vmem:[#allocation2 + $0x178] sm:$0xff]
    %v111 = vld [vmem:[#allocation2 + $0x180] sm:$0xff]
    %v112 = vld [vmem:[#allocation2 + $0x188] sm:$0xff]
    %v113 = vld [vmem:[#allocation2 + $0x190] sm:$0xff]
    %v114 = vld [vmem:[#allocation2 + $0x198] sm:$0xff]
    %v115 = vld [vmem:[#allocation2 + $0x1a0] sm:$0xff]
    %v116 = vld [vmem:[#allocation2 + $0x1a8] sm:$0xff]
    %v117 = vld [vmem:[#allocation2 + $0x1b0] sm:$0xff]
    %v118 = vld [vmem:[#allocation2 + $0x1b8] sm:$0xff]
    %v119 = vld [vmem:[#allocation2 + $0x1c0] sm:$0xff]
    %v120 = vld [vmem:[#allocation2 + $0x1c8] sm:$0xff]
    %v121 = vld [vmem:[#allocation2 + $0x1d0] sm:$0xff]
    %v122 = vld [vmem:[#allocation2 + $0x1d8] sm:$0xff]
    %v123 = vld [vmem:[#allocation2 + $0x1e0] sm:$0xff]
    %v124 = vld [vmem:[#allocation2 + $0x1e8] sm:$0xff]
    %v125 = vld [vmem:[#allocation2 + $0x1f0] sm:$0xff]
    %v126 = vld [vmem:[#allocation2 + $0x1f8] sm:$0xff]
    %v127 = vlaneseq
    %v128 = vshrl.u32 %v127, 7
    %v129 = vadd.s32 %v128, 8
    %v130 = vadd.s32 %v128, 16
    %v131 = vadd.s32 %v128, 24
    %v132 = vadd.s32 %v128, 32
    %v133 = vadd.s32 %v128, 40
    %v134 = vadd.s32 %v128, 48
    %v135 = vadd.s32 %v128, 56
    %v136 = vadd.s32 %v128, 64
    %v137 = vadd.s32 %v128, 72
    %v138 = vadd.s32 %v128, 80
    %v139 = vadd.s32 %v128, 88
    %v140 = vadd.s32 %v128, 96
    %v141 = vadd.s32 %v128, 104
    %v142 = vadd.s32 %v128, 112
    %v143 = vadd.s32 %v128, 120
    %v144 = vadd.s32 %v128, 128
    %v145 = vadd.s32 %v128, 136
    %v146 = vadd.s32 %v128, 144
    %v147 = vadd.s32 %v128, 152
    %v148 = vadd.s32 %v128, 160
    %v149 = vadd.s32 %v128, 168
    %v150 = vadd.s32 %v128, 176
    %v151 = vadd.s32 %v128, 184
    %v152 = vadd.s32 %v128, 192
    %v153 = vadd.s32 %v128, 200
    %v154 = vadd.s32 %v128, 208
    %v155 = vadd.s32 %v128, 216
    %v156 = vadd.s32 %v128, 224
    %v157 = vadd.s32 %v128, 232
    %v158 = vadd.s32 %v128, 240
    %v159 = vadd.s32 %v128, 248
    %v160 = vadd.s32 %v128, 256
    %v161 = vadd.s32 %v128, 264
    %v162 = vadd.s32 %v128, 272
    %v163 = vadd.s32 %v128, 280
    %v164 = vadd.s32 %v128, 288
    %v165 = vadd.s32 %v128, 296
    %v166 = vadd.s32 %v128, 304
    %v167 = vadd.s32 %v128, 312
    %v168 = vadd.s32 %v128, 320
    %v169 = vadd.s32 %v128, 328
    %v170 = vadd.s32 %v128, 336
    %v171 = vadd.s32 %v128, 344
    %v172 = vadd.s32 %v128, 352
    %v173 = vadd.s32 %v128, 360
    %v174 = vadd.s32 %v128, 368
    %v175 = vadd.s32 %v128, 376
    %v176 = vadd.s32 %v128, 384
    %v177 = vadd.s32 %v128, 392
    %v178 = vadd.s32 %v128, 400
    %v179 = vadd.s32 %v128, 408
    %v180 = vadd.s32 %v128, 416
    %v181 = vadd.s32 %v128, 424
    %v182 = vadd.s32 %v128, 432
    %v183 = vadd.s32 %v128, 440
    %v184 = vadd.s32 %v128, 448
    %v185 = vadd.s32 %v128, 456
    %v186 = vadd.s32 %v128, 464
    %v187 = vadd.s32 %v128, 472
    %v188 = vadd.s32 %v128, 480
    %v189 = vadd.s32 %v128, 488
    %v190 = vadd.s32 %v128, 496
    %v191 = vadd.s32 %v128, 504
    %vm192 = vcmp.lt.s32.totalorder %v128, 0
    %v193 = vsub.s32 0, %v128
    %v194 = vsel %vm192, %v193, %v128
    %v195 = vshrl.u32 %v194, 8
    %v196 = vand.u32 %v194, 255
    %v197 = vsub.s32 0, %v196
    %v198 = vsel %vm192, %v197, %v196
    %vm199 = vcmp.lt.s32.totalorder %v129, 0
    %v200 = vsub.s32 0, %v129
    %v201 = vsel %vm199, %v200, %v129
    %v202 = vshrl.u32 %v201, 8
    %v203 = vand.u32 %v201, 255
    %v204 = vsub.s32 0, %v203
    %v205 = vsel %vm199, %v204, %v203
    %vm206 = vcmp.lt.s32.totalorder %v130, 0
    %v207 = vsub.s32 0, %v130
    %v208 = vsel %vm206, %v207, %v130
    %v209 = vshrl.u32 %v208, 8
    %v210 = vand.u32 %v208, 255
    %v211 = vsub.s32 0, %v210
    %v212 = vsel %vm206, %v211, %v210
    %vm213 = vcmp.lt.s32.totalorder %v131, 0
    %v214 = vsub.s32 0, %v131
    %v215 = vsel %vm213, %v214, %v131
    %v216 = vshrl.u32 %v215, 8
    %v217 = vand.u32 %v215, 255
    %v218 = vsub.s32 0, %v217
    %v219 = vsel %vm213, %v218, %v217
    %vm220 = vcmp.lt.s32.totalorder %v132, 0
    %v221 = vsub.s32 0, %v132
    %v222 = vsel %vm220, %v221, %v132
    %v223 = vshrl.u32 %v222, 8
    %v224 = vand.u32 %v222, 255
    %v225 = vsub.s32 0, %v224
    %v226 = vsel %vm220, %v225, %v224
    %vm227 = vcmp.lt.s32.totalorder %v133, 0
    %v228 = vsub.s32 0, %v133
    %v229 = vsel %vm227, %v228, %v133
    %v230 = vshrl.u32 %v229, 8
    %v231 = vand.u32 %v229, 255
    %v232 = vsub.s32 0, %v231
    %v233 = vsel %vm227, %v232, %v231
    %vm234 = vcmp.lt.s32.totalorder %v134, 0
    %v235 = vsub.s32 0, %v134
    %v236 = vsel %vm234, %v235, %v134
    %v237 = vshrl.u32 %v236, 8
    %v238 = vand.u32 %v236, 255
    %v239 = vsub.s32 0, %v238
    %v240 = vsel %vm234, %v239, %v238
    %vm241 = vcmp.lt.s32.totalorder %v135, 0
    %v242 = vsub.s32 0, %v135
    %v243 = vsel %vm241, %v242, %v135
    %v244 = vshrl.u32 %v243, 8
    %v245 = vand.u32 %v243, 255
    %v246 = vsub.s32 0, %v245
    %v247 = vsel %vm241, %v246, %v245
    %vm248 = vcmp.lt.s32.totalorder %v136, 0
    %v249 = vsub.s32 0, %v136
    %v250 = vsel %vm248, %v249, %v136
    %v251 = vshrl.u32 %v250, 8
    %v252 = vand.u32 %v250, 255
    %v253 = vsub.s32 0, %v252
    %v254 = vsel %vm248, %v253, %v252
    %vm255 = vcmp.lt.s32.totalorder %v137, 0
    %v256 = vsub.s32 0, %v137
    %v257 = vsel %vm255, %v256, %v137
    %v258 = vshrl.u32 %v257, 8
    %v259 = vand.u32 %v257, 255
    %v260 = vsub.s32 0, %v259
    %v261 = vsel %vm255, %v260, %v259
    %vm262 = vcmp.lt.s32.totalorder %v138, 0
    %v263 = vsub.s32 0, %v138
    %v264 = vsel %vm262, %v263, %v138
    %v265 = vshrl.u32 %v264, 8
    %v266 = vand.u32 %v264, 255
    %v267 = vsub.s32 0, %v266
    %v268 = vsel %vm262, %v267, %v266
    %vm269 = vcmp.lt.s32.totalorder %v139, 0
    %v270 = vsub.s32 0, %v139
    %v271 = vsel %vm269, %v270, %v139
    %v272 = vshrl.u32 %v271, 8
    %v273 = vand.u32 %v271, 255
    %v274 = vsub.s32 0, %v273
    %v275 = vsel %vm269, %v274, %v273
    %vm276 = vcmp.lt.s32.totalorder %v140, 0
    %v277 = vsub.s32 0, %v140
    %v278 = vsel %vm276, %v277, %v140
    %v279 = vshrl.u32 %v278, 8
    %v280 = vand.u32 %v278, 255
    %v281 = vsub.s32 0, %v280
    %v282 = vsel %vm276, %v281, %v280
    %vm283 = vcmp.lt.s32.totalorder %v141, 0
    %v284 = vsub.s32 0, %v141
    %v285 = vsel %vm283, %v284, %v141
    %v286 = vshrl.u32 %v285, 8
    %v287 = vand.u32 %v285, 255
    %v288 = vsub.s32 0, %v287
    %v289 = vsel %vm283, %v288, %v287
    %vm290 = vcmp.lt.s32.totalorder %v142, 0
    %v291 = vsub.s32 0, %v142
    %v292 = vsel %vm290, %v291, %v142
    %v293 = vshrl.u32 %v292, 8
    %v294 = vand.u32 %v292, 255
    %v295 = vsub.s32 0, %v294
    %v296 = vsel %vm290, %v295, %v294
    %vm297 = vcmp.lt.s32.totalorder %v143, 0
    %v298 = vsub.s32 0, %v143
    %v299 = vsel %vm297, %v298, %v143
    %v300 = vshrl.u32 %v299, 8
    %v301 = vand.u32 %v299, 255
    %v302 = vsub.s32 0, %v301
    %v303 = vsel %vm297, %v302, %v301
    %vm304 = vcmp.lt.s32.totalorder %v144, 0
    %v305 = vsub.s32 0, %v144
    %v306 = vsel %vm304, %v305, %v144
    %v307 = vshrl.u32 %v306, 8
    %v308 = vand.u32 %v306, 255
    %v309 = vsub.s32 0, %v308
    %v310 = vsel %vm304, %v309, %v308
    %vm311 = vcmp.lt.s32.totalorder %v145, 0
    %v312 = vsub.s32 0, %v145
    %v313 = vsel %vm311, %v312, %v145
    %v314 = vshrl.u32 %v313, 8
    %v315 = vand.u32 %v313, 255
    %v316 = vsub.s32 0, %v315
    %v317 = vsel %vm311, %v316, %v315
    %vm318 = vcmp.lt.s32.totalorder %v146, 0
    %v319 = vsub.s32 0, %v146
    %v320 = vsel %vm318, %v319, %v146
    %v321 = vshrl.u32 %v320, 8
    %v322 = vand.u32 %v320, 255
    %v323 = vsub.s32 0, %v322
    %v324 = vsel %vm318, %v323, %v322
    %vm325 = vcmp.lt.s32.totalorder %v147, 0
    %v326 = vsub.s32 0, %v147
    %v327 = vsel %vm325, %v326, %v147
    %v328 = vshrl.u32 %v327, 8
    %v329 = vand.u32 %v327, 255
    %v330 = vsub.s32 0, %v329
    %v331 = vsel %vm325, %v330, %v329
    %vm332 = vcmp.lt.s32.totalorder %v148, 0
    %v333 = vsub.s32 0, %v148
    %v334 = vsel %vm332, %v333, %v148
    %v335 = vshrl.u32 %v334, 8
    %v336 = vand.u32 %v334, 255
    %v337 = vsub.s32 0, %v336
    %v338 = vsel %vm332, %v337, %v336
    %vm339 = vcmp.lt.s32.totalorder %v149, 0
    %v340 = vsub.s32 0, %v149
    %v341 = vsel %vm339, %v340, %v149
    %v342 = vshrl.u32 %v341, 8
    %v343 = vand.u32 %v341, 255
    %v344 = vsub.s32 0, %v343
    %v345 = vsel %vm339, %v344, %v343
    %vm346 = vcmp.lt.s32.totalorder %v150, 0
    %v347 = vsub.s32 0, %v150
    %v348 = vsel %vm346, %v347, %v150
    %v349 = vshrl.u32 %v348, 8
    %v350 = vand.u32 %v348, 255
    %v351 = vsub.s32 0, %v350
    %v352 = vsel %vm346, %v351, %v350
    %vm353 = vcmp.lt.s32.totalorder %v151, 0
    %v354 = vsub.s32 0, %v151
    %v355 = vsel %vm353, %v354, %v151
    %v356 = vshrl.u32 %v355, 8
    %v357 = vand.u32 %v355, 255
    %v358 = vsub.s32 0, %v357
    %v359 = vsel %vm353, %v358, %v357
    %vm360 = vcmp.lt.s32.totalorder %v152, 0
    %v361 = vsub.s32 0, %v152
    %v362 = vsel %vm360, %v361, %v152
    %v363 = vshrl.u32 %v362, 8
    %v364 = vand.u32 %v362, 255
    %v365 = vsub.s32 0, %v364
    %v366 = vsel %vm360, %v365, %v364
    %vm367 = vcmp.lt.s32.totalorder %v153, 0
    %v368 = vsub.s32 0, %v153
    %v369 = vsel %vm367, %v368, %v153
    %v370 = vshrl.u32 %v369, 8
    %v371 = vand.u32 %v369, 255
    %v372 = vsub.s32 0, %v371
    %v373 = vsel %vm367, %v372, %v371
    %vm374 = vcmp.lt.s32.totalorder %v154, 0
    %v375 = vsub.s32 0, %v154
    %v376 = vsel %vm374, %v375, %v154
    %v377 = vshrl.u32 %v376, 8
    %v378 = vand.u32 %v376, 255
    %v379 = vsub.s32 0, %v378
    %v380 = vsel %vm374, %v379, %v378
    %vm381 = vcmp.lt.s32.totalorder %v155, 0
    %v382 = vsub.s32 0, %v155
    %v383 = vsel %vm381, %v382, %v155
    %v384 = vshrl.u32 %v383, 8
    %v385 = vand.u32 %v383, 255
    %v386 = vsub.s32 0, %v385
    %v387 = vsel %vm381, %v386, %v385
    %vm388 = vcmp.lt.s32.totalorder %v156, 0
    %v389 = vsub.s32 0, %v156
    %v390 = vsel %vm388, %v389, %v156
    %v391 = vshrl.u32 %v390, 8
    %v392 = vand.u32 %v390, 255
    %v393 = vsub.s32 0, %v392
    %v394 = vsel %vm388, %v393, %v392
    %vm395 = vcmp.lt.s32.totalorder %v157, 0
    %v396 = vsub.s32 0, %v157
    %v397 = vsel %vm395, %v396, %v157
    %v398 = vshrl.u32 %v397, 8
    %v399 = vand.u32 %v397, 255
    %v400 = vsub.s32 0, %v399
    %v401 = vsel %vm395, %v400, %v399
    %vm402 = vcmp.lt.s32.totalorder %v158, 0
    %v403 = vsub.s32 0, %v158
    %v404 = vsel %vm402, %v403, %v158
    %v405 = vshrl.u32 %v404, 8
    %v406 = vand.u32 %v404, 255
    %v407 = vsub.s32 0, %v406
    %v408 = vsel %vm402, %v407, %v406
    %vm409 = vcmp.lt.s32.totalorder %v159, 0
    %v410 = vsub.s32 0, %v159
    %v411 = vsel %vm409, %v410, %v159
    %v412 = vshrl.u32 %v411, 8
    %v413 = vand.u32 %v411, 255
    %v414 = vsub.s32 0, %v413
    %v415 = vsel %vm409, %v414, %v413
    %vm416 = vcmp.lt.s32.totalorder %v160, 0
    %v417 = vsub.s32 0, %v160
    %v418 = vsel %vm416, %v417, %v160
    %v419 = vshrl.u32 %v418, 8
    %v420 = vand.u32 %v418, 255
    %v421 = vsub.s32 0, %v420
    %v422 = vsel %vm416, %v421, %v420
    %vm423 = vcmp.lt.s32.totalorder %v161, 0
    %v424 = vsub.s32 0, %v161
    %v425 = vsel %vm423, %v424, %v161
    %v426 = vshrl.u32 %v425, 8
    %v427 = vand.u32 %v425, 255
    %v428 = vsub.s32 0, %v427
    %v429 = vsel %vm423, %v428, %v427
    %vm430 = vcmp.lt.s32.totalorder %v162, 0
    %v431 = vsub.s32 0, %v162
    %v432 = vsel %vm430, %v431, %v162
    %v433 = vshrl.u32 %v432, 8
    %v434 = vand.u32 %v432, 255
    %v435 = vsub.s32 0, %v434
    %v436 = vsel %vm430, %v435, %v434
    %vm437 = vcmp.lt.s32.totalorder %v163, 0
    %v438 = vsub.s32 0, %v163
    %v439 = vsel %vm437, %v438, %v163
    %v440 = vshrl.u32 %v439, 8
    %v441 = vand.u32 %v439, 255
    %v442 = vsub.s32 0, %v441
    %v443 = vsel %vm437, %v442, %v441
    %vm444 = vcmp.lt.s32.totalorder %v164, 0
    %v445 = vsub.s32 0, %v164
    %v446 = vsel %vm444, %v445, %v164
    %v447 = vshrl.u32 %v446, 8
    %v448 = vand.u32 %v446, 255
    %v449 = vsub.s32 0, %v448
    %v450 = vsel %vm444, %v449, %v448
    %vm451 = vcmp.lt.s32.totalorder %v165, 0
    %v452 = vsub.s32 0, %v165
    %v453 = vsel %vm451, %v452, %v165
    %v454 = vshrl.u32 %v453, 8
    %v455 = vand.u32 %v453, 255
    %v456 = vsub.s32 0, %v455
    %v457 = vsel %vm451, %v456, %v455
    %vm458 = vcmp.lt.s32.totalorder %v166, 0
    %v459 = vsub.s32 0, %v166
    %v460 = vsel %vm458, %v459, %v166
    %v461 = vshrl.u32 %v460, 8
    %v462 = vand.u32 %v460, 255
    %v463 = vsub.s32 0, %v462
    %v464 = vsel %vm458, %v463, %v462
    %vm465 = vcmp.lt.s32.totalorder %v167, 0
    %v466 = vsub.s32 0, %v167
    %v467 = vsel %vm465, %v466, %v167
    %v468 = vshrl.u32 %v467, 8
    %v469 = vand.u32 %v467, 255
    %v470 = vsub.s32 0, %v469
    %v471 = vsel %vm465, %v470, %v469
    %vm472 = vcmp.lt.s32.totalorder %v168, 0
    %v473 = vsub.s32 0, %v168
    %v474 = vsel %vm472, %v473, %v168
    %v475 = vshrl.u32 %v474, 8
    %v476 = vand.u32 %v474, 255
    %v477 = vsub.s32 0, %v476
    %v478 = vsel %vm472, %v477, %v476
    %vm479 = vcmp.lt.s32.totalorder %v169, 0
    %v480 = vsub.s32 0, %v169
    %v481 = vsel %vm479, %v480, %v169
    %v482 = vshrl.u32 %v481, 8
    %v483 = vand.u32 %v481, 255
    %v484 = vsub.s32 0, %v483
    %v485 = vsel %vm479, %v484, %v483
    %vm486 = vcmp.lt.s32.totalorder %v170, 0
    %v487 = vsub.s32 0, %v170
    %v488 = vsel %vm486, %v487, %v170
    %v489 = vshrl.u32 %v488, 8
    %v490 = vand.u32 %v488, 255
    %v491 = vsub.s32 0, %v490
    %v492 = vsel %vm486, %v491, %v490
    %vm493 = vcmp.lt.s32.totalorder %v171, 0
    %v494 = vsub.s32 0, %v171
    %v495 = vsel %vm493, %v494, %v171
    %v496 = vshrl.u32 %v495, 8
    %v497 = vand.u32 %v495, 255
    %v498 = vsub.s32 0, %v497
    %v499 = vsel %vm493, %v498, %v497
    %vm500 = vcmp.lt.s32.totalorder %v172, 0
    %v501 = vsub.s32 0, %v172
    %v502 = vsel %vm500, %v501, %v172
    %v503 = vshrl.u32 %v502, 8
    %v504 = vand.u32 %v502, 255
    %v505 = vsub.s32 0, %v504
    %v506 = vsel %vm500, %v505, %v504
    %vm507 = vcmp.lt.s32.totalorder %v173, 0
    %v508 = vsub.s32 0, %v173
    %v509 = vsel %vm507, %v508, %v173
    %v510 = vshrl.u32 %v509, 8
    %v511 = vand.u32 %v509, 255
    %v512 = vsub.s32 0, %v511
    %v513 = vsel %vm507, %v512, %v511
    %vm514 = vcmp.lt.s32.totalorder %v174, 0
    %v515 = vsub.s32 0, %v174
    %v516 = vsel %vm514, %v515, %v174
    %v517 = vshrl.u32 %v516, 8
    %v518 = vand.u32 %v516, 255
    %v519 = vsub.s32 0, %v518
    %v520 = vsel %vm514, %v519, %v518
    %vm521 = vcmp.lt.s32.totalorder %v175, 0
    %v522 = vsub.s32 0, %v175
    %v523 = vsel %vm521, %v522, %v175
    %v524 = vshrl.u32 %v523, 8
    %v525 = vand.u32 %v523, 255
    %v526 = vsub.s32 0, %v525
    %v527 = vsel %vm521, %v526, %v525
    %vm528 = vcmp.lt.s32.totalorder %v176, 0
    %v529 = vsub.s32 0, %v176
    %v530 = vsel %vm528, %v529, %v176
    %v531 = vshrl.u32 %v530, 8
    %v532 = vand.u32 %v530, 255
    %v533 = vsub.s32 0, %v532
    %v534 = vsel %vm528, %v533, %v532
    %vm535 = vcmp.lt.s32.totalorder %v177, 0
    %v536 = vsub.s32 0, %v177
    %v537 = vsel %vm535, %v536, %v177
    %v538 = vshrl.u32 %v537, 8
    %v539 = vand.u32 %v537, 255
    %v540 = vsub.s32 0, %v539
    %v541 = vsel %vm535, %v540, %v539
    %vm542 = vcmp.lt.s32.totalorder %v178, 0
    %v543 = vsub.s32 0, %v178
    %v544 = vsel %vm542, %v543, %v178
    %v545 = vshrl.u32 %v544, 8
    %v546 = vand.u32 %v544, 255
    %v547 = vsub.s32 0, %v546
    %v548 = vsel %vm542, %v547, %v546
    %vm549 = vcmp.lt.s32.totalorder %v179, 0
    %v550 = vsub.s32 0, %v179
    %v551 = vsel %vm549, %v550, %v179
    %v552 = vshrl.u32 %v551, 8
    %v553 = vand.u32 %v551, 255
    %v554 = vsub.s32 0, %v553
    %v555 = vsel %vm549, %v554, %v553
    %vm556 = vcmp.lt.s32.totalorder %v180, 0
    %v557 = vsub.s32 0, %v180
    %v558 = vsel %vm556, %v557, %v180
    %v559 = vshrl.u32 %v558, 8
    %v560 = vand.u32 %v558, 255
    %v561 = vsub.s32 0, %v560
    %v562 = vsel %vm556, %v561, %v560
    %vm563 = vcmp.lt.s32.totalorder %v181, 0
    %v564 = vsub.s32 0, %v181
    %v565 = vsel %vm563, %v564, %v181
    %v566 = vshrl.u32 %v565, 8
    %v567 = vand.u32 %v565, 255
    %v568 = vsub.s32 0, %v567
    %v569 = vsel %vm563, %v568, %v567
    %vm570 = vcmp.lt.s32.totalorder %v182, 0
    %v571 = vsub.s32 0, %v182
    %v572 = vsel %vm570, %v571, %v182
    %v573 = vshrl.u32 %v572, 8
    %v574 = vand.u32 %v572, 255
    %v575 = vsub.s32 0, %v574
    %v576 = vsel %vm570, %v575, %v574
    %vm577 = vcmp.lt.s32.totalorder %v183, 0
    %v578 = vsub.s32 0, %v183
    %v579 = vsel %vm577, %v578, %v183
    %v580 = vshrl.u32 %v579, 8
    %v581 = vand.u32 %v579, 255
    %v582 = vsub.s32 0, %v581
    %v583 = vsel %vm577, %v582, %v581
    %vm584 = vcmp.lt.s32.totalorder %v184, 0
    %v585 = vsub.s32 0, %v184
    %v586 = vsel %vm584, %v585, %v184
    %v587 = vshrl.u32 %v586, 8
    %v588 = vand.u32 %v586, 255
    %v589 = vsub.s32 0, %v588
    %v590 = vsel %vm584, %v589, %v588
    %vm591 = vcmp.lt.s32.totalorder %v185, 0
    %v592 = vsub.s32 0, %v185
    %v593 = vsel %vm591, %v592, %v185
    %v594 = vshrl.u32 %v593, 8
    %v595 = vand.u32 %v593, 255
    %v596 = vsub.s32 0, %v595
    %v597 = vsel %vm591, %v596, %v595
    %vm598 = vcmp.lt.s32.totalorder %v186, 0
    %v599 = vsub.s32 0, %v186
    %v600 = vsel %vm598, %v599, %v186
    %v601 = vshrl.u32 %v600, 8
    %v602 = vand.u32 %v600, 255
    %v603 = vsub.s32 0, %v602
    %v604 = vsel %vm598, %v603, %v602
    %vm605 = vcmp.lt.s32.totalorder %v187, 0
    %v606 = vsub.s32 0, %v187
    %v607 = vsel %vm605, %v606, %v187
    %v608 = vshrl.u32 %v607, 8
    %v609 = vand.u32 %v607, 255
    %v610 = vsub.s32 0, %v609
    %v611 = vsel %vm605, %v610, %v609
    %vm612 = vcmp.lt.s32.totalorder %v188, 0
    %v613 = vsub.s32 0, %v188
    %v614 = vsel %vm612, %v613, %v188
    %v615 = vshrl.u32 %v614, 8
    %v616 = vand.u32 %v614, 255
    %v617 = vsub.s32 0, %v616
    %v618 = vsel %vm612, %v617, %v616
    %vm619 = vcmp.lt.s32.totalorder %v189, 0
    %v620 = vsub.s32 0, %v189
    %v621 = vsel %vm619, %v620, %v189
    %v622 = vshrl.u32 %v621, 8
    %v623 = vand.u32 %v621, 255
    %v624 = vsub.s32 0, %v623
    %v625 = vsel %vm619, %v624, %v623
    %vm626 = vcmp.lt.s32.totalorder %v190, 0
    %v627 = vsub.s32 0, %v190
    %v628 = vsel %vm626, %v627, %v190
    %v629 = vshrl.u32 %v628, 8
    %v630 = vand.u32 %v628, 255
    %v631 = vsub.s32 0, %v630
    %v632 = vsel %vm626, %v631, %v630
    %vm633 = vcmp.lt.s32.totalorder %v191, 0
    %v634 = vsub.s32 0, %v191
    %v635 = vsel %vm633, %v634, %v191
    %v636 = vshrl.u32 %v635, 8
    %v637 = vand.u32 %v635, 255
    %v638 = vsub.s32 0, %v637
    %v639 = vsel %vm633, %v638, %v637
    %vm640 = vcmp.ne.s32.totalorder %v198, 0
    %vm641 = vcmp.ne.s32.totalorder %v205, 0
    %vm642 = vcmp.ne.s32.totalorder %v212, 0
    %vm643 = vcmp.ne.s32.totalorder %v219, 0
    %vm644 = vcmp.ne.s32.totalorder %v226, 0
    %vm645 = vcmp.ne.s32.totalorder %v233, 0
    %vm646 = vcmp.ne.s32.totalorder %v240, 0
    %vm647 = vcmp.ne.s32.totalorder %v247, 0
    %vm648 = vcmp.ne.s32.totalorder %v254, 0
    %vm649 = vcmp.ne.s32.totalorder %v261, 0
    %vm650 = vcmp.ne.s32.totalorder %v268, 0
    %vm651 = vcmp.ne.s32.totalorder %v275, 0
    %vm652 = vcmp.ne.s32.totalorder %v282, 0
    %vm653 = vcmp.ne.s32.totalorder %v289, 0
    %vm654 = vcmp.ne.s32.totalorder %v296, 0
    %vm655 = vcmp.ne.s32.totalorder %v303, 0
    %vm656 = vcmp.ne.s32.totalorder %v310, 0
    %vm657 = vcmp.ne.s32.totalorder %v317, 0
    %vm658 = vcmp.ne.s32.totalorder %v324, 0
    %vm659 = vcmp.ne.s32.totalorder %v331, 0
    %vm660 = vcmp.ne.s32.totalorder %v338, 0
    %vm661 = vcmp.ne.s32.totalorder %v345, 0
    %vm662 = vcmp.ne.s32.totalorder %v352, 0
    %vm663 = vcmp.ne.s32.totalorder %v359, 0
    %vm664 = vcmp.ne.s32.totalorder %v366, 0
    %vm665 = vcmp.ne.s32.totalorder %v373, 0
    %vm666 = vcmp.ne.s32.totalorder %v380, 0
    %vm667 = vcmp.ne.s32.totalorder %v387, 0
    %vm668 = vcmp.ne.s32.totalorder %v394, 0
    %vm669 = vcmp.ne.s32.totalorder %v401, 0
    %vm670 = vcmp.ne.s32.totalorder %v408, 0
    %vm671 = vcmp.ne.s32.totalorder %v415, 0
    %vm672 = vcmp.ne.s32.totalorder %v422, 0
    %vm673 = vcmp.ne.s32.totalorder %v429, 0
    %vm674 = vcmp.ne.s32.totalorder %v436, 0
    %vm675 = vcmp.ne.s32.totalorder %v443, 0
    %vm676 = vcmp.ne.s32.totalorder %v450, 0
    %vm677 = vcmp.ne.s32.totalorder %v457, 0
    %vm678 = vcmp.ne.s32.totalorder %v464, 0
    %vm679 = vcmp.ne.s32.totalorder %v471, 0
    %vm680 = vcmp.ne.s32.totalorder %v478, 0
    %vm681 = vcmp.ne.s32.totalorder %v485, 0
    %vm682 = vcmp.ne.s32.totalorder %v492, 0
    %vm683 = vcmp.ne.s32.totalorder %v499, 0
    %vm684 = vcmp.ne.s32.totalorder %v506, 0
    %vm685 = vcmp.ne.s32.totalorder %v513, 0
    %vm686 = vcmp.ne.s32.totalorder %v520, 0
    %vm687 = vcmp.ne.s32.totalorder %v527, 0
    %vm688 = vcmp.ne.s32.totalorder %v534, 0
    %vm689 = vcmp.ne.s32.totalorder %v541, 0
    %vm690 = vcmp.ne.s32.totalorder %v548, 0
    %vm691 = vcmp.ne.s32.totalorder %v555, 0
    %vm692 = vcmp.ne.s32.totalorder %v562, 0
    %vm693 = vcmp.ne.s32.totalorder %v569, 0
    %vm694 = vcmp.ne.s32.totalorder %v576, 0
    %vm695 = vcmp.ne.s32.totalorder %v583, 0
    %vm696 = vcmp.ne.s32.totalorder %v590, 0
    %vm697 = vcmp.ne.s32.totalorder %v597, 0
    %vm698 = vcmp.ne.s32.totalorder %v604, 0
    %vm699 = vcmp.ne.s32.totalorder %v611, 0
    %vm700 = vcmp.ne.s32.totalorder %v618, 0
    %vm701 = vcmp.ne.s32.totalorder %v625, 0
    %vm702 = vcmp.ne.s32.totalorder %v632, 0
    %vm703 = vcmp.ne.s32.totalorder %v639, 0
    %vm704 = vcmp.lt.s32.totalorder %v198, 0
    %vm705 = vcmp.lt.s32.totalorder %v205, 0
    %vm706 = vcmp.lt.s32.totalorder %v212, 0
    %vm707 = vcmp.lt.s32.totalorder %v219, 0
    %vm708 = vcmp.lt.s32.totalorder %v226, 0
    %vm709 = vcmp.lt.s32.totalorder %v233, 0
    %vm710 = vcmp.lt.s32.totalorder %v240, 0
    %vm711 = vcmp.lt.s32.totalorder %v247, 0
    %vm712 = vcmp.lt.s32.totalorder %v254, 0
    %vm713 = vcmp.lt.s32.totalorder %v261, 0
    %vm714 = vcmp.lt.s32.totalorder %v268, 0
    %vm715 = vcmp.lt.s32.totalorder %v275, 0
    %vm716 = vcmp.lt.s32.totalorder %v282, 0
    %vm717 = vcmp.lt.s32.totalorder %v289, 0
    %vm718 = vcmp.lt.s32.totalorder %v296, 0
    %vm719 = vcmp.lt.s32.totalorder %v303, 0
    %vm720 = vcmp.lt.s32.totalorder %v310, 0
    %vm721 = vcmp.lt.s32.totalorder %v317, 0
    %vm722 = vcmp.lt.s32.totalorder %v324, 0
    %vm723 = vcmp.lt.s32.totalorder %v331, 0
    %vm724 = vcmp.lt.s32.totalorder %v338, 0
    %vm725 = vcmp.lt.s32.totalorder %v345, 0
    %vm726 = vcmp.lt.s32.totalorder %v352, 0
    %vm727 = vcmp.lt.s32.totalorder %v359, 0
    %vm728 = vcmp.lt.s32.totalorder %v366, 0
    %vm729 = vcmp.lt.s32.totalorder %v373, 0
    %vm730 = vcmp.lt.s32.totalorder %v380, 0
    %vm731 = vcmp.lt.s32.totalorder %v387, 0
    %vm732 = vcmp.lt.s32.totalorder %v394, 0
    %vm733 = vcmp.lt.s32.totalorder %v401, 0
    %vm734 = vcmp.lt.s32.totalorder %v408, 0
    %vm735 = vcmp.lt.s32.totalorder %v415, 0
    %vm736 = vcmp.lt.s32.totalorder %v422, 0
    %vm737 = vcmp.lt.s32.totalorder %v429, 0
    %vm738 = vcmp.lt.s32.totalorder %v436, 0
    %vm739 = vcmp.lt.s32.totalorder %v443, 0
    %vm740 = vcmp.lt.s32.totalorder %v450, 0
    %vm741 = vcmp.lt.s32.totalorder %v457, 0
    %vm742 = vcmp.lt.s32.totalorder %v464, 0
    %vm743 = vcmp.lt.s32.totalorder %v471, 0
    %vm744 = vcmp.lt.s32.totalorder %v478, 0
    %vm745 = vcmp.lt.s32.totalorder %v485, 0
    %vm746 = vcmp.lt.s32.totalorder %v492, 0
    %vm747 = vcmp.lt.s32.totalorder %v499, 0
    %vm748 = vcmp.lt.s32.totalorder %v506, 0
    %vm749 = vcmp.lt.s32.totalorder %v513, 0
    %vm750 = vcmp.lt.s32.totalorder %v520, 0
    %vm751 = vcmp.lt.s32.totalorder %v527, 0
    %vm752 = vcmp.lt.s32.totalorder %v534, 0
    %vm753 = vcmp.lt.s32.totalorder %v541, 0
    %vm754 = vcmp.lt.s32.totalorder %v548, 0
    %vm755 = vcmp.lt.s32.totalorder %v555, 0
    %vm756 = vcmp.lt.s32.totalorder %v562, 0
    %vm757 = vcmp.lt.s32.totalorder %v569, 0
    %vm758 = vcmp.lt.s32.totalorder %v576, 0
    %vm759 = vcmp.lt.s32.totalorder %v583, 0
    %vm760 = vcmp.lt.s32.totalorder %v590, 0
    %vm761 = vcmp.lt.s32.totalorder %v597, 0
    %vm762 = vcmp.lt.s32.totalorder %v604, 0
    %vm763 = vcmp.lt.s32.totalorder %v611, 0
    %vm764 = vcmp.lt.s32.totalorder %v618, 0
    %vm765 = vcmp.lt.s32.totalorder %v625, 0
    %vm766 = vcmp.lt.s32.totalorder %v632, 0
    %vm767 = vcmp.lt.s32.totalorder %v639, 0
    %vm768 = vmand %vm704, %vm640
    %vm769 = vmand %vm705, %vm641
    %vm770 = vmand %vm706, %vm642
    %vm771 = vmand %vm707, %vm643
    %vm772 = vmand %vm708, %vm644
    %vm773 = vmand %vm709, %vm645
    %vm774 = vmand %vm710, %vm646
    %vm775 = vmand %vm711, %vm647
    %vm776 = vmand %vm712, %vm648
    %vm777 = vmand %vm713, %vm649
    %vm778 = vmand %vm714, %vm650
    %vm779 = vmand %vm715, %vm651
    %vm780 = vmand %vm716, %vm652
    %vm781 = vmand %vm717, %vm653
    %vm782 = vmand %vm718, %vm654
    %vm783 = vmand %vm719, %vm655
    %vm784 = vmand %vm720, %vm656
    %vm785 = vmand %vm721, %vm657
    %vm786 = vmand %vm722, %vm658
    %vm787 = vmand %vm723, %vm659
    %vm788 = vmand %vm724, %vm660
    %vm789 = vmand %vm725, %vm661
    %vm790 = vmand %vm726, %vm662
    %vm791 = vmand %vm727, %vm663
    %vm792 = vmand %vm728, %vm664
    %vm793 = vmand %vm729, %vm665
    %vm794 = vmand %vm730, %vm666
    %vm795 = vmand %vm731, %vm667
    %vm796 = vmand %vm732, %vm668
    %vm797 = vmand %vm733, %vm669
    %vm798 = vmand %vm734, %vm670
    %vm799 = vmand %vm735, %vm671
    %vm800 = vmand %vm736, %vm672
    %vm801 = vmand %vm737, %vm673
    %vm802 = vmand %vm738, %vm674
    %vm803 = vmand %vm739, %vm675
    %vm804 = vmand %vm740, %vm676
    %vm805 = vmand %vm741, %vm677
    %vm806 = vmand %vm742, %vm678
    %vm807 = vmand %vm743, %vm679
    %vm808 = vmand %vm744, %vm680
    %vm809 = vmand %vm745, %vm681
    %vm810 = vmand %vm746, %vm682
    %vm811 = vmand %vm747, %vm683
    %vm812 = vmand %vm748, %vm684
    %vm813 = vmand %vm749, %vm685
    %vm814 = vmand %vm750, %vm686
    %vm815 = vmand %vm751, %vm687
    %vm816 = vmand %vm752, %vm688
    %vm817 = vmand %vm753, %vm689
    %vm818 = vmand %vm754, %vm690
    %vm819 = vmand %vm755, %vm691
    %vm820 = vmand %vm756, %vm692
    %vm821 = vmand %vm757, %vm693
    %vm822 = vmand %vm758, %vm694
    %vm823 = vmand %vm759, %vm695
    %vm824 = vmand %vm760, %vm696
    %vm825 = vmand %vm761, %vm697
    %vm826 = vmand %vm762, %vm698
    %vm827 = vmand %vm763, %vm699
    %vm828 = vmand %vm764, %vm700
    %vm829 = vmand %vm765, %vm701
    %vm830 = vmand %vm766, %vm702
    %vm831 = vmand %vm767, %vm703
    %v832 = vadd.s32 %v198, 256
    %v833 = vadd.s32 %v205, 256
    %v834 = vadd.s32 %v212, 256
    %v835 = vadd.s32 %v219, 256
    %v836 = vadd.s32 %v226, 256
    %v837 = vadd.s32 %v233, 256
    %v838 = vadd.s32 %v240, 256
    %v839 = vadd.s32 %v247, 256
    %v840 = vadd.s32 %v254, 256
    %v841 = vadd.s32 %v261, 256
    %v842 = vadd.s32 %v268, 256
    %v843 = vadd.s32 %v275, 256
    %v844 = vadd.s32 %v282, 256
    %v845 = vadd.s32 %v289, 256
    %v846 = vadd.s32 %v296, 256
    %v847 = vadd.s32 %v303, 256
    %v848 = vadd.s32 %v310, 256
    %v849 = vadd.s32 %v317, 256
    %v850 = vadd.s32 %v324, 256
    %v851 = vadd.s32 %v331, 256
    %v852 = vadd.s32 %v338, 256
    %v853 = vadd.s32 %v345, 256
    %v854 = vadd.s32 %v352, 256
    %v855 = vadd.s32 %v359, 256
    %v856 = vadd.s32 %v366, 256
    %v857 = vadd.s32 %v373, 256
    %v858 = vadd.s32 %v380, 256
    %v859 = vadd.s32 %v387, 256
    %v860 = vadd.s32 %v394, 256
    %v861 = vadd.s32 %v401, 256
    %v862 = vadd.s32 %v408, 256
    %v863 = vadd.s32 %v415, 256
    %v864 = vadd.s32 %v422, 256
    %v865 = vadd.s32 %v429, 256
    %v866 = vadd.s32 %v436, 256
    %v867 = vadd.s32 %v443, 256
    %v868 = vadd.s32 %v450, 256
    %v869 = vadd.s32 %v457, 256
    %v870 = vadd.s32 %v464, 256
    %v871 = vadd.s32 %v471, 256
    %v872 = vadd.s32 %v478, 256
    %v873 = vadd.s32 %v485, 256
    %v874 = vadd.s32 %v492, 256
    %v875 = vadd.s32 %v499, 256
    %v876 = vadd.s32 %v506, 256
    %v877 = vadd.s32 %v513, 256
    %v878 = vadd.s32 %v520, 256
    %v879 = vadd.s32 %v527, 256
    %v880 = vadd.s32 %v534, 256
    %v881 = vadd.s32 %v541, 256
    %v882 = vadd.s32 %v548, 256
    %v883 = vadd.s32 %v555, 256
    %v884 = vadd.s32 %v562, 256
    %v885 = vadd.s32 %v569, 256
    %v886 = vadd.s32 %v576, 256
    %v887 = vadd.s32 %v583, 256
    %v888 = vadd.s32 %v590, 256
    %v889 = vadd.s32 %v597, 256
    %v890 = vadd.s32 %v604, 256
    %v891 = vadd.s32 %v611, 256
    %v892 = vadd.s32 %v618, 256
    %v893 = vadd.s32 %v625, 256
    %v894 = vadd.s32 %v632, 256
    %v895 = vadd.s32 %v639, 256
    %v896 = vsel %vm768, %v832, %v198
    %v897 = vsel %vm769, %v833, %v205
    %v898 = vsel %vm770, %v834, %v212
    %v899 = vsel %vm771, %v835, %v219
    %v900 = vsel %vm772, %v836, %v226
    %v901 = vsel %vm773, %v837, %v233
    %v902 = vsel %vm774, %v838, %v240
    %v903 = vsel %vm775, %v839, %v247
    %v904 = vsel %vm776, %v840, %v254
    %v905 = vsel %vm777, %v841, %v261
    %v906 = vsel %vm778, %v842, %v268
    %v907 = vsel %vm779, %v843, %v275
    %v908 = vsel %vm780, %v844, %v282
    %v909 = vsel %vm781, %v845, %v289
    %v910 = vsel %vm782, %v846, %v296
    %v911 = vsel %vm783, %v847, %v303
    %v912 = vsel %vm784, %v848, %v310
    %v913 = vsel %vm785, %v849, %v317
    %v914 = vsel %vm786, %v850, %v324
    %v915 = vsel %vm787, %v851, %v331
    %v916 = vsel %vm788, %v852, %v338
    %v917 = vsel %vm789, %v853, %v345
    %v918 = vsel %vm790, %v854, %v352
    %v919 = vsel %vm791, %v855, %v359
    %v920 = vsel %vm792, %v856, %v366
    %v921 = vsel %vm793, %v857, %v373
    %v922 = vsel %vm794, %v858, %v380
    %v923 = vsel %vm795, %v859, %v387
    %v924 = vsel %vm796, %v860, %v394
    %v925 = vsel %vm797, %v861, %v401
    %v926 = vsel %vm798, %v862, %v408
    %v927 = vsel %vm799, %v863, %v415
    %v928 = vsel %vm800, %v864, %v422
    %v929 = vsel %vm801, %v865, %v429
    %v930 = vsel %vm802, %v866, %v436
    %v931 = vsel %vm803, %v867, %v443
    %v932 = vsel %vm804, %v868, %v450
    %v933 = vsel %vm805, %v869, %v457
    %v934 = vsel %vm806, %v870, %v464
    %v935 = vsel %vm807, %v871, %v471
    %v936 = vsel %vm808, %v872, %v478
    %v937 = vsel %vm809, %v873, %v485
    %v938 = vsel %vm810, %v874, %v492
    %v939 = vsel %vm811, %v875, %v499
    %v940 = vsel %vm812, %v876, %v506
    %v941 = vsel %vm813, %v877, %v513
    %v942 = vsel %vm814, %v878, %v520
    %v943 = vsel %vm815, %v879, %v527
    %v944 = vsel %vm816, %v880, %v534
    %v945 = vsel %vm817, %v881, %v541
    %v946 = vsel %vm818, %v882, %v548
    %v947 = vsel %vm819, %v883, %v555
    %v948 = vsel %vm820, %v884, %v562
    %v949 = vsel %vm821, %v885, %v569
    %v950 = vsel %vm822, %v886, %v576
    %v951 = vsel %vm823, %v887, %v583
    %v952 = vsel %vm824, %v888, %v590
    %v953 = vsel %vm825, %v889, %v597
    %v954 = vsel %vm826, %v890, %v604
    %v955 = vsel %vm827, %v891, %v611
    %v956 = vsel %vm828, %v892, %v618
    %v957 = vsel %vm829, %v893, %v625
    %v958 = vsel %vm830, %v894, %v632
    %v959 = vsel %vm831, %v895, %v639
    %vm960 = vcmp.lt.s32.totalorder %v128, 0
    %v961 = vsub.s32 0, %v128
    %v962 = vsel %vm960, %v961, %v128
    %v963 = vshrl.u32 %v962, 4
    %v964 = vand.u32 %v962, 15
    %v965 = vsub.s32 0, %v964
    %v966 = vsel %vm960, %v965, %v964
    %vm967 = vcmp.lt.s32.totalorder %v129, 0
    %v968 = vsub.s32 0, %v129
    %v969 = vsel %vm967, %v968, %v129
    %v970 = vshrl.u32 %v969, 4
    %v971 = vand.u32 %v969, 15
    %v972 = vsub.s32 0, %v971
    %v973 = vsel %vm967, %v972, %v971
    %vm974 = vcmp.lt.s32.totalorder %v130, 0
    %v975 = vsub.s32 0, %v130
    %v976 = vsel %vm974, %v975, %v130
    %v977 = vshrl.u32 %v976, 4
    %v978 = vand.u32 %v976, 15
    %v979 = vsub.s32 0, %v978
    %v980 = vsel %vm974, %v979, %v978
    %vm981 = vcmp.lt.s32.totalorder %v131, 0
    %v982 = vsub.s32 0, %v131
    %v983 = vsel %vm981, %v982, %v131
    %v984 = vshrl.u32 %v983, 4
    %v985 = vand.u32 %v983, 15
    %v986 = vsub.s32 0, %v985
    %v987 = vsel %vm981, %v986, %v985
    %vm988 = vcmp.lt.s32.totalorder %v132, 0
    %v989 = vsub.s32 0, %v132
    %v990 = vsel %vm988, %v989, %v132
    %v991 = vshrl.u32 %v990, 4
    %v992 = vand.u32 %v990, 15
    %v993 = vsub.s32 0, %v992
    %v994 = vsel %vm988, %v993, %v992
    %vm995 = vcmp.lt.s32.totalorder %v133, 0
    %v996 = vsub.s32 0, %v133
    %v997 = vsel %vm995, %v996, %v133
    %v998 = vshrl.u32 %v997, 4
    %v999 = vand.u32 %v997, 15
    %v1000 = vsub.s32 0, %v999
    %v1001 = vsel %vm995, %v1000, %v999
    %vm1002 = vcmp.lt.s32.totalorder %v134, 0
    %v1003 = vsub.s32 0, %v134
    %v1004 = vsel %vm1002, %v1003, %v134
    %v1005 = vshrl.u32 %v1004, 4
    %v1006 = vand.u32 %v1004, 15
    %v1007 = vsub.s32 0, %v1006
    %v1008 = vsel %vm1002, %v1007, %v1006
    %vm1009 = vcmp.lt.s32.totalorder %v135, 0
    %v1010 = vsub.s32 0, %v135
    %v1011 = vsel %vm1009, %v1010, %v135
    %v1012 = vshrl.u32 %v1011, 4
    %v1013 = vand.u32 %v1011, 15
    %v1014 = vsub.s32 0, %v1013
    %v1015 = vsel %vm1009, %v1014, %v1013
    %vm1016 = vcmp.lt.s32.totalorder %v136, 0
    %v1017 = vsub.s32 0, %v136
    %v1018 = vsel %vm1016, %v1017, %v136
    %v1019 = vshrl.u32 %v1018, 4
    %v1020 = vand.u32 %v1018, 15
    %v1021 = vsub.s32 0, %v1020
    %v1022 = vsel %vm1016, %v1021, %v1020
    %vm1023 = vcmp.lt.s32.totalorder %v137, 0
    %v1024 = vsub.s32 0, %v137
    %v1025 = vsel %vm1023, %v1024, %v137
    %v1026 = vshrl.u32 %v1025, 4
    %v1027 = vand.u32 %v1025, 15
    %v1028 = vsub.s32 0, %v1027
    %v1029 = vsel %vm1023, %v1028, %v1027
    %vm1030 = vcmp.lt.s32.totalorder %v138, 0
    %v1031 = vsub.s32 0, %v138
    %v1032 = vsel %vm1030, %v1031, %v138
    %v1033 = vshrl.u32 %v1032, 4
    %v1034 = vand.u32 %v1032, 15
    %v1035 = vsub.s32 0, %v1034
    %v1036 = vsel %vm1030, %v1035, %v1034
    %vm1037 = vcmp.lt.s32.totalorder %v139, 0
    %v1038 = vsub.s32 0, %v139
    %v1039 = vsel %vm1037, %v1038, %v139
    %v1040 = vshrl.u32 %v1039, 4
    %v1041 = vand.u32 %v1039, 15
    %v1042 = vsub.s32 0, %v1041
    %v1043 = vsel %vm1037, %v1042, %v1041
    %vm1044 = vcmp.lt.s32.totalorder %v140, 0
    %v1045 = vsub.s32 0, %v140
    %v1046 = vsel %vm1044, %v1045, %v140
    %v1047 = vshrl.u32 %v1046, 4
    %v1048 = vand.u32 %v1046, 15
    %v1049 = vsub.s32 0, %v1048
    %v1050 = vsel %vm1044, %v1049, %v1048
    %vm1051 = vcmp.lt.s32.totalorder %v141, 0
    %v1052 = vsub.s32 0, %v141
    %v1053 = vsel %vm1051, %v1052, %v141
    %v1054 = vshrl.u32 %v1053, 4
    %v1055 = vand.u32 %v1053, 15
    %v1056 = vsub.s32 0, %v1055
    %v1057 = vsel %vm1051, %v1056, %v1055
    %vm1058 = vcmp.lt.s32.totalorder %v142, 0
    %v1059 = vsub.s32 0, %v142
    %v1060 = vsel %vm1058, %v1059, %v142
    %v1061 = vshrl.u32 %v1060, 4
    %v1062 = vand.u32 %v1060, 15
    %v1063 = vsub.s32 0, %v1062
    %v1064 = vsel %vm1058, %v1063, %v1062
    %vm1065 = vcmp.lt.s32.totalorder %v143, 0
    %v1066 = vsub.s32 0, %v143
    %v1067 = vsel %vm1065, %v1066, %v143
    %v1068 = vshrl.u32 %v1067, 4
    %v1069 = vand.u32 %v1067, 15
    %v1070 = vsub.s32 0, %v1069
    %v1071 = vsel %vm1065, %v1070, %v1069
    %vm1072 = vcmp.lt.s32.totalorder %v144, 0
    %v1073 = vsub.s32 0, %v144
    %v1074 = vsel %vm1072, %v1073, %v144
    %v1075 = vshrl.u32 %v1074, 4
    %v1076 = vand.u32 %v1074, 15
    %v1077 = vsub.s32 0, %v1076
    %v1078 = vsel %vm1072, %v1077, %v1076
    %vm1079 = vcmp.lt.s32.totalorder %v145, 0
    %v1080 = vsub.s32 0, %v145
    %v1081 = vsel %vm1079, %v1080, %v145
    %v1082 = vshrl.u32 %v1081, 4
    %v1083 = vand.u32 %v1081, 15
    %v1084 = vsub.s32 0, %v1083
    %v1085 = vsel %vm1079, %v1084, %v1083
    %vm1086 = vcmp.lt.s32.totalorder %v146, 0
    %v1087 = vsub.s32 0, %v146
    %v1088 = vsel %vm1086, %v1087, %v146
    %v1089 = vshrl.u32 %v1088, 4
    %v1090 = vand.u32 %v1088, 15
    %v1091 = vsub.s32 0, %v1090
    %v1092 = vsel %vm1086, %v1091, %v1090
    %vm1093 = vcmp.lt.s32.totalorder %v147, 0
    %v1094 = vsub.s32 0, %v147
    %v1095 = vsel %vm1093, %v1094, %v147
    %v1096 = vshrl.u32 %v1095, 4
    %v1097 = vand.u32 %v1095, 15
    %v1098 = vsub.s32 0, %v1097
    %v1099 = vsel %vm1093, %v1098, %v1097
    %vm1100 = vcmp.lt.s32.totalorder %v148, 0
    %v1101 = vsub.s32 0, %v148
    %v1102 = vsel %vm1100, %v1101, %v148
    %v1103 = vshrl.u32 %v1102, 4
    %v1104 = vand.u32 %v1102, 15
    %v1105 = vsub.s32 0, %v1104
    %v1106 = vsel %vm1100, %v1105, %v1104
    %vm1107 = vcmp.lt.s32.totalorder %v149, 0
    %v1108 = vsub.s32 0, %v149
    %v1109 = vsel %vm1107, %v1108, %v149
    %v1110 = vshrl.u32 %v1109, 4
    %v1111 = vand.u32 %v1109, 15
    %v1112 = vsub.s32 0, %v1111
    %v1113 = vsel %vm1107, %v1112, %v1111
    %vm1114 = vcmp.lt.s32.totalorder %v150, 0
    %v1115 = vsub.s32 0, %v150
    %v1116 = vsel %vm1114, %v1115, %v150
    %v1117 = vshrl.u32 %v1116, 4
    %v1118 = vand.u32 %v1116, 15
    %v1119 = vsub.s32 0, %v1118
    %v1120 = vsel %vm1114, %v1119, %v1118
    %vm1121 = vcmp.lt.s32.totalorder %v151, 0
    %v1122 = vsub.s32 0, %v151
    %v1123 = vsel %vm1121, %v1122, %v151
    %v1124 = vshrl.u32 %v1123, 4
    %v1125 = vand.u32 %v1123, 15
    %v1126 = vsub.s32 0, %v1125
    %v1127 = vsel %vm1121, %v1126, %v1125
    %vm1128 = vcmp.lt.s32.totalorder %v152, 0
    %v1129 = vsub.s32 0, %v152
    %v1130 = vsel %vm1128, %v1129, %v152
    %v1131 = vshrl.u32 %v1130, 4
    %v1132 = vand.u32 %v1130, 15
    %v1133 = vsub.s32 0, %v1132
    %v1134 = vsel %vm1128, %v1133, %v1132
    %vm1135 = vcmp.lt.s32.totalorder %v153, 0
    %v1136 = vsub.s32 0, %v153
    %v1137 = vsel %vm1135, %v1136, %v153
    %v1138 = vshrl.u32 %v1137, 4
    %v1139 = vand.u32 %v1137, 15
    %v1140 = vsub.s32 0, %v1139
    %v1141 = vsel %vm1135, %v1140, %v1139
    %vm1142 = vcmp.lt.s32.totalorder %v154, 0
    %v1143 = vsub.s32 0, %v154
    %v1144 = vsel %vm1142, %v1143, %v154
    %v1145 = vshrl.u32 %v1144, 4
    %v1146 = vand.u32 %v1144, 15
    %v1147 = vsub.s32 0, %v1146
    %v1148 = vsel %vm1142, %v1147, %v1146
    %vm1149 = vcmp.lt.s32.totalorder %v155, 0
    %v1150 = vsub.s32 0, %v155
    %v1151 = vsel %vm1149, %v1150, %v155
    %v1152 = vshrl.u32 %v1151, 4
    %v1153 = vand.u32 %v1151, 15
    %v1154 = vsub.s32 0, %v1153
    %v1155 = vsel %vm1149, %v1154, %v1153
    %vm1156 = vcmp.lt.s32.totalorder %v156, 0
    %v1157 = vsub.s32 0, %v156
    %v1158 = vsel %vm1156, %v1157, %v156
    %v1159 = vshrl.u32 %v1158, 4
    %v1160 = vand.u32 %v1158, 15
    %v1161 = vsub.s32 0, %v1160
    %v1162 = vsel %vm1156, %v1161, %v1160
    %vm1163 = vcmp.lt.s32.totalorder %v157, 0
    %v1164 = vsub.s32 0, %v157
    %v1165 = vsel %vm1163, %v1164, %v157
    %v1166 = vshrl.u32 %v1165, 4
    %v1167 = vand.u32 %v1165, 15
    %v1168 = vsub.s32 0, %v1167
    %v1169 = vsel %vm1163, %v1168, %v1167
    %vm1170 = vcmp.lt.s32.totalorder %v158, 0
    %v1171 = vsub.s32 0, %v158
    %v1172 = vsel %vm1170, %v1171, %v158
    %v1173 = vshrl.u32 %v1172, 4
    %v1174 = vand.u32 %v1172, 15
    %v1175 = vsub.s32 0, %v1174
    %v1176 = vsel %vm1170, %v1175, %v1174
    %vm1177 = vcmp.lt.s32.totalorder %v159, 0
    %v1178 = vsub.s32 0, %v159
    %v1179 = vsel %vm1177, %v1178, %v159
    %v1180 = vshrl.u32 %v1179, 4
    %v1181 = vand.u32 %v1179, 15
    %v1182 = vsub.s32 0, %v1181
    %v1183 = vsel %vm1177, %v1182, %v1181
    %vm1184 = vcmp.lt.s32.totalorder %v160, 0
    %v1185 = vsub.s32 0, %v160
    %v1186 = vsel %vm1184, %v1185, %v160
    %v1187 = vshrl.u32 %v1186, 4
    %v1188 = vand.u32 %v1186, 15
    %v1189 = vsub.s32 0, %v1188
    %v1190 = vsel %vm1184, %v1189, %v1188
    %vm1191 = vcmp.lt.s32.totalorder %v161, 0
    %v1192 = vsub.s32 0, %v161
    %v1193 = vsel %vm1191, %v1192, %v161
    %v1194 = vshrl.u32 %v1193, 4
    %v1195 = vand.u32 %v1193, 15
    %v1196 = vsub.s32 0, %v1195
    %v1197 = vsel %vm1191, %v1196, %v1195
    %vm1198 = vcmp.lt.s32.totalorder %v162, 0
    %v1199 = vsub.s32 0, %v162
    %v1200 = vsel %vm1198, %v1199, %v162
    %v1201 = vshrl.u32 %v1200, 4
    %v1202 = vand.u32 %v1200, 15
    %v1203 = vsub.s32 0, %v1202
    %v1204 = vsel %vm1198, %v1203, %v1202
    %vm1205 = vcmp.lt.s32.totalorder %v163, 0
    %v1206 = vsub.s32 0, %v163
    %v1207 = vsel %vm1205, %v1206, %v163
    %v1208 = vshrl.u32 %v1207, 4
    %v1209 = vand.u32 %v1207, 15
    %v1210 = vsub.s32 0, %v1209
    %v1211 = vsel %vm1205, %v1210, %v1209
    %vm1212 = vcmp.lt.s32.totalorder %v164, 0
    %v1213 = vsub.s32 0, %v164
    %v1214 = vsel %vm1212, %v1213, %v164
    %v1215 = vshrl.u32 %v1214, 4
    %v1216 = vand.u32 %v1214, 15
    %v1217 = vsub.s32 0, %v1216
    %v1218 = vsel %vm1212, %v1217, %v1216
    %vm1219 = vcmp.lt.s32.totalorder %v165, 0
    %v1220 = vsub.s32 0, %v165
    %v1221 = vsel %vm1219, %v1220, %v165
    %v1222 = vshrl.u32 %v1221, 4
    %v1223 = vand.u32 %v1221, 15
    %v1224 = vsub.s32 0, %v1223
    %v1225 = vsel %vm1219, %v1224, %v1223
    %vm1226 = vcmp.lt.s32.totalorder %v166, 0
    %v1227 = vsub.s32 0, %v166
    %v1228 = vsel %vm1226, %v1227, %v166
    %v1229 = vshrl.u32 %v1228, 4
    %v1230 = vand.u32 %v1228, 15
    %v1231 = vsub.s32 0, %v1230
    %v1232 = vsel %vm1226, %v1231, %v1230
    %vm1233 = vcmp.lt.s32.totalorder %v167, 0
    %v1234 = vsub.s32 0, %v167
    %v1235 = vsel %vm1233, %v1234, %v167
    %v1236 = vshrl.u32 %v1235, 4
    %v1237 = vand.u32 %v1235, 15
    %v1238 = vsub.s32 0, %v1237
    %v1239 = vsel %vm1233, %v1238, %v1237
    %vm1240 = vcmp.lt.s32.totalorder %v168, 0
    %v1241 = vsub.s32 0, %v168
    %v1242 = vsel %vm1240, %v1241, %v168
    %v1243 = vshrl.u32 %v1242, 4
    %v1244 = vand.u32 %v1242, 15
    %v1245 = vsub.s32 0, %v1244
    %v1246 = vsel %vm1240, %v1245, %v1244
    %vm1247 = vcmp.lt.s32.totalorder %v169, 0
    %v1248 = vsub.s32 0, %v169
    %v1249 = vsel %vm1247, %v1248, %v169
    %v1250 = vshrl.u32 %v1249, 4
    %v1251 = vand.u32 %v1249, 15
    %v1252 = vsub.s32 0, %v1251
    %v1253 = vsel %vm1247, %v1252, %v1251
    %vm1254 = vcmp.lt.s32.totalorder %v170, 0
    %v1255 = vsub.s32 0, %v170
    %v1256 = vsel %vm1254, %v1255, %v170
    %v1257 = vshrl.u32 %v1256, 4
    %v1258 = vand.u32 %v1256, 15
    %v1259 = vsub.s32 0, %v1258
    %v1260 = vsel %vm1254, %v1259, %v1258
    %vm1261 = vcmp.lt.s32.totalorder %v171, 0
    %v1262 = vsub.s32 0, %v171
    %v1263 = vsel %vm1261, %v1262, %v171
    %v1264 = vshrl.u32 %v1263, 4
    %v1265 = vand.u32 %v1263, 15
    %v1266 = vsub.s32 0, %v1265
    %v1267 = vsel %vm1261, %v1266, %v1265
    %vm1268 = vcmp.lt.s32.totalorder %v172, 0
    %v1269 = vsub.s32 0, %v172
    %v1270 = vsel %vm1268, %v1269, %v172
    %v1271 = vshrl.u32 %v1270, 4
    %v1272 = vand.u32 %v1270, 15
    %v1273 = vsub.s32 0, %v1272
    %v1274 = vsel %vm1268, %v1273, %v1272
    %vm1275 = vcmp.lt.s32.totalorder %v173, 0
    %v1276 = vsub.s32 0, %v173
    %v1277 = vsel %vm1275, %v1276, %v173
    %v1278 = vshrl.u32 %v1277, 4
    %v1279 = vand.u32 %v1277, 15
    %v1280 = vsub.s32 0, %v1279
    %v1281 = vsel %vm1275, %v1280, %v1279
    %vm1282 = vcmp.lt.s32.totalorder %v174, 0
    %v1283 = vsub.s32 0, %v174
    %v1284 = vsel %vm1282, %v1283, %v174
    %v1285 = vshrl.u32 %v1284, 4
    %v1286 = vand.u32 %v1284, 15
    %v1287 = vsub.s32 0, %v1286
    %v1288 = vsel %vm1282, %v1287, %v1286
    %vm1289 = vcmp.lt.s32.totalorder %v175, 0
    %v1290 = vsub.s32 0, %v175
    %v1291 = vsel %vm1289, %v1290, %v175
    %v1292 = vshrl.u32 %v1291, 4
    %v1293 = vand.u32 %v1291, 15
    %v1294 = vsub.s32 0, %v1293
    %v1295 = vsel %vm1289, %v1294, %v1293
    %vm1296 = vcmp.lt.s32.totalorder %v176, 0
    %v1297 = vsub.s32 0, %v176
    %v1298 = vsel %vm1296, %v1297, %v176
    %v1299 = vshrl.u32 %v1298, 4
    %v1300 = vand.u32 %v1298, 15
    %v1301 = vsub.s32 0, %v1300
    %v1302 = vsel %vm1296, %v1301, %v1300
    %vm1303 = vcmp.lt.s32.totalorder %v177, 0
    %v1304 = vsub.s32 0, %v177
    %v1305 = vsel %vm1303, %v1304, %v177
    %v1306 = vshrl.u32 %v1305, 4
    %v1307 = vand.u32 %v1305, 15
    %v1308 = vsub.s32 0, %v1307
    %v1309 = vsel %vm1303, %v1308, %v1307
    %vm1310 = vcmp.lt.s32.totalorder %v178, 0
    %v1311 = vsub.s32 0, %v178
    %v1312 = vsel %vm1310, %v1311, %v178
    %v1313 = vshrl.u32 %v1312, 4
    %v1314 = vand.u32 %v1312, 15
    %v1315 = vsub.s32 0, %v1314
    %v1316 = vsel %vm1310, %v1315, %v1314
    %vm1317 = vcmp.lt.s32.totalorder %v179, 0
    %v1318 = vsub.s32 0, %v179
    %v1319 = vsel %vm1317, %v1318, %v179
    %v1320 = vshrl.u32 %v1319, 4
    %v1321 = vand.u32 %v1319, 15
    %v1322 = vsub.s32 0, %v1321
    %v1323 = vsel %vm1317, %v1322, %v1321
    %vm1324 = vcmp.lt.s32.totalorder %v180, 0
    %v1325 = vsub.s32 0, %v180
    %v1326 = vsel %vm1324, %v1325, %v180
    %v1327 = vshrl.u32 %v1326, 4
    %v1328 = vand.u32 %v1326, 15
    %v1329 = vsub.s32 0, %v1328
    %v1330 = vsel %vm1324, %v1329, %v1328
    %vm1331 = vcmp.lt.s32.totalorder %v181, 0
    %v1332 = vsub.s32 0, %v181
    %v1333 = vsel %vm1331, %v1332, %v181
    %v1334 = vshrl.u32 %v1333, 4
    %v1335 = vand.u32 %v1333, 15
    %v1336 = vsub.s32 0, %v1335
    %v1337 = vsel %vm1331, %v1336, %v1335
    %vm1338 = vcmp.lt.s32.totalorder %v182, 0
    %v1339 = vsub.s32 0, %v182
    %v1340 = vsel %vm1338, %v1339, %v182
    %v1341 = vshrl.u32 %v1340, 4
    %v1342 = vand.u32 %v1340, 15
    %v1343 = vsub.s32 0, %v1342
    %v1344 = vsel %vm1338, %v1343, %v1342
    %vm1345 = vcmp.lt.s32.totalorder %v183, 0
    %v1346 = vsub.s32 0, %v183
    %v1347 = vsel %vm1345, %v1346, %v183
    %v1348 = vshrl.u32 %v1347, 4
    %v1349 = vand.u32 %v1347, 15
    %v1350 = vsub.s32 0, %v1349
    %v1351 = vsel %vm1345, %v1350, %v1349
    %vm1352 = vcmp.lt.s32.totalorder %v184, 0
    %v1353 = vsub.s32 0, %v184
    %v1354 = vsel %vm1352, %v1353, %v184
    %v1355 = vshrl.u32 %v1354, 4
    %v1356 = vand.u32 %v1354, 15
    %v1357 = vsub.s32 0, %v1356
    %v1358 = vsel %vm1352, %v1357, %v1356
    %vm1359 = vcmp.lt.s32.totalorder %v185, 0
    %v1360 = vsub.s32 0, %v185
    %v1361 = vsel %vm1359, %v1360, %v185
    %v1362 = vshrl.u32 %v1361, 4
    %v1363 = vand.u32 %v1361, 15
    %v1364 = vsub.s32 0, %v1363
    %v1365 = vsel %vm1359, %v1364, %v1363
    %vm1366 = vcmp.lt.s32.totalorder %v186, 0
    %v1367 = vsub.s32 0, %v186
    %v1368 = vsel %vm1366, %v1367, %v186
    %v1369 = vshrl.u32 %v1368, 4
    %v1370 = vand.u32 %v1368, 15
    %v1371 = vsub.s32 0, %v1370
    %v1372 = vsel %vm1366, %v1371, %v1370
    %vm1373 = vcmp.lt.s32.totalorder %v187, 0
    %v1374 = vsub.s32 0, %v187
    %v1375 = vsel %vm1373, %v1374, %v187
    %v1376 = vshrl.u32 %v1375, 4
    %v1377 = vand.u32 %v1375, 15
    %v1378 = vsub.s32 0, %v1377
    %v1379 = vsel %vm1373, %v1378, %v1377
    %vm1380 = vcmp.lt.s32.totalorder %v188, 0
    %v1381 = vsub.s32 0, %v188
    %v1382 = vsel %vm1380, %v1381, %v188
    %v1383 = vshrl.u32 %v1382, 4
    %v1384 = vand.u32 %v1382, 15
    %v1385 = vsub.s32 0, %v1384
    %v1386 = vsel %vm1380, %v1385, %v1384
    %vm1387 = vcmp.lt.s32.totalorder %v189, 0
    %v1388 = vsub.s32 0, %v189
    %v1389 = vsel %vm1387, %v1388, %v189
    %v1390 = vshrl.u32 %v1389, 4
    %v1391 = vand.u32 %v1389, 15
    %v1392 = vsub.s32 0, %v1391
    %v1393 = vsel %vm1387, %v1392, %v1391
    %vm1394 = vcmp.lt.s32.totalorder %v190, 0
    %v1395 = vsub.s32 0, %v190
    %v1396 = vsel %vm1394, %v1395, %v190
    %v1397 = vshrl.u32 %v1396, 4
    %v1398 = vand.u32 %v1396, 15
    %v1399 = vsub.s32 0, %v1398
    %v1400 = vsel %vm1394, %v1399, %v1398
    %vm1401 = vcmp.lt.s32.totalorder %v191, 0
    %v1402 = vsub.s32 0, %v191
    %v1403 = vsel %vm1401, %v1402, %v191
    %v1404 = vshrl.u32 %v1403, 4
    %v1405 = vand.u32 %v1403, 15
    %v1406 = vsub.s32 0, %v1405
    %v1407 = vsel %vm1401, %v1406, %v1405
    %vm1408 = vcmp.ne.s32.totalorder %v966, 0
    %vm1409 = vcmp.ne.s32.totalorder %v973, 0
    %vm1410 = vcmp.ne.s32.totalorder %v980, 0
    %vm1411 = vcmp.ne.s32.totalorder %v987, 0
    %vm1412 = vcmp.ne.s32.totalorder %v994, 0
    %vm1413 = vcmp.ne.s32.totalorder %v1001, 0
    %vm1414 = vcmp.ne.s32.totalorder %v1008, 0
    %vm1415 = vcmp.ne.s32.totalorder %v1015, 0
    %vm1416 = vcmp.ne.s32.totalorder %v1022, 0
    %vm1417 = vcmp.ne.s32.totalorder %v1029, 0
    %vm1418 = vcmp.ne.s32.totalorder %v1036, 0
    %vm1419 = vcmp.ne.s32.totalorder %v1043, 0
    %vm1420 = vcmp.ne.s32.totalorder %v1050, 0
    %vm1421 = vcmp.ne.s32.totalorder %v1057, 0
    %vm1422 = vcmp.ne.s32.totalorder %v1064, 0
    %vm1423 = vcmp.ne.s32.totalorder %v1071, 0
    %vm1424 = vcmp.ne.s32.totalorder %v1078, 0
    %vm1425 = vcmp.ne.s32.totalorder %v1085, 0
    %vm1426 = vcmp.ne.s32.totalorder %v1092, 0
    %vm1427 = vcmp.ne.s32.totalorder %v1099, 0
    %vm1428 = vcmp.ne.s32.totalorder %v1106, 0
    %vm1429 = vcmp.ne.s32.totalorder %v1113, 0
    %vm1430 = vcmp.ne.s32.totalorder %v1120, 0
    %vm1431 = vcmp.ne.s32.totalorder %v1127, 0
    %vm1432 = vcmp.ne.s32.totalorder %v1134, 0
    %vm1433 = vcmp.ne.s32.totalorder %v1141, 0
    %vm1434 = vcmp.ne.s32.totalorder %v1148, 0
    %vm1435 = vcmp.ne.s32.totalorder %v1155, 0
    %vm1436 = vcmp.ne.s32.totalorder %v1162, 0
    %vm1437 = vcmp.ne.s32.totalorder %v1169, 0
    %vm1438 = vcmp.ne.s32.totalorder %v1176, 0
    %vm1439 = vcmp.ne.s32.totalorder %v1183, 0
    %vm1440 = vcmp.ne.s32.totalorder %v1190, 0
    %vm1441 = vcmp.ne.s32.totalorder %v1197, 0
    %vm1442 = vcmp.ne.s32.totalorder %v1204, 0
    %vm1443 = vcmp.ne.s32.totalorder %v1211, 0
    %vm1444 = vcmp.ne.s32.totalorder %v1218, 0
    %vm1445 = vcmp.ne.s32.totalorder %v1225, 0
    %vm1446 = vcmp.ne.s32.totalorder %v1232, 0
    %vm1447 = vcmp.ne.s32.totalorder %v1239, 0
    %vm1448 = vcmp.ne.s32.totalorder %v1246, 0
    %vm1449 = vcmp.ne.s32.totalorder %v1253, 0
    %vm1450 = vcmp.ne.s32.totalorder %v1260, 0
    %vm1451 = vcmp.ne.s32.totalorder %v1267, 0
    %vm1452 = vcmp.ne.s32.totalorder %v1274, 0
    %vm1453 = vcmp.ne.s32.totalorder %v1281, 0
    %vm1454 = vcmp.ne.s32.totalorder %v1288, 0
    %vm1455 = vcmp.ne.s32.totalorder %v1295, 0
    %vm1456 = vcmp.ne.s32.totalorder %v1302, 0
    %vm1457 = vcmp.ne.s32.totalorder %v1309, 0
    %vm1458 = vcmp.ne.s32.totalorder %v1316, 0
    %vm1459 = vcmp.ne.s32.totalorder %v1323, 0
    %vm1460 = vcmp.ne.s32.totalorder %v1330, 0
    %vm1461 = vcmp.ne.s32.totalorder %v1337, 0
    %vm1462 = vcmp.ne.s32.totalorder %v1344, 0
    %vm1463 = vcmp.ne.s32.totalorder %v1351, 0
    %vm1464 = vcmp.ne.s32.totalorder %v1358, 0
    %vm1465 = vcmp.ne.s32.totalorder %v1365, 0
    %vm1466 = vcmp.ne.s32.totalorder %v1372, 0
    %vm1467 = vcmp.ne.s32.totalorder %v1379, 0
    %vm1468 = vcmp.ne.s32.totalorder %v1386, 0
    %vm1469 = vcmp.ne.s32.totalorder %v1393, 0
    %vm1470 = vcmp.ne.s32.totalorder %v1400, 0
    %vm1471 = vcmp.ne.s32.totalorder %v1407, 0
    %vm1472 = vcmp.lt.s32.totalorder %v966, 0
    %vm1473 = vcmp.lt.s32.totalorder %v973, 0
    %vm1474 = vcmp.lt.s32.totalorder %v980, 0
    %vm1475 = vcmp.lt.s32.totalorder %v987, 0
    %vm1476 = vcmp.lt.s32.totalorder %v994, 0
    %vm1477 = vcmp.lt.s32.totalorder %v1001, 0
    %vm1478 = vcmp.lt.s32.totalorder %v1008, 0
    %vm1479 = vcmp.lt.s32.totalorder %v1015, 0
    %vm1480 = vcmp.lt.s32.totalorder %v1022, 0
    %vm1481 = vcmp.lt.s32.totalorder %v1029, 0
    %vm1482 = vcmp.lt.s32.totalorder %v1036, 0
    %vm1483 = vcmp.lt.s32.totalorder %v1043, 0
    %vm1484 = vcmp.lt.s32.totalorder %v1050, 0
    %vm1485 = vcmp.lt.s32.totalorder %v1057, 0
    %vm1486 = vcmp.lt.s32.totalorder %v1064, 0
    %vm1487 = vcmp.lt.s32.totalorder %v1071, 0
    %vm1488 = vcmp.lt.s32.totalorder %v1078, 0
    %vm1489 = vcmp.lt.s32.totalorder %v1085, 0
    %vm1490 = vcmp.lt.s32.totalorder %v1092, 0
    %vm1491 = vcmp.lt.s32.totalorder %v1099, 0
    %vm1492 = vcmp.lt.s32.totalorder %v1106, 0
    %vm1493 = vcmp.lt.s32.totalorder %v1113, 0
    %vm1494 = vcmp.lt.s32.totalorder %v1120, 0
    %vm1495 = vcmp.lt.s32.totalorder %v1127, 0
    %vm1496 = vcmp.lt.s32.totalorder %v1134, 0
    %vm1497 = vcmp.lt.s32.totalorder %v1141, 0
    %vm1498 = vcmp.lt.s32.totalorder %v1148, 0
    %vm1499 = vcmp.lt.s32.totalorder %v1155, 0
    %vm1500 = vcmp.lt.s32.totalorder %v1162, 0
    %vm1501 = vcmp.lt.s32.totalorder %v1169, 0
    %vm1502 = vcmp.lt.s32.totalorder %v1176, 0
    %vm1503 = vcmp.lt.s32.totalorder %v1183, 0
    %vm1504 = vcmp.lt.s32.totalorder %v1190, 0
    %vm1505 = vcmp.lt.s32.totalorder %v1197, 0
    %vm1506 = vcmp.lt.s32.totalorder %v1204, 0
    %vm1507 = vcmp.lt.s32.totalorder %v1211, 0
    %vm1508 = vcmp.lt.s32.totalorder %v1218, 0
    %vm1509 = vcmp.lt.s32.totalorder %v1225, 0
    %vm1510 = vcmp.lt.s32.totalorder %v1232, 0
    %vm1511 = vcmp.lt.s32.totalorder %v1239, 0
    %vm1512 = vcmp.lt.s32.totalorder %v1246, 0
    %vm1513 = vcmp.lt.s32.totalorder %v1253, 0
    %vm1514 = vcmp.lt.s32.totalorder %v1260, 0
    %vm1515 = vcmp.lt.s32.totalorder %v1267, 0
    %vm1516 = vcmp.lt.s32.totalorder %v1274, 0
    %vm1517 = vcmp.lt.s32.totalorder %v1281, 0
    %vm1518 = vcmp.lt.s32.totalorder %v1288, 0
    %vm1519 = vcmp.lt.s32.totalorder %v1295, 0
    %vm1520 = vcmp.lt.s32.totalorder %v1302, 0
    %vm1521 = vcmp.lt.s32.totalorder %v1309, 0
    %vm1522 = vcmp.lt.s32.totalorder %v1316, 0
    %vm1523 = vcmp.lt.s32.totalorder %v1323, 0
    %vm1524 = vcmp.lt.s32.totalorder %v1330, 0
    %vm1525 = vcmp.lt.s32.totalorder %v1337, 0
    %vm1526 = vcmp.lt.s32.totalorder %v1344, 0
    %vm1527 = vcmp.lt.s32.totalorder %v1351, 0
    %vm1528 = vcmp.lt.s32.totalorder %v1358, 0
    %vm1529 = vcmp.lt.s32.totalorder %v1365, 0
    %vm1530 = vcmp.lt.s32.totalorder %v1372, 0
    %vm1531 = vcmp.lt.s32.totalorder %v1379, 0
    %vm1532 = vcmp.lt.s32.totalorder %v1386, 0
    %vm1533 = vcmp.lt.s32.totalorder %v1393, 0
    %vm1534 = vcmp.lt.s32.totalorder %v1400, 0
    %vm1535 = vcmp.lt.s32.totalorder %v1407, 0
    %vm1536 = vmand %vm1472, %vm1408
    %vm1537 = vmand %vm1473, %vm1409
    %vm1538 = vmand %vm1474, %vm1410
    %vm1539 = vmand %vm1475, %vm1411
    %vm1540 = vmand %vm1476, %vm1412
    %vm1541 = vmand %vm1477, %vm1413
    %vm1542 = vmand %vm1478, %vm1414
    %vm1543 = vmand %vm1479, %vm1415
    %vm1544 = vmand %vm1480, %vm1416
    %vm1545 = vmand %vm1481, %vm1417
    %vm1546 = vmand %vm1482, %vm1418
    %vm1547 = vmand %vm1483, %vm1419
    %vm1548 = vmand %vm1484, %vm1420
    %vm1549 = vmand %vm1485, %vm1421
    %vm1550 = vmand %vm1486, %vm1422
    %vm1551 = vmand %vm1487, %vm1423
    %vm1552 = vmand %vm1488, %vm1424
    %vm1553 = vmand %vm1489, %vm1425
    %vm1554 = vmand %vm1490, %vm1426
    %vm1555 = vmand %vm1491, %vm1427
    %vm1556 = vmand %vm1492, %vm1428
    %vm1557 = vmand %vm1493, %vm1429
    %vm1558 = vmand %vm1494, %vm1430
    %vm1559 = vmand %vm1495, %vm1431
    %vm1560 = vmand %vm1496, %vm1432
    %vm1561 = vmand %vm1497, %vm1433
    %vm1562 = vmand %vm1498, %vm1434
    %vm1563 = vmand %vm1499, %vm1435
    %vm1564 = vmand %vm1500, %vm1436
    %vm1565 = vmand %vm1501, %vm1437
    %vm1566 = vmand %vm1502, %vm1438
    %vm1567 = vmand %vm1503, %vm1439
    %vm1568 = vmand %vm1504, %vm1440
    %vm1569 = vmand %vm1505, %vm1441
    %vm1570 = vmand %vm1506, %vm1442
    %vm1571 = vmand %vm1507, %vm1443
    %vm1572 = vmand %vm1508, %vm1444
    %vm1573 = vmand %vm1509, %vm1445
    %vm1574 = vmand %vm1510, %vm1446
    %vm1575 = vmand %vm1511, %vm1447
    %vm1576 = vmand %vm1512, %vm1448
    %vm1577 = vmand %vm1513, %vm1449
    %vm1578 = vmand %vm1514, %vm1450
    %vm1579 = vmand %vm1515, %vm1451
    %vm1580 = vmand %vm1516, %vm1452
    %vm1581 = vmand %vm1517, %vm1453
    %vm1582 = vmand %vm1518, %vm1454
    %vm1583 = vmand %vm1519, %vm1455
    %vm1584 = vmand %vm1520, %vm1456
    %vm1585 = vmand %vm1521, %vm1457
    %vm1586 = vmand %vm1522, %vm1458
    %vm1587 = vmand %vm1523, %vm1459
    %vm1588 = vmand %vm1524, %vm1460
    %vm1589 = vmand %vm1525, %vm1461
    %vm1590 = vmand %vm1526, %vm1462
    %vm1591 = vmand %vm1527, %vm1463
    %vm1592 = vmand %vm1528, %vm1464
    %vm1593 = vmand %vm1529, %vm1465
    %vm1594 = vmand %vm1530, %vm1466
    %vm1595 = vmand %vm1531, %vm1467
    %vm1596 = vmand %vm1532, %vm1468
    %vm1597 = vmand %vm1533, %vm1469
    %vm1598 = vmand %vm1534, %vm1470
    %vm1599 = vmand %vm1535, %vm1471
    %v1600 = vadd.s32 %v966, 16
    %v1601 = vadd.s32 %v973, 16
    %v1602 = vadd.s32 %v980, 16
    %v1603 = vadd.s32 %v987, 16
    %v1604 = vadd.s32 %v994, 16
    %v1605 = vadd.s32 %v1001, 16
    %v1606 = vadd.s32 %v1008, 16
    %v1607 = vadd.s32 %v1015, 16
    %v1608 = vadd.s32 %v1022, 16
    %v1609 = vadd.s32 %v1029, 16
    %v1610 = vadd.s32 %v1036, 16
    %v1611 = vadd.s32 %v1043, 16
    %v1612 = vadd.s32 %v1050, 16
    %v1613 = vadd.s32 %v1057, 16
    %v1614 = vadd.s32 %v1064, 16
    %v1615 = vadd.s32 %v1071, 16
    %v1616 = vadd.s32 %v1078, 16
    %v1617 = vadd.s32 %v1085, 16
    %v1618 = vadd.s32 %v1092, 16
    %v1619 = vadd.s32 %v1099, 16
    %v1620 = vadd.s32 %v1106, 16
    %v1621 = vadd.s32 %v1113, 16
    %v1622 = vadd.s32 %v1120, 16
    %v1623 = vadd.s32 %v1127, 16
    %v1624 = vadd.s32 %v1134, 16
    %v1625 = vadd.s32 %v1141, 16
    %v1626 = vadd.s32 %v1148, 16
    %v1627 = vadd.s32 %v1155, 16
    %v1628 = vadd.s32 %v1162, 16
    %v1629 = vadd.s32 %v1169, 16
    %v1630 = vadd.s32 %v1176, 16
    %v1631 = vadd.s32 %v1183, 16
    %v1632 = vadd.s32 %v1190, 16
    %v1633 = vadd.s32 %v1197, 16
    %v1634 = vadd.s32 %v1204, 16
    %v1635 = vadd.s32 %v1211, 16
    %v1636 = vadd.s32 %v1218, 16
    %v1637 = vadd.s32 %v1225, 16
    %v1638 = vadd.s32 %v1232, 16
    %v1639 = vadd.s32 %v1239, 16
    %v1640 = vadd.s32 %v1246, 16
    %v1641 = vadd.s32 %v1253, 16
    %v1642 = vadd.s32 %v1260, 16
    %v1643 = vadd.s32 %v1267, 16
    %v1644 = vadd.s32 %v1274, 16
    %v1645 = vadd.s32 %v1281, 16
    %v1646 = vadd.s32 %v1288, 16
    %v1647 = vadd.s32 %v1295, 16
    %v1648 = vadd.s32 %v1302, 16
    %v1649 = vadd.s32 %v1309, 16
    %v1650 = vadd.s32 %v1316, 16
    %v1651 = vadd.s32 %v1323, 16
    %v1652 = vadd.s32 %v1330, 16
    %v1653 = vadd.s32 %v1337, 16
    %v1654 = vadd.s32 %v1344, 16
    %v1655 = vadd.s32 %v1351, 16
    %v1656 = vadd.s32 %v1358, 16
    %v1657 = vadd.s32 %v1365, 16
    %v1658 = vadd.s32 %v1372, 16
    %v1659 = vadd.s32 %v1379, 16
    %v1660 = vadd.s32 %v1386, 16
    %v1661 = vadd.s32 %v1393, 16
    %v1662 = vadd.s32 %v1400, 16
    %v1663 = vadd.s32 %v1407, 16
    %v1664 = vsel %vm1536, %v1600, %v966
    %v1665 = vsel %vm1537, %v1601, %v973
    %v1666 = vsel %vm1538, %v1602, %v980
    %v1667 = vsel %vm1539, %v1603, %v987
    %v1668 = vsel %vm1540, %v1604, %v994
    %v1669 = vsel %vm1541, %v1605, %v1001
    %v1670 = vsel %vm1542, %v1606, %v1008
    %v1671 = vsel %vm1543, %v1607, %v1015
    %v1672 = vsel %vm1544, %v1608, %v1022
    %v1673 = vsel %vm1545, %v1609, %v1029
    %v1674 = vsel %vm1546, %v1610, %v1036
    %v1675 = vsel %vm1547, %v1611, %v1043
    %v1676 = vsel %vm1548, %v1612, %v1050
    %v1677 = vsel %vm1549, %v1613, %v1057
    %v1678 = vsel %vm1550, %v1614, %v1064
    %v1679 = vsel %vm1551, %v1615, %v1071
    %v1680 = vsel %vm1552, %v1616, %v1078
    %v1681 = vsel %vm1553, %v1617, %v1085
    %v1682 = vsel %vm1554, %v1618, %v1092
    %v1683 = vsel %vm1555, %v1619, %v1099
    %v1684 = vsel %vm1556, %v1620, %v1106
    %v1685 = vsel %vm1557, %v1621, %v1113
    %v1686 = vsel %vm1558, %v1622, %v1120
    %v1687 = vsel %vm1559, %v1623, %v1127
    %v1688 = vsel %vm1560, %v1624, %v1134
    %v1689 = vsel %vm1561, %v1625, %v1141
    %v1690 = vsel %vm1562, %v1626, %v1148
    %v1691 = vsel %vm1563, %v1627, %v1155
    %v1692 = vsel %vm1564, %v1628, %v1162
    %v1693 = vsel %vm1565, %v1629, %v1169
    %v1694 = vsel %vm1566, %v1630, %v1176
    %v1695 = vsel %vm1567, %v1631, %v1183
    %v1696 = vsel %vm1568, %v1632, %v1190
    %v1697 = vsel %vm1569, %v1633, %v1197
    %v1698 = vsel %vm1570, %v1634, %v1204
    %v1699 = vsel %vm1571, %v1635, %v1211
    %v1700 = vsel %vm1572, %v1636, %v1218
    %v1701 = vsel %vm1573, %v1637, %v1225
    %v1702 = vsel %vm1574, %v1638, %v1232
    %v1703 = vsel %vm1575, %v1639, %v1239
    %v1704 = vsel %vm1576, %v1640, %v1246
    %v1705 = vsel %vm1577, %v1641, %v1253
    %v1706 = vsel %vm1578, %v1642, %v1260
    %v1707 = vsel %vm1579, %v1643, %v1267
    %v1708 = vsel %vm1580, %v1644, %v1274
    %v1709 = vsel %vm1581, %v1645, %v1281
    %v1710 = vsel %vm1582, %v1646, %v1288
    %v1711 = vsel %vm1583, %v1647, %v1295
    %v1712 = vsel %vm1584, %v1648, %v1302
    %v1713 = vsel %vm1585, %v1649, %v1309
    %v1714 = vsel %vm1586, %v1650, %v1316
    %v1715 = vsel %vm1587, %v1651, %v1323
    %v1716 = vsel %vm1588, %v1652, %v1330
    %v1717 = vsel %vm1589, %v1653, %v1337
    %v1718 = vsel %vm1590, %v1654, %v1344
    %v1719 = vsel %vm1591, %v1655, %v1351
    %v1720 = vsel %vm1592, %v1656, %v1358
    %v1721 = vsel %vm1593, %v1657, %v1365
    %v1722 = vsel %vm1594, %v1658, %v1372
    %v1723 = vsel %vm1595, %v1659, %v1379
    %v1724 = vsel %vm1596, %v1660, %v1386
    %v1725 = vsel %vm1597, %v1661, %v1393
    %v1726 = vsel %vm1598, %v1662, %v1400
    %v1727 = vsel %vm1599, %v1663, %v1407
    %vm1728 = vcmp.ge.s32.totalorder %v896, 16
    %vm1729 = vcmp.ge.s32.totalorder %v897, 16
    %vm1730 = vcmp.ge.s32.totalorder %v898, 16
    %vm1731 = vcmp.ge.s32.totalorder %v899, 16
    %vm1732 = vcmp.ge.s32.totalorder %v900, 16
    %vm1733 = vcmp.ge.s32.totalorder %v901, 16
    %vm1734 = vcmp.ge.s32.totalorder %v902, 16
    %vm1735 = vcmp.ge.s32.totalorder %v903, 16
    %vm1736 = vcmp.ge.s32.totalorder %v904, 16
    %vm1737 = vcmp.ge.s32.totalorder %v905, 16
    %vm1738 = vcmp.ge.s32.totalorder %v906, 16
    %vm1739 = vcmp.ge.s32.totalorder %v907, 16
    %vm1740 = vcmp.ge.s32.totalorder %v908, 16
    %vm1741 = vcmp.ge.s32.totalorder %v909, 16
    %vm1742 = vcmp.ge.s32.totalorder %v910, 16
    %vm1743 = vcmp.ge.s32.totalorder %v911, 16
    %vm1744 = vcmp.ge.s32.totalorder %v912, 16
    %vm1745 = vcmp.ge.s32.totalorder %v913, 16
    %vm1746 = vcmp.ge.s32.totalorder %v914, 16
    %vm1747 = vcmp.ge.s32.totalorder %v915, 16
    %vm1748 = vcmp.ge.s32.totalorder %v916, 16
    %vm1749 = vcmp.ge.s32.totalorder %v917, 16
    %vm1750 = vcmp.ge.s32.totalorder %v918, 16
    %vm1751 = vcmp.ge.s32.totalorder %v919, 16
    %vm1752 = vcmp.ge.s32.totalorder %v920, 16
    %vm1753 = vcmp.ge.s32.totalorder %v921, 16
    %vm1754 = vcmp.ge.s32.totalorder %v922, 16
    %vm1755 = vcmp.ge.s32.totalorder %v923, 16
    %vm1756 = vcmp.ge.s32.totalorder %v924, 16
    %vm1757 = vcmp.ge.s32.totalorder %v925, 16
    %vm1758 = vcmp.ge.s32.totalorder %v926, 16
    %vm1759 = vcmp.ge.s32.totalorder %v927, 16
    %vm1760 = vcmp.ge.s32.totalorder %v928, 16
    %vm1761 = vcmp.ge.s32.totalorder %v929, 16
    %vm1762 = vcmp.ge.s32.totalorder %v930, 16
    %vm1763 = vcmp.ge.s32.totalorder %v931, 16
    %vm1764 = vcmp.ge.s32.totalorder %v932, 16
    %vm1765 = vcmp.ge.s32.totalorder %v933, 16
    %vm1766 = vcmp.ge.s32.totalorder %v934, 16
    %vm1767 = vcmp.ge.s32.totalorder %v935, 16
    %vm1768 = vcmp.ge.s32.totalorder %v936, 16
    %vm1769 = vcmp.ge.s32.totalorder %v937, 16
    %vm1770 = vcmp.ge.s32.totalorder %v938, 16
    %vm1771 = vcmp.ge.s32.totalorder %v939, 16
    %vm1772 = vcmp.ge.s32.totalorder %v940, 16
    %vm1773 = vcmp.ge.s32.totalorder %v941, 16
    %vm1774 = vcmp.ge.s32.totalorder %v942, 16
    %vm1775 = vcmp.ge.s32.totalorder %v943, 16
    %vm1776 = vcmp.ge.s32.totalorder %v944, 16
    %vm1777 = vcmp.ge.s32.totalorder %v945, 16
    %vm1778 = vcmp.ge.s32.totalorder %v946, 16
    %vm1779 = vcmp.ge.s32.totalorder %v947, 16
    %vm1780 = vcmp.ge.s32.totalorder %v948, 16
    %vm1781 = vcmp.ge.s32.totalorder %v949, 16
    %vm1782 = vcmp.ge.s32.totalorder %v950, 16
    %vm1783 = vcmp.ge.s32.totalorder %v951, 16
    %vm1784 = vcmp.ge.s32.totalorder %v952, 16
    %vm1785 = vcmp.ge.s32.totalorder %v953, 16
    %vm1786 = vcmp.ge.s32.totalorder %v954, 16
    %vm1787 = vcmp.ge.s32.totalorder %v955, 16
    %vm1788 = vcmp.ge.s32.totalorder %v956, 16
    %vm1789 = vcmp.ge.s32.totalorder %v957, 16
    %vm1790 = vcmp.ge.s32.totalorder %v958, 16
    %vm1791 = vcmp.ge.s32.totalorder %v959, 16
    %vm1792 = vcmp.lt.s32.totalorder %v896, 240
    %vm1793 = vcmp.lt.s32.totalorder %v897, 240
    %vm1794 = vcmp.lt.s32.totalorder %v898, 240
    %vm1795 = vcmp.lt.s32.totalorder %v899, 240
    %vm1796 = vcmp.lt.s32.totalorder %v900, 240
    %vm1797 = vcmp.lt.s32.totalorder %v901, 240
    %vm1798 = vcmp.lt.s32.totalorder %v902, 240
    %vm1799 = vcmp.lt.s32.totalorder %v903, 240
    %vm1800 = vcmp.lt.s32.totalorder %v904, 240
    %vm1801 = vcmp.lt.s32.totalorder %v905, 240
    %vm1802 = vcmp.lt.s32.totalorder %v906, 240
    %vm1803 = vcmp.lt.s32.totalorder %v907, 240
    %vm1804 = vcmp.lt.s32.totalorder %v908, 240
    %vm1805 = vcmp.lt.s32.totalorder %v909, 240
    %vm1806 = vcmp.lt.s32.totalorder %v910, 240
    %vm1807 = vcmp.lt.s32.totalorder %v911, 240
    %vm1808 = vcmp.lt.s32.totalorder %v912, 240
    %vm1809 = vcmp.lt.s32.totalorder %v913, 240
    %vm1810 = vcmp.lt.s32.totalorder %v914, 240
    %vm1811 = vcmp.lt.s32.totalorder %v915, 240
    %vm1812 = vcmp.lt.s32.totalorder %v916, 240
    %vm1813 = vcmp.lt.s32.totalorder %v917, 240
    %vm1814 = vcmp.lt.s32.totalorder %v918, 240
    %vm1815 = vcmp.lt.s32.totalorder %v919, 240
    %vm1816 = vcmp.lt.s32.totalorder %v920, 240
    %vm1817 = vcmp.lt.s32.totalorder %v921, 240
    %vm1818 = vcmp.lt.s32.totalorder %v922, 240
    %vm1819 = vcmp.lt.s32.totalorder %v923, 240
    %vm1820 = vcmp.lt.s32.totalorder %v924, 240
    %vm1821 = vcmp.lt.s32.totalorder %v925, 240
    %vm1822 = vcmp.lt.s32.totalorder %v926, 240
    %vm1823 = vcmp.lt.s32.totalorder %v927, 240
    %vm1824 = vcmp.lt.s32.totalorder %v928, 240
    %vm1825 = vcmp.lt.s32.totalorder %v929, 240
    %vm1826 = vcmp.lt.s32.totalorder %v930, 240
    %vm1827 = vcmp.lt.s32.totalorder %v931, 240
    %vm1828 = vcmp.lt.s32.totalorder %v932, 240
    %vm1829 = vcmp.lt.s32.totalorder %v933, 240
    %vm1830 = vcmp.lt.s32.totalorder %v934, 240
    %vm1831 = vcmp.lt.s32.totalorder %v935, 240
    %vm1832 = vcmp.lt.s32.totalorder %v936, 240
    %vm1833 = vcmp.lt.s32.totalorder %v937, 240
    %vm1834 = vcmp.lt.s32.totalorder %v938, 240
    %vm1835 = vcmp.lt.s32.totalorder %v939, 240
    %vm1836 = vcmp.lt.s32.totalorder %v940, 240
    %vm1837 = vcmp.lt.s32.totalorder %v941, 240
    %vm1838 = vcmp.lt.s32.totalorder %v942, 240
    %vm1839 = vcmp.lt.s32.totalorder %v943, 240
    %vm1840 = vcmp.lt.s32.totalorder %v944, 240
    %vm1841 = vcmp.lt.s32.totalorder %v945, 240
    %vm1842 = vcmp.lt.s32.totalorder %v946, 240
    %vm1843 = vcmp.lt.s32.totalorder %v947, 240
    %vm1844 = vcmp.lt.s32.totalorder %v948, 240
    %vm1845 = vcmp.lt.s32.totalorder %v949, 240
    %vm1846 = vcmp.lt.s32.totalorder %v950, 240
    %vm1847 = vcmp.lt.s32.totalorder %v951, 240
    %vm1848 = vcmp.lt.s32.totalorder %v952, 240
    %vm1849 = vcmp.lt.s32.totalorder %v953, 240
    %vm1850 = vcmp.lt.s32.totalorder %v954, 240
    %vm1851 = vcmp.lt.s32.totalorder %v955, 240
    %vm1852 = vcmp.lt.s32.totalorder %v956, 240
    %vm1853 = vcmp.lt.s32.totalorder %v957, 240
    %vm1854 = vcmp.lt.s32.totalorder %v958, 240
    %vm1855 = vcmp.lt.s32.totalorder %v959, 240
    %vm1856 = vcmp.ne.s32.totalorder %v1664, 0
    %vm1857 = vcmp.ne.s32.totalorder %v1665, 0
    %vm1858 = vcmp.ne.s32.totalorder %v1666, 0
    %vm1859 = vcmp.ne.s32.totalorder %v1667, 0
    %vm1860 = vcmp.ne.s32.totalorder %v1668, 0
    %vm1861 = vcmp.ne.s32.totalorder %v1669, 0
    %vm1862 = vcmp.ne.s32.totalorder %v1670, 0
    %vm1863 = vcmp.ne.s32.totalorder %v1671, 0
    %vm1864 = vcmp.ne.s32.totalorder %v1672, 0
    %vm1865 = vcmp.ne.s32.totalorder %v1673, 0
    %vm1866 = vcmp.ne.s32.totalorder %v1674, 0
    %vm1867 = vcmp.ne.s32.totalorder %v1675, 0
    %vm1868 = vcmp.ne.s32.totalorder %v1676, 0
    %vm1869 = vcmp.ne.s32.totalorder %v1677, 0
    %vm1870 = vcmp.ne.s32.totalorder %v1678, 0
    %vm1871 = vcmp.ne.s32.totalorder %v1679, 0
    %vm1872 = vcmp.ne.s32.totalorder %v1680, 0
    %vm1873 = vcmp.ne.s32.totalorder %v1681, 0
    %vm1874 = vcmp.ne.s32.totalorder %v1682, 0
    %vm1875 = vcmp.ne.s32.totalorder %v1683, 0
    %vm1876 = vcmp.ne.s32.totalorder %v1684, 0
    %vm1877 = vcmp.ne.s32.totalorder %v1685, 0
    %vm1878 = vcmp.ne.s32.totalorder %v1686, 0
    %vm1879 = vcmp.ne.s32.totalorder %v1687, 0
    %vm1880 = vcmp.ne.s32.totalorder %v1688, 0
    %vm1881 = vcmp.ne.s32.totalorder %v1689, 0
    %vm1882 = vcmp.ne.s32.totalorder %v1690, 0
    %vm1883 = vcmp.ne.s32.totalorder %v1691, 0
    %vm1884 = vcmp.ne.s32.totalorder %v1692, 0
    %vm1885 = vcmp.ne.s32.totalorder %v1693, 0
    %vm1886 = vcmp.ne.s32.totalorder %v1694, 0
    %vm1887 = vcmp.ne.s32.totalorder %v1695, 0
    %vm1888 = vcmp.ne.s32.totalorder %v1696, 0
    %vm1889 = vcmp.ne.s32.totalorder %v1697, 0
    %vm1890 = vcmp.ne.s32.totalorder %v1698, 0
    %vm1891 = vcmp.ne.s32.totalorder %v1699, 0
    %vm1892 = vcmp.ne.s32.totalorder %v1700, 0
    %vm1893 = vcmp.ne.s32.totalorder %v1701, 0
    %vm1894 = vcmp.ne.s32.totalorder %v1702, 0
    %vm1895 = vcmp.ne.s32.totalorder %v1703, 0
    %vm1896 = vcmp.ne.s32.totalorder %v1704, 0
    %vm1897 = vcmp.ne.s32.totalorder %v1705, 0
    %vm1898 = vcmp.ne.s32.totalorder %v1706, 0
    %vm1899 = vcmp.ne.s32.totalorder %v1707, 0
    %vm1900 = vcmp.ne.s32.totalorder %v1708, 0
    %vm1901 = vcmp.ne.s32.totalorder %v1709, 0
    %vm1902 = vcmp.ne.s32.totalorder %v1710, 0
    %vm1903 = vcmp.ne.s32.totalorder %v1711, 0
    %vm1904 = vcmp.ne.s32.totalorder %v1712, 0
    %vm1905 = vcmp.ne.s32.totalorder %v1713, 0
    %vm1906 = vcmp.ne.s32.totalorder %v1714, 0
    %vm1907 = vcmp.ne.s32.totalorder %v1715, 0
    %vm1908 = vcmp.ne.s32.totalorder %v1716, 0
    %vm1909 = vcmp.ne.s32.totalorder %v1717, 0
    %vm1910 = vcmp.ne.s32.totalorder %v1718, 0
    %vm1911 = vcmp.ne.s32.totalorder %v1719, 0
    %vm1912 = vcmp.ne.s32.totalorder %v1720, 0
    %vm1913 = vcmp.ne.s32.totalorder %v1721, 0
    %vm1914 = vcmp.ne.s32.totalorder %v1722, 0
    %vm1915 = vcmp.ne.s32.totalorder %v1723, 0
    %vm1916 = vcmp.ne.s32.totalorder %v1724, 0
    %vm1917 = vcmp.ne.s32.totalorder %v1725, 0
    %vm1918 = vcmp.ne.s32.totalorder %v1726, 0
    %vm1919 = vcmp.ne.s32.totalorder %v1727, 0
    %vm1920 = vcmp.ne.s32.totalorder %v1664, 15
    %vm1921 = vcmp.ne.s32.totalorder %v1665, 15
    %vm1922 = vcmp.ne.s32.totalorder %v1666, 15
    %vm1923 = vcmp.ne.s32.totalorder %v1667, 15
    %vm1924 = vcmp.ne.s32.totalorder %v1668, 15
    %vm1925 = vcmp.ne.s32.totalorder %v1669, 15
    %vm1926 = vcmp.ne.s32.totalorder %v1670, 15
    %vm1927 = vcmp.ne.s32.totalorder %v1671, 15
    %vm1928 = vcmp.ne.s32.totalorder %v1672, 15
    %vm1929 = vcmp.ne.s32.totalorder %v1673, 15
    %vm1930 = vcmp.ne.s32.totalorder %v1674, 15
    %vm1931 = vcmp.ne.s32.totalorder %v1675, 15
    %vm1932 = vcmp.ne.s32.totalorder %v1676, 15
    %vm1933 = vcmp.ne.s32.totalorder %v1677, 15
    %vm1934 = vcmp.ne.s32.totalorder %v1678, 15
    %vm1935 = vcmp.ne.s32.totalorder %v1679, 15
    %vm1936 = vcmp.ne.s32.totalorder %v1680, 15
    %vm1937 = vcmp.ne.s32.totalorder %v1681, 15
    %vm1938 = vcmp.ne.s32.totalorder %v1682, 15
    %vm1939 = vcmp.ne.s32.totalorder %v1683, 15
    %vm1940 = vcmp.ne.s32.totalorder %v1684, 15
    %vm1941 = vcmp.ne.s32.totalorder %v1685, 15
    %vm1942 = vcmp.ne.s32.totalorder %v1686, 15
    %vm1943 = vcmp.ne.s32.totalorder %v1687, 15
    %vm1944 = vcmp.ne.s32.totalorder %v1688, 15
    %vm1945 = vcmp.ne.s32.totalorder %v1689, 15
    %vm1946 = vcmp.ne.s32.totalorder %v1690, 15
    %vm1947 = vcmp.ne.s32.totalorder %v1691, 15
    %vm1948 = vcmp.ne.s32.totalorder %v1692, 15
    %vm1949 = vcmp.ne.s32.totalorder %v1693, 15
    %vm1950 = vcmp.ne.s32.totalorder %v1694, 15
    %vm1951 = vcmp.ne.s32.totalorder %v1695, 15
    %vm1952 = vcmp.ne.s32.totalorder %v1696, 15
    %vm1953 = vcmp.ne.s32.totalorder %v1697, 15
    %vm1954 = vcmp.ne.s32.totalorder %v1698, 15
    %vm1955 = vcmp.ne.s32.totalorder %v1699, 15
    %vm1956 = vcmp.ne.s32.totalorder %v1700, 15
    %vm1957 = vcmp.ne.s32.totalorder %v1701, 15
    %vm1958 = vcmp.ne.s32.totalorder %v1702, 15
    %vm1959 = vcmp.ne.s32.totalorder %v1703, 15
    %vm1960 = vcmp.ne.s32.totalorder %v1704, 15
    %vm1961 = vcmp.ne.s32.totalorder %v1705, 15
    %vm1962 = vcmp.ne.s32.totalorder %v1706, 15
    %vm1963 = vcmp.ne.s32.totalorder %v1707, 15
    %vm1964 = vcmp.ne.s32.totalorder %v1708, 15
    %vm1965 = vcmp.ne.s32.totalorder %v1709, 15
    %vm1966 = vcmp.ne.s32.totalorder %v1710, 15
    %vm1967 = vcmp.ne.s32.totalorder %v1711, 15
    %vm1968 = vcmp.ne.s32.totalorder %v1712, 15
    %vm1969 = vcmp.ne.s32.totalorder %v1713, 15
    %vm1970 = vcmp.ne.s32.totalorder %v1714, 15
    %vm1971 = vcmp.ne.s32.totalorder %v1715, 15
    %vm1972 = vcmp.ne.s32.totalorder %v1716, 15
    %vm1973 = vcmp.ne.s32.totalorder %v1717, 15
    %vm1974 = vcmp.ne.s32.totalorder %v1718, 15
    %vm1975 = vcmp.ne.s32.totalorder %v1719, 15
    %vm1976 = vcmp.ne.s32.totalorder %v1720, 15
    %vm1977 = vcmp.ne.s32.totalorder %v1721, 15
    %vm1978 = vcmp.ne.s32.totalorder %v1722, 15
    %vm1979 = vcmp.ne.s32.totalorder %v1723, 15
    %vm1980 = vcmp.ne.s32.totalorder %v1724, 15
    %vm1981 = vcmp.ne.s32.totalorder %v1725, 15
    %vm1982 = vcmp.ne.s32.totalorder %v1726, 15
    %vm1983 = vcmp.ne.s32.totalorder %v1727, 15
    %v1984 = vrot.slane %v63, 7
    %v1985 = vrot.slane %v64, 7
    %v1986 = vrot.slane %v65, 7
    %v1987 = vrot.slane %v66, 7
    %v1988 = vrot.slane %v67, 7
    %v1989 = vrot.slane %v68, 7
    %v1990 = vrot.slane %v69, 7
    %v1991 = vrot.slane %v70, 7
    %v1992 = vrot.slane %v71, 7
    %v1993 = vrot.slane %v72, 7
    %v1994 = vrot.slane %v73, 7
    %v1995 = vrot.slane %v74, 7
    %v1996 = vrot.slane %v75, 7
    %v1997 = vrot.slane %v76, 7
    %v1998 = vrot.slane %v77, 7
    %v1999 = vrot.slane %v78, 7
    %v2000 = vrot.slane %v79, 7
    %v2001 = vrot.slane %v80, 7
    %v2002 = vrot.slane %v81, 7
    %v2003 = vrot.slane %v82, 7
    %v2004 = vrot.slane %v83, 7
    %v2005 = vrot.slane %v84, 7
    %v2006 = vrot.slane %v85, 7
    %v2007 = vrot.slane %v86, 7
    %v2008 = vrot.slane %v87, 7
    %v2009 = vrot.slane %v88, 7
    %v2010 = vrot.slane %v89, 7
    %v2011 = vrot.slane %v90, 7
    %v2012 = vrot.slane %v91, 7
    %v2013 = vrot.slane %v92, 7
    %v2014 = vrot.slane %v93, 7
    %v2015 = vrot.slane %v94, 7
    %v2016 = vrot.slane %v95, 7
    %v2017 = vrot.slane %v96, 7
    %v2018 = vrot.slane %v97, 7
    %v2019 = vrot.slane %v98, 7
    %v2020 = vrot.slane %v99, 7
    %v2021 = vrot.slane %v100, 7
    %v2022 = vrot.slane %v101, 7
    %v2023 = vrot.slane %v102, 7
    %v2024 = vrot.slane %v103, 7
    %v2025 = vrot.slane %v104, 7
    %v2026 = vrot.slane %v105, 7
    %v2027 = vrot.slane %v106, 7
    %v2028 = vrot.slane %v107, 7
    %v2029 = vrot.slane %v108, 7
    %v2030 = vrot.slane %v109, 7
    %v2031 = vrot.slane %v110, 7
    %v2032 = vrot.slane %v111, 7
    %v2033 = vrot.slane %v112, 7
    %v2034 = vrot.slane %v113, 7
    %v2035 = vrot.slane %v114, 7
    %v2036 = vrot.slane %v115, 7
    %v2037 = vrot.slane %v116, 7
    %v2038 = vrot.slane %v117, 7
    %v2039 = vrot.slane %v118, 7
    %v2040 = vrot.slane %v119, 7
    %v2041 = vrot.slane %v120, 7
    %v2042 = vrot.slane %v121, 7
    %v2043 = vrot.slane %v122, 7
    %v2044 = vrot.slane %v123, 7
    %v2045 = vrot.slane %v124, 7
    %v2046 = vrot.slane %v125, 7
    %v2047 = vrot.slane %v126, 7
    %vm2048 = vcmp.lt.s32.totalorder %v128, 1
    %v2049 = vsel %vm2048, %v2046, %v2047
    %v2050 = vsel %vm2048, %v2045, %v2046
    %v2051 = vsel %vm2048, %v2044, %v2045
    %v2052 = vsel %vm2048, %v2043, %v2044
    %v2053 = vsel %vm2048, %v2042, %v2043
    %v2054 = vsel %vm2048, %v2041, %v2042
    %v2055 = vsel %vm2048, %v2040, %v2041
    %v2056 = vsel %vm2048, %v2039, %v2040
    %v2057 = vsel %vm2048, %v2038, %v2039
    %v2058 = vsel %vm2048, %v2037, %v2038
    %v2059 = vsel %vm2048, %v2036, %v2037
    %v2060 = vsel %vm2048, %v2035, %v2036
    %v2061 = vsel %vm2048, %v2034, %v2035
    %v2062 = vsel %vm2048, %v2033, %v2034
    %v2063 = vsel %vm2048, %v2032, %v2033
    %v2064 = vsel %vm2048, %v2031, %v2032
    %v2065 = vsel %vm2048, %v2030, %v2031
    %v2066 = vsel %vm2048, %v2029, %v2030
    %v2067 = vsel %vm2048, %v2028, %v2029
    %v2068 = vsel %vm2048, %v2027, %v2028
    %v2069 = vsel %vm2048, %v2026, %v2027
    %v2070 = vsel %vm2048, %v2025, %v2026
    %v2071 = vsel %vm2048, %v2024, %v2025
    %v2072 = vsel %vm2048, %v2023, %v2024
    %v2073 = vsel %vm2048, %v2022, %v2023
    %v2074 = vsel %vm2048, %v2021, %v2022
    %v2075 = vsel %vm2048, %v2020, %v2021
    %v2076 = vsel %vm2048, %v2019, %v2020
    %v2077 = vsel %vm2048, %v2018, %v2019
    %v2078 = vsel %vm2048, %v2017, %v2018
    %v2079 = vsel %vm2048, %v2016, %v2017
    %v2080 = vsel %vm2048, %v2015, %v2016
    %v2081 = vsel %vm2048, %v2014, %v2015
    %v2082 = vsel %vm2048, %v2013, %v2014
    %v2083 = vsel %vm2048, %v2012, %v2013
    %v2084 = vsel %vm2048, %v2011, %v2012
    %v2085 = vsel %vm2048, %v2010, %v2011
    %v2086 = vsel %vm2048, %v2009, %v2010
    %v2087 = vsel %vm2048, %v2008, %v2009
    %v2088 = vsel %vm2048, %v2007, %v2008
    %v2089 = vsel %vm2048, %v2006, %v2007
    %v2090 = vsel %vm2048, %v2005, %v2006
    %v2091 = vsel %vm2048, %v2004, %v2005
    %v2092 = vsel %vm2048, %v2003, %v2004
    %v2093 = vsel %vm2048, %v2002, %v2003
    %v2094 = vsel %vm2048, %v2001, %v2002
    %v2095 = vsel %vm2048, %v2000, %v2001
    %v2096 = vsel %vm2048, %v1999, %v2000
    %v2097 = vsel %vm2048, %v1998, %v1999
    %v2098 = vsel %vm2048, %v1997, %v1998
    %v2099 = vsel %vm2048, %v1996, %v1997
    %v2100 = vsel %vm2048, %v1995, %v1996
    %v2101 = vsel %vm2048, %v1994, %v1995
    %v2102 = vsel %vm2048, %v1993, %v1994
    %v2103 = vsel %vm2048, %v1992, %v1993
    %v2104 = vsel %vm2048, %v1991, %v1992
    %v2105 = vsel %vm2048, %v1990, %v1991
    %v2106 = vsel %vm2048, %v1989, %v1990
    %v2107 = vsel %vm2048, %v1988, %v1989
    %v2108 = vsel %vm2048, %v1987, %v1988
    %v2109 = vsel %vm2048, %v1986, %v1987
    %v2110 = vsel %vm2048, %v1985, %v1986
    %v2111 = vsel %vm2048, %v1984, %v1985
    %v2112 = vsel %vm2048, %v2047, %v1984
    %vm2113 = vmand %vm1728, %vm1856
    %vm2114 = vmand %vm1729, %vm1857
    %vm2115 = vmand %vm1730, %vm1858
    %vm2116 = vmand %vm1731, %vm1859
    %vm2117 = vmand %vm1732, %vm1860
    %vm2118 = vmand %vm1733, %vm1861
    %vm2119 = vmand %vm1734, %vm1862
    %vm2120 = vmand %vm1735, %vm1863
    %vm2121 = vmand %vm1736, %vm1864
    %vm2122 = vmand %vm1737, %vm1865
    %vm2123 = vmand %vm1738, %vm1866
    %vm2124 = vmand %vm1739, %vm1867
    %vm2125 = vmand %vm1740, %vm1868
    %vm2126 = vmand %vm1741, %vm1869
    %vm2127 = vmand %vm1742, %vm1870
    %vm2128 = vmand %vm1743, %vm1871
    %vm2129 = vmand %vm1744, %vm1872
    %vm2130 = vmand %vm1745, %vm1873
    %vm2131 = vmand %vm1746, %vm1874
    %vm2132 = vmand %vm1747, %vm1875
    %vm2133 = vmand %vm1748, %vm1876
    %vm2134 = vmand %vm1749, %vm1877
    %vm2135 = vmand %vm1750, %vm1878
    %vm2136 = vmand %vm1751, %vm1879
    %vm2137 = vmand %vm1752, %vm1880
    %vm2138 = vmand %vm1753, %vm1881
    %vm2139 = vmand %vm1754, %vm1882
    %vm2140 = vmand %vm1755, %vm1883
    %vm2141 = vmand %vm1756, %vm1884
    %vm2142 = vmand %vm1757, %vm1885
    %vm2143 = vmand %vm1758, %vm1886
    %vm2144 = vmand %vm1759, %vm1887
    %vm2145 = vmand %vm1760, %vm1888
    %vm2146 = vmand %vm1761, %vm1889
    %vm2147 = vmand %vm1762, %vm1890
    %vm2148 = vmand %vm1763, %vm1891
    %vm2149 = vmand %vm1764, %vm1892
    %vm2150 = vmand %vm1765, %vm1893
    %vm2151 = vmand %vm1766, %vm1894
    %vm2152 = vmand %vm1767, %vm1895
    %vm2153 = vmand %vm1768, %vm1896
    %vm2154 = vmand %vm1769, %vm1897
    %vm2155 = vmand %vm1770, %vm1898
    %vm2156 = vmand %vm1771, %vm1899
    %vm2157 = vmand %vm1772, %vm1900
    %vm2158 = vmand %vm1773, %vm1901
    %vm2159 = vmand %vm1774, %vm1902
    %vm2160 = vmand %vm1775, %vm1903
    %vm2161 = vmand %vm1776, %vm1904
    %vm2162 = vmand %vm1777, %vm1905
    %vm2163 = vmand %vm1778, %vm1906
    %vm2164 = vmand %vm1779, %vm1907
    %vm2165 = vmand %vm1780, %vm1908
    %vm2166 = vmand %vm1781, %vm1909
    %vm2167 = vmand %vm1782, %vm1910
    %vm2168 = vmand %vm1783, %vm1911
    %vm2169 = vmand %vm1784, %vm1912
    %vm2170 = vmand %vm1785, %vm1913
    %vm2171 = vmand %vm1786, %vm1914
    %vm2172 = vmand %vm1787, %vm1915
    %vm2173 = vmand %vm1788, %vm1916
    %vm2174 = vmand %vm1789, %vm1917
    %vm2175 = vmand %vm1790, %vm1918
    %vm2176 = vmand %vm1791, %vm1919
    %v2177 = vsel %vm2113, %v2050, 0.0
    %v2178 = vsel %vm2114, %v2049, 0.0
    %v2179 = vsel %vm2115, %v2112, 0.0
    %v2180 = vsel %vm2116, %v2111, 0.0
    %v2181 = vsel %vm2117, %v2110, 0.0
    %v2182 = vsel %vm2118, %v2109, 0.0
    %v2183 = vsel %vm2119, %v2108, 0.0
    %v2184 = vsel %vm2120, %v2107, 0.0
    %v2185 = vsel %vm2121, %v2106, 0.0
    %v2186 = vsel %vm2122, %v2105, 0.0
    %v2187 = vsel %vm2123, %v2104, 0.0
    %v2188 = vsel %vm2124, %v2103, 0.0
    %v2189 = vsel %vm2125, %v2102, 0.0
    %v2190 = vsel %vm2126, %v2101, 0.0
    %v2191 = vsel %vm2127, %v2100, 0.0
    %v2192 = vsel %vm2128, %v2099, 0.0
    %v2193 = vsel %vm2129, %v2098, 0.0
    %v2194 = vsel %vm2130, %v2097, 0.0
    %v2195 = vsel %vm2131, %v2096, 0.0
    %v2196 = vsel %vm2132, %v2095, 0.0
    %v2197 = vsel %vm2133, %v2094, 0.0
    %v2198 = vsel %vm2134, %v2093, 0.0
    %v2199 = vsel %vm2135, %v2092, 0.0
    %v2200 = vsel %vm2136, %v2091, 0.0
    %v2201 = vsel %vm2137, %v2090, 0.0
    %v2202 = vsel %vm2138, %v2089, 0.0
    %v2203 = vsel %vm2139, %v2088, 0.0
    %v2204 = vsel %vm2140, %v2087, 0.0
    %v2205 = vsel %vm2141, %v2086, 0.0
    %v2206 = vsel %vm2142, %v2085, 0.0
    %v2207 = vsel %vm2143, %v2084, 0.0
    %v2208 = vsel %vm2144, %v2083, 0.0
    %v2209 = vsel %vm2145, %v2082, 0.0
    %v2210 = vsel %vm2146, %v2081, 0.0
    %v2211 = vsel %vm2147, %v2080, 0.0
    %v2212 = vsel %vm2148, %v2079, 0.0
    %v2213 = vsel %vm2149, %v2078, 0.0
    %v2214 = vsel %vm2150, %v2077, 0.0
    %v2215 = vsel %vm2151, %v2076, 0.0
    %v2216 = vsel %vm2152, %v2075, 0.0
    %v2217 = vsel %vm2153, %v2074, 0.0
    %v2218 = vsel %vm2154, %v2073, 0.0
    %v2219 = vsel %vm2155, %v2072, 0.0
    %v2220 = vsel %vm2156, %v2071, 0.0
    %v2221 = vsel %vm2157, %v2070, 0.0
    %v2222 = vsel %vm2158, %v2069, 0.0
    %v2223 = vsel %vm2159, %v2068, 0.0
    %v2224 = vsel %vm2160, %v2067, 0.0
    %v2225 = vsel %vm2161, %v2066, 0.0
    %v2226 = vsel %vm2162, %v2065, 0.0
    %v2227 = vsel %vm2163, %v2064, 0.0
    %v2228 = vsel %vm2164, %v2063, 0.0
    %v2229 = vsel %vm2165, %v2062, 0.0
    %v2230 = vsel %vm2166, %v2061, 0.0
    %v2231 = vsel %vm2167, %v2060, 0.0
    %v2232 = vsel %vm2168, %v2059, 0.0
    %v2233 = vsel %vm2169, %v2058, 0.0
    %v2234 = vsel %vm2170, %v2057, 0.0
    %v2235 = vsel %vm2171, %v2056, 0.0
    %v2236 = vsel %vm2172, %v2055, 0.0
    %v2237 = vsel %vm2173, %v2054, 0.0
    %v2238 = vsel %vm2174, %v2053, 0.0
    %v2239 = vsel %vm2175, %v2052, 0.0
    %v2240 = vsel %vm2176, %v2051, 0.0
    %v2241 = vpack.c.bf16 %v2178, %v2177
    %v2242 = vpack.c.bf16 %v2180, %v2179
    %v2243 = vpack.c.bf16 %v2182, %v2181
    %v2244 = vpack.c.bf16 %v2184, %v2183
    %v2245 = vpack.c.bf16 %v2186, %v2185
    %v2246 = vpack.c.bf16 %v2188, %v2187
    %v2247 = vpack.c.bf16 %v2190, %v2189
    %v2248 = vpack.c.bf16 %v2192, %v2191
    %v2249 = vpack.c.bf16 %v2194, %v2193
    %v2250 = vpack.c.bf16 %v2196, %v2195
    %v2251 = vpack.c.bf16 %v2198, %v2197
    %v2252 = vpack.c.bf16 %v2200, %v2199
    %v2253 = vpack.c.bf16 %v2202, %v2201
    %v2254 = vpack.c.bf16 %v2204, %v2203
    %v2255 = vpack.c.bf16 %v2206, %v2205
    %v2256 = vpack.c.bf16 %v2208, %v2207
    %v2257 = vpack.c.bf16 %v2210, %v2209
    %v2258 = vpack.c.bf16 %v2212, %v2211
    %v2259 = vpack.c.bf16 %v2214, %v2213
    %v2260 = vpack.c.bf16 %v2216, %v2215
    %v2261 = vpack.c.bf16 %v2218, %v2217
    %v2262 = vpack.c.bf16 %v2220, %v2219
    %v2263 = vpack.c.bf16 %v2222, %v2221
    %v2264 = vpack.c.bf16 %v2224, %v2223
    %v2265 = vpack.c.bf16 %v2226, %v2225
    %v2266 = vpack.c.bf16 %v2228, %v2227
    %v2267 = vpack.c.bf16 %v2230, %v2229
    %v2268 = vpack.c.bf16 %v2232, %v2231
    %v2269 = vpack.c.bf16 %v2234, %v2233
    %v2270 = vpack.c.bf16 %v2236, %v2235
    %v2271 = vpack.c.bf16 %v2238, %v2237
    %v2272 = vpack.c.bf16 %v2240, %v2239
    %v2273 = vsel %vm1728, %v125, 0.0
    %v2274 = vsel %vm1729, %v126, 0.0
    %v2275 = vsel %vm1730, %v63, 0.0
    %v2276 = vsel %vm1731, %v64, 0.0
    %v2277 = vsel %vm1732, %v65, 0.0
    %v2278 = vsel %vm1733, %v66, 0.0
    %v2279 = vsel %vm1734, %v67, 0.0
    %v2280 = vsel %vm1735, %v68, 0.0
    %v2281 = vsel %vm1736, %v69, 0.0
    %v2282 = vsel %vm1737, %v70, 0.0
    %v2283 = vsel %vm1738, %v71, 0.0
    %v2284 = vsel %vm1739, %v72, 0.0
    %v2285 = vsel %vm1740, %v73, 0.0
    %v2286 = vsel %vm1741, %v74, 0.0
    %v2287 = vsel %vm1742, %v75, 0.0
    %v2288 = vsel %vm1743, %v76, 0.0
    %v2289 = vsel %vm1744, %v77, 0.0
    %v2290 = vsel %vm1745, %v78, 0.0
    %v2291 = vsel %vm1746, %v79, 0.0
    %v2292 = vsel %vm1747, %v80, 0.0
    %v2293 = vsel %vm1748, %v81, 0.0
    %v2294 = vsel %vm1749, %v82, 0.0
    %v2295 = vsel %vm1750, %v83, 0.0
    %v2296 = vsel %vm1751, %v84, 0.0
    %v2297 = vsel %vm1752, %v85, 0.0
    %v2298 = vsel %vm1753, %v86, 0.0
    %v2299 = vsel %vm1754, %v87, 0.0
    %v2300 = vsel %vm1755, %v88, 0.0
    %v2301 = vsel %vm1756, %v89, 0.0
    %v2302 = vsel %vm1757, %v90, 0.0
    %v2303 = vsel %vm1758, %v91, 0.0
    %v2304 = vsel %vm1759, %v92, 0.0
    %v2305 = vsel %vm1760, %v93, 0.0
    %v2306 = vsel %vm1761, %v94, 0.0
    %v2307 = vsel %vm1762, %v95, 0.0
    %v2308 = vsel %vm1763, %v96, 0.0
    %v2309 = vsel %vm1764, %v97, 0.0
    %v2310 = vsel %vm1765, %v98, 0.0
    %v2311 = vsel %vm1766, %v99, 0.0
    %v2312 = vsel %vm1767, %v100, 0.0
    %v2313 = vsel %vm1768, %v101, 0.0
    %v2314 = vsel %vm1769, %v102, 0.0
    %v2315 = vsel %vm1770, %v103, 0.0
    %v2316 = vsel %vm1771, %v104, 0.0
    %v2317 = vsel %vm1772, %v105, 0.0
    %v2318 = vsel %vm1773, %v106, 0.0
    %v2319 = vsel %vm1774, %v107, 0.0
    %v2320 = vsel %vm1775, %v108, 0.0
    %v2321 = vsel %vm1776, %v109, 0.0
    %v2322 = vsel %vm1777, %v110, 0.0
    %v2323 = vsel %vm1778, %v111, 0.0
    %v2324 = vsel %vm1779, %v112, 0.0
    %v2325 = vsel %vm1780, %v113, 0.0
    %v2326 = vsel %vm1781, %v114, 0.0
    %v2327 = vsel %vm1782, %v115, 0.0
    %v2328 = vsel %vm1783, %v116, 0.0
    %v2329 = vsel %vm1784, %v117, 0.0
    %v2330 = vsel %vm1785, %v118, 0.0
    %v2331 = vsel %vm1786, %v119, 0.0
    %v2332 = vsel %vm1787, %v120, 0.0
    %v2333 = vsel %vm1788, %v121, 0.0
    %v2334 = vsel %vm1789, %v122, 0.0
    %v2335 = vsel %vm1790, %v123, 0.0
    %v2336 = vsel %vm1791, %v124, 0.0
    %v2337 = vpack.c.bf16 %v2274, %v2273
    %v2338 = vpack.c.bf16 %v2276, %v2275
    %v2339 = vpack.c.bf16 %v2278, %v2277
    %v2340 = vpack.c.bf16 %v2280, %v2279
    %v2341 = vpack.c.bf16 %v2282, %v2281
    %v2342 = vpack.c.bf16 %v2284, %v2283
    %v2343 = vpack.c.bf16 %v2286, %v2285
    %v2344 = vpack.c.bf16 %v2288, %v2287
    %v2345 = vpack.c.bf16 %v2290, %v2289
    %v2346 = vpack.c.bf16 %v2292, %v2291
    %v2347 = vpack.c.bf16 %v2294, %v2293
    %v2348 = vpack.c.bf16 %v2296, %v2295
    %v2349 = vpack.c.bf16 %v2298, %v2297
    %v2350 = vpack.c.bf16 %v2300, %v2299
    %v2351 = vpack.c.bf16 %v2302, %v2301
    %v2352 = vpack.c.bf16 %v2304, %v2303
    %v2353 = vpack.c.bf16 %v2306, %v2305
    %v2354 = vpack.c.bf16 %v2308, %v2307
    %v2355 = vpack.c.bf16 %v2310, %v2309
    %v2356 = vpack.c.bf16 %v2312, %v2311
    %v2357 = vpack.c.bf16 %v2314, %v2313
    %v2358 = vpack.c.bf16 %v2316, %v2315
    %v2359 = vpack.c.bf16 %v2318, %v2317
    %v2360 = vpack.c.bf16 %v2320, %v2319
    %v2361 = vpack.c.bf16 %v2322, %v2321
    %v2362 = vpack.c.bf16 %v2324, %v2323
    %v2363 = vpack.c.bf16 %v2326, %v2325
    %v2364 = vpack.c.bf16 %v2328, %v2327
    %v2365 = vpack.c.bf16 %v2330, %v2329
    %v2366 = vpack.c.bf16 %v2332, %v2331
    %v2367 = vpack.c.bf16 %v2334, %v2333
    %v2368 = vpack.c.bf16 %v2336, %v2335
    %v2369 = vrot.slane %v63, 1
    %v2370 = vrot.slane %v64, 1
    %v2371 = vrot.slane %v65, 1
    %v2372 = vrot.slane %v66, 1
    %v2373 = vrot.slane %v67, 1
    %v2374 = vrot.slane %v68, 1
    %v2375 = vrot.slane %v69, 1
    %v2376 = vrot.slane %v70, 1
    %v2377 = vrot.slane %v71, 1
    %v2378 = vrot.slane %v72, 1
    %v2379 = vrot.slane %v73, 1
    %v2380 = vrot.slane %v74, 1
    %v2381 = vrot.slane %v75, 1
    %v2382 = vrot.slane %v76, 1
    %v2383 = vrot.slane %v77, 1
    %v2384 = vrot.slane %v78, 1
    %v2385 = vrot.slane %v79, 1
    %v2386 = vrot.slane %v80, 1
    %v2387 = vrot.slane %v81, 1
    %v2388 = vrot.slane %v82, 1
    %v2389 = vrot.slane %v83, 1
    %v2390 = vrot.slane %v84, 1
    %v2391 = vrot.slane %v85, 1
    %v2392 = vrot.slane %v86, 1
    %v2393 = vrot.slane %v87, 1
    %v2394 = vrot.slane %v88, 1
    %v2395 = vrot.slane %v89, 1
    %v2396 = vrot.slane %v90, 1
    %v2397 = vrot.slane %v91, 1
    %v2398 = vrot.slane %v92, 1
    %v2399 = vrot.slane %v93, 1
    %v2400 = vrot.slane %v94, 1
    %v2401 = vrot.slane %v95, 1
    %v2402 = vrot.slane %v96, 1
    %v2403 = vrot.slane %v97, 1
    %v2404 = vrot.slane %v98, 1
    %v2405 = vrot.slane %v99, 1
    %v2406 = vrot.slane %v100, 1
    %v2407 = vrot.slane %v101, 1
    %v2408 = vrot.slane %v102, 1
    %v2409 = vrot.slane %v103, 1
    %v2410 = vrot.slane %v104, 1
    %v2411 = vrot.slane %v105, 1
    %v2412 = vrot.slane %v106, 1
    %v2413 = vrot.slane %v107, 1
    %v2414 = vrot.slane %v108, 1
    %v2415 = vrot.slane %v109, 1
    %v2416 = vrot.slane %v110, 1
    %v2417 = vrot.slane %v111, 1
    %v2418 = vrot.slane %v112, 1
    %v2419 = vrot.slane %v113, 1
    %v2420 = vrot.slane %v114, 1
    %v2421 = vrot.slane %v115, 1
    %v2422 = vrot.slane %v116, 1
    %v2423 = vrot.slane %v117, 1
    %v2424 = vrot.slane %v118, 1
    %v2425 = vrot.slane %v119, 1
    %v2426 = vrot.slane %v120, 1
    %v2427 = vrot.slane %v121, 1
    %v2428 = vrot.slane %v122, 1
    %v2429 = vrot.slane %v123, 1
    %v2430 = vrot.slane %v124, 1
    %v2431 = vrot.slane %v125, 1
    %v2432 = vrot.slane %v126, 1
    %vm2433 = vcmp.lt.s32.totalorder %v128, 7
    %v2434 = vsel %vm2433, %v2431, %v2432
    %v2435 = vsel %vm2433, %v2430, %v2431
    %v2436 = vsel %vm2433, %v2429, %v2430
    %v2437 = vsel %vm2433, %v2428, %v2429
    %v2438 = vsel %vm2433, %v2427, %v2428
    %v2439 = vsel %vm2433, %v2426, %v2427
    %v2440 = vsel %vm2433, %v2425, %v2426
    %v2441 = vsel %vm2433, %v2424, %v2425
    %v2442 = vsel %vm2433, %v2423, %v2424
    %v2443 = vsel %vm2433, %v2422, %v2423
    %v2444 = vsel %vm2433, %v2421, %v2422
    %v2445 = vsel %vm2433, %v2420, %v2421
    %v2446 = vsel %vm2433, %v2419, %v2420
    %v2447 = vsel %vm2433, %v2418, %v2419
    %v2448 = vsel %vm2433, %v2417, %v2418
    %v2449 = vsel %vm2433, %v2416, %v2417
    %v2450 = vsel %vm2433, %v2415, %v2416
    %v2451 = vsel %vm2433, %v2414, %v2415
    %v2452 = vsel %vm2433, %v2413, %v2414
    %v2453 = vsel %vm2433, %v2412, %v2413
    %v2454 = vsel %vm2433, %v2411, %v2412
    %v2455 = vsel %vm2433, %v2410, %v2411
    %v2456 = vsel %vm2433, %v2409, %v2410
    %v2457 = vsel %vm2433, %v2408, %v2409
    %v2458 = vsel %vm2433, %v2407, %v2408
    %v2459 = vsel %vm2433, %v2406, %v2407
    %v2460 = vsel %vm2433, %v2405, %v2406
    %v2461 = vsel %vm2433, %v2404, %v2405
    %v2462 = vsel %vm2433, %v2403, %v2404
    %v2463 = vsel %vm2433, %v2402, %v2403
    %v2464 = vsel %vm2433, %v2401, %v2402
    %v2465 = vsel %vm2433, %v2400, %v2401
    %v2466 = vsel %vm2433, %v2399, %v2400
    %v2467 = vsel %vm2433, %v2398, %v2399
    %v2468 = vsel %vm2433, %v2397, %v2398
    %v2469 = vsel %vm2433, %v2396, %v2397
    %v2470 = vsel %vm2433, %v2395, %v2396
    %v2471 = vsel %vm2433, %v2394, %v2395
    %v2472 = vsel %vm2433, %v2393, %v2394
    %v2473 = vsel %vm2433, %v2392, %v2393
    %v2474 = vsel %vm2433, %v2391, %v2392
    %v2475 = vsel %vm2433, %v2390, %v2391
    %v2476 = vsel %vm2433, %v2389, %v2390
    %v2477 = vsel %vm2433, %v2388, %v2389
    %v2478 = vsel %vm2433, %v2387, %v2388
    %v2479 = vsel %vm2433, %v2386, %v2387
    %v2480 = vsel %vm2433, %v2385, %v2386
    %v2481 = vsel %vm2433, %v2384, %v2385
    %v2482 = vsel %vm2433, %v2383, %v2384
    %v2483 = vsel %vm2433, %v2382, %v2383
    %v2484 = vsel %vm2433, %v2381, %v2382
    %v2485 = vsel %vm2433, %v2380, %v2381
    %v2486 = vsel %vm2433, %v2379, %v2380
    %v2487 = vsel %vm2433, %v2378, %v2379
    %v2488 = vsel %vm2433, %v2377, %v2378
    %v2489 = vsel %vm2433, %v2376, %v2377
    %v2490 = vsel %vm2433, %v2375, %v2376
    %v2491 = vsel %vm2433, %v2374, %v2375
    %v2492 = vsel %vm2433, %v2373, %v2374
    %v2493 = vsel %vm2433, %v2372, %v2373
    %v2494 = vsel %vm2433, %v2371, %v2372
    %v2495 = vsel %vm2433, %v2370, %v2371
    %v2496 = vsel %vm2433, %v2369, %v2370
    %v2497 = vsel %vm2433, %v2432, %v2369
    %vm2498 = vmand %vm1728, %vm1920
    %vm2499 = vmand %vm1729, %vm1921
    %vm2500 = vmand %vm1730, %vm1922
    %vm2501 = vmand %vm1731, %vm1923
    %vm2502 = vmand %vm1732, %vm1924
    %vm2503 = vmand %vm1733, %vm1925
    %vm2504 = vmand %vm1734, %vm1926
    %vm2505 = vmand %vm1735, %vm1927
    %vm2506 = vmand %vm1736, %vm1928
    %vm2507 = vmand %vm1737, %vm1929
    %vm2508 = vmand %vm1738, %vm1930
    %vm2509 = vmand %vm1739, %vm1931
    %vm2510 = vmand %vm1740, %vm1932
    %vm2511 = vmand %vm1741, %vm1933
    %vm2512 = vmand %vm1742, %vm1934
    %vm2513 = vmand %vm1743, %vm1935
    %vm2514 = vmand %vm1744, %vm1936
    %vm2515 = vmand %vm1745, %vm1937
    %vm2516 = vmand %vm1746, %vm1938
    %vm2517 = vmand %vm1747, %vm1939
    %vm2518 = vmand %vm1748, %vm1940
    %vm2519 = vmand %vm1749, %vm1941
    %vm2520 = vmand %vm1750, %vm1942
    %vm2521 = vmand %vm1751, %vm1943
    %vm2522 = vmand %vm1752, %vm1944
    %vm2523 = vmand %vm1753, %vm1945
    %vm2524 = vmand %vm1754, %vm1946
    %vm2525 = vmand %vm1755, %vm1947
    %vm2526 = vmand %vm1756, %vm1948
    %vm2527 = vmand %vm1757, %vm1949
    %vm2528 = vmand %vm1758, %vm1950
    %vm2529 = vmand %vm1759, %vm1951
    %vm2530 = vmand %vm1760, %vm1952
    %vm2531 = vmand %vm1761, %vm1953
    %vm2532 = vmand %vm1762, %vm1954
    %vm2533 = vmand %vm1763, %vm1955
    %vm2534 = vmand %vm1764, %vm1956
    %vm2535 = vmand %vm1765, %vm1957
    %vm2536 = vmand %vm1766, %vm1958
    %vm2537 = vmand %vm1767, %vm1959
    %vm2538 = vmand %vm1768, %vm1960
    %vm2539 = vmand %vm1769, %vm1961
    %vm2540 = vmand %vm1770, %vm1962
    %vm2541 = vmand %vm1771, %vm1963
    %vm2542 = vmand %vm1772, %vm1964
    %vm2543 = vmand %vm1773, %vm1965
    %vm2544 = vmand %vm1774, %vm1966
    %vm2545 = vmand %vm1775, %vm1967
    %vm2546 = vmand %vm1776, %vm1968
    %vm2547 = vmand %vm1777, %vm1969
    %vm2548 = vmand %vm1778, %vm1970
    %vm2549 = vmand %vm1779, %vm1971
    %vm2550 = vmand %vm1780, %vm1972
    %vm2551 = vmand %vm1781, %vm1973
    %vm2552 = vmand %vm1782, %vm1974
    %vm2553 = vmand %vm1783, %vm1975
    %vm2554 = vmand %vm1784, %vm1976
    %vm2555 = vmand %vm1785, %vm1977
    %vm2556 = vmand %vm1786, %vm1978
    %vm2557 = vmand %vm1787, %vm1979
    %vm2558 = vmand %vm1788, %vm1980
    %vm2559 = vmand %vm1789, %vm1981
    %vm2560 = vmand %vm1790, %vm1982
    %vm2561 = vmand %vm1791, %vm1983
    %v2562 = vsel %vm2498, %v2434, 0.0
    %v2563 = vsel %vm2499, %v2497, 0.0
    %v2564 = vsel %vm2500, %v2496, 0.0
    %v2565 = vsel %vm2501, %v2495, 0.0
    %v2566 = vsel %vm2502, %v2494, 0.0
    %v2567 = vsel %vm2503, %v2493, 0.0
    %v2568 = vsel %vm2504, %v2492, 0.0
    %v2569 = vsel %vm2505, %v2491, 0.0
    %v2570 = vsel %vm2506, %v2490, 0.0
    %v2571 = vsel %vm2507, %v2489, 0.0
    %v2572 = vsel %vm2508, %v2488, 0.0
    %v2573 = vsel %vm2509, %v2487, 0.0
    %v2574 = vsel %vm2510, %v2486, 0.0
    %v2575 = vsel %vm2511, %v2485, 0.0
    %v2576 = vsel %vm2512, %v2484, 0.0
    %v2577 = vsel %vm2513, %v2483, 0.0
    %v2578 = vsel %vm2514, %v2482, 0.0
    %v2579 = vsel %vm2515, %v2481, 0.0
    %v2580 = vsel %vm2516, %v2480, 0.0
    %v2581 = vsel %vm2517, %v2479, 0.0
    %v2582 = vsel %vm2518, %v2478, 0.0
    %v2583 = vsel %vm2519, %v2477, 0.0
    %v2584 = vsel %vm2520, %v2476, 0.0
    %v2585 = vsel %vm2521, %v2475, 0.0
    %v2586 = vsel %vm2522, %v2474, 0.0
    %v2587 = vsel %vm2523, %v2473, 0.0
    %v2588 = vsel %vm2524, %v2472, 0.0
    %v2589 = vsel %vm2525, %v2471, 0.0
    %v2590 = vsel %vm2526, %v2470, 0.0
    %v2591 = vsel %vm2527, %v2469, 0.0
    %v2592 = vsel %vm2528, %v2468, 0.0
    %v2593 = vsel %vm2529, %v2467, 0.0
    %v2594 = vsel %vm2530, %v2466, 0.0
    %v2595 = vsel %vm2531, %v2465, 0.0
    %v2596 = vsel %vm2532, %v2464, 0.0
    %v2597 = vsel %vm2533, %v2463, 0.0
    %v2598 = vsel %vm2534, %v2462, 0.0
    %v2599 = vsel %vm2535, %v2461, 0.0
    %v2600 = vsel %vm2536, %v2460, 0.0
    %v2601 = vsel %vm2537, %v2459, 0.0
    %v2602 = vsel %vm2538, %v2458, 0.0
    %v2603 = vsel %vm2539, %v2457, 0.0
    %v2604 = vsel %vm2540, %v2456, 0.0
    %v2605 = vsel %vm2541, %v2455, 0.0
    %v2606 = vsel %vm2542, %v2454, 0.0
    %v2607 = vsel %vm2543, %v2453, 0.0
    %v2608 = vsel %vm2544, %v2452, 0.0
    %v2609 = vsel %vm2545, %v2451, 0.0
    %v2610 = vsel %vm2546, %v2450, 0.0
    %v2611 = vsel %vm2547, %v2449, 0.0
    %v2612 = vsel %vm2548, %v2448, 0.0
    %v2613 = vsel %vm2549, %v2447, 0.0
    %v2614 = vsel %vm2550, %v2446, 0.0
    %v2615 = vsel %vm2551, %v2445, 0.0
    %v2616 = vsel %vm2552, %v2444, 0.0
    %v2617 = vsel %vm2553, %v2443, 0.0
    %v2618 = vsel %vm2554, %v2442, 0.0
    %v2619 = vsel %vm2555, %v2441, 0.0
    %v2620 = vsel %vm2556, %v2440, 0.0
    %v2621 = vsel %vm2557, %v2439, 0.0
    %v2622 = vsel %vm2558, %v2438, 0.0
    %v2623 = vsel %vm2559, %v2437, 0.0
    %v2624 = vsel %vm2560, %v2436, 0.0
    %v2625 = vsel %vm2561, %v2435, 0.0
    %v2626 = vpack.c.bf16 %v2563, %v2562
    %v2627 = vpack.c.bf16 %v2565, %v2564
    %v2628 = vpack.c.bf16 %v2567, %v2566
    %v2629 = vpack.c.bf16 %v2569, %v2568
    %v2630 = vpack.c.bf16 %v2571, %v2570
    %v2631 = vpack.c.bf16 %v2573, %v2572
    %v2632 = vpack.c.bf16 %v2575, %v2574
    %v2633 = vpack.c.bf16 %v2577, %v2576
    %v2634 = vpack.c.bf16 %v2579, %v2578
    %v2635 = vpack.c.bf16 %v2581, %v2580
    %v2636 = vpack.c.bf16 %v2583, %v2582
    %v2637 = vpack.c.bf16 %v2585, %v2584
    %v2638 = vpack.c.bf16 %v2587, %v2586
    %v2639 = vpack.c.bf16 %v2589, %v2588
    %v2640 = vpack.c.bf16 %v2591, %v2590
    %v2641 = vpack.c.bf16 %v2593, %v2592
    %v2642 = vpack.c.bf16 %v2595, %v2594
    %v2643 = vpack.c.bf16 %v2597, %v2596
    %v2644 = vpack.c.bf16 %v2599, %v2598
    %v2645 = vpack.c.bf16 %v2601, %v2600
    %v2646 = vpack.c.bf16 %v2603, %v2602
    %v2647 = vpack.c.bf16 %v2605, %v2604
    %v2648 = vpack.c.bf16 %v2607, %v2606
    %v2649 = vpack.c.bf16 %v2609, %v2608
    %v2650 = vpack.c.bf16 %v2611, %v2610
    %v2651 = vpack.c.bf16 %v2613, %v2612
    %v2652 = vpack.c.bf16 %v2615, %v2614
    %v2653 = vpack.c.bf16 %v2617, %v2616
    %v2654 = vpack.c.bf16 %v2619, %v2618
    %v2655 = vpack.c.bf16 %v2621, %v2620
    %v2656 = vpack.c.bf16 %v2623, %v2622
    %v2657 = vpack.c.bf16 %v2625, %v2624
    %v2658 = vsel %vm1856, %v2112, 0.0
    %v2659 = vsel %vm1857, %v2111, 0.0
    %v2660 = vsel %vm1858, %v2110, 0.0
    %v2661 = vsel %vm1859, %v2109, 0.0
    %v2662 = vsel %vm1860, %v2108, 0.0
    %v2663 = vsel %vm1861, %v2107, 0.0
    %v2664 = vsel %vm1862, %v2106, 0.0
    %v2665 = vsel %vm1863, %v2105, 0.0
    %v2666 = vsel %vm1864, %v2104, 0.0
    %v2667 = vsel %vm1865, %v2103, 0.0
    %v2668 = vsel %vm1866, %v2102, 0.0
    %v2669 = vsel %vm1867, %v2101, 0.0
    %v2670 = vsel %vm1868, %v2100, 0.0
    %v2671 = vsel %vm1869, %v2099, 0.0
    %v2672 = vsel %vm1870, %v2098, 0.0
    %v2673 = vsel %vm1871, %v2097, 0.0
    %v2674 = vsel %vm1872, %v2096, 0.0
    %v2675 = vsel %vm1873, %v2095, 0.0
    %v2676 = vsel %vm1874, %v2094, 0.0
    %v2677 = vsel %vm1875, %v2093, 0.0
    %v2678 = vsel %vm1876, %v2092, 0.0
    %v2679 = vsel %vm1877, %v2091, 0.0
    %v2680 = vsel %vm1878, %v2090, 0.0
    %v2681 = vsel %vm1879, %v2089, 0.0
    %v2682 = vsel %vm1880, %v2088, 0.0
    %v2683 = vsel %vm1881, %v2087, 0.0
    %v2684 = vsel %vm1882, %v2086, 0.0
    %v2685 = vsel %vm1883, %v2085, 0.0
    %v2686 = vsel %vm1884, %v2084, 0.0
    %v2687 = vsel %vm1885, %v2083, 0.0
    %v2688 = vsel %vm1886, %v2082, 0.0
    %v2689 = vsel %vm1887, %v2081, 0.0
    %v2690 = vsel %vm1888, %v2080, 0.0
    %v2691 = vsel %vm1889, %v2079, 0.0
    %v2692 = vsel %vm1890, %v2078, 0.0
    %v2693 = vsel %vm1891, %v2077, 0.0
    %v2694 = vsel %vm1892, %v2076, 0.0
    %v2695 = vsel %vm1893, %v2075, 0.0
    %v2696 = vsel %vm1894, %v2074, 0.0
    %v2697 = vsel %vm1895, %v2073, 0.0
    %v2698 = vsel %vm1896, %v2072, 0.0
    %v2699 = vsel %vm1897, %v2071, 0.0
    %v2700 = vsel %vm1898, %v2070, 0.0
    %v2701 = vsel %vm1899, %v2069, 0.0
    %v2702 = vsel %vm1900, %v2068, 0.0
    %v2703 = vsel %vm1901, %v2067, 0.0
    %v2704 = vsel %vm1902, %v2066, 0.0
    %v2705 = vsel %vm1903, %v2065, 0.0
    %v2706 = vsel %vm1904, %v2064, 0.0
    %v2707 = vsel %vm1905, %v2063, 0.0
    %v2708 = vsel %vm1906, %v2062, 0.0
    %v2709 = vsel %vm1907, %v2061, 0.0
    %v2710 = vsel %vm1908, %v2060, 0.0
    %v2711 = vsel %vm1909, %v2059, 0.0
    %v2712 = vsel %vm1910, %v2058, 0.0
    %v2713 = vsel %vm1911, %v2057, 0.0
    %v2714 = vsel %vm1912, %v2056, 0.0
    %v2715 = vsel %vm1913, %v2055, 0.0
    %v2716 = vsel %vm1914, %v2054, 0.0
    %v2717 = vsel %vm1915, %v2053, 0.0
    %v2718 = vsel %vm1916, %v2052, 0.0
    %v2719 = vsel %vm1917, %v2051, 0.0
    %v2720 = vsel %vm1918, %v2050, 0.0
    %v2721 = vsel %vm1919, %v2049, 0.0
    %v2722 = vpack.c.bf16 %v2659, %v2658
    %v2723 = vpack.c.bf16 %v2661, %v2660
    %v2724 = vpack.c.bf16 %v2663, %v2662
    %v2725 = vpack.c.bf16 %v2665, %v2664
    %v2726 = vpack.c.bf16 %v2667, %v2666
    %v2727 = vpack.c.bf16 %v2669, %v2668
    %v2728 = vpack.c.bf16 %v2671, %v2670
    %v2729 = vpack.c.bf16 %v2673, %v2672
    %v2730 = vpack.c.bf16 %v2675, %v2674
    %v2731 = vpack.c.bf16 %v2677, %v2676
    %v2732 = vpack.c.bf16 %v2679, %v2678
    %v2733 = vpack.c.bf16 %v2681, %v2680
    %v2734 = vpack.c.bf16 %v2683, %v2682
    %v2735 = vpack.c.bf16 %v2685, %v2684
    %v2736 = vpack.c.bf16 %v2687, %v2686
    %v2737 = vpack.c.bf16 %v2689, %v2688
    %v2738 = vpack.c.bf16 %v2691, %v2690
    %v2739 = vpack.c.bf16 %v2693, %v2692
    %v2740 = vpack.c.bf16 %v2695, %v2694
    %v2741 = vpack.c.bf16 %v2697, %v2696
    %v2742 = vpack.c.bf16 %v2699, %v2698
    %v2743 = vpack.c.bf16 %v2701, %v2700
    %v2744 = vpack.c.bf16 %v2703, %v2702
    %v2745 = vpack.c.bf16 %v2705, %v2704
    %v2746 = vpack.c.bf16 %v2707, %v2706
    %v2747 = vpack.c.bf16 %v2709, %v2708
    %v2748 = vpack.c.bf16 %v2711, %v2710
    %v2749 = vpack.c.bf16 %v2713, %v2712
    %v2750 = vpack.c.bf16 %v2715, %v2714
    %v2751 = vpack.c.bf16 %v2717, %v2716
    %v2752 = vpack.c.bf16 %v2719, %v2718
    %v2753 = vpack.c.bf16 %v2721, %v2720
    %v2754 = vpack.c.bf16 %v64, %v63
    %v2755 = vpack.c.bf16 %v66, %v65
    %v2756 = vpack.c.bf16 %v68, %v67
    %v2757 = vpack.c.bf16 %v70, %v69
    %v2758 = vpack.c.bf16 %v72, %v71
    %v2759 = vpack.c.bf16 %v74, %v73
    %v2760 = vpack.c.bf16 %v76, %v75
    %v2761 = vpack.c.bf16 %v78, %v77
    %v2762 = vpack.c.bf16 %v80, %v79
    %v2763 = vpack.c.bf16 %v82, %v81
    %v2764 = vpack.c.bf16 %v84, %v83
    %v2765 = vpack.c.bf16 %v86, %v85
    %v2766 = vpack.c.bf16 %v88, %v87
    %v2767 = vpack.c.bf16 %v90, %v89
    %v2768 = vpack.c.bf16 %v92, %v91
    %v2769 = vpack.c.bf16 %v94, %v93
    %v2770 = vpack.c.bf16 %v96, %v95
    %v2771 = vpack.c.bf16 %v98, %v97
    %v2772 = vpack.c.bf16 %v100, %v99
    %v2773 = vpack.c.bf16 %v102, %v101
    %v2774 = vpack.c.bf16 %v104, %v103
    %v2775 = vpack.c.bf16 %v106, %v105
    %v2776 = vpack.c.bf16 %v108, %v107
    %v2777 = vpack.c.bf16 %v110, %v109
    %v2778 = vpack.c.bf16 %v112, %v111
    %v2779 = vpack.c.bf16 %v114, %v113
    %v2780 = vpack.c.bf16 %v116, %v115
    %v2781 = vpack.c.bf16 %v118, %v117
    %v2782 = vpack.c.bf16 %v120, %v119
    %v2783 = vpack.c.bf16 %v122, %v121
    %v2784 = vpack.c.bf16 %v124, %v123
    %v2785 = vpack.c.bf16 %v126, %v125
    %v2786 = vsel %vm1920, %v2496, 0.0
    %v2787 = vsel %vm1921, %v2495, 0.0
    %v2788 = vsel %vm1922, %v2494, 0.0
    %v2789 = vsel %vm1923, %v2493, 0.0
    %v2790 = vsel %vm1924, %v2492, 0.0
    %v2791 = vsel %vm1925, %v2491, 0.0
    %v2792 = vsel %vm1926, %v2490, 0.0
    %v2793 = vsel %vm1927, %v2489, 0.0
    %v2794 = vsel %vm1928, %v2488, 0.0
    %v2795 = vsel %vm1929, %v2487, 0.0
    %v2796 = vsel %vm1930, %v2486, 0.0
    %v2797 = vsel %vm1931, %v2485, 0.0
    %v2798 = vsel %vm1932, %v2484, 0.0
    %v2799 = vsel %vm1933, %v2483, 0.0
    %v2800 = vsel %vm1934, %v2482, 0.0
    %v2801 = vsel %vm1935, %v2481, 0.0
    %v2802 = vsel %vm1936, %v2480, 0.0
    %v2803 = vsel %vm1937, %v2479, 0.0
    %v2804 = vsel %vm1938, %v2478, 0.0
    %v2805 = vsel %vm1939, %v2477, 0.0
    %v2806 = vsel %vm1940, %v2476, 0.0
    %v2807 = vsel %vm1941, %v2475, 0.0
    %v2808 = vsel %vm1942, %v2474, 0.0
    %v2809 = vsel %vm1943, %v2473, 0.0
    %v2810 = vsel %vm1944, %v2472, 0.0
    %v2811 = vsel %vm1945, %v2471, 0.0
    %v2812 = vsel %vm1946, %v2470, 0.0
    %v2813 = vsel %vm1947, %v2469, 0.0
    %v2814 = vsel %vm1948, %v2468, 0.0
    %v2815 = vsel %vm1949, %v2467, 0.0
    %v2816 = vsel %vm1950, %v2466, 0.0
    %v2817 = vsel %vm1951, %v2465, 0.0
    %v2818 = vsel %vm1952, %v2464, 0.0
    %v2819 = vsel %vm1953, %v2463, 0.0
    %v2820 = vsel %vm1954, %v2462, 0.0
    %v2821 = vsel %vm1955, %v2461, 0.0
    %v2822 = vsel %vm1956, %v2460, 0.0
    %v2823 = vsel %vm1957, %v2459, 0.0
    %v2824 = vsel %vm1958, %v2458, 0.0
    %v2825 = vsel %vm1959, %v2457, 0.0
    %v2826 = vsel %vm1960, %v2456, 0.0
    %v2827 = vsel %vm1961, %v2455, 0.0
    %v2828 = vsel %vm1962, %v2454, 0.0
    %v2829 = vsel %vm1963, %v2453, 0.0
    %v2830 = vsel %vm1964, %v2452, 0.0
    %v2831 = vsel %vm1965, %v2451, 0.0
    %v2832 = vsel %vm1966, %v2450, 0.0
    %v2833 = vsel %vm1967, %v2449, 0.0
    %v2834 = vsel %vm1968, %v2448, 0.0
    %v2835 = vsel %vm1969, %v2447, 0.0
    %v2836 = vsel %vm1970, %v2446, 0.0
    %v2837 = vsel %vm1971, %v2445, 0.0
    %v2838 = vsel %vm1972, %v2444, 0.0
    %v2839 = vsel %vm1973, %v2443, 0.0
    %v2840 = vsel %vm1974, %v2442, 0.0
    %v2841 = vsel %vm1975, %v2441, 0.0
    %v2842 = vsel %vm1976, %v2440, 0.0
    %v2843 = vsel %vm1977, %v2439, 0.0
    %v2844 = vsel %vm1978, %v2438, 0.0
    %v2845 = vsel %vm1979, %v2437, 0.0
    %v2846 = vsel %vm1980, %v2436, 0.0
    %v2847 = vsel %vm1981, %v2435, 0.0
    %v2848 = vsel %vm1982, %v2434, 0.0
    %v2849 = vsel %vm1983, %v2497, 0.0
    %v2850 = vpack.c.bf16 %v2787, %v2786
    %v2851 = vpack.c.bf16 %v2789, %v2788
    %v2852 = vpack.c.bf16 %v2791, %v2790
    %v2853 = vpack.c.bf16 %v2793, %v2792
    %v2854 = vpack.c.bf16 %v2795, %v2794
    %v2855 = vpack.c.bf16 %v2797, %v2796
    %v2856 = vpack.c.bf16 %v2799, %v2798
    %v2857 = vpack.c.bf16 %v2801, %v2800
    %v2858 = vpack.c.bf16 %v2803, %v2802
    %v2859 = vpack.c.bf16 %v2805, %v2804
    %v2860 = vpack.c.bf16 %v2807, %v2806
    %v2861 = vpack.c.bf16 %v2809, %v2808
    %v2862 = vpack.c.bf16 %v2811, %v2810
    %v2863 = vpack.c.bf16 %v2813, %v2812
    %v2864 = vpack.c.bf16 %v2815, %v2814
    %v2865 = vpack.c.bf16 %v2817, %v2816
    %v2866 = vpack.c.bf16 %v2819, %v2818
    %v2867 = vpack.c.bf16 %v2821, %v2820
    %v2868 = vpack.c.bf16 %v2823, %v2822
    %v2869 = vpack.c.bf16 %v2825, %v2824
    %v2870 = vpack.c.bf16 %v2827, %v2826
    %v2871 = vpack.c.bf16 %v2829, %v2828
    %v2872 = vpack.c.bf16 %v2831, %v2830
    %v2873 = vpack.c.bf16 %v2833, %v2832
    %v2874 = vpack.c.bf16 %v2835, %v2834
    %v2875 = vpack.c.bf16 %v2837, %v2836
    %v2876 = vpack.c.bf16 %v2839, %v2838
    %v2877 = vpack.c.bf16 %v2841, %v2840
    %v2878 = vpack.c.bf16 %v2843, %v2842
    %v2879 = vpack.c.bf16 %v2845, %v2844
    %v2880 = vpack.c.bf16 %v2847, %v2846
    %v2881 = vpack.c.bf16 %v2849, %v2848
    %vm2882 = vmand %vm1792, %vm1856
    %vm2883 = vmand %vm1793, %vm1857
    %vm2884 = vmand %vm1794, %vm1858
    %vm2885 = vmand %vm1795, %vm1859
    %vm2886 = vmand %vm1796, %vm1860
    %vm2887 = vmand %vm1797, %vm1861
    %vm2888 = vmand %vm1798, %vm1862
    %vm2889 = vmand %vm1799, %vm1863
    %vm2890 = vmand %vm1800, %vm1864
    %vm2891 = vmand %vm1801, %vm1865
    %vm2892 = vmand %vm1802, %vm1866
    %vm2893 = vmand %vm1803, %vm1867
    %vm2894 = vmand %vm1804, %vm1868
    %vm2895 = vmand %vm1805, %vm1869
    %vm2896 = vmand %vm1806, %vm1870
    %vm2897 = vmand %vm1807, %vm1871
    %vm2898 = vmand %vm1808, %vm1872
    %vm2899 = vmand %vm1809, %vm1873
    %vm2900 = vmand %vm1810, %vm1874
    %vm2901 = vmand %vm1811, %vm1875
    %vm2902 = vmand %vm1812, %vm1876
    %vm2903 = vmand %vm1813, %vm1877
    %vm2904 = vmand %vm1814, %vm1878
    %vm2905 = vmand %vm1815, %vm1879
    %vm2906 = vmand %vm1816, %vm1880
    %vm2907 = vmand %vm1817, %vm1881
    %vm2908 = vmand %vm1818, %vm1882
    %vm2909 = vmand %vm1819, %vm1883
    %vm2910 = vmand %vm1820, %vm1884
    %vm2911 = vmand %vm1821, %vm1885
    %vm2912 = vmand %vm1822, %vm1886
    %vm2913 = vmand %vm1823, %vm1887
    %vm2914 = vmand %vm1824, %vm1888
    %vm2915 = vmand %vm1825, %vm1889
    %vm2916 = vmand %vm1826, %vm1890
    %vm2917 = vmand %vm1827, %vm1891
    %vm2918 = vmand %vm1828, %vm1892
    %vm2919 = vmand %vm1829, %vm1893
    %vm2920 = vmand %vm1830, %vm1894
    %vm2921 = vmand %vm1831, %vm1895
    %vm2922 = vmand %vm1832, %vm1896
    %vm2923 = vmand %vm1833, %vm1897
    %vm2924 = vmand %vm1834, %vm1898
    %vm2925 = vmand %vm1835, %vm1899
    %vm2926 = vmand %vm1836, %vm1900
    %vm2927 = vmand %vm1837, %vm1901
    %vm2928 = vmand %vm1838, %vm1902
    %vm2929 = vmand %vm1839, %vm1903
    %vm2930 = vmand %vm1840, %vm1904
    %vm2931 = vmand %vm1841, %vm1905
    %vm2932 = vmand %vm1842, %vm1906
    %vm2933 = vmand %vm1843, %vm1907
    %vm2934 = vmand %vm1844, %vm1908
    %vm2935 = vmand %vm1845, %vm1909
    %vm2936 = vmand %vm1846, %vm1910
    %vm2937 = vmand %vm1847, %vm1911
    %vm2938 = vmand %vm1848, %vm1912
    %vm2939 = vmand %vm1849, %vm1913
    %vm2940 = vmand %vm1850, %vm1914
    %vm2941 = vmand %vm1851, %vm1915
    %vm2942 = vmand %vm1852, %vm1916
    %vm2943 = vmand %vm1853, %vm1917
    %vm2944 = vmand %vm1854, %vm1918
    %vm2945 = vmand %vm1855, %vm1919
    %v2946 = vsel %vm2882, %v2110, 0.0
    %v2947 = vsel %vm2883, %v2109, 0.0
    %v2948 = vsel %vm2884, %v2108, 0.0
    %v2949 = vsel %vm2885, %v2107, 0.0
    %v2950 = vsel %vm2886, %v2106, 0.0
    %v2951 = vsel %vm2887, %v2105, 0.0
    %v2952 = vsel %vm2888, %v2104, 0.0
    %v2953 = vsel %vm2889, %v2103, 0.0
    %v2954 = vsel %vm2890, %v2102, 0.0
    %v2955 = vsel %vm2891, %v2101, 0.0
    %v2956 = vsel %vm2892, %v2100, 0.0
    %v2957 = vsel %vm2893, %v2099, 0.0
    %v2958 = vsel %vm2894, %v2098, 0.0
    %v2959 = vsel %vm2895, %v2097, 0.0
    %v2960 = vsel %vm2896, %v2096, 0.0
    %v2961 = vsel %vm2897, %v2095, 0.0
    %v2962 = vsel %vm2898, %v2094, 0.0
    %v2963 = vsel %vm2899, %v2093, 0.0
    %v2964 = vsel %vm2900, %v2092, 0.0
    %v2965 = vsel %vm2901, %v2091, 0.0
    %v2966 = vsel %vm2902, %v2090, 0.0
    %v2967 = vsel %vm2903, %v2089, 0.0
    %v2968 = vsel %vm2904, %v2088, 0.0
    %v2969 = vsel %vm2905, %v2087, 0.0
    %v2970 = vsel %vm2906, %v2086, 0.0
    %v2971 = vsel %vm2907, %v2085, 0.0
    %v2972 = vsel %vm2908, %v2084, 0.0
    %v2973 = vsel %vm2909, %v2083, 0.0
    %v2974 = vsel %vm2910, %v2082, 0.0
    %v2975 = vsel %vm2911, %v2081, 0.0
    %v2976 = vsel %vm2912, %v2080, 0.0
    %v2977 = vsel %vm2913, %v2079, 0.0
    %v2978 = vsel %vm2914, %v2078, 0.0
    %v2979 = vsel %vm2915, %v2077, 0.0
    %v2980 = vsel %vm2916, %v2076, 0.0
    %v2981 = vsel %vm2917, %v2075, 0.0
    %v2982 = vsel %vm2918, %v2074, 0.0
    %v2983 = vsel %vm2919, %v2073, 0.0
    %v2984 = vsel %vm2920, %v2072, 0.0
    %v2985 = vsel %vm2921, %v2071, 0.0
    %v2986 = vsel %vm2922, %v2070, 0.0
    %v2987 = vsel %vm2923, %v2069, 0.0
    %v2988 = vsel %vm2924, %v2068, 0.0
    %v2989 = vsel %vm2925, %v2067, 0.0
    %v2990 = vsel %vm2926, %v2066, 0.0
    %v2991 = vsel %vm2927, %v2065, 0.0
    %v2992 = vsel %vm2928, %v2064, 0.0
    %v2993 = vsel %vm2929, %v2063, 0.0
    %v2994 = vsel %vm2930, %v2062, 0.0
    %v2995 = vsel %vm2931, %v2061, 0.0
    %v2996 = vsel %vm2932, %v2060, 0.0
    %v2997 = vsel %vm2933, %v2059, 0.0
    %v2998 = vsel %vm2934, %v2058, 0.0
    %v2999 = vsel %vm2935, %v2057, 0.0
    %v3000 = vsel %vm2936, %v2056, 0.0
    %v3001 = vsel %vm2937, %v2055, 0.0
    %v3002 = vsel %vm2938, %v2054, 0.0
    %v3003 = vsel %vm2939, %v2053, 0.0
    %v3004 = vsel %vm2940, %v2052, 0.0
    %v3005 = vsel %vm2941, %v2051, 0.0
    %v3006 = vsel %vm2942, %v2050, 0.0
    %v3007 = vsel %vm2943, %v2049, 0.0
    %v3008 = vsel %vm2944, %v2112, 0.0
    %v3009 = vsel %vm2945, %v2111, 0.0
    %v3010 = vpack.c.bf16 %v2947, %v2946
    %v3011 = vpack.c.bf16 %v2949, %v2948
    %v3012 = vpack.c.bf16 %v2951, %v2950
    %v3013 = vpack.c.bf16 %v2953, %v2952
    %v3014 = vpack.c.bf16 %v2955, %v2954
    %v3015 = vpack.c.bf16 %v2957, %v2956
    %v3016 = vpack.c.bf16 %v2959, %v2958
    %v3017 = vpack.c.bf16 %v2961, %v2960
    %v3018 = vpack.c.bf16 %v2963, %v2962
    %v3019 = vpack.c.bf16 %v2965, %v2964
    %v3020 = vpack.c.bf16 %v2967, %v2966
    %v3021 = vpack.c.bf16 %v2969, %v2968
    %v3022 = vpack.c.bf16 %v2971, %v2970
    %v3023 = vpack.c.bf16 %v2973, %v2972
    %v3024 = vpack.c.bf16 %v2975, %v2974
    %v3025 = vpack.c.bf16 %v2977, %v2976
    %v3026 = vpack.c.bf16 %v2979, %v2978
    %v3027 = vpack.c.bf16 %v2981, %v2980
    %v3028 = vpack.c.bf16 %v2983, %v2982
    %v3029 = vpack.c.bf16 %v2985, %v2984
    %v3030 = vpack.c.bf16 %v2987, %v2986
    %v3031 = vpack.c.bf16 %v2989, %v2988
    %v3032 = vpack.c.bf16 %v2991, %v2990
    %v3033 = vpack.c.bf16 %v2993, %v2992
    %v3034 = vpack.c.bf16 %v2995, %v2994
    %v3035 = vpack.c.bf16 %v2997, %v2996
    %v3036 = vpack.c.bf16 %v2999, %v2998
    %v3037 = vpack.c.bf16 %v3001, %v3000
    %v3038 = vpack.c.bf16 %v3003, %v3002
    %v3039 = vpack.c.bf16 %v3005, %v3004
    %v3040 = vpack.c.bf16 %v3007, %v3006
    %v3041 = vpack.c.bf16 %v3009, %v3008
    %v3042 = vsel %vm1792, %v65, 0.0
    %v3043 = vsel %vm1793, %v66, 0.0
    %v3044 = vsel %vm1794, %v67, 0.0
    %v3045 = vsel %vm1795, %v68, 0.0
    %v3046 = vsel %vm1796, %v69, 0.0
    %v3047 = vsel %vm1797, %v70, 0.0
    %v3048 = vsel %vm1798, %v71, 0.0
    %v3049 = vsel %vm1799, %v72, 0.0
    %v3050 = vsel %vm1800, %v73, 0.0
    %v3051 = vsel %vm1801, %v74, 0.0
    %v3052 = vsel %vm1802, %v75, 0.0
    %v3053 = vsel %vm1803, %v76, 0.0
    %v3054 = vsel %vm1804, %v77, 0.0
    %v3055 = vsel %vm1805, %v78, 0.0
    %v3056 = vsel %vm1806, %v79, 0.0
    %v3057 = vsel %vm1807, %v80, 0.0
    %v3058 = vsel %vm1808, %v81, 0.0
    %v3059 = vsel %vm1809, %v82, 0.0
    %v3060 = vsel %vm1810, %v83, 0.0
    %v3061 = vsel %vm1811, %v84, 0.0
    %v3062 = vsel %vm1812, %v85, 0.0
    %v3063 = vsel %vm1813, %v86, 0.0
    %v3064 = vsel %vm1814, %v87, 0.0
    %v3065 = vsel %vm1815, %v88, 0.0
    %v3066 = vsel %vm1816, %v89, 0.0
    %v3067 = vsel %vm1817, %v90, 0.0
    %v3068 = vsel %vm1818, %v91, 0.0
    %v3069 = vsel %vm1819, %v92, 0.0
    %v3070 = vsel %vm1820, %v93, 0.0
    %v3071 = vsel %vm1821, %v94, 0.0
    %v3072 = vsel %vm1822, %v95, 0.0
    %v3073 = vsel %vm1823, %v96, 0.0
    %v3074 = vsel %vm1824, %v97, 0.0
    %v3075 = vsel %vm1825, %v98, 0.0
    %v3076 = vsel %vm1826, %v99, 0.0
    %v3077 = vsel %vm1827, %v100, 0.0
    %v3078 = vsel %vm1828, %v101, 0.0
    %v3079 = vsel %vm1829, %v102, 0.0
    %v3080 = vsel %vm1830, %v103, 0.0
    %v3081 = vsel %vm1831, %v104, 0.0
    %v3082 = vsel %vm1832, %v105, 0.0
    %v3083 = vsel %vm1833, %v106, 0.0
    %v3084 = vsel %vm1834, %v107, 0.0
    %v3085 = vsel %vm1835, %v108, 0.0
    %v3086 = vsel %vm1836, %v109, 0.0
    %v3087 = vsel %vm1837, %v110, 0.0
    %v3088 = vsel %vm1838, %v111, 0.0
    %v3089 = vsel %vm1839, %v112, 0.0
    %v3090 = vsel %vm1840, %v113, 0.0
    %v3091 = vsel %vm1841, %v114, 0.0
    %v3092 = vsel %vm1842, %v115, 0.0
    %v3093 = vsel %vm1843, %v116, 0.0
    %v3094 = vsel %vm1844, %v117, 0.0
    %v3095 = vsel %vm1845, %v118, 0.0
    %v3096 = vsel %vm1846, %v119, 0.0
    %v3097 = vsel %vm1847, %v120, 0.0
    %v3098 = vsel %vm1848, %v121, 0.0
    %v3099 = vsel %vm1849, %v122, 0.0
    %v3100 = vsel %vm1850, %v123, 0.0
    %v3101 = vsel %vm1851, %v124, 0.0
    %v3102 = vsel %vm1852, %v125, 0.0
    %v3103 = vsel %vm1853, %v126, 0.0
    %v3104 = vsel %vm1854, %v63, 0.0
    %v3105 = vsel %vm1855, %v64, 0.0
    %v3106 = vpack.c.bf16 %v3043, %v3042
    %v3107 = vpack.c.bf16 %v3045, %v3044
    %v3108 = vpack.c.bf16 %v3047, %v3046
    %v3109 = vpack.c.bf16 %v3049, %v3048
    %v3110 = vpack.c.bf16 %v3051, %v3050
    %v3111 = vpack.c.bf16 %v3053, %v3052
    %v3112 = vpack.c.bf16 %v3055, %v3054
    %v3113 = vpack.c.bf16 %v3057, %v3056
    %v3114 = vpack.c.bf16 %v3059, %v3058
    %v3115 = vpack.c.bf16 %v3061, %v3060
    %v3116 = vpack.c.bf16 %v3063, %v3062
    %v3117 = vpack.c.bf16 %v3065, %v3064
    %v3118 = vpack.c.bf16 %v3067, %v3066
    %v3119 = vpack.c.bf16 %v3069, %v3068
    %v3120 = vpack.c.bf16 %v3071, %v3070
    %v3121 = vpack.c.bf16 %v3073, %v3072
    %v3122 = vpack.c.bf16 %v3075, %v3074
    %v3123 = vpack.c.bf16 %v3077, %v3076
    %v3124 = vpack.c.bf16 %v3079, %v3078
    %v3125 = vpack.c.bf16 %v3081, %v3080
    %v3126 = vpack.c.bf16 %v3083, %v3082
    %v3127 = vpack.c.bf16 %v3085, %v3084
    %v3128 = vpack.c.bf16 %v3087, %v3086
    %v3129 = vpack.c.bf16 %v3089, %v3088
    %v3130 = vpack.c.bf16 %v3091, %v3090
    %v3131 = vpack.c.bf16 %v3093, %v3092
    %v3132 = vpack.c.bf16 %v3095, %v3094
    %v3133 = vpack.c.bf16 %v3097, %v3096
    %v3134 = vpack.c.bf16 %v3099, %v3098
    %v3135 = vpack.c.bf16 %v3101, %v3100
    %v3136 = vpack.c.bf16 %v3103, %v3102
    %v3137 = vpack.c.bf16 %v3105, %v3104
    %vm3138 = vmand %vm1792, %vm1920
    %vm3139 = vmand %vm1793, %vm1921
    %vm3140 = vmand %vm1794, %vm1922
    %vm3141 = vmand %vm1795, %vm1923
    %vm3142 = vmand %vm1796, %vm1924
    %vm3143 = vmand %vm1797, %vm1925
    %vm3144 = vmand %vm1798, %vm1926
    %vm3145 = vmand %vm1799, %vm1927
    %vm3146 = vmand %vm1800, %vm1928
    %vm3147 = vmand %vm1801, %vm1929
    %vm3148 = vmand %vm1802, %vm1930
    %vm3149 = vmand %vm1803, %vm1931
    %vm3150 = vmand %vm1804, %vm1932
    %vm3151 = vmand %vm1805, %vm1933
    %vm3152 = vmand %vm1806, %vm1934
    %vm3153 = vmand %vm1807, %vm1935
    %vm3154 = vmand %vm1808, %vm1936
    %vm3155 = vmand %vm1809, %vm1937
    %vm3156 = vmand %vm1810, %vm1938
    %vm3157 = vmand %vm1811, %vm1939
    %vm3158 = vmand %vm1812, %vm1940
    %vm3159 = vmand %vm1813, %vm1941
    %vm3160 = vmand %vm1814, %vm1942
    %vm3161 = vmand %vm1815, %vm1943
    %vm3162 = vmand %vm1816, %vm1944
    %vm3163 = vmand %vm1817, %vm1945
    %vm3164 = vmand %vm1818, %vm1946
    %vm3165 = vmand %vm1819, %vm1947
    %vm3166 = vmand %vm1820, %vm1948
    %vm3167 = vmand %vm1821, %vm1949
    %vm3168 = vmand %vm1822, %vm1950
    %vm3169 = vmand %vm1823, %vm1951
    %vm3170 = vmand %vm1824, %vm1952
    %vm3171 = vmand %vm1825, %vm1953
    %vm3172 = vmand %vm1826, %vm1954
    %vm3173 = vmand %vm1827, %vm1955
    %vm3174 = vmand %vm1828, %vm1956
    %vm3175 = vmand %vm1829, %vm1957
    %vm3176 = vmand %vm1830, %vm1958
    %vm3177 = vmand %vm1831, %vm1959
    %vm3178 = vmand %vm1832, %vm1960
    %vm3179 = vmand %vm1833, %vm1961
    %vm3180 = vmand %vm1834, %vm1962
    %vm3181 = vmand %vm1835, %vm1963
    %vm3182 = vmand %vm1836, %vm1964
    %vm3183 = vmand %vm1837, %vm1965
    %vm3184 = vmand %vm1838, %vm1966
    %vm3185 = vmand %vm1839, %vm1967
    %vm3186 = vmand %vm1840, %vm1968
    %vm3187 = vmand %vm1841, %vm1969
    %vm3188 = vmand %vm1842, %vm1970
    %vm3189 = vmand %vm1843, %vm1971
    %vm3190 = vmand %vm1844, %vm1972
    %vm3191 = vmand %vm1845, %vm1973
    %vm3192 = vmand %vm1846, %vm1974
    %vm3193 = vmand %vm1847, %vm1975
    %vm3194 = vmand %vm1848, %vm1976
    %vm3195 = vmand %vm1849, %vm1977
    %vm3196 = vmand %vm1850, %vm1978
    %vm3197 = vmand %vm1851, %vm1979
    %vm3198 = vmand %vm1852, %vm1980
    %vm3199 = vmand %vm1853, %vm1981
    %vm3200 = vmand %vm1854, %vm1982
    %vm3201 = vmand %vm1855, %vm1983
    %v3202 = vsel %vm3138, %v2494, 0.0
    %v3203 = vsel %vm3139, %v2493, 0.0
    %v3204 = vsel %vm3140, %v2492, 0.0
    %v3205 = vsel %vm3141, %v2491, 0.0
    %v3206 = vsel %vm3142, %v2490, 0.0
    %v3207 = vsel %vm3143, %v2489, 0.0
    %v3208 = vsel %vm3144, %v2488, 0.0
    %v3209 = vsel %vm3145, %v2487, 0.0
    %v3210 = vsel %vm3146, %v2486, 0.0
    %v3211 = vsel %vm3147, %v2485, 0.0
    %v3212 = vsel %vm3148, %v2484, 0.0
    %v3213 = vsel %vm3149, %v2483, 0.0
    %v3214 = vsel %vm3150, %v2482, 0.0
    %v3215 = vsel %vm3151, %v2481, 0.0
    %v3216 = vsel %vm3152, %v2480, 0.0
    %v3217 = vsel %vm3153, %v2479, 0.0
    %v3218 = vsel %vm3154, %v2478, 0.0
    %v3219 = vsel %vm3155, %v2477, 0.0
    %v3220 = vsel %vm3156, %v2476, 0.0
    %v3221 = vsel %vm3157, %v2475, 0.0
    %v3222 = vsel %vm3158, %v2474, 0.0
    %v3223 = vsel %vm3159, %v2473, 0.0
    %v3224 = vsel %vm3160, %v2472, 0.0
    %v3225 = vsel %vm3161, %v2471, 0.0
    %v3226 = vsel %vm3162, %v2470, 0.0
    %v3227 = vsel %vm3163, %v2469, 0.0
    %v3228 = vsel %vm3164, %v2468, 0.0
    %v3229 = vsel %vm3165, %v2467, 0.0
    %v3230 = vsel %vm3166, %v2466, 0.0
    %v3231 = vsel %vm3167, %v2465, 0.0
    %v3232 = vsel %vm3168, %v2464, 0.0
    %v3233 = vsel %vm3169, %v2463, 0.0
    %v3234 = vsel %vm3170, %v2462, 0.0
    %v3235 = vsel %vm3171, %v2461, 0.0
    %v3236 = vsel %vm3172, %v2460, 0.0
    %v3237 = vsel %vm3173, %v2459, 0.0
    %v3238 = vsel %vm3174, %v2458, 0.0
    %v3239 = vsel %vm3175, %v2457, 0.0
    %v3240 = vsel %vm3176, %v2456, 0.0
    %v3241 = vsel %vm3177, %v2455, 0.0
    %v3242 = vsel %vm3178, %v2454, 0.0
    %v3243 = vsel %vm3179, %v2453, 0.0
    %v3244 = vsel %vm3180, %v2452, 0.0
    %v3245 = vsel %vm3181, %v2451, 0.0
    %v3246 = vsel %vm3182, %v2450, 0.0
    %v3247 = vsel %vm3183, %v2449, 0.0
    %v3248 = vsel %vm3184, %v2448, 0.0
    %v3249 = vsel %vm3185, %v2447, 0.0
    %v3250 = vsel %vm3186, %v2446, 0.0
    %v3251 = vsel %vm3187, %v2445, 0.0
    %v3252 = vsel %vm3188, %v2444, 0.0
    %v3253 = vsel %vm3189, %v2443, 0.0
    %v3254 = vsel %vm3190, %v2442, 0.0
    %v3255 = vsel %vm3191, %v2441, 0.0
    %v3256 = vsel %vm3192, %v2440, 0.0
    %v3257 = vsel %vm3193, %v2439, 0.0
    %v3258 = vsel %vm3194, %v2438, 0.0
    %v3259 = vsel %vm3195, %v2437, 0.0
    %v3260 = vsel %vm3196, %v2436, 0.0
    %v3261 = vsel %vm3197, %v2435, 0.0
    %v3262 = vsel %vm3198, %v2434, 0.0
    %v3263 = vsel %vm3199, %v2497, 0.0
    %v3264 = vsel %vm3200, %v2496, 0.0
    %v3265 = vsel %vm3201, %v2495, 0.0
    %v3266 = vpack.c.bf16 %v3203, %v3202
    %v3267 = vpack.c.bf16 %v3205, %v3204
    %v3268 = vpack.c.bf16 %v3207, %v3206
    %v3269 = vpack.c.bf16 %v3209, %v3208
    %v3270 = vpack.c.bf16 %v3211, %v3210
    %v3271 = vpack.c.bf16 %v3213, %v3212
    %v3272 = vpack.c.bf16 %v3215, %v3214
    %v3273 = vpack.c.bf16 %v3217, %v3216
    %v3274 = vpack.c.bf16 %v3219, %v3218
    %v3275 = vpack.c.bf16 %v3221, %v3220
    %v3276 = vpack.c.bf16 %v3223, %v3222
    %v3277 = vpack.c.bf16 %v3225, %v3224
    %v3278 = vpack.c.bf16 %v3227, %v3226
    %v3279 = vpack.c.bf16 %v3229, %v3228
    %v3280 = vpack.c.bf16 %v3231, %v3230
    %v3281 = vpack.c.bf16 %v3233, %v3232
    %v3282 = vpack.c.bf16 %v3235, %v3234
    %v3283 = vpack.c.bf16 %v3237, %v3236
    %v3284 = vpack.c.bf16 %v3239, %v3238
    %v3285 = vpack.c.bf16 %v3241, %v3240
    %v3286 = vpack.c.bf16 %v3243, %v3242
    %v3287 = vpack.c.bf16 %v3245, %v3244
    %v3288 = vpack.c.bf16 %v3247, %v3246
    %v3289 = vpack.c.bf16 %v3249, %v3248
    %v3290 = vpack.c.bf16 %v3251, %v3250
    %v3291 = vpack.c.bf16 %v3253, %v3252
    %v3292 = vpack.c.bf16 %v3255, %v3254
    %v3293 = vpack.c.bf16 %v3257, %v3256
    %v3294 = vpack.c.bf16 %v3259, %v3258
    %v3295 = vpack.c.bf16 %v3261, %v3260
    %v3296 = vpack.c.bf16 %v3263, %v3262
    %v3297 = vpack.c.bf16 %v3265, %v3264
    %v3298 = vld [vmem:[#allocation5] sm:$0xf]
    %v3299 = vld [vmem:[#allocation5 + $0x4] sm:$0xf]
    %v3300 = vld [vmem:[#allocation5 + $0x8] sm:$0xf]
    %v3301 = vld [vmem:[#allocation5 + $0xc] sm:$0xf]
    %v3302 = vld [vmem:[#allocation5 + $0x10] sm:$0xf]
    %v3303 = vld [vmem:[#allocation5 + $0x14] sm:$0xf]
    %v3304 = vld [vmem:[#allocation5 + $0x18] sm:$0xf]
    %v3305 = vld [vmem:[#allocation5 + $0x1c] sm:$0xf]
    %v3306 = vld [vmem:[#allocation5 + $0x20] sm:$0xf]
    %v3307 = vld [vmem:[#allocation5 + $0x24] sm:$0xf]
    %v3308 = vld [vmem:[#allocation5 + $0x28] sm:$0xf]
    %v3309 = vld [vmem:[#allocation5 + $0x2c] sm:$0xf]
    %v3310 = vld [vmem:[#allocation5 + $0x30] sm:$0xf]
    %v3311 = vld [vmem:[#allocation5 + $0x34] sm:$0xf]
    %v3312 = vld [vmem:[#allocation5 + $0x38] sm:$0xf]
    %v3313 = vld [vmem:[#allocation5 + $0x3c] sm:$0xf]
    %v3314 = vld [vmem:[#allocation5 + $0x40] sm:$0xf]
    %v3315 = vld [vmem:[#allocation5 + $0x44] sm:$0xf]
    %v3316 = vld [vmem:[#allocation5 + $0x48] sm:$0xf]
    %v3317 = vld [vmem:[#allocation5 + $0x4c] sm:$0xf]
    %v3318 = vld [vmem:[#allocation5 + $0x50] sm:$0xf]
    %v3319 = vld [vmem:[#allocation5 + $0x54] sm:$0xf]
    %v3320 = vld [vmem:[#allocation5 + $0x58] sm:$0xf]
    %v3321 = vld [vmem:[#allocation5 + $0x5c] sm:$0xf]
    %v3322 = vld [vmem:[#allocation5 + $0x60] sm:$0xf]
    %v3323 = vld [vmem:[#allocation5 + $0x64] sm:$0xf]
    %v3324 = vld [vmem:[#allocation5 + $0x68] sm:$0xf]
    %v3325 = vld [vmem:[#allocation5 + $0x6c] sm:$0xf]
    %v3326 = vld [vmem:[#allocation5 + $0x70] sm:$0xf]
    %v3327 = vld [vmem:[#allocation5 + $0x74] sm:$0xf]
    %v3328 = vld [vmem:[#allocation5 + $0x78] sm:$0xf]
    %v3329 = vld [vmem:[#allocation5 + $0x7c] sm:$0xf]
    %v3330 = vld [vmem:[#allocation5 + $0x80] sm:$0xf]
    %v3331 = vld [vmem:[#allocation5 + $0x84] sm:$0xf]
    %v3332 = vld [vmem:[#allocation5 + $0x88] sm:$0xf]
    %v3333 = vld [vmem:[#allocation5 + $0x8c] sm:$0xf]
    %v3334 = vld [vmem:[#allocation5 + $0x90] sm:$0xf]
    %v3335 = vld [vmem:[#allocation5 + $0x94] sm:$0xf]
    %v3336 = vld [vmem:[#allocation5 + $0x98] sm:$0xf]
    %v3337 = vld [vmem:[#allocation5 + $0x9c] sm:$0xf]
    %v3338 = vld [vmem:[#allocation5 + $0xa0] sm:$0xf]
    %v3339 = vld [vmem:[#allocation5 + $0xa4] sm:$0xf]
    %v3340 = vld [vmem:[#allocation5 + $0xa8] sm:$0xf]
    %v3341 = vld [vmem:[#allocation5 + $0xac] sm:$0xf]
    %v3342 = vld [vmem:[#allocation5 + $0xb0] sm:$0xf]
    %v3343 = vld [vmem:[#allocation5 + $0xb4] sm:$0xf]
    %v3344 = vld [vmem:[#allocation5 + $0xb8] sm:$0xf]
    %v3345 = vld [vmem:[#allocation5 + $0xbc] sm:$0xf]
    %v3346 = vld [vmem:[#allocation5 + $0xc0] sm:$0xf]
    %v3347 = vld [vmem:[#allocation5 + $0xc4] sm:$0xf]
    %v3348 = vld [vmem:[#allocation5 + $0xc8] sm:$0xf]
    %v3349 = vld [vmem:[#allocation5 + $0xcc] sm:$0xf]
    %v3350 = vld [vmem:[#allocation5 + $0xd0] sm:$0xf]
    %v3351 = vld [vmem:[#allocation5 + $0xd4] sm:$0xf]
    %v3352 = vld [vmem:[#allocation5 + $0xd8] sm:$0xf]
    %v3353 = vld [vmem:[#allocation5 + $0xdc] sm:$0xf]
    %v3354 = vld [vmem:[#allocation5 + $0xe0] sm:$0xf]
    %v3355 = vld [vmem:[#allocation5 + $0xe4] sm:$0xf]
    %v3356 = vld [vmem:[#allocation5 + $0xe8] sm:$0xf]
    %v3357 = vld [vmem:[#allocation5 + $0xec] sm:$0xf]
    %v3358 = vld [vmem:[#allocation5 + $0xf0] sm:$0xf]
    %v3359 = vld [vmem:[#allocation5 + $0xf4] sm:$0xf]
    %v3360 = vld [vmem:[#allocation5 + $0xf8] sm:$0xf]
    %v3361 = vld [vmem:[#allocation5 + $0xfc] sm:$0xf]
    %v3362 = vld [vmem:[#allocation5 + $0x100] sm:$0xf]
    %v3363 = vld [vmem:[#allocation5 + $0x104] sm:$0xf]
    %v3364 = vld [vmem:[#allocation5 + $0x108] sm:$0xf]
    %v3365 = vld [vmem:[#allocation5 + $0x10c] sm:$0xf]
    %v3366 = vld [vmem:[#allocation5 + $0x110] sm:$0xf]
    %v3367 = vld [vmem:[#allocation5 + $0x114] sm:$0xf]
    %v3368 = vld [vmem:[#allocation5 + $0x118] sm:$0xf]
    %v3369 = vld [vmem:[#allocation5 + $0x11c] sm:$0xf]
    %v3370 = vld [vmem:[#allocation5 + $0x120] sm:$0xf]
    %v3371 = vld [vmem:[#allocation5 + $0x124] sm:$0xf]
    %v3372 = vld [vmem:[#allocation5 + $0x128] sm:$0xf]
    %v3373 = vld [vmem:[#allocation5 + $0x12c] sm:$0xf]
    %v3374 = vld [vmem:[#allocation5 + $0x130] sm:$0xf]
    %v3375 = vld [vmem:[#allocation5 + $0x134] sm:$0xf]
    %v3376 = vld [vmem:[#allocation5 + $0x138] sm:$0xf]
    %v3377 = vld [vmem:[#allocation5 + $0x13c] sm:$0xf]
    %v3378 = vld [vmem:[#allocation5 + $0x140] sm:$0xf]
    %v3379 = vld [vmem:[#allocation5 + $0x144] sm:$0xf]
    %v3380 = vld [vmem:[#allocation5 + $0x148] sm:$0xf]
    %v3381 = vld [vmem:[#allocation5 + $0x14c] sm:$0xf]
    %v3382 = vld [vmem:[#allocation5 + $0x150] sm:$0xf]
    %v3383 = vld [vmem:[#allocation5 + $0x154] sm:$0xf]
    %v3384 = vld [vmem:[#allocation5 + $0x158] sm:$0xf]
    %v3385 = vld [vmem:[#allocation5 + $0x15c] sm:$0xf]
    %v3386 = vld [vmem:[#allocation5 + $0x160] sm:$0xf]
    %v3387 = vld [vmem:[#allocation5 + $0x164] sm:$0xf]
    %v3388 = vld [vmem:[#allocation5 + $0x168] sm:$0xf]
    %v3389 = vld [vmem:[#allocation5 + $0x16c] sm:$0xf]
    %v3390 = vld [vmem:[#allocation5 + $0x170] sm:$0xf]
    %v3391 = vld [vmem:[#allocation5 + $0x174] sm:$0xf]
    %v3392 = vld [vmem:[#allocation5 + $0x178] sm:$0xf]
    %v3393 = vld [vmem:[#allocation5 + $0x17c] sm:$0xf]
    %v3394 = vld [vmem:[#allocation5 + $0x180] sm:$0xf]
    %v3395 = vld [vmem:[#allocation5 + $0x184] sm:$0xf]
    %v3396 = vld [vmem:[#allocation5 + $0x188] sm:$0xf]
    %v3397 = vld [vmem:[#allocation5 + $0x18c] sm:$0xf]
    %v3398 = vld [vmem:[#allocation5 + $0x190] sm:$0xf]
    %v3399 = vld [vmem:[#allocation5 + $0x194] sm:$0xf]
    %v3400 = vld [vmem:[#allocation5 + $0x198] sm:$0xf]
    %v3401 = vld [vmem:[#allocation5 + $0x19c] sm:$0xf]
    %v3402 = vld [vmem:[#allocation5 + $0x1a0] sm:$0xf]
    %v3403 = vld [vmem:[#allocation5 + $0x1a4] sm:$0xf]
    %v3404 = vld [vmem:[#allocation5 + $0x1a8] sm:$0xf]
    %v3405 = vld [vmem:[#allocation5 + $0x1ac] sm:$0xf]
    %v3406 = vld [vmem:[#allocation5 + $0x1b0] sm:$0xf]
    %v3407 = vld [vmem:[#allocation5 + $0x1b4] sm:$0xf]
    %v3408 = vld [vmem:[#allocation5 + $0x1b8] sm:$0xf]
    %v3409 = vld [vmem:[#allocation5 + $0x1bc] sm:$0xf]
    %v3410 = vld [vmem:[#allocation5 + $0x1c0] sm:$0xf]
    %v3411 = vld [vmem:[#allocation5 + $0x1c4] sm:$0xf]
    %v3412 = vld [vmem:[#allocation5 + $0x1c8] sm:$0xf]
    %v3413 = vld [vmem:[#allocation5 + $0x1cc] sm:$0xf]
    %v3414 = vld [vmem:[#allocation5 + $0x1d0] sm:$0xf]
    %v3415 = vld [vmem:[#allocation5 + $0x1d4] sm:$0xf]
    %v3416 = vld [vmem:[#allocation5 + $0x1d8] sm:$0xf]
    %v3417 = vld [vmem:[#allocation5 + $0x1dc] sm:$0xf]
    %v3418 = vld [vmem:[#allocation5 + $0x1e0] sm:$0xf]
    %v3419 = vld [vmem:[#allocation5 + $0x1e4] sm:$0xf]
    %v3420 = vld [vmem:[#allocation5 + $0x1e8] sm:$0xf]
    %v3421 = vld [vmem:[#allocation5 + $0x1ec] sm:$0xf]
    %v3422 = vld [vmem:[#allocation5 + $0x1f0] sm:$0xf]
    %v3423 = vld [vmem:[#allocation5 + $0x1f4] sm:$0xf]
    %v3424 = vld [vmem:[#allocation5 + $0x1f8] sm:$0xf]
    %v3425 = vld [vmem:[#allocation5 + $0x1fc] sm:$0xf]
    %v3426 = vld [vmem:[#allocation5 + $0x200] sm:$0xf]
    %v3427 = vld [vmem:[#allocation5 + $0x204] sm:$0xf]
    %v3428 = vld [vmem:[#allocation5 + $0x208] sm:$0xf]
    %v3429 = vld [vmem:[#allocation5 + $0x20c] sm:$0xf]
    %v3430 = vld [vmem:[#allocation5 + $0x210] sm:$0xf]
    %v3431 = vld [vmem:[#allocation5 + $0x214] sm:$0xf]
    %v3432 = vld [vmem:[#allocation5 + $0x218] sm:$0xf]
    %v3433 = vld [vmem:[#allocation5 + $0x21c] sm:$0xf]
    %v3434 = vld [vmem:[#allocation5 + $0x220] sm:$0xf]
    %v3435 = vld [vmem:[#allocation5 + $0x224] sm:$0xf]
    %v3436 = vld [vmem:[#allocation5 + $0x228] sm:$0xf]
    %v3437 = vld [vmem:[#allocation5 + $0x22c] sm:$0xf]
    %v3438 = vld [vmem:[#allocation5 + $0x230] sm:$0xf]
    %v3439 = vld [vmem:[#allocation5 + $0x234] sm:$0xf]
    %v3440 = vld [vmem:[#allocation5 + $0x238] sm:$0xf]
    %v3441 = vld [vmem:[#allocation5 + $0x23c] sm:$0xf]
    %v3442 = vld [vmem:[%s3] sm:$0x1]
    %v3444 = vlaneseq
    %v3445 = vshrl.u32 %v3444, 7
    %v3446 = vsub.s32 0, %v3445
    %v3447 = vrot.slane %v3442, %v3446
    %v3593 = vunpack.c.l.b16 %v3298
    %v3594 = vunpack.c.l.b16 %v3299
    %v3595 = vunpack.c.l.b16 %v3300
    %v3596 = vunpack.c.l.b16 %v3301
    %v3597 = vunpack.c.l.b16 %v3302
    %v3598 = vunpack.c.l.b16 %v3303
    %v3599 = vunpack.c.l.b16 %v3304
    %v3600 = vunpack.c.l.b16 %v3305
    %v3601 = vunpack.c.l.b16 %v3306
    %v3602 = vunpack.c.l.b16 %v3307
    %v3603 = vunpack.c.l.b16 %v3308
    %v3604 = vunpack.c.l.b16 %v3309
    %v3605 = vunpack.c.l.b16 %v3310
    %v3606 = vunpack.c.l.b16 %v3311
    %v3607 = vunpack.c.l.b16 %v3312
    %v3608 = vunpack.c.l.b16 %v3313
    %v3609 = vunpack.c.l.b16 %v3314
    %v3610 = vunpack.c.l.b16 %v3315
    %v3611 = vunpack.c.l.b16 %v3316
    %v3612 = vunpack.c.l.b16 %v3317
    %v3613 = vunpack.c.l.b16 %v3318
    %v3614 = vunpack.c.l.b16 %v3319
    %v3615 = vunpack.c.l.b16 %v3320
    %v3616 = vunpack.c.l.b16 %v3321
    %v3617 = vunpack.c.l.b16 %v3322
    %v3618 = vunpack.c.l.b16 %v3323
    %v3619 = vunpack.c.l.b16 %v3324
    %v3620 = vunpack.c.l.b16 %v3325
    %v3621 = vunpack.c.l.b16 %v3326
    %v3622 = vunpack.c.l.b16 %v3327
    %v3623 = vunpack.c.l.b16 %v3328
    %v3624 = vunpack.c.l.b16 %v3329
    %v3625 = vunpack.c.l.b16 %v3330
    %v3626 = vunpack.c.l.b16 %v3331
    %v3627 = vunpack.c.l.b16 %v3332
    %v3628 = vunpack.c.l.b16 %v3333
    %v3629 = vunpack.c.l.b16 %v3334
    %v3630 = vunpack.c.l.b16 %v3335
    %v3631 = vunpack.c.l.b16 %v3336
    %v3632 = vunpack.c.l.b16 %v3337
    %v3633 = vunpack.c.l.b16 %v3338
    %v3634 = vunpack.c.l.b16 %v3339
    %v3635 = vunpack.c.l.b16 %v3340
    %v3636 = vunpack.c.l.b16 %v3341
    %v3637 = vunpack.c.l.b16 %v3342
    %v3638 = vunpack.c.l.b16 %v3343
    %v3639 = vunpack.c.l.b16 %v3344
    %v3640 = vunpack.c.l.b16 %v3345
    %v3641 = vunpack.c.l.b16 %v3346
    %v3642 = vunpack.c.l.b16 %v3347
    %v3643 = vunpack.c.l.b16 %v3348
    %v3644 = vunpack.c.l.b16 %v3349
    %v3645 = vunpack.c.l.b16 %v3350
    %v3646 = vunpack.c.l.b16 %v3351
    %v3647 = vunpack.c.l.b16 %v3352
    %v3648 = vunpack.c.l.b16 %v3353
    %v3649 = vunpack.c.l.b16 %v3354
    %v3650 = vunpack.c.l.b16 %v3355
    %v3651 = vunpack.c.l.b16 %v3356
    %v3652 = vunpack.c.l.b16 %v3357
    %v3653 = vunpack.c.l.b16 %v3358
    %v3654 = vunpack.c.l.b16 %v3359
    %v3655 = vunpack.c.l.b16 %v3360
    %v3656 = vunpack.c.l.b16 %v3361
    %v3657 = vunpack.c.l.b16 %v3362
    %v3658 = vunpack.c.l.b16 %v3363
    %v3659 = vunpack.c.l.b16 %v3364
    %v3660 = vunpack.c.l.b16 %v3365
    %v3661 = vunpack.c.l.b16 %v3366
    %v3662 = vunpack.c.l.b16 %v3367
    %v3663 = vunpack.c.l.b16 %v3368
    %v3664 = vunpack.c.l.b16 %v3369
    %v3665 = vunpack.c.l.b16 %v3370
    %v3666 = vunpack.c.l.b16 %v3371
    %v3667 = vunpack.c.l.b16 %v3372
    %v3668 = vunpack.c.l.b16 %v3373
    %v3669 = vunpack.c.l.b16 %v3374
    %v3670 = vunpack.c.l.b16 %v3375
    %v3671 = vunpack.c.l.b16 %v3376
    %v3672 = vunpack.c.l.b16 %v3377
    %v3673 = vunpack.c.l.b16 %v3378
    %v3674 = vunpack.c.l.b16 %v3379
    %v3675 = vunpack.c.l.b16 %v3380
    %v3676 = vunpack.c.l.b16 %v3381
    %v3677 = vunpack.c.l.b16 %v3382
    %v3678 = vunpack.c.l.b16 %v3383
    %v3679 = vunpack.c.l.b16 %v3384
    %v3680 = vunpack.c.l.b16 %v3385
    %v3681 = vunpack.c.l.b16 %v3386
    %v3682 = vunpack.c.l.b16 %v3387
    %v3683 = vunpack.c.l.b16 %v3388
    %v3684 = vunpack.c.l.b16 %v3389
    %v3685 = vunpack.c.l.b16 %v3390
    %v3686 = vunpack.c.l.b16 %v3391
    %v3687 = vunpack.c.l.b16 %v3392
    %v3688 = vunpack.c.l.b16 %v3393
    %v3689 = vunpack.c.l.b16 %v3394
    %v3690 = vunpack.c.l.b16 %v3395
    %v3691 = vunpack.c.l.b16 %v3396
    %v3692 = vunpack.c.l.b16 %v3397
    %v3693 = vunpack.c.l.b16 %v3398
    %v3694 = vunpack.c.l.b16 %v3399
    %v3695 = vunpack.c.l.b16 %v3400
    %v3696 = vunpack.c.l.b16 %v3401
    %v3697 = vunpack.c.l.b16 %v3402
    %v3698 = vunpack.c.l.b16 %v3403
    %v3699 = vunpack.c.l.b16 %v3404
    %v3700 = vunpack.c.l.b16 %v3405
    %v3701 = vunpack.c.l.b16 %v3406
    %v3702 = vunpack.c.l.b16 %v3407
    %v3703 = vunpack.c.l.b16 %v3408
    %v3704 = vunpack.c.l.b16 %v3409
    %v3705 = vunpack.c.l.b16 %v3410
    %v3706 = vunpack.c.l.b16 %v3411
    %v3707 = vunpack.c.l.b16 %v3412
    %v3708 = vunpack.c.l.b16 %v3413
    %v3709 = vunpack.c.l.b16 %v3414
    %v3710 = vunpack.c.l.b16 %v3415
    %v3711 = vunpack.c.l.b16 %v3416
    %v3712 = vunpack.c.l.b16 %v3417
    %v3713 = vunpack.c.l.b16 %v3418
    %v3714 = vunpack.c.l.b16 %v3419
    %v3715 = vunpack.c.l.b16 %v3420
    %v3716 = vunpack.c.l.b16 %v3421
    %v3717 = vunpack.c.l.b16 %v3422
    %v3718 = vunpack.c.l.b16 %v3423
    %v3719 = vunpack.c.l.b16 %v3424
    %v3720 = vunpack.c.l.b16 %v3425
    %v3721 = vunpack.c.l.b16 %v3426
    %v3722 = vunpack.c.l.b16 %v3427
    %v3723 = vunpack.c.l.b16 %v3428
    %v3724 = vunpack.c.l.b16 %v3429
    %v3725 = vunpack.c.l.b16 %v3430
    %v3726 = vunpack.c.l.b16 %v3431
    %v3727 = vunpack.c.l.b16 %v3432
    %v3728 = vunpack.c.l.b16 %v3433
    %v3729 = vunpack.c.l.b16 %v3434
    %v3730 = vunpack.c.l.b16 %v3435
    %v3731 = vunpack.c.l.b16 %v3436
    %v3732 = vunpack.c.l.b16 %v3437
    %v3733 = vunpack.c.l.b16 %v3438
    %v3734 = vunpack.c.l.b16 %v3439
    %v3735 = vunpack.c.l.b16 %v3440
    %v3736 = vunpack.c.l.b16 %v3441
    %v3737 = vpack.c.b16 %v3594, %v3593
    %v3738 = vpack.c.b16 %v3596, %v3595
    %v3739 = vpack.c.b16 %v3598, %v3597
    %v3740 = vpack.c.b16 %v3600, %v3599
    %v3741 = vpack.c.b16 %v3602, %v3601
    %v3742 = vpack.c.b16 %v3604, %v3603
    %v3743 = vpack.c.b16 %v3606, %v3605
    %v3744 = vpack.c.b16 %v3608, %v3607
    %v3745 = vpack.c.b16 %v3610, %v3609
    %v3746 = vpack.c.b16 %v3612, %v3611
    %v3747 = vpack.c.b16 %v3614, %v3613
    %v3748 = vpack.c.b16 %v3616, %v3615
    %v3749 = vpack.c.b16 %v3618, %v3617
    %v3750 = vpack.c.b16 %v3620, %v3619
    %v3751 = vpack.c.b16 %v3622, %v3621
    %v3752 = vpack.c.b16 %v3624, %v3623
    %v3753 = vpack.c.b16 %v3626, %v3625
    %v3754 = vpack.c.b16 %v3628, %v3627
    %v3755 = vpack.c.b16 %v3630, %v3629
    %v3756 = vpack.c.b16 %v3632, %v3631
    %v3757 = vpack.c.b16 %v3634, %v3633
    %v3758 = vpack.c.b16 %v3636, %v3635
    %v3759 = vpack.c.b16 %v3638, %v3637
    %v3760 = vpack.c.b16 %v3640, %v3639
    %v3761 = vpack.c.b16 %v3642, %v3641
    %v3762 = vpack.c.b16 %v3644, %v3643
    %v3763 = vpack.c.b16 %v3646, %v3645
    %v3764 = vpack.c.b16 %v3648, %v3647
    %v3765 = vpack.c.b16 %v3650, %v3649
    %v3766 = vpack.c.b16 %v3652, %v3651
    %v3767 = vpack.c.b16 %v3654, %v3653
    %v3768 = vpack.c.b16 %v3656, %v3655
    %v3769 = vpack.c.b16 %v3658, %v3657
    %v3770 = vpack.c.b16 %v3660, %v3659
    %v3771 = vpack.c.b16 %v3662, %v3661
    %v3772 = vpack.c.b16 %v3664, %v3663
    %v3773 = vpack.c.b16 %v3666, %v3665
    %v3774 = vpack.c.b16 %v3668, %v3667
    %v3775 = vpack.c.b16 %v3670, %v3669
    %v3776 = vpack.c.b16 %v3672, %v3671
    %v3777 = vpack.c.b16 %v3674, %v3673
    %v3778 = vpack.c.b16 %v3676, %v3675
    %v3779 = vpack.c.b16 %v3678, %v3677
    %v3780 = vpack.c.b16 %v3680, %v3679
    %v3781 = vpack.c.b16 %v3682, %v3681
    %v3782 = vpack.c.b16 %v3684, %v3683
    %v3783 = vpack.c.b16 %v3686, %v3685
    %v3784 = vpack.c.b16 %v3688, %v3687
    %v3785 = vpack.c.b16 %v3690, %v3689
    %v3786 = vpack.c.b16 %v3692, %v3691
    %v3787 = vpack.c.b16 %v3694, %v3693
    %v3788 = vpack.c.b16 %v3696, %v3695
    %v3789 = vpack.c.b16 %v3698, %v3697
    %v3790 = vpack.c.b16 %v3700, %v3699
    %v3791 = vpack.c.b16 %v3702, %v3701
    %v3792 = vpack.c.b16 %v3704, %v3703
    %v3793 = vpack.c.b16 %v3706, %v3705
    %v3794 = vpack.c.b16 %v3708, %v3707
    %v3795 = vpack.c.b16 %v3710, %v3709
    %v3796 = vpack.c.b16 %v3712, %v3711
    %v3797 = vpack.c.b16 %v3714, %v3713
    %v3798 = vpack.c.b16 %v3716, %v3715
    %v3799 = vpack.c.b16 %v3718, %v3717
    %v3800 = vpack.c.b16 %v3720, %v3719
    %v3801 = vpack.c.b16 %v3722, %v3721
    %v3802 = vpack.c.b16 %v3724, %v3723
    %v3803 = vpack.c.b16 %v3726, %v3725
    %v3804 = vpack.c.b16 %v3728, %v3727
    %v3805 = vpack.c.b16 %v3730, %v3729
    %v3806 = vpack.c.b16 %v3732, %v3731
    %v3807 = vpack.c.b16 %v3734, %v3733
    %v3808 = vpack.c.b16 %v3736, %v3735
    %3881 = vmatprep.subr.bf16.mxu0 0
    %3882 = vmatpush1.bf16.msra.mxu0 %v3744
    %3883 = vmatprep.subr.bf16.mxu0 0
    %3884 = vmatpush1.bf16.msra.mxu0 %v3743
    %3885 = vmatprep.subr.bf16.mxu0 0
    %3886 = vmatpush1.bf16.msra.mxu0 %v3742
    %3887 = vmatprep.subr.bf16.mxu0 0
    %3888 = vmatpush1.bf16.msra.mxu0 %v3741
    %3889 = vmatprep.subr.bf16.mxu0 0
    %3890 = vmatpush1.bf16.msra.mxu0 %v3740
    %3891 = vmatprep.subr.bf16.mxu0 0
    %3892 = vmatpush1.bf16.msra.mxu0 %v3739
    %3893 = vmatprep.subr.bf16.mxu0 0
    %3894 = vmatpush1.bf16.msra.mxu0 %v3738
    %3895 = vmatprep.subr.bf16.mxu0 0
    %3896 = vmatpush1.bf16.msra.mxu0 %v3737
    %3897 = vmatprep.subr.bf16.mxu0 0
    %3898 = vmatpush2.bf16.msra.mxu0 %v3752
    %3899 = vmatprep.subr.bf16.mxu0 0
    %3900 = vmatpush2.bf16.msra.mxu0 %v3751
    %3901 = vmatprep.subr.bf16.mxu0 0
    %3902 = vmatpush2.bf16.msra.mxu0 %v3750
    %3903 = vmatprep.subr.bf16.mxu0 0
    %3904 = vmatpush2.bf16.msra.mxu0 %v3749
    %3905 = vmatprep.subr.bf16.mxu0 0
    %3906 = vmatpush2.bf16.msra.mxu0 %v3748
    %3907 = vmatprep.subr.bf16.mxu0 0
    %3908 = vmatpush2.bf16.msra.mxu0 %v3747
    %3909 = vmatprep.subr.bf16.mxu0 0
    %3910 = vmatpush2.bf16.msra.mxu0 %v3746
    %3911 = vmatprep.subr.bf16.mxu0 0
    %3912 = vmatpush2.bf16.msra.mxu0 %v3745
    %3913 = vmatprep.mubr.bf16.mxu0 %v2337
    %3914 = vmatmul.mubr.bf16.gmra.mxu0 %v2241
    %v3915 = vpop.f32.mrf.mxu0
    %v3916 = vadd.f32 %v3447, %v3915
    %v3917 = vpop.f32.mrf.mxu0
    %v3918 = vpop.f32.mrf.mxu0
    %v3919 = vadd.f32 %v3447, %v3918
    %v3920 = vpop.f32.mrf.mxu0
    %3921 = vmatprep.mubr.bf16.mxu0 %v2338
    %3922 = vmatmul.mubr.bf16.gmra.mxu0 %v2242
    %v3923 = vpop.f32.mrf.mxu0
    %v3924 = vadd.f32 %v3447, %v3923
    %v3925 = vpop.f32.mrf.mxu0
    %v3926 = vpop.f32.mrf.mxu0
    %v3927 = vadd.f32 %v3447, %v3926
    %v3928 = vpop.f32.mrf.mxu0
    %3929 = vmatprep.mubr.bf16.mxu0 %v2339
    %3930 = vmatmul.mubr.bf16.gmra.mxu0 %v2243
    %v3931 = vpop.f32.mrf.mxu0
    %v3932 = vadd.f32 %v3447, %v3931
    %v3933 = vpop.f32.mrf.mxu0
    %v3934 = vpop.f32.mrf.mxu0
    %v3935 = vadd.f32 %v3447, %v3934
    %v3936 = vpop.f32.mrf.mxu0
    %3937 = vmatprep.mubr.bf16.mxu0 %v2340
    %3938 = vmatmul.mubr.bf16.gmra.mxu0 %v2244
    %v3939 = vpop.f32.mrf.mxu0
    %v3940 = vadd.f32 %v3447, %v3939
    %v3941 = vpop.f32.mrf.mxu0
    %v3942 = vpop.f32.mrf.mxu0
    %v3943 = vadd.f32 %v3447, %v3942
    %v3944 = vpop.f32.mrf.mxu0
    %3945 = vmatprep.mubr.bf16.mxu0 %v2341
    %3946 = vmatmul.mubr.bf16.gmra.mxu0 %v2245
    %v3947 = vpop.f32.mrf.mxu0
    %v3948 = vadd.f32 %v3447, %v3947
    %v3949 = vpop.f32.mrf.mxu0
    %v3950 = vpop.f32.mrf.mxu0
    %v3951 = vadd.f32 %v3447, %v3950
    %v3952 = vpop.f32.mrf.mxu0
    %3953 = vmatprep.mubr.bf16.mxu0 %v2342
    %3954 = vmatmul.mubr.bf16.gmra.mxu0 %v2246
    %v3955 = vpop.f32.mrf.mxu0
    %v3956 = vadd.f32 %v3447, %v3955
    %v3957 = vpop.f32.mrf.mxu0
    %v3958 = vpop.f32.mrf.mxu0
    %v3959 = vadd.f32 %v3447, %v3958
    %v3960 = vpop.f32.mrf.mxu0
    %3961 = vmatprep.mubr.bf16.mxu0 %v2343
    %3962 = vmatmul.mubr.bf16.gmra.mxu0 %v2247
    %v3963 = vpop.f32.mrf.mxu0
    %v3964 = vadd.f32 %v3447, %v3963
    %v3965 = vpop.f32.mrf.mxu0
    %v3966 = vpop.f32.mrf.mxu0
    %v3967 = vadd.f32 %v3447, %v3966
    %v3968 = vpop.f32.mrf.mxu0
    %3969 = vmatprep.mubr.bf16.mxu0 %v2344
    %3970 = vmatmul.mubr.bf16.gmra.mxu0 %v2248
    %v3971 = vpop.f32.mrf.mxu0
    %v3972 = vadd.f32 %v3447, %v3971
    %v3973 = vpop.f32.mrf.mxu0
    %v3974 = vpop.f32.mrf.mxu0
    %v3975 = vadd.f32 %v3447, %v3974
    %v3976 = vpop.f32.mrf.mxu0
    %3977 = vmatprep.mubr.bf16.mxu0 %v2345
    %3978 = vmatmul.mubr.bf16.gmra.mxu0 %v2249
    %v3979 = vpop.f32.mrf.mxu0
    %v3980 = vadd.f32 %v3447, %v3979
    %v3981 = vpop.f32.mrf.mxu0
    %v3982 = vpop.f32.mrf.mxu0
    %v3983 = vadd.f32 %v3447, %v3982
    %v3984 = vpop.f32.mrf.mxu0
    %3985 = vmatprep.mubr.bf16.mxu0 %v2346
    %3986 = vmatmul.mubr.bf16.gmra.mxu0 %v2250
    %v3987 = vpop.f32.mrf.mxu0
    %v3988 = vadd.f32 %v3447, %v3987
    %v3989 = vpop.f32.mrf.mxu0
    %v3990 = vpop.f32.mrf.mxu0
    %v3991 = vadd.f32 %v3447, %v3990
    %v3992 = vpop.f32.mrf.mxu0
    %3993 = vmatprep.mubr.bf16.mxu0 %v2347
    %3994 = vmatmul.mubr.bf16.gmra.mxu0 %v2251
    %v3995 = vpop.f32.mrf.mxu0
    %v3996 = vadd.f32 %v3447, %v3995
    %v3997 = vpop.f32.mrf.mxu0
    %v3998 = vpop.f32.mrf.mxu0
    %v3999 = vadd.f32 %v3447, %v3998
    %v4000 = vpop.f32.mrf.mxu0
    %4001 = vmatprep.mubr.bf16.mxu0 %v2348
    %4002 = vmatmul.mubr.bf16.gmra.mxu0 %v2252
    %v4003 = vpop.f32.mrf.mxu0
    %v4004 = vadd.f32 %v3447, %v4003
    %v4005 = vpop.f32.mrf.mxu0
    %v4006 = vpop.f32.mrf.mxu0
    %v4007 = vadd.f32 %v3447, %v4006
    %v4008 = vpop.f32.mrf.mxu0
    %4009 = vmatprep.mubr.bf16.mxu0 %v2349
    %4010 = vmatmul.mubr.bf16.gmra.mxu0 %v2253
    %v4011 = vpop.f32.mrf.mxu0
    %v4012 = vadd.f32 %v3447, %v4011
    %v4013 = vpop.f32.mrf.mxu0
    %v4014 = vpop.f32.mrf.mxu0
    %v4015 = vadd.f32 %v3447, %v4014
    %v4016 = vpop.f32.mrf.mxu0
    %4017 = vmatprep.mubr.bf16.mxu0 %v2350
    %4018 = vmatmul.mubr.bf16.gmra.mxu0 %v2254
    %v4019 = vpop.f32.mrf.mxu0
    %v4020 = vadd.f32 %v3447, %v4019
    %v4021 = vpop.f32.mrf.mxu0
    %v4022 = vpop.f32.mrf.mxu0
    %v4023 = vadd.f32 %v3447, %v4022
    %v4024 = vpop.f32.mrf.mxu0
    %4025 = vmatprep.mubr.bf16.mxu0 %v2351
    %4026 = vmatmul.mubr.bf16.gmra.mxu0 %v2255
    %v4027 = vpop.f32.mrf.mxu0
    %v4028 = vadd.f32 %v3447, %v4027
    %v4029 = vpop.f32.mrf.mxu0
    %v4030 = vpop.f32.mrf.mxu0
    %v4031 = vadd.f32 %v3447, %v4030
    %v4032 = vpop.f32.mrf.mxu0
    %4033 = vmatprep.mubr.bf16.mxu0 %v2352
    %4034 = vmatmul.mubr.bf16.gmra.mxu0 %v2256
    %v4035 = vpop.f32.mrf.mxu0
    %v4036 = vadd.f32 %v3447, %v4035
    %v4037 = vpop.f32.mrf.mxu0
    %v4038 = vpop.f32.mrf.mxu0
    %v4039 = vadd.f32 %v3447, %v4038
    %v4040 = vpop.f32.mrf.mxu0
    %4041 = vmatprep.mubr.bf16.mxu0 %v2353
    %4042 = vmatmul.mubr.bf16.gmra.mxu0 %v2257
    %v4043 = vpop.f32.mrf.mxu0
    %v4044 = vadd.f32 %v3447, %v4043
    %v4045 = vpop.f32.mrf.mxu0
    %v4046 = vpop.f32.mrf.mxu0
    %v4047 = vadd.f32 %v3447, %v4046
    %v4048 = vpop.f32.mrf.mxu0
    %4049 = vmatprep.mubr.bf16.mxu0 %v2354
    %4050 = vmatmul.mubr.bf16.gmra.mxu0 %v2258
    %v4051 = vpop.f32.mrf.mxu0
    %v4052 = vadd.f32 %v3447, %v4051
    %v4053 = vpop.f32.mrf.mxu0
    %v4054 = vpop.f32.mrf.mxu0
    %v4055 = vadd.f32 %v3447, %v4054
    %v4056 = vpop.f32.mrf.mxu0
    %4057 = vmatprep.mubr.bf16.mxu0 %v2355
    %4058 = vmatmul.mubr.bf16.gmra.mxu0 %v2259
    %v4059 = vpop.f32.mrf.mxu0
    %v4060 = vadd.f32 %v3447, %v4059
    %v4061 = vpop.f32.mrf.mxu0
    %v4062 = vpop.f32.mrf.mxu0
    %v4063 = vadd.f32 %v3447, %v4062
    %v4064 = vpop.f32.mrf.mxu0
    %4065 = vmatprep.mubr.bf16.mxu0 %v2356
    %4066 = vmatmul.mubr.bf16.gmra.mxu0 %v2260
    %v4067 = vpop.f32.mrf.mxu0
    %v4068 = vadd.f32 %v3447, %v4067
    %v4069 = vpop.f32.mrf.mxu0
    %v4070 = vpop.f32.mrf.mxu0
    %v4071 = vadd.f32 %v3447, %v4070
    %v4072 = vpop.f32.mrf.mxu0
    %4073 = vmatprep.mubr.bf16.mxu0 %v2357
    %4074 = vmatmul.mubr.bf16.gmra.mxu0 %v2261
    %v4075 = vpop.f32.mrf.mxu0
    %v4076 = vadd.f32 %v3447, %v4075
    %v4077 = vpop.f32.mrf.mxu0
    %v4078 = vpop.f32.mrf.mxu0
    %v4079 = vadd.f32 %v3447, %v4078
    %v4080 = vpop.f32.mrf.mxu0
    %4081 = vmatprep.mubr.bf16.mxu0 %v2358
    %4082 = vmatmul.mubr.bf16.gmra.mxu0 %v2262
    %v4083 = vpop.f32.mrf.mxu0
    %v4084 = vadd.f32 %v3447, %v4083
    %v4085 = vpop.f32.mrf.mxu0
    %v4086 = vpop.f32.mrf.mxu0
    %v4087 = vadd.f32 %v3447, %v4086
    %v4088 = vpop.f32.mrf.mxu0
    %4089 = vmatprep.mubr.bf16.mxu0 %v2359
    %4090 = vmatmul.mubr.bf16.gmra.mxu0 %v2263
    %v4091 = vpop.f32.mrf.mxu0
    %v4092 = vadd.f32 %v3447, %v4091
    %v4093 = vpop.f32.mrf.mxu0
    %v4094 = vpop.f32.mrf.mxu0
    %v4095 = vadd.f32 %v3447, %v4094
    %v4096 = vpop.f32.mrf.mxu0
    %4097 = vmatprep.mubr.bf16.mxu0 %v2360
    %4098 = vmatmul.mubr.bf16.gmra.mxu0 %v2264
    %v4099 = vpop.f32.mrf.mxu0
    %v4100 = vadd.f32 %v3447, %v4099
    %v4101 = vpop.f32.mrf.mxu0
    %v4102 = vpop.f32.mrf.mxu0
    %v4103 = vadd.f32 %v3447, %v4102
    %v4104 = vpop.f32.mrf.mxu0
    %4105 = vmatprep.mubr.bf16.mxu0 %v2361
    %4106 = vmatmul.mubr.bf16.gmra.mxu0 %v2265
    %v4107 = vpop.f32.mrf.mxu0
    %v4108 = vadd.f32 %v3447, %v4107
    %v4109 = vpop.f32.mrf.mxu0
    %v4110 = vpop.f32.mrf.mxu0
    %v4111 = vadd.f32 %v3447, %v4110
    %v4112 = vpop.f32.mrf.mxu0
    %4113 = vmatprep.mubr.bf16.mxu0 %v2362
    %4114 = vmatmul.mubr.bf16.gmra.mxu0 %v2266
    %v4115 = vpop.f32.mrf.mxu0
    %v4116 = vadd.f32 %v3447, %v4115
    %v4117 = vpop.f32.mrf.mxu0
    %v4118 = vpop.f32.mrf.mxu0
    %v4119 = vadd.f32 %v3447, %v4118
    %v4120 = vpop.f32.mrf.mxu0
    %4121 = vmatprep.mubr.bf16.mxu0 %v2363
    %4122 = vmatmul.mubr.bf16.gmra.mxu0 %v2267
    %v4123 = vpop.f32.mrf.mxu0
    %v4124 = vadd.f32 %v3447, %v4123
    %v4125 = vpop.f32.mrf.mxu0
    %v4126 = vpop.f32.mrf.mxu0
    %v4127 = vadd.f32 %v3447, %v4126
    %v4128 = vpop.f32.mrf.mxu0
    %4129 = vmatprep.mubr.bf16.mxu0 %v2364
    %4130 = vmatmul.mubr.bf16.gmra.mxu0 %v2268
    %v4131 = vpop.f32.mrf.mxu0
    %v4132 = vadd.f32 %v3447, %v4131
    %v4133 = vpop.f32.mrf.mxu0
    %v4134 = vpop.f32.mrf.mxu0
    %v4135 = vadd.f32 %v3447, %v4134
    %v4136 = vpop.f32.mrf.mxu0
    %4137 = vmatprep.mubr.bf16.mxu0 %v2365
    %4138 = vmatmul.mubr.bf16.gmra.mxu0 %v2269
    %v4139 = vpop.f32.mrf.mxu0
    %v4140 = vadd.f32 %v3447, %v4139
    %v4141 = vpop.f32.mrf.mxu0
    %v4142 = vpop.f32.mrf.mxu0
    %v4143 = vadd.f32 %v3447, %v4142
    %v4144 = vpop.f32.mrf.mxu0
    %4145 = vmatprep.mubr.bf16.mxu0 %v2366
    %4146 = vmatmul.mubr.bf16.gmra.mxu0 %v2270
    %v4147 = vpop.f32.mrf.mxu0
    %v4148 = vadd.f32 %v3447, %v4147
    %v4149 = vpop.f32.mrf.mxu0
    %v4150 = vpop.f32.mrf.mxu0
    %v4151 = vadd.f32 %v3447, %v4150
    %v4152 = vpop.f32.mrf.mxu0
    %4153 = vmatprep.mubr.bf16.mxu0 %v2367
    %4154 = vmatmul.mubr.bf16.gmra.mxu0 %v2271
    %v4155 = vpop.f32.mrf.mxu0
    %v4156 = vadd.f32 %v3447, %v4155
    %v4157 = vpop.f32.mrf.mxu0
    %v4158 = vpop.f32.mrf.mxu0
    %v4159 = vadd.f32 %v3447, %v4158
    %v4160 = vpop.f32.mrf.mxu0
    %4161 = vmatprep.mubr.bf16.mxu0 %v2368
    %4162 = vmatmul.mubr.bf16.gmra.mxu0 %v2272
    %v4163 = vpop.f32.mrf.mxu0
    %v4164 = vadd.f32 %v3447, %v4163
    %v4165 = vpop.f32.mrf.mxu0
    %v4166 = vpop.f32.mrf.mxu0
    %v4167 = vadd.f32 %v3447, %v4166
    %v4168 = vpop.f32.mrf.mxu0
    %4169 = vdwg.mxu0
    %4170 = vmatprep.subr.bf16.mxu0 0
    %4171 = vmatpush1.bf16.msra.mxu0 %v3760
    %4172 = vmatprep.subr.bf16.mxu0 0
    %4173 = vmatpush1.bf16.msra.mxu0 %v3759
    %4174 = vmatprep.subr.bf16.mxu0 0
    %4175 = vmatpush1.bf16.msra.mxu0 %v3758
    %4176 = vmatprep.subr.bf16.mxu0 0
    %4177 = vmatpush1.bf16.msra.mxu0 %v3757
    %4178 = vmatprep.subr.bf16.mxu0 0
    %4179 = vmatpush1.bf16.msra.mxu0 %v3756
    %4180 = vmatprep.subr.bf16.mxu0 0
    %4181 = vmatpush1.bf16.msra.mxu0 %v3755
    %4182 = vmatprep.subr.bf16.mxu0 0
    %4183 = vmatpush1.bf16.msra.mxu0 %v3754
    %4184 = vmatprep.subr.bf16.mxu0 0
    %4185 = vmatpush1.bf16.msra.mxu0 %v3753
    %4186 = vmatprep.subr.bf16.mxu0 0
    %4187 = vmatpush2.bf16.msra.mxu0 %v3768
    %4188 = vmatprep.subr.bf16.mxu0 0
    %4189 = vmatpush2.bf16.msra.mxu0 %v3767
    %4190 = vmatprep.subr.bf16.mxu0 0
    %4191 = vmatpush2.bf16.msra.mxu0 %v3766
    %4192 = vmatprep.subr.bf16.mxu0 0
    %4193 = vmatpush2.bf16.msra.mxu0 %v3765
    %4194 = vmatprep.subr.bf16.mxu0 0
    %4195 = vmatpush2.bf16.msra.mxu0 %v3764
    %4196 = vmatprep.subr.bf16.mxu0 0
    %4197 = vmatpush2.bf16.msra.mxu0 %v3763
    %4198 = vmatprep.subr.bf16.mxu0 0
    %4199 = vmatpush2.bf16.msra.mxu0 %v3762
    %4200 = vmatprep.subr.bf16.mxu0 0
    %4201 = vmatpush2.bf16.msra.mxu0 %v3761
    %4202 = vmatprep.mubr.bf16.mxu0 %v2722
    %4203 = vmatmul.mubr.bf16.gmra.mxu0 %v2626
    %v4204 = vpop.f32.mrf.mxu0
    %v4205 = vadd.f32 %v3916, %v4204
    %v4206 = vpop.f32.mrf.mxu0
    %v4207 = vpop.f32.mrf.mxu0
    %v4208 = vadd.f32 %v3919, %v4207
    %v4209 = vpop.f32.mrf.mxu0
    %4210 = vmatprep.mubr.bf16.mxu0 %v2723
    %4211 = vmatmul.mubr.bf16.gmra.mxu0 %v2627
    %v4212 = vpop.f32.mrf.mxu0
    %v4213 = vadd.f32 %v3924, %v4212
    %v4214 = vpop.f32.mrf.mxu0
    %v4215 = vpop.f32.mrf.mxu0
    %v4216 = vadd.f32 %v3927, %v4215
    %v4217 = vpop.f32.mrf.mxu0
    %4218 = vmatprep.mubr.bf16.mxu0 %v2724
    %4219 = vmatmul.mubr.bf16.gmra.mxu0 %v2628
    %v4220 = vpop.f32.mrf.mxu0
    %v4221 = vadd.f32 %v3932, %v4220
    %v4222 = vpop.f32.mrf.mxu0
    %v4223 = vpop.f32.mrf.mxu0
    %v4224 = vadd.f32 %v3935, %v4223
    %v4225 = vpop.f32.mrf.mxu0
    %4226 = vmatprep.mubr.bf16.mxu0 %v2725
    %4227 = vmatmul.mubr.bf16.gmra.mxu0 %v2629
    %v4228 = vpop.f32.mrf.mxu0
    %v4229 = vadd.f32 %v3940, %v4228
    %v4230 = vpop.f32.mrf.mxu0
    %v4231 = vpop.f32.mrf.mxu0
    %v4232 = vadd.f32 %v3943, %v4231
    %v4233 = vpop.f32.mrf.mxu0
    %4234 = vmatprep.mubr.bf16.mxu0 %v2726
    %4235 = vmatmul.mubr.bf16.gmra.mxu0 %v2630
    %v4236 = vpop.f32.mrf.mxu0
    %v4237 = vadd.f32 %v3948, %v4236
    %v4238 = vpop.f32.mrf.mxu0
    %v4239 = vpop.f32.mrf.mxu0
    %v4240 = vadd.f32 %v3951, %v4239
    %v4241 = vpop.f32.mrf.mxu0
    %4242 = vmatprep.mubr.bf16.mxu0 %v2727
    %4243 = vmatmul.mubr.bf16.gmra.mxu0 %v2631
    %v4244 = vpop.f32.mrf.mxu0
    %v4245 = vadd.f32 %v3956, %v4244
    %v4246 = vpop.f32.mrf.mxu0
    %v4247 = vpop.f32.mrf.mxu0
    %v4248 = vadd.f32 %v3959, %v4247
    %v4249 = vpop.f32.mrf.mxu0
    %4250 = vmatprep.mubr.bf16.mxu0 %v2728
    %4251 = vmatmul.mubr.bf16.gmra.mxu0 %v2632
    %v4252 = vpop.f32.mrf.mxu0
    %v4253 = vadd.f32 %v3964, %v4252
    %v4254 = vpop.f32.mrf.mxu0
    %v4255 = vpop.f32.mrf.mxu0
    %v4256 = vadd.f32 %v3967, %v4255
    %v4257 = vpop.f32.mrf.mxu0
    %4258 = vmatprep.mubr.bf16.mxu0 %v2729
    %4259 = vmatmul.mubr.bf16.gmra.mxu0 %v2633
    %v4260 = vpop.f32.mrf.mxu0
    %v4261 = vadd.f32 %v3972, %v4260
    %v4262 = vpop.f32.mrf.mxu0
    %v4263 = vpop.f32.mrf.mxu0
    %v4264 = vadd.f32 %v3975, %v4263
    %v4265 = vpop.f32.mrf.mxu0
    %4266 = vmatprep.mubr.bf16.mxu0 %v2730
    %4267 = vmatmul.mubr.bf16.gmra.mxu0 %v2634
    %v4268 = vpop.f32.mrf.mxu0
    %v4269 = vadd.f32 %v3980, %v4268
    %v4270 = vpop.f32.mrf.mxu0
    %v4271 = vpop.f32.mrf.mxu0
    %v4272 = vadd.f32 %v3983, %v4271
    %v4273 = vpop.f32.mrf.mxu0
    %4274 = vmatprep.mubr.bf16.mxu0 %v2731
    %4275 = vmatmul.mubr.bf16.gmra.mxu0 %v2635
    %v4276 = vpop.f32.mrf.mxu0
    %v4277 = vadd.f32 %v3988, %v4276
    %v4278 = vpop.f32.mrf.mxu0
    %v4279 = vpop.f32.mrf.mxu0
    %v4280 = vadd.f32 %v3991, %v4279
    %v4281 = vpop.f32.mrf.mxu0
    %4282 = vmatprep.mubr.bf16.mxu0 %v2732
    %4283 = vmatmul.mubr.bf16.gmra.mxu0 %v2636
    %v4284 = vpop.f32.mrf.mxu0
    %v4285 = vadd.f32 %v3996, %v4284
    %v4286 = vpop.f32.mrf.mxu0
    %v4287 = vpop.f32.mrf.mxu0
    %v4288 = vadd.f32 %v3999, %v4287
    %v4289 = vpop.f32.mrf.mxu0
    %4290 = vmatprep.mubr.bf16.mxu0 %v2733
    %4291 = vmatmul.mubr.bf16.gmra.mxu0 %v2637
    %v4292 = vpop.f32.mrf.mxu0
    %v4293 = vadd.f32 %v4004, %v4292
    %v4294 = vpop.f32.mrf.mxu0
    %v4295 = vpop.f32.mrf.mxu0
    %v4296 = vadd.f32 %v4007, %v4295
    %v4297 = vpop.f32.mrf.mxu0
    %4298 = vmatprep.mubr.bf16.mxu0 %v2734
    %4299 = vmatmul.mubr.bf16.gmra.mxu0 %v2638
    %v4300 = vpop.f32.mrf.mxu0
    %v4301 = vadd.f32 %v4012, %v4300
    %v4302 = vpop.f32.mrf.mxu0
    %v4303 = vpop.f32.mrf.mxu0
    %v4304 = vadd.f32 %v4015, %v4303
    %v4305 = vpop.f32.mrf.mxu0
    %4306 = vmatprep.mubr.bf16.mxu0 %v2735
    %4307 = vmatmul.mubr.bf16.gmra.mxu0 %v2639
    %v4308 = vpop.f32.mrf.mxu0
    %v4309 = vadd.f32 %v4020, %v4308
    %v4310 = vpop.f32.mrf.mxu0
    %v4311 = vpop.f32.mrf.mxu0
    %v4312 = vadd.f32 %v4023, %v4311
    %v4313 = vpop.f32.mrf.mxu0
    %4314 = vmatprep.mubr.bf16.mxu0 %v2736
    %4315 = vmatmul.mubr.bf16.gmra.mxu0 %v2640
    %v4316 = vpop.f32.mrf.mxu0
    %v4317 = vadd.f32 %v4028, %v4316
    %v4318 = vpop.f32.mrf.mxu0
    %v4319 = vpop.f32.mrf.mxu0
    %v4320 = vadd.f32 %v4031, %v4319
    %v4321 = vpop.f32.mrf.mxu0
    %4322 = vmatprep.mubr.bf16.mxu0 %v2737
    %4323 = vmatmul.mubr.bf16.gmra.mxu0 %v2641
    %v4324 = vpop.f32.mrf.mxu0
    %v4325 = vadd.f32 %v4036, %v4324
    %v4326 = vpop.f32.mrf.mxu0
    %v4327 = vpop.f32.mrf.mxu0
    %v4328 = vadd.f32 %v4039, %v4327
    %v4329 = vpop.f32.mrf.mxu0
    %4330 = vmatprep.mubr.bf16.mxu0 %v2738
    %4331 = vmatmul.mubr.bf16.gmra.mxu0 %v2642
    %v4332 = vpop.f32.mrf.mxu0
    %v4333 = vadd.f32 %v4044, %v4332
    %v4334 = vpop.f32.mrf.mxu0
    %v4335 = vpop.f32.mrf.mxu0
    %v4336 = vadd.f32 %v4047, %v4335
    %v4337 = vpop.f32.mrf.mxu0
    %4338 = vmatprep.mubr.bf16.mxu0 %v2739
    %4339 = vmatmul.mubr.bf16.gmra.mxu0 %v2643
    %v4340 = vpop.f32.mrf.mxu0
    %v4341 = vadd.f32 %v4052, %v4340
    %v4342 = vpop.f32.mrf.mxu0
    %v4343 = vpop.f32.mrf.mxu0
    %v4344 = vadd.f32 %v4055, %v4343
    %v4345 = vpop.f32.mrf.mxu0
    %4346 = vmatprep.mubr.bf16.mxu0 %v2740
    %4347 = vmatmul.mubr.bf16.gmra.mxu0 %v2644
    %v4348 = vpop.f32.mrf.mxu0
    %v4349 = vadd.f32 %v4060, %v4348
    %v4350 = vpop.f32.mrf.mxu0
    %v4351 = vpop.f32.mrf.mxu0
    %v4352 = vadd.f32 %v4063, %v4351
    %v4353 = vpop.f32.mrf.mxu0
    %4354 = vmatprep.mubr.bf16.mxu0 %v2741
    %4355 = vmatmul.mubr.bf16.gmra.mxu0 %v2645
    %v4356 = vpop.f32.mrf.mxu0
    %v4357 = vadd.f32 %v4068, %v4356
    %v4358 = vpop.f32.mrf.mxu0
    %v4359 = vpop.f32.mrf.mxu0
    %v4360 = vadd.f32 %v4071, %v4359
    %v4361 = vpop.f32.mrf.mxu0
    %4362 = vmatprep.mubr.bf16.mxu0 %v2742
    %4363 = vmatmul.mubr.bf16.gmra.mxu0 %v2646
    %v4364 = vpop.f32.mrf.mxu0
    %v4365 = vadd.f32 %v4076, %v4364
    %v4366 = vpop.f32.mrf.mxu0
    %v4367 = vpop.f32.mrf.mxu0
    %v4368 = vadd.f32 %v4079, %v4367
    %v4369 = vpop.f32.mrf.mxu0
    %4370 = vmatprep.mubr.bf16.mxu0 %v2743
    %4371 = vmatmul.mubr.bf16.gmra.mxu0 %v2647
    %v4372 = vpop.f32.mrf.mxu0
    %v4373 = vadd.f32 %v4084, %v4372
    %v4374 = vpop.f32.mrf.mxu0
    %v4375 = vpop.f32.mrf.mxu0
    %v4376 = vadd.f32 %v4087, %v4375
    %v4377 = vpop.f32.mrf.mxu0
    %4378 = vmatprep.mubr.bf16.mxu0 %v2744
    %4379 = vmatmul.mubr.bf16.gmra.mxu0 %v2648
    %v4380 = vpop.f32.mrf.mxu0
    %v4381 = vadd.f32 %v4092, %v4380
    %v4382 = vpop.f32.mrf.mxu0
    %v4383 = vpop.f32.mrf.mxu0
    %v4384 = vadd.f32 %v4095, %v4383
    %v4385 = vpop.f32.mrf.mxu0
    %4386 = vmatprep.mubr.bf16.mxu0 %v2745
    %4387 = vmatmul.mubr.bf16.gmra.mxu0 %v2649
    %v4388 = vpop.f32.mrf.mxu0
    %v4389 = vadd.f32 %v4100, %v4388
    %v4390 = vpop.f32.mrf.mxu0
    %v4391 = vpop.f32.mrf.mxu0
    %v4392 = vadd.f32 %v4103, %v4391
    %v4393 = vpop.f32.mrf.mxu0
    %4394 = vmatprep.mubr.bf16.mxu0 %v2746
    %4395 = vmatmul.mubr.bf16.gmra.mxu0 %v2650
    %v4396 = vpop.f32.mrf.mxu0
    %v4397 = vadd.f32 %v4108, %v4396
    %v4398 = vpop.f32.mrf.mxu0
    %v4399 = vpop.f32.mrf.mxu0
    %v4400 = vadd.f32 %v4111, %v4399
    %v4401 = vpop.f32.mrf.mxu0
    %4402 = vmatprep.mubr.bf16.mxu0 %v2747
    %4403 = vmatmul.mubr.bf16.gmra.mxu0 %v2651
    %v4404 = vpop.f32.mrf.mxu0
    %v4405 = vadd.f32 %v4116, %v4404
    %v4406 = vpop.f32.mrf.mxu0
    %v4407 = vpop.f32.mrf.mxu0
    %v4408 = vadd.f32 %v4119, %v4407
    %v4409 = vpop.f32.mrf.mxu0
    %4410 = vmatprep.mubr.bf16.mxu0 %v2748
    %4411 = vmatmul.mubr.bf16.gmra.mxu0 %v2652
    %v4412 = vpop.f32.mrf.mxu0
    %v4413 = vadd.f32 %v4124, %v4412
    %v4414 = vpop.f32.mrf.mxu0
    %v4415 = vpop.f32.mrf.mxu0
    %v4416 = vadd.f32 %v4127, %v4415
    %v4417 = vpop.f32.mrf.mxu0
    %4418 = vmatprep.mubr.bf16.mxu0 %v2749
    %4419 = vmatmul.mubr.bf16.gmra.mxu0 %v2653
    %v4420 = vpop.f32.mrf.mxu0
    %v4421 = vadd.f32 %v4132, %v4420
    %v4422 = vpop.f32.mrf.mxu0
    %v4423 = vpop.f32.mrf.mxu0
    %v4424 = vadd.f32 %v4135, %v4423
    %v4425 = vpop.f32.mrf.mxu0
    %4426 = vmatprep.mubr.bf16.mxu0 %v2750
    %4427 = vmatmul.mubr.bf16.gmra.mxu0 %v2654
    %v4428 = vpop.f32.mrf.mxu0
    %v4429 = vadd.f32 %v4140, %v4428
    %v4430 = vpop.f32.mrf.mxu0
    %v4431 = vpop.f32.mrf.mxu0
    %v4432 = vadd.f32 %v4143, %v4431
    %v4433 = vpop.f32.mrf.mxu0
    %4434 = vmatprep.mubr.bf16.mxu0 %v2751
    %4435 = vmatmul.mubr.bf16.gmra.mxu0 %v2655
    %v4436 = vpop.f32.mrf.mxu0
    %v4437 = vadd.f32 %v4148, %v4436
    %v4438 = vpop.f32.mrf.mxu0
    %v4439 = vpop.f32.mrf.mxu0
    %v4440 = vadd.f32 %v4151, %v4439
    %v4441 = vpop.f32.mrf.mxu0
    %4442 = vmatprep.mubr.bf16.mxu0 %v2752
    %4443 = vmatmul.mubr.bf16.gmra.mxu0 %v2656
    %v4444 = vpop.f32.mrf.mxu0
    %v4445 = vadd.f32 %v4156, %v4444
    %v4446 = vpop.f32.mrf.mxu0
    %v4447 = vpop.f32.mrf.mxu0
    %v4448 = vadd.f32 %v4159, %v4447
    %v4449 = vpop.f32.mrf.mxu0
    %4450 = vmatprep.mubr.bf16.mxu0 %v2753
    %4451 = vmatmul.mubr.bf16.gmra.mxu0 %v2657
    %v4452 = vpop.f32.mrf.mxu0
    %v4453 = vadd.f32 %v4164, %v4452
    %v4454 = vpop.f32.mrf.mxu0
    %v4455 = vpop.f32.mrf.mxu0
    %v4456 = vadd.f32 %v4167, %v4455
    %v4457 = vpop.f32.mrf.mxu0
    %4458 = vdwg.mxu0
    %4459 = vmatprep.subr.bf16.mxu0 0
    %4460 = vmatpush1.bf16.msra.mxu0 %v3776
    %4461 = vmatprep.subr.bf16.mxu0 0
    %4462 = vmatpush1.bf16.msra.mxu0 %v3775
    %4463 = vmatprep.subr.bf16.mxu0 0
    %4464 = vmatpush1.bf16.msra.mxu0 %v3774
    %4465 = vmatprep.subr.bf16.mxu0 0
    %4466 = vmatpush1.bf16.msra.mxu0 %v3773
    %4467 = vmatprep.subr.bf16.mxu0 0
    %4468 = vmatpush1.bf16.msra.mxu0 %v3772
    %4469 = vmatprep.subr.bf16.mxu0 0
    %4470 = vmatpush1.bf16.msra.mxu0 %v3771
    %4471 = vmatprep.subr.bf16.mxu0 0
    %4472 = vmatpush1.bf16.msra.mxu0 %v3770
    %4473 = vmatprep.subr.bf16.mxu0 0
    %4474 = vmatpush1.bf16.msra.mxu0 %v3769
    %4475 = vmatprep.subr.bf16.mxu0 0
    %4476 = vmatpush2.bf16.msra.mxu0 %v3784
    %4477 = vmatprep.subr.bf16.mxu0 0
    %4478 = vmatpush2.bf16.msra.mxu0 %v3783
    %4479 = vmatprep.subr.bf16.mxu0 0
    %4480 = vmatpush2.bf16.msra.mxu0 %v3782
    %4481 = vmatprep.subr.bf16.mxu0 0
    %4482 = vmatpush2.bf16.msra.mxu0 %v3781
    %4483 = vmatprep.subr.bf16.mxu0 0
    %4484 = vmatpush2.bf16.msra.mxu0 %v3780
    %4485 = vmatprep.subr.bf16.mxu0 0
    %4486 = vmatpush2.bf16.msra.mxu0 %v3779
    %4487 = vmatprep.subr.bf16.mxu0 0
    %4488 = vmatpush2.bf16.msra.mxu0 %v3778
    %4489 = vmatprep.subr.bf16.mxu0 0
    %4490 = vmatpush2.bf16.msra.mxu0 %v3777
    %4491 = vmatprep.mubr.bf16.mxu0 %v2850
    %4492 = vmatmul.mubr.bf16.gmra.mxu0 %v2754
    %v4493 = vpop.f32.mrf.mxu0
    %v4494 = vadd.f32 %v4205, %v4493
    %v4495 = vpop.f32.mrf.mxu0
    %v4496 = vpop.f32.mrf.mxu0
    %v4497 = vadd.f32 %v4208, %v4496
    %v4498 = vpop.f32.mrf.mxu0
    %4499 = vmatprep.mubr.bf16.mxu0 %v2851
    %4500 = vmatmul.mubr.bf16.gmra.mxu0 %v2755
    %v4501 = vpop.f32.mrf.mxu0
    %v4502 = vadd.f32 %v4213, %v4501
    %v4503 = vpop.f32.mrf.mxu0
    %v4504 = vpop.f32.mrf.mxu0
    %v4505 = vadd.f32 %v4216, %v4504
    %v4506 = vpop.f32.mrf.mxu0
    %4507 = vmatprep.mubr.bf16.mxu0 %v2852
    %4508 = vmatmul.mubr.bf16.gmra.mxu0 %v2756
    %v4509 = vpop.f32.mrf.mxu0
    %v4510 = vadd.f32 %v4221, %v4509
    %v4511 = vpop.f32.mrf.mxu0
    %v4512 = vpop.f32.mrf.mxu0
    %v4513 = vadd.f32 %v4224, %v4512
    %v4514 = vpop.f32.mrf.mxu0
    %4515 = vmatprep.mubr.bf16.mxu0 %v2853
    %4516 = vmatmul.mubr.bf16.gmra.mxu0 %v2757
    %v4517 = vpop.f32.mrf.mxu0
    %v4518 = vadd.f32 %v4229, %v4517
    %v4519 = vpop.f32.mrf.mxu0
    %v4520 = vpop.f32.mrf.mxu0
    %v4521 = vadd.f32 %v4232, %v4520
    %v4522 = vpop.f32.mrf.mxu0
    %4523 = vmatprep.mubr.bf16.mxu0 %v2854
    %4524 = vmatmul.mubr.bf16.gmra.mxu0 %v2758
    %v4525 = vpop.f32.mrf.mxu0
    %v4526 = vadd.f32 %v4237, %v4525
    %v4527 = vpop.f32.mrf.mxu0
    %v4528 = vpop.f32.mrf.mxu0
    %v4529 = vadd.f32 %v4240, %v4528
    %v4530 = vpop.f32.mrf.mxu0
    %4531 = vmatprep.mubr.bf16.mxu0 %v2855
    %4532 = vmatmul.mubr.bf16.gmra.mxu0 %v2759
    %v4533 = vpop.f32.mrf.mxu0
    %v4534 = vadd.f32 %v4245, %v4533
    %v4535 = vpop.f32.mrf.mxu0
    %v4536 = vpop.f32.mrf.mxu0
    %v4537 = vadd.f32 %v4248, %v4536
    %v4538 = vpop.f32.mrf.mxu0
    %4539 = vmatprep.mubr.bf16.mxu0 %v2856
    %4540 = vmatmul.mubr.bf16.gmra.mxu0 %v2760
    %v4541 = vpop.f32.mrf.mxu0
    %v4542 = vadd.f32 %v4253, %v4541
    %v4543 = vpop.f32.mrf.mxu0
    %v4544 = vpop.f32.mrf.mxu0
    %v4545 = vadd.f32 %v4256, %v4544
    %v4546 = vpop.f32.mrf.mxu0
    %4547 = vmatprep.mubr.bf16.mxu0 %v2857
    %4548 = vmatmul.mubr.bf16.gmra.mxu0 %v2761
    %v4549 = vpop.f32.mrf.mxu0
    %v4550 = vadd.f32 %v4261, %v4549
    %v4551 = vpop.f32.mrf.mxu0
    %v4552 = vpop.f32.mrf.mxu0
    %v4553 = vadd.f32 %v4264, %v4552
    %v4554 = vpop.f32.mrf.mxu0
    %4555 = vmatprep.mubr.bf16.mxu0 %v2858
    %4556 = vmatmul.mubr.bf16.gmra.mxu0 %v2762
    %v4557 = vpop.f32.mrf.mxu0
    %v4558 = vadd.f32 %v4269, %v4557
    %v4559 = vpop.f32.mrf.mxu0
    %v4560 = vpop.f32.mrf.mxu0
    %v4561 = vadd.f32 %v4272, %v4560
    %v4562 = vpop.f32.mrf.mxu0
    %4563 = vmatprep.mubr.bf16.mxu0 %v2859
    %4564 = vmatmul.mubr.bf16.gmra.mxu0 %v2763
    %v4565 = vpop.f32.mrf.mxu0
    %v4566 = vadd.f32 %v4277, %v4565
    %v4567 = vpop.f32.mrf.mxu0
    %v4568 = vpop.f32.mrf.mxu0
    %v4569 = vadd.f32 %v4280, %v4568
    %v4570 = vpop.f32.mrf.mxu0
    %4571 = vmatprep.mubr.bf16.mxu0 %v2860
    %4572 = vmatmul.mubr.bf16.gmra.mxu0 %v2764
    %v4573 = vpop.f32.mrf.mxu0
    %v4574 = vadd.f32 %v4285, %v4573
    %v4575 = vpop.f32.mrf.mxu0
    %v4576 = vpop.f32.mrf.mxu0
    %v4577 = vadd.f32 %v4288, %v4576
    %v4578 = vpop.f32.mrf.mxu0
    %4579 = vmatprep.mubr.bf16.mxu0 %v2861
    %4580 = vmatmul.mubr.bf16.gmra.mxu0 %v2765
    %v4581 = vpop.f32.mrf.mxu0
    %v4582 = vadd.f32 %v4293, %v4581
    %v4583 = vpop.f32.mrf.mxu0
    %v4584 = vpop.f32.mrf.mxu0
    %v4585 = vadd.f32 %v4296, %v4584
    %v4586 = vpop.f32.mrf.mxu0
    %4587 = vmatprep.mubr.bf16.mxu0 %v2862
    %4588 = vmatmul.mubr.bf16.gmra.mxu0 %v2766
    %v4589 = vpop.f32.mrf.mxu0
    %v4590 = vadd.f32 %v4301, %v4589
    %v4591 = vpop.f32.mrf.mxu0
    %v4592 = vpop.f32.mrf.mxu0
    %v4593 = vadd.f32 %v4304, %v4592
    %v4594 = vpop.f32.mrf.mxu0
    %4595 = vmatprep.mubr.bf16.mxu0 %v2863
    %4596 = vmatmul.mubr.bf16.gmra.mxu0 %v2767
    %v4597 = vpop.f32.mrf.mxu0
    %v4598 = vadd.f32 %v4309, %v4597
    %v4599 = vpop.f32.mrf.mxu0
    %v4600 = vpop.f32.mrf.mxu0
    %v4601 = vadd.f32 %v4312, %v4600
    %v4602 = vpop.f32.mrf.mxu0
    %4603 = vmatprep.mubr.bf16.mxu0 %v2864
    %4604 = vmatmul.mubr.bf16.gmra.mxu0 %v2768
    %v4605 = vpop.f32.mrf.mxu0
    %v4606 = vadd.f32 %v4317, %v4605
    %v4607 = vpop.f32.mrf.mxu0
    %v4608 = vpop.f32.mrf.mxu0
    %v4609 = vadd.f32 %v4320, %v4608
    %v4610 = vpop.f32.mrf.mxu0
    %4611 = vmatprep.mubr.bf16.mxu0 %v2865
    %4612 = vmatmul.mubr.bf16.gmra.mxu0 %v2769
    %v4613 = vpop.f32.mrf.mxu0
    %v4614 = vadd.f32 %v4325, %v4613
    %v4615 = vpop.f32.mrf.mxu0
    %v4616 = vpop.f32.mrf.mxu0
    %v4617 = vadd.f32 %v4328, %v4616
    %v4618 = vpop.f32.mrf.mxu0
    %4619 = vmatprep.mubr.bf16.mxu0 %v2866
    %4620 = vmatmul.mubr.bf16.gmra.mxu0 %v2770
    %v4621 = vpop.f32.mrf.mxu0
    %v4622 = vadd.f32 %v4333, %v4621
    %v4623 = vpop.f32.mrf.mxu0
    %v4624 = vpop.f32.mrf.mxu0
    %v4625 = vadd.f32 %v4336, %v4624
    %v4626 = vpop.f32.mrf.mxu0
    %4627 = vmatprep.mubr.bf16.mxu0 %v2867
    %4628 = vmatmul.mubr.bf16.gmra.mxu0 %v2771
    %v4629 = vpop.f32.mrf.mxu0
    %v4630 = vadd.f32 %v4341, %v4629
    %v4631 = vpop.f32.mrf.mxu0
    %v4632 = vpop.f32.mrf.mxu0
    %v4633 = vadd.f32 %v4344, %v4632
    %v4634 = vpop.f32.mrf.mxu0
    %4635 = vmatprep.mubr.bf16.mxu0 %v2868
    %4636 = vmatmul.mubr.bf16.gmra.mxu0 %v2772
    %v4637 = vpop.f32.mrf.mxu0
    %v4638 = vadd.f32 %v4349, %v4637
    %v4639 = vpop.f32.mrf.mxu0
    %v4640 = vpop.f32.mrf.mxu0
    %v4641 = vadd.f32 %v4352, %v4640
    %v4642 = vpop.f32.mrf.mxu0
    %4643 = vmatprep.mubr.bf16.mxu0 %v2869
    %4644 = vmatmul.mubr.bf16.gmra.mxu0 %v2773
    %v4645 = vpop.f32.mrf.mxu0
    %v4646 = vadd.f32 %v4357, %v4645
    %v4647 = vpop.f32.mrf.mxu0
    %v4648 = vpop.f32.mrf.mxu0
    %v4649 = vadd.f32 %v4360, %v4648
    %v4650 = vpop.f32.mrf.mxu0
    %4651 = vmatprep.mubr.bf16.mxu0 %v2870
    %4652 = vmatmul.mubr.bf16.gmra.mxu0 %v2774
    %v4653 = vpop.f32.mrf.mxu0
    %v4654 = vadd.f32 %v4365, %v4653
    %v4655 = vpop.f32.mrf.mxu0
    %v4656 = vpop.f32.mrf.mxu0
    %v4657 = vadd.f32 %v4368, %v4656
    %v4658 = vpop.f32.mrf.mxu0
    %4659 = vmatprep.mubr.bf16.mxu0 %v2871
    %4660 = vmatmul.mubr.bf16.gmra.mxu0 %v2775
    %v4661 = vpop.f32.mrf.mxu0
    %v4662 = vadd.f32 %v4373, %v4661
    %v4663 = vpop.f32.mrf.mxu0
    %v4664 = vpop.f32.mrf.mxu0
    %v4665 = vadd.f32 %v4376, %v4664
    %v4666 = vpop.f32.mrf.mxu0
    %4667 = vmatprep.mubr.bf16.mxu0 %v2872
    %4668 = vmatmul.mubr.bf16.gmra.mxu0 %v2776
    %v4669 = vpop.f32.mrf.mxu0
    %v4670 = vadd.f32 %v4381, %v4669
    %v4671 = vpop.f32.mrf.mxu0
    %v4672 = vpop.f32.mrf.mxu0
    %v4673 = vadd.f32 %v4384, %v4672
    %v4674 = vpop.f32.mrf.mxu0
    %4675 = vmatprep.mubr.bf16.mxu0 %v2873
    %4676 = vmatmul.mubr.bf16.gmra.mxu0 %v2777
    %v4677 = vpop.f32.mrf.mxu0
    %v4678 = vadd.f32 %v4389, %v4677
    %v4679 = vpop.f32.mrf.mxu0
    %v4680 = vpop.f32.mrf.mxu0
    %v4681 = vadd.f32 %v4392, %v4680
    %v4682 = vpop.f32.mrf.mxu0
    %4683 = vmatprep.mubr.bf16.mxu0 %v2874
    %4684 = vmatmul.mubr.bf16.gmra.mxu0 %v2778
    %v4685 = vpop.f32.mrf.mxu0
    %v4686 = vadd.f32 %v4397, %v4685
    %v4687 = vpop.f32.mrf.mxu0
    %v4688 = vpop.f32.mrf.mxu0
    %v4689 = vadd.f32 %v4400, %v4688
    %v4690 = vpop.f32.mrf.mxu0
    %4691 = vmatprep.mubr.bf16.mxu0 %v2875
    %4692 = vmatmul.mubr.bf16.gmra.mxu0 %v2779
    %v4693 = vpop.f32.mrf.mxu0
    %v4694 = vadd.f32 %v4405, %v4693
    %v4695 = vpop.f32.mrf.mxu0
    %v4696 = vpop.f32.mrf.mxu0
    %v4697 = vadd.f32 %v4408, %v4696
    %v4698 = vpop.f32.mrf.mxu0
    %4699 = vmatprep.mubr.bf16.mxu0 %v2876
    %4700 = vmatmul.mubr.bf16.gmra.mxu0 %v2780
    %v4701 = vpop.f32.mrf.mxu0
    %v4702 = vadd.f32 %v4413, %v4701
    %v4703 = vpop.f32.mrf.mxu0
    %v4704 = vpop.f32.mrf.mxu0
    %v4705 = vadd.f32 %v4416, %v4704
    %v4706 = vpop.f32.mrf.mxu0
    %4707 = vmatprep.mubr.bf16.mxu0 %v2877
    %4708 = vmatmul.mubr.bf16.gmra.mxu0 %v2781
    %v4709 = vpop.f32.mrf.mxu0
    %v4710 = vadd.f32 %v4421, %v4709
    %v4711 = vpop.f32.mrf.mxu0
    %v4712 = vpop.f32.mrf.mxu0
    %v4713 = vadd.f32 %v4424, %v4712
    %v4714 = vpop.f32.mrf.mxu0
    %4715 = vmatprep.mubr.bf16.mxu0 %v2878
    %4716 = vmatmul.mubr.bf16.gmra.mxu0 %v2782
    %v4717 = vpop.f32.mrf.mxu0
    %v4718 = vadd.f32 %v4429, %v4717
    %v4719 = vpop.f32.mrf.mxu0
    %v4720 = vpop.f32.mrf.mxu0
    %v4721 = vadd.f32 %v4432, %v4720
    %v4722 = vpop.f32.mrf.mxu0
    %4723 = vmatprep.mubr.bf16.mxu0 %v2879
    %4724 = vmatmul.mubr.bf16.gmra.mxu0 %v2783
    %v4725 = vpop.f32.mrf.mxu0
    %v4726 = vadd.f32 %v4437, %v4725
    %v4727 = vpop.f32.mrf.mxu0
    %v4728 = vpop.f32.mrf.mxu0
    %v4729 = vadd.f32 %v4440, %v4728
    %v4730 = vpop.f32.mrf.mxu0
    %4731 = vmatprep.mubr.bf16.mxu0 %v2880
    %4732 = vmatmul.mubr.bf16.gmra.mxu0 %v2784
    %v4733 = vpop.f32.mrf.mxu0
    %v4734 = vadd.f32 %v4445, %v4733
    %v4735 = vpop.f32.mrf.mxu0
    %v4736 = vpop.f32.mrf.mxu0
    %v4737 = vadd.f32 %v4448, %v4736
    %v4738 = vpop.f32.mrf.mxu0
    %4739 = vmatprep.mubr.bf16.mxu0 %v2881
    %4740 = vmatmul.mubr.bf16.gmra.mxu0 %v2785
    %v4741 = vpop.f32.mrf.mxu0
    %v4742 = vadd.f32 %v4453, %v4741
    %v4743 = vpop.f32.mrf.mxu0
    %v4744 = vpop.f32.mrf.mxu0
    %v4745 = vadd.f32 %v4456, %v4744
    %v4746 = vpop.f32.mrf.mxu0
    %4747 = vdwg.mxu0
    %4748 = vmatprep.subr.bf16.mxu0 0
    %4749 = vmatpush1.bf16.msra.mxu0 %v3792
    %4750 = vmatprep.subr.bf16.mxu0 0
    %4751 = vmatpush1.bf16.msra.mxu0 %v3791
    %4752 = vmatprep.subr.bf16.mxu0 0
    %4753 = vmatpush1.bf16.msra.mxu0 %v3790
    %4754 = vmatprep.subr.bf16.mxu0 0
    %4755 = vmatpush1.bf16.msra.mxu0 %v3789
    %4756 = vmatprep.subr.bf16.mxu0 0
    %4757 = vmatpush1.bf16.msra.mxu0 %v3788
    %4758 = vmatprep.subr.bf16.mxu0 0
    %4759 = vmatpush1.bf16.msra.mxu0 %v3787
    %4760 = vmatprep.subr.bf16.mxu0 0
    %4761 = vmatpush1.bf16.msra.mxu0 %v3786
    %4762 = vmatprep.subr.bf16.mxu0 0
    %4763 = vmatpush1.bf16.msra.mxu0 %v3785
    %4764 = vmatprep.subr.bf16.mxu0 0
    %4765 = vmatpush2.bf16.msra.mxu0 %v3800
    %4766 = vmatprep.subr.bf16.mxu0 0
    %4767 = vmatpush2.bf16.msra.mxu0 %v3799
    %4768 = vmatprep.subr.bf16.mxu0 0
    %4769 = vmatpush2.bf16.msra.mxu0 %v3798
    %4770 = vmatprep.subr.bf16.mxu0 0
    %4771 = vmatpush2.bf16.msra.mxu0 %v3797
    %4772 = vmatprep.subr.bf16.mxu0 0
    %4773 = vmatpush2.bf16.msra.mxu0 %v3796
    %4774 = vmatprep.subr.bf16.mxu0 0
    %4775 = vmatpush2.bf16.msra.mxu0 %v3795
    %4776 = vmatprep.subr.bf16.mxu0 0
    %4777 = vmatpush2.bf16.msra.mxu0 %v3794
    %4778 = vmatprep.subr.bf16.mxu0 0
    %4779 = vmatpush2.bf16.msra.mxu0 %v3793
    %4780 = vmatprep.mubr.bf16.mxu0 %v3106
    %4781 = vmatmul.mubr.bf16.gmra.mxu0 %v3010
    %v4782 = vpop.f32.mrf.mxu0
    %v4783 = vadd.f32 %v4494, %v4782
    %v4784 = vpop.f32.mrf.mxu0
    %v4785 = vpop.f32.mrf.mxu0
    %v4786 = vadd.f32 %v4497, %v4785
    %v4787 = vpop.f32.mrf.mxu0
    %4788 = vmatprep.mubr.bf16.mxu0 %v3107
    %4789 = vmatmul.mubr.bf16.gmra.mxu0 %v3011
    %v4790 = vpop.f32.mrf.mxu0
    %v4791 = vadd.f32 %v4502, %v4790
    %v4792 = vpop.f32.mrf.mxu0
    %v4793 = vpop.f32.mrf.mxu0
    %v4794 = vadd.f32 %v4505, %v4793
    %v4795 = vpop.f32.mrf.mxu0
    %4796 = vmatprep.mubr.bf16.mxu0 %v3108
    %4797 = vmatmul.mubr.bf16.gmra.mxu0 %v3012
    %v4798 = vpop.f32.mrf.mxu0
    %v4799 = vadd.f32 %v4510, %v4798
    %v4800 = vpop.f32.mrf.mxu0
    %v4801 = vpop.f32.mrf.mxu0
    %v4802 = vadd.f32 %v4513, %v4801
    %v4803 = vpop.f32.mrf.mxu0
    %4804 = vmatprep.mubr.bf16.mxu0 %v3109
    %4805 = vmatmul.mubr.bf16.gmra.mxu0 %v3013
    %v4806 = vpop.f32.mrf.mxu0
    %v4807 = vadd.f32 %v4518, %v4806
    %v4808 = vpop.f32.mrf.mxu0
    %v4809 = vpop.f32.mrf.mxu0
    %v4810 = vadd.f32 %v4521, %v4809
    %v4811 = vpop.f32.mrf.mxu0
    %4812 = vmatprep.mubr.bf16.mxu0 %v3110
    %4813 = vmatmul.mubr.bf16.gmra.mxu0 %v3014
    %v4814 = vpop.f32.mrf.mxu0
    %v4815 = vadd.f32 %v4526, %v4814
    %v4816 = vpop.f32.mrf.mxu0
    %v4817 = vpop.f32.mrf.mxu0
    %v4818 = vadd.f32 %v4529, %v4817
    %v4819 = vpop.f32.mrf.mxu0
    %4820 = vmatprep.mubr.bf16.mxu0 %v3111
    %4821 = vmatmul.mubr.bf16.gmra.mxu0 %v3015
    %v4822 = vpop.f32.mrf.mxu0
    %v4823 = vadd.f32 %v4534, %v4822
    %v4824 = vpop.f32.mrf.mxu0
    %v4825 = vpop.f32.mrf.mxu0
    %v4826 = vadd.f32 %v4537, %v4825
    %v4827 = vpop.f32.mrf.mxu0
    %4828 = vmatprep.mubr.bf16.mxu0 %v3112
    %4829 = vmatmul.mubr.bf16.gmra.mxu0 %v3016
    %v4830 = vpop.f32.mrf.mxu0
    %v4831 = vadd.f32 %v4542, %v4830
    %v4832 = vpop.f32.mrf.mxu0
    %v4833 = vpop.f32.mrf.mxu0
    %v4834 = vadd.f32 %v4545, %v4833
    %v4835 = vpop.f32.mrf.mxu0
    %4836 = vmatprep.mubr.bf16.mxu0 %v3113
    %4837 = vmatmul.mubr.bf16.gmra.mxu0 %v3017
    %v4838 = vpop.f32.mrf.mxu0
    %v4839 = vadd.f32 %v4550, %v4838
    %v4840 = vpop.f32.mrf.mxu0
    %v4841 = vpop.f32.mrf.mxu0
    %v4842 = vadd.f32 %v4553, %v4841
    %v4843 = vpop.f32.mrf.mxu0
    %4844 = vmatprep.mubr.bf16.mxu0 %v3114
    %4845 = vmatmul.mubr.bf16.gmra.mxu0 %v3018
    %v4846 = vpop.f32.mrf.mxu0
    %v4847 = vadd.f32 %v4558, %v4846
    %v4848 = vpop.f32.mrf.mxu0
    %v4849 = vpop.f32.mrf.mxu0
    %v4850 = vadd.f32 %v4561, %v4849
    %v4851 = vpop.f32.mrf.mxu0
    %4852 = vmatprep.mubr.bf16.mxu0 %v3115
    %4853 = vmatmul.mubr.bf16.gmra.mxu0 %v3019
    %v4854 = vpop.f32.mrf.mxu0
    %v4855 = vadd.f32 %v4566, %v4854
    %v4856 = vpop.f32.mrf.mxu0
    %v4857 = vpop.f32.mrf.mxu0
    %v4858 = vadd.f32 %v4569, %v4857
    %v4859 = vpop.f32.mrf.mxu0
    %4860 = vmatprep.mubr.bf16.mxu0 %v3116
    %4861 = vmatmul.mubr.bf16.gmra.mxu0 %v3020
    %v4862 = vpop.f32.mrf.mxu0
    %v4863 = vadd.f32 %v4574, %v4862
    %v4864 = vpop.f32.mrf.mxu0
    %v4865 = vpop.f32.mrf.mxu0
    %v4866 = vadd.f32 %v4577, %v4865
    %v4867 = vpop.f32.mrf.mxu0
    %4868 = vmatprep.mubr.bf16.mxu0 %v3117
    %4869 = vmatmul.mubr.bf16.gmra.mxu0 %v3021
    %v4870 = vpop.f32.mrf.mxu0
    %v4871 = vadd.f32 %v4582, %v4870
    %v4872 = vpop.f32.mrf.mxu0
    %v4873 = vpop.f32.mrf.mxu0
    %v4874 = vadd.f32 %v4585, %v4873
    %v4875 = vpop.f32.mrf.mxu0
    %4876 = vmatprep.mubr.bf16.mxu0 %v3118
    %4877 = vmatmul.mubr.bf16.gmra.mxu0 %v3022
    %v4878 = vpop.f32.mrf.mxu0
    %v4879 = vadd.f32 %v4590, %v4878
    %v4880 = vpop.f32.mrf.mxu0
    %v4881 = vpop.f32.mrf.mxu0
    %v4882 = vadd.f32 %v4593, %v4881
    %v4883 = vpop.f32.mrf.mxu0
    %4884 = vmatprep.mubr.bf16.mxu0 %v3119
    %4885 = vmatmul.mubr.bf16.gmra.mxu0 %v3023
    %v4886 = vpop.f32.mrf.mxu0
    %v4887 = vadd.f32 %v4598, %v4886
    %v4888 = vpop.f32.mrf.mxu0
    %v4889 = vpop.f32.mrf.mxu0
    %v4890 = vadd.f32 %v4601, %v4889
    %v4891 = vpop.f32.mrf.mxu0
    %4892 = vmatprep.mubr.bf16.mxu0 %v3120
    %4893 = vmatmul.mubr.bf16.gmra.mxu0 %v3024
    %v4894 = vpop.f32.mrf.mxu0
    %v4895 = vadd.f32 %v4606, %v4894
    %v4896 = vpop.f32.mrf.mxu0
    %v4897 = vpop.f32.mrf.mxu0
    %v4898 = vadd.f32 %v4609, %v4897
    %v4899 = vpop.f32.mrf.mxu0
    %4900 = vmatprep.mubr.bf16.mxu0 %v3121
    %4901 = vmatmul.mubr.bf16.gmra.mxu0 %v3025
    %v4902 = vpop.f32.mrf.mxu0
    %v4903 = vadd.f32 %v4614, %v4902
    %v4904 = vpop.f32.mrf.mxu0
    %v4905 = vpop.f32.mrf.mxu0
    %v4906 = vadd.f32 %v4617, %v4905
    %v4907 = vpop.f32.mrf.mxu0
    %4908 = vmatprep.mubr.bf16.mxu0 %v3122
    %4909 = vmatmul.mubr.bf16.gmra.mxu0 %v3026
    %v4910 = vpop.f32.mrf.mxu0
    %v4911 = vadd.f32 %v4622, %v4910
    %v4912 = vpop.f32.mrf.mxu0
    %v4913 = vpop.f32.mrf.mxu0
    %v4914 = vadd.f32 %v4625, %v4913
    %v4915 = vpop.f32.mrf.mxu0
    %4916 = vmatprep.mubr.bf16.mxu0 %v3123
    %4917 = vmatmul.mubr.bf16.gmra.mxu0 %v3027
    %v4918 = vpop.f32.mrf.mxu0
    %v4919 = vadd.f32 %v4630, %v4918
    %v4920 = vpop.f32.mrf.mxu0
    %v4921 = vpop.f32.mrf.mxu0
    %v4922 = vadd.f32 %v4633, %v4921
    %v4923 = vpop.f32.mrf.mxu0
    %4924 = vmatprep.mubr.bf16.mxu0 %v3124
    %4925 = vmatmul.mubr.bf16.gmra.mxu0 %v3028
    %v4926 = vpop.f32.mrf.mxu0
    %v4927 = vadd.f32 %v4638, %v4926
    %v4928 = vpop.f32.mrf.mxu0
    %v4929 = vpop.f32.mrf.mxu0
    %v4930 = vadd.f32 %v4641, %v4929
    %v4931 = vpop.f32.mrf.mxu0
    %4932 = vmatprep.mubr.bf16.mxu0 %v3125
    %4933 = vmatmul.mubr.bf16.gmra.mxu0 %v3029
    %v4934 = vpop.f32.mrf.mxu0
    %v4935 = vadd.f32 %v4646, %v4934
    %v4936 = vpop.f32.mrf.mxu0
    %v4937 = vpop.f32.mrf.mxu0
    %v4938 = vadd.f32 %v4649, %v4937
    %v4939 = vpop.f32.mrf.mxu0
    %4940 = vmatprep.mubr.bf16.mxu0 %v3126
    %4941 = vmatmul.mubr.bf16.gmra.mxu0 %v3030
    %v4942 = vpop.f32.mrf.mxu0
    %v4943 = vadd.f32 %v4654, %v4942
    %v4944 = vpop.f32.mrf.mxu0
    %v4945 = vpop.f32.mrf.mxu0
    %v4946 = vadd.f32 %v4657, %v4945
    %v4947 = vpop.f32.mrf.mxu0
    %4948 = vmatprep.mubr.bf16.mxu0 %v3127
    %4949 = vmatmul.mubr.bf16.gmra.mxu0 %v3031
    %v4950 = vpop.f32.mrf.mxu0
    %v4951 = vadd.f32 %v4662, %v4950
    %v4952 = vpop.f32.mrf.mxu0
    %v4953 = vpop.f32.mrf.mxu0
    %v4954 = vadd.f32 %v4665, %v4953
    %v4955 = vpop.f32.mrf.mxu0
    %4956 = vmatprep.mubr.bf16.mxu0 %v3128
    %4957 = vmatmul.mubr.bf16.gmra.mxu0 %v3032
    %v4958 = vpop.f32.mrf.mxu0
    %v4959 = vadd.f32 %v4670, %v4958
    %v4960 = vpop.f32.mrf.mxu0
    %v4961 = vpop.f32.mrf.mxu0
    %v4962 = vadd.f32 %v4673, %v4961
    %v4963 = vpop.f32.mrf.mxu0
    %4964 = vmatprep.mubr.bf16.mxu0 %v3129
    %4965 = vmatmul.mubr.bf16.gmra.mxu0 %v3033
    %v4966 = vpop.f32.mrf.mxu0
    %v4967 = vadd.f32 %v4678, %v4966
    %v4968 = vpop.f32.mrf.mxu0
    %v4969 = vpop.f32.mrf.mxu0
    %v4970 = vadd.f32 %v4681, %v4969
    %v4971 = vpop.f32.mrf.mxu0
    %4972 = vmatprep.mubr.bf16.mxu0 %v3130
    %4973 = vmatmul.mubr.bf16.gmra.mxu0 %v3034
    %v4974 = vpop.f32.mrf.mxu0
    %v4975 = vadd.f32 %v4686, %v4974
    %v4976 = vpop.f32.mrf.mxu0
    %v4977 = vpop.f32.mrf.mxu0
    %v4978 = vadd.f32 %v4689, %v4977
    %v4979 = vpop.f32.mrf.mxu0
    %4980 = vmatprep.mubr.bf16.mxu0 %v3131
    %4981 = vmatmul.mubr.bf16.gmra.mxu0 %v3035
    %v4982 = vpop.f32.mrf.mxu0
    %v4983 = vadd.f32 %v4694, %v4982
    %v4984 = vpop.f32.mrf.mxu0
    %v4985 = vpop.f32.mrf.mxu0
    %v4986 = vadd.f32 %v4697, %v4985
    %v4987 = vpop.f32.mrf.mxu0
    %4988 = vmatprep.mubr.bf16.mxu0 %v3132
    %4989 = vmatmul.mubr.bf16.gmra.mxu0 %v3036
    %v4990 = vpop.f32.mrf.mxu0
    %v4991 = vadd.f32 %v4702, %v4990
    %v4992 = vpop.f32.mrf.mxu0
    %v4993 = vpop.f32.mrf.mxu0
    %v4994 = vadd.f32 %v4705, %v4993
    %v4995 = vpop.f32.mrf.mxu0
    %4996 = vmatprep.mubr.bf16.mxu0 %v3133
    %4997 = vmatmul.mubr.bf16.gmra.mxu0 %v3037
    %v4998 = vpop.f32.mrf.mxu0
    %v4999 = vadd.f32 %v4710, %v4998
    %v5000 = vpop.f32.mrf.mxu0
    %v5001 = vpop.f32.mrf.mxu0
    %v5002 = vadd.f32 %v4713, %v5001
    %v5003 = vpop.f32.mrf.mxu0
    %5004 = vmatprep.mubr.bf16.mxu0 %v3134
    %5005 = vmatmul.mubr.bf16.gmra.mxu0 %v3038
    %v5006 = vpop.f32.mrf.mxu0
    %v5007 = vadd.f32 %v4718, %v5006
    %v5008 = vpop.f32.mrf.mxu0
    %v5009 = vpop.f32.mrf.mxu0
    %v5010 = vadd.f32 %v4721, %v5009
    %v5011 = vpop.f32.mrf.mxu0
    %5012 = vmatprep.mubr.bf16.mxu0 %v3135
    %5013 = vmatmul.mubr.bf16.gmra.mxu0 %v3039
    %v5014 = vpop.f32.mrf.mxu0
    %v5015 = vadd.f32 %v4726, %v5014
    %v5016 = vpop.f32.mrf.mxu0
    %v5017 = vpop.f32.mrf.mxu0
    %v5018 = vadd.f32 %v4729, %v5017
    %v5019 = vpop.f32.mrf.mxu0
    %5020 = vmatprep.mubr.bf16.mxu0 %v3136
    %5021 = vmatmul.mubr.bf16.gmra.mxu0 %v3040
    %v5022 = vpop.f32.mrf.mxu0
    %v5023 = vadd.f32 %v4734, %v5022
    %v5024 = vpop.f32.mrf.mxu0
    %v5025 = vpop.f32.mrf.mxu0
    %v5026 = vadd.f32 %v4737, %v5025
    %v5027 = vpop.f32.mrf.mxu0
    %5028 = vmatprep.mubr.bf16.mxu0 %v3137
    %5029 = vmatmul.mubr.bf16.gmra.mxu0 %v3041
    %v5030 = vpop.f32.mrf.mxu0
    %v5031 = vadd.f32 %v4742, %v5030
    %v5032 = vpop.f32.mrf.mxu0
    %v5033 = vpop.f32.mrf.mxu0
    %v5034 = vadd.f32 %v4745, %v5033
    %v5035 = vpop.f32.mrf.mxu0
    %5036 = vdwg.mxu0
    %5037 = vmatprep.subr.bf16.mxu0 0
    %5038 = vmatpush1.bf16.msra.mxu0 %v3808
    %5039 = vmatprep.subr.bf16.mxu0 0
    %5040 = vmatpush1.bf16.msra.mxu0 %v3807
    %5041 = vmatprep.subr.bf16.mxu0 0
    %5042 = vmatpush1.bf16.msra.mxu0 %v3806
    %5043 = vmatprep.subr.bf16.mxu0 0
    %5044 = vmatpush1.bf16.msra.mxu0 %v3805
    %5045 = vmatprep.subr.bf16.mxu0 0
    %5046 = vmatpush1.bf16.msra.mxu0 %v3804
    %5047 = vmatprep.subr.bf16.mxu0 0
    %5048 = vmatpush1.bf16.msra.mxu0 %v3803
    %5049 = vmatprep.subr.bf16.mxu0 0
    %5050 = vmatpush1.bf16.msra.mxu0 %v3802
    %5051 = vmatprep.subr.bf16.mxu0 0
    %5052 = vmatpush1.bf16.msra.mxu0 %v3801
    %5053 = vmatprep.subr.bf16.mxu0 0
    %5054 = vmatpush2.bf16.msra.mxu0 0
    %5055 = vmatprep.subr.bf16.mxu0 0
    %5056 = vmatpush2.bf16.msra.mxu0 0
    %5057 = vmatprep.subr.bf16.mxu0 0
    %5058 = vmatpush2.bf16.msra.mxu0 0
    %5059 = vmatprep.subr.bf16.mxu0 0
    %5060 = vmatpush2.bf16.msra.mxu0 0
    %5061 = vmatprep.subr.bf16.mxu0 0
    %5062 = vmatpush2.bf16.msra.mxu0 0
    %5063 = vmatprep.subr.bf16.mxu0 0
    %5064 = vmatpush2.bf16.msra.mxu0 0
    %5065 = vmatprep.subr.bf16.mxu0 0
    %5066 = vmatpush2.bf16.msra.mxu0 0
    %5067 = vmatprep.subr.bf16.mxu0 0
    %5068 = vmatpush2.bf16.msra.mxu0 0
    %5069 = vmatprep.mubr.bf16.mxu0 0
    %5070 = vmatmul.mubr.bf16.gmra.mxu0 %v3266
    %v5071 = vpop.f32.mrf.mxu0
    %v5072 = vadd.f32 %v4783, %v5071
    %v5073 = vpop.f32.mrf.mxu0
    %v5074 = vpop.f32.mrf.mxu0
    %v5075 = vadd.f32 %v4786, %v5074
    %v5076 = vpop.f32.mrf.mxu0
    %5077 = vmatprep.mubr.bf16.mxu0 0
    %5078 = vmatmul.mubr.bf16.gmra.mxu0 %v3267
    %v5079 = vpop.f32.mrf.mxu0
    %v5080 = vadd.f32 %v4791, %v5079
    %v5081 = vpop.f32.mrf.mxu0
    %v5082 = vpop.f32.mrf.mxu0
    %v5083 = vadd.f32 %v4794, %v5082
    %v5084 = vpop.f32.mrf.mxu0
    %5085 = vmatprep.mubr.bf16.mxu0 0
    %5086 = vmatmul.mubr.bf16.gmra.mxu0 %v3268
    %v5087 = vpop.f32.mrf.mxu0
    %v5088 = vadd.f32 %v4799, %v5087
    %v5089 = vpop.f32.mrf.mxu0
    %v5090 = vpop.f32.mrf.mxu0
    %v5091 = vadd.f32 %v4802, %v5090
    %v5092 = vpop.f32.mrf.mxu0
    %5093 = vmatprep.mubr.bf16.mxu0 0
    %5094 = vmatmul.mubr.bf16.gmra.mxu0 %v3269
    %v5095 = vpop.f32.mrf.mxu0
    %v5096 = vadd.f32 %v4807, %v5095
    %v5097 = vpop.f32.mrf.mxu0
    %v5098 = vpop.f32.mrf.mxu0
    %v5099 = vadd.f32 %v4810, %v5098
    %v5100 = vpop.f32.mrf.mxu0
    %5101 = vmatprep.mubr.bf16.mxu0 0
    %5102 = vmatmul.mubr.bf16.gmra.mxu0 %v3270
    %v5103 = vpop.f32.mrf.mxu0
    %v5104 = vadd.f32 %v4815, %v5103
    %v5105 = vpop.f32.mrf.mxu0
    %v5106 = vpop.f32.mrf.mxu0
    %v5107 = vadd.f32 %v4818, %v5106
    %v5108 = vpop.f32.mrf.mxu0
    %5109 = vmatprep.mubr.bf16.mxu0 0
    %5110 = vmatmul.mubr.bf16.gmra.mxu0 %v3271
    %v5111 = vpop.f32.mrf.mxu0
    %v5112 = vadd.f32 %v4823, %v5111
    %v5113 = vpop.f32.mrf.mxu0
    %v5114 = vpop.f32.mrf.mxu0
    %v5115 = vadd.f32 %v4826, %v5114
    %v5116 = vpop.f32.mrf.mxu0
    %5117 = vmatprep.mubr.bf16.mxu0 0
    %5118 = vmatmul.mubr.bf16.gmra.mxu0 %v3272
    %v5119 = vpop.f32.mrf.mxu0
    %v5120 = vadd.f32 %v4831, %v5119
    %v5121 = vpop.f32.mrf.mxu0
    %v5122 = vpop.f32.mrf.mxu0
    %v5123 = vadd.f32 %v4834, %v5122
    %v5124 = vpop.f32.mrf.mxu0
    %5125 = vmatprep.mubr.bf16.mxu0 0
    %5126 = vmatmul.mubr.bf16.gmra.mxu0 %v3273
    %v5127 = vpop.f32.mrf.mxu0
    %v5128 = vadd.f32 %v4839, %v5127
    %v5129 = vpop.f32.mrf.mxu0
    %v5130 = vpop.f32.mrf.mxu0
    %v5131 = vadd.f32 %v4842, %v5130
    %v5132 = vpop.f32.mrf.mxu0
    %5133 = vmatprep.mubr.bf16.mxu0 0
    %5134 = vmatmul.mubr.bf16.gmra.mxu0 %v3274
    %v5135 = vpop.f32.mrf.mxu0
    %v5136 = vadd.f32 %v4847, %v5135
    %v5137 = vpop.f32.mrf.mxu0
    %v5138 = vpop.f32.mrf.mxu0
    %v5139 = vadd.f32 %v4850, %v5138
    %v5140 = vpop.f32.mrf.mxu0
    %5141 = vmatprep.mubr.bf16.mxu0 0
    %5142 = vmatmul.mubr.bf16.gmra.mxu0 %v3275
    %v5143 = vpop.f32.mrf.mxu0
    %v5144 = vadd.f32 %v4855, %v5143
    %v5145 = vpop.f32.mrf.mxu0
    %v5146 = vpop.f32.mrf.mxu0
    %v5147 = vadd.f32 %v4858, %v5146
    %v5148 = vpop.f32.mrf.mxu0
    %5149 = vmatprep.mubr.bf16.mxu0 0
    %5150 = vmatmul.mubr.bf16.gmra.mxu0 %v3276
    %v5151 = vpop.f32.mrf.mxu0
    %v5152 = vadd.f32 %v4863, %v5151
    %v5153 = vpop.f32.mrf.mxu0
    %v5154 = vpop.f32.mrf.mxu0
    %v5155 = vadd.f32 %v4866, %v5154
    %v5156 = vpop.f32.mrf.mxu0
    %5157 = vmatprep.mubr.bf16.mxu0 0
    %5158 = vmatmul.mubr.bf16.gmra.mxu0 %v3277
    %v5159 = vpop.f32.mrf.mxu0
    %v5160 = vadd.f32 %v4871, %v5159
    %v5161 = vpop.f32.mrf.mxu0
    %v5162 = vpop.f32.mrf.mxu0
    %v5163 = vadd.f32 %v4874, %v5162
    %v5164 = vpop.f32.mrf.mxu0
    %5165 = vmatprep.mubr.bf16.mxu0 0
    %5166 = vmatmul.mubr.bf16.gmra.mxu0 %v3278
    %v5167 = vpop.f32.mrf.mxu0
    %v5168 = vadd.f32 %v4879, %v5167
    %v5169 = vpop.f32.mrf.mxu0
    %v5170 = vpop.f32.mrf.mxu0
    %v5171 = vadd.f32 %v4882, %v5170
    %v5172 = vpop.f32.mrf.mxu0
    %5173 = vmatprep.mubr.bf16.mxu0 0
    %5174 = vmatmul.mubr.bf16.gmra.mxu0 %v3279
    %v5175 = vpop.f32.mrf.mxu0
    %v5176 = vadd.f32 %v4887, %v5175
    %v5177 = vpop.f32.mrf.mxu0
    %v5178 = vpop.f32.mrf.mxu0
    %v5179 = vadd.f32 %v4890, %v5178
    %v5180 = vpop.f32.mrf.mxu0
    %5181 = vmatprep.mubr.bf16.mxu0 0
    %5182 = vmatmul.mubr.bf16.gmra.mxu0 %v3280
    %v5183 = vpop.f32.mrf.mxu0
    %v5184 = vadd.f32 %v4895, %v5183
    %v5185 = vpop.f32.mrf.mxu0
    %v5186 = vpop.f32.mrf.mxu0
    %v5187 = vadd.f32 %v4898, %v5186
    %v5188 = vpop.f32.mrf.mxu0
    %5189 = vmatprep.mubr.bf16.mxu0 0
    %5190 = vmatmul.mubr.bf16.gmra.mxu0 %v3281
    %v5191 = vpop.f32.mrf.mxu0
    %v5192 = vadd.f32 %v4903, %v5191
    %v5193 = vpop.f32.mrf.mxu0
    %v5194 = vpop.f32.mrf.mxu0
    %v5195 = vadd.f32 %v4906, %v5194
    %v5196 = vpop.f32.mrf.mxu0
    %5197 = vmatprep.mubr.bf16.mxu0 0
    %5198 = vmatmul.mubr.bf16.gmra.mxu0 %v3282
    %v5199 = vpop.f32.mrf.mxu0
    %v5200 = vadd.f32 %v4911, %v5199
    %v5201 = vpop.f32.mrf.mxu0
    %v5202 = vpop.f32.mrf.mxu0
    %v5203 = vadd.f32 %v4914, %v5202
    %v5204 = vpop.f32.mrf.mxu0
    %5205 = vmatprep.mubr.bf16.mxu0 0
    %5206 = vmatmul.mubr.bf16.gmra.mxu0 %v3283
    %v5207 = vpop.f32.mrf.mxu0
    %v5208 = vadd.f32 %v4919, %v5207
    %v5209 = vpop.f32.mrf.mxu0
    %v5210 = vpop.f32.mrf.mxu0
    %v5211 = vadd.f32 %v4922, %v5210
    %v5212 = vpop.f32.mrf.mxu0
    %5213 = vmatprep.mubr.bf16.mxu0 0
    %5214 = vmatmul.mubr.bf16.gmra.mxu0 %v3284
    %v5215 = vpop.f32.mrf.mxu0
    %v5216 = vadd.f32 %v4927, %v5215
    %v5217 = vpop.f32.mrf.mxu0
    %v5218 = vpop.f32.mrf.mxu0
    %v5219 = vadd.f32 %v4930, %v5218
    %v5220 = vpop.f32.mrf.mxu0
    %5221 = vmatprep.mubr.bf16.mxu0 0
    %5222 = vmatmul.mubr.bf16.gmra.mxu0 %v3285
    %v5223 = vpop.f32.mrf.mxu0
    %v5224 = vadd.f32 %v4935, %v5223
    %v5225 = vpop.f32.mrf.mxu0
    %v5226 = vpop.f32.mrf.mxu0
    %v5227 = vadd.f32 %v4938, %v5226
    %v5228 = vpop.f32.mrf.mxu0
    %5229 = vmatprep.mubr.bf16.mxu0 0
    %5230 = vmatmul.mubr.bf16.gmra.mxu0 %v3286
    %v5231 = vpop.f32.mrf.mxu0
    %v5232 = vadd.f32 %v4943, %v5231
    %v5233 = vpop.f32.mrf.mxu0
    %v5234 = vpop.f32.mrf.mxu0
    %v5235 = vadd.f32 %v4946, %v5234
    %v5236 = vpop.f32.mrf.mxu0
    %5237 = vmatprep.mubr.bf16.mxu0 0
    %5238 = vmatmul.mubr.bf16.gmra.mxu0 %v3287
    %v5239 = vpop.f32.mrf.mxu0
    %v5240 = vadd.f32 %v4951, %v5239
    %v5241 = vpop.f32.mrf.mxu0
    %v5242 = vpop.f32.mrf.mxu0
    %v5243 = vadd.f32 %v4954, %v5242
    %v5244 = vpop.f32.mrf.mxu0
    %5245 = vmatprep.mubr.bf16.mxu0 0
    %5246 = vmatmul.mubr.bf16.gmra.mxu0 %v3288
    %v5247 = vpop.f32.mrf.mxu0
    %v5248 = vadd.f32 %v4959, %v5247
    %v5249 = vpop.f32.mrf.mxu0
    %v5250 = vpop.f32.mrf.mxu0
    %v5251 = vadd.f32 %v4962, %v5250
    %v5252 = vpop.f32.mrf.mxu0
    %5253 = vmatprep.mubr.bf16.mxu0 0
    %5254 = vmatmul.mubr.bf16.gmra.mxu0 %v3289
    %v5255 = vpop.f32.mrf.mxu0
    %v5256 = vadd.f32 %v4967, %v5255
    %v5257 = vpop.f32.mrf.mxu0
    %v5258 = vpop.f32.mrf.mxu0
    %v5259 = vadd.f32 %v4970, %v5258
    %v5260 = vpop.f32.mrf.mxu0
    %5261 = vmatprep.mubr.bf16.mxu0 0
    %5262 = vmatmul.mubr.bf16.gmra.mxu0 %v3290
    %v5263 = vpop.f32.mrf.mxu0
    %v5264 = vadd.f32 %v4975, %v5263
    %v5265 = vpop.f32.mrf.mxu0
    %v5266 = vpop.f32.mrf.mxu0
    %v5267 = vadd.f32 %v4978, %v5266
    %v5268 = vpop.f32.mrf.mxu0
    %5269 = vmatprep.mubr.bf16.mxu0 0
    %5270 = vmatmul.mubr.bf16.gmra.mxu0 %v3291
    %v5271 = vpop.f32.mrf.mxu0
    %v5272 = vadd.f32 %v4983, %v5271
    %v5273 = vpop.f32.mrf.mxu0
    %v5274 = vpop.f32.mrf.mxu0
    %v5275 = vadd.f32 %v4986, %v5274
    %v5276 = vpop.f32.mrf.mxu0
    %5277 = vmatprep.mubr.bf16.mxu0 0
    %5278 = vmatmul.mubr.bf16.gmra.mxu0 %v3292
    %v5279 = vpop.f32.mrf.mxu0
    %v5280 = vadd.f32 %v4991, %v5279
    %v5281 = vpop.f32.mrf.mxu0
    %v5282 = vpop.f32.mrf.mxu0
    %v5283 = vadd.f32 %v4994, %v5282
    %v5284 = vpop.f32.mrf.mxu0
    %5285 = vmatprep.mubr.bf16.mxu0 0
    %5286 = vmatmul.mubr.bf16.gmra.mxu0 %v3293
    %v5287 = vpop.f32.mrf.mxu0
    %v5288 = vadd.f32 %v4999, %v5287
    %v5289 = vpop.f32.mrf.mxu0
    %v5290 = vpop.f32.mrf.mxu0
    %v5291 = vadd.f32 %v5002, %v5290
    %v5292 = vpop.f32.mrf.mxu0
    %5293 = vmatprep.mubr.bf16.mxu0 0
    %5294 = vmatmul.mubr.bf16.gmra.mxu0 %v3294
    %v5295 = vpop.f32.mrf.mxu0
    %v5296 = vadd.f32 %v5007, %v5295
    %v5297 = vpop.f32.mrf.mxu0
    %v5298 = vpop.f32.mrf.mxu0
    %v5299 = vadd.f32 %v5010, %v5298
    %v5300 = vpop.f32.mrf.mxu0
    %5301 = vmatprep.mubr.bf16.mxu0 0
    %5302 = vmatmul.mubr.bf16.gmra.mxu0 %v3295
    %v5303 = vpop.f32.mrf.mxu0
    %v5304 = vadd.f32 %v5015, %v5303
    %v5305 = vpop.f32.mrf.mxu0
    %v5306 = vpop.f32.mrf.mxu0
    %v5307 = vadd.f32 %v5018, %v5306
    %v5308 = vpop.f32.mrf.mxu0
    %5309 = vmatprep.mubr.bf16.mxu0 0
    %5310 = vmatmul.mubr.bf16.gmra.mxu0 %v3296
    %v5311 = vpop.f32.mrf.mxu0
    %v5312 = vadd.f32 %v5023, %v5311
    %v5313 = vpop.f32.mrf.mxu0
    %v5314 = vpop.f32.mrf.mxu0
    %v5315 = vadd.f32 %v5026, %v5314
    %v5316 = vpop.f32.mrf.mxu0
    %5317 = vmatprep.mubr.bf16.mxu0 0
    %5318 = vmatmul.mubr.bf16.gmra.mxu0 %v3297
    %v5319 = vpop.f32.mrf.mxu0
    %v5320 = vadd.f32 %v5031, %v5319
    %v5321 = vpop.f32.mrf.mxu0
    %v5322 = vpop.f32.mrf.mxu0
    %v5323 = vadd.f32 %v5034, %v5322
    %v5324 = vpop.f32.mrf.mxu0
    %5325 = vdwg.mxu0
    %v5326 = vmax.f32 %v5072, 0.0
    %v5327 = vmax.f32 %v5075, 0.0
    %v5328 = vmax.f32 %v5080, 0.0
    %v5329 = vmax.f32 %v5083, 0.0
    %v5330 = vmax.f32 %v5088, 0.0
    %v5331 = vmax.f32 %v5091, 0.0
    %v5332 = vmax.f32 %v5096, 0.0
    %v5333 = vmax.f32 %v5099, 0.0
    %v5334 = vmax.f32 %v5104, 0.0
    %v5335 = vmax.f32 %v5107, 0.0
    %v5336 = vmax.f32 %v5112, 0.0
    %v5337 = vmax.f32 %v5115, 0.0
    %v5338 = vmax.f32 %v5120, 0.0
    %v5339 = vmax.f32 %v5123, 0.0
    %v5340 = vmax.f32 %v5128, 0.0
    %v5341 = vmax.f32 %v5131, 0.0
    %v5342 = vmax.f32 %v5136, 0.0
    %v5343 = vmax.f32 %v5139, 0.0
    %v5344 = vmax.f32 %v5144, 0.0
    %v5345 = vmax.f32 %v5147, 0.0
    %v5346 = vmax.f32 %v5152, 0.0
    %v5347 = vmax.f32 %v5155, 0.0
    %v5348 = vmax.f32 %v5160, 0.0
    %v5349 = vmax.f32 %v5163, 0.0
    %v5350 = vmax.f32 %v5168, 0.0
    %v5351 = vmax.f32 %v5171, 0.0
    %v5352 = vmax.f32 %v5176, 0.0
    %v5353 = vmax.f32 %v5179, 0.0
    %v5354 = vmax.f32 %v5184, 0.0
    %v5355 = vmax.f32 %v5187, 0.0
    %v5356 = vmax.f32 %v5192, 0.0
    %v5357 = vmax.f32 %v5195, 0.0
    %v5358 = vmax.f32 %v5200, 0.0
    %v5359 = vmax.f32 %v5203, 0.0
    %v5360 = vmax.f32 %v5208, 0.0
    %v5361 = vmax.f32 %v5211, 0.0
    %v5362 = vmax.f32 %v5216, 0.0
    %v5363 = vmax.f32 %v5219, 0.0
    %v5364 = vmax.f32 %v5224, 0.0
    %v5365 = vmax.f32 %v5227, 0.0
    %v5366 = vmax.f32 %v5232, 0.0
    %v5367 = vmax.f32 %v5235, 0.0
    %v5368 = vmax.f32 %v5240, 0.0
    %v5369 = vmax.f32 %v5243, 0.0
    %v5370 = vmax.f32 %v5248, 0.0
    %v5371 = vmax.f32 %v5251, 0.0
    %v5372 = vmax.f32 %v5256, 0.0
    %v5373 = vmax.f32 %v5259, 0.0
    %v5374 = vmax.f32 %v5264, 0.0
    %v5375 = vmax.f32 %v5267, 0.0
    %v5376 = vmax.f32 %v5272, 0.0
    %v5377 = vmax.f32 %v5275, 0.0
    %v5378 = vmax.f32 %v5280, 0.0
    %v5379 = vmax.f32 %v5283, 0.0
    %v5380 = vmax.f32 %v5288, 0.0
    %v5381 = vmax.f32 %v5291, 0.0
    %v5382 = vmax.f32 %v5296, 0.0
    %v5383 = vmax.f32 %v5299, 0.0
    %v5384 = vmax.f32 %v5304, 0.0
    %v5385 = vmax.f32 %v5307, 0.0
    %v5386 = vmax.f32 %v5312, 0.0
    %v5387 = vmax.f32 %v5315, 0.0
    %v5388 = vmax.f32 %v5320, 0.0
    %v5389 = vmax.f32 %v5323, 0.0
    %v5390 = vrot.slane %v5326, 7
    %v5391 = vrot.slane %v5327, 7
    %v5392 = vrot.slane %v5328, 7
    %v5393 = vrot.slane %v5329, 7
    %v5394 = vrot.slane %v5330, 7
    %v5395 = vrot.slane %v5331, 7
    %v5396 = vrot.slane %v5332, 7
    %v5397 = vrot.slane %v5333, 7
    %v5398 = vrot.slane %v5334, 7
    %v5399 = vrot.slane %v5335, 7
    %v5400 = vrot.slane %v5336, 7
    %v5401 = vrot.slane %v5337, 7
    %v5402 = vrot.slane %v5338, 7
    %v5403 = vrot.slane %v5339, 7
    %v5404 = vrot.slane %v5340, 7
    %v5405 = vrot.slane %v5341, 7
    %v5406 = vrot.slane %v5342, 7
    %v5407 = vrot.slane %v5343, 7
    %v5408 = vrot.slane %v5344, 7
    %v5409 = vrot.slane %v5345, 7
    %v5410 = vrot.slane %v5346, 7
    %v5411 = vrot.slane %v5347, 7
    %v5412 = vrot.slane %v5348, 7
    %v5413 = vrot.slane %v5349, 7
    %v5414 = vrot.slane %v5350, 7
    %v5415 = vrot.slane %v5351, 7
    %v5416 = vrot.slane %v5352, 7
    %v5417 = vrot.slane %v5353, 7
    %v5418 = vrot.slane %v5354, 7
    %v5419 = vrot.slane %v5355, 7
    %v5420 = vrot.slane %v5356, 7
    %v5421 = vrot.slane %v5357, 7
    %v5422 = vrot.slane %v5358, 7
    %v5423 = vrot.slane %v5359, 7
    %v5424 = vrot.slane %v5360, 7
    %v5425 = vrot.slane %v5361, 7
    %v5426 = vrot.slane %v5362, 7
    %v5427 = vrot.slane %v5363, 7
    %v5428 = vrot.slane %v5364, 7
    %v5429 = vrot.slane %v5365, 7
    %v5430 = vrot.slane %v5366, 7
    %v5431 = vrot.slane %v5367, 7
    %v5432 = vrot.slane %v5368, 7
    %v5433 = vrot.slane %v5369, 7
    %v5434 = vrot.slane %v5370, 7
    %v5435 = vrot.slane %v5371, 7
    %v5436 = vrot.slane %v5372, 7
    %v5437 = vrot.slane %v5373, 7
    %v5438 = vrot.slane %v5374, 7
    %v5439 = vrot.slane %v5375, 7
    %v5440 = vrot.slane %v5376, 7
    %v5441 = vrot.slane %v5377, 7
    %v5442 = vrot.slane %v5378, 7
    %v5443 = vrot.slane %v5379, 7
    %v5444 = vrot.slane %v5380, 7
    %v5445 = vrot.slane %v5381, 7
    %v5446 = vrot.slane %v5382, 7
    %v5447 = vrot.slane %v5383, 7
    %v5448 = vrot.slane %v5384, 7
    %v5449 = vrot.slane %v5385, 7
    %v5450 = vrot.slane %v5386, 7
    %v5451 = vrot.slane %v5387, 7
    %v5452 = vrot.slane %v5388, 7
    %v5453 = vrot.slane %v5389, 7
    %v5454 = vsel %vm2048, %v5452, %v5453
    %v5455 = vsel %vm2048, %v5451, %v5452
    %v5456 = vsel %vm2048, %v5450, %v5451
    %v5457 = vsel %vm2048, %v5449, %v5450
    %v5458 = vsel %vm2048, %v5448, %v5449
    %v5459 = vsel %vm2048, %v5447, %v5448
    %v5460 = vsel %vm2048, %v5446, %v5447
    %v5461 = vsel %vm2048, %v5445, %v5446
    %v5462 = vsel %vm2048, %v5444, %v5445
    %v5463 = vsel %vm2048, %v5443, %v5444
    %v5464 = vsel %vm2048, %v5442, %v5443
    %v5465 = vsel %vm2048, %v5441, %v5442
    %v5466 = vsel %vm2048, %v5440, %v5441
    %v5467 = vsel %vm2048, %v5439, %v5440
    %v5468 = vsel %vm2048, %v5438, %v5439
    %v5469 = vsel %vm2048, %v5437, %v5438
    %v5470 = vsel %vm2048, %v5436, %v5437
    %v5471 = vsel %vm2048, %v5435, %v5436
    %v5472 = vsel %vm2048, %v5434, %v5435
    %v5473 = vsel %vm2048, %v5433, %v5434
    %v5474 = vsel %vm2048, %v5432, %v5433
    %v5475 = vsel %vm2048, %v5431, %v5432
    %v5476 = vsel %vm2048, %v5430, %v5431
    %v5477 = vsel %vm2048, %v5429, %v5430
    %v5478 = vsel %vm2048, %v5428, %v5429
    %v5479 = vsel %vm2048, %v5427, %v5428
    %v5480 = vsel %vm2048, %v5426, %v5427
    %v5481 = vsel %vm2048, %v5425, %v5426
    %v5482 = vsel %vm2048, %v5424, %v5425
    %v5483 = vsel %vm2048, %v5423, %v5424
    %v5484 = vsel %vm2048, %v5422, %v5423
    %v5485 = vsel %vm2048, %v5421, %v5422
    %v5486 = vsel %vm2048, %v5420, %v5421
    %v5487 = vsel %vm2048, %v5419, %v5420
    %v5488 = vsel %vm2048, %v5418, %v5419
    %v5489 = vsel %vm2048, %v5417, %v5418
    %v5490 = vsel %vm2048, %v5416, %v5417
    %v5491 = vsel %vm2048, %v5415, %v5416
    %v5492 = vsel %vm2048, %v5414, %v5415
    %v5493 = vsel %vm2048, %v5413, %v5414
    %v5494 = vsel %vm2048, %v5412, %v5413
    %v5495 = vsel %vm2048, %v5411, %v5412
    %v5496 = vsel %vm2048, %v5410, %v5411
    %v5497 = vsel %vm2048, %v5409, %v5410
    %v5498 = vsel %vm2048, %v5408, %v5409
    %v5499 = vsel %vm2048, %v5407, %v5408
    %v5500 = vsel %vm2048, %v5406, %v5407
    %v5501 = vsel %vm2048, %v5405, %v5406
    %v5502 = vsel %vm2048, %v5404, %v5405
    %v5503 = vsel %vm2048, %v5403, %v5404
    %v5504 = vsel %vm2048, %v5402, %v5403
    %v5505 = vsel %vm2048, %v5401, %v5402
    %v5506 = vsel %vm2048, %v5400, %v5401
    %v5507 = vsel %vm2048, %v5399, %v5400
    %v5508 = vsel %vm2048, %v5398, %v5399
    %v5509 = vsel %vm2048, %v5397, %v5398
    %v5510 = vsel %vm2048, %v5396, %v5397
    %v5511 = vsel %vm2048, %v5395, %v5396
    %v5512 = vsel %vm2048, %v5394, %v5395
    %v5513 = vsel %vm2048, %v5393, %v5394
    %v5514 = vsel %vm2048, %v5392, %v5393
    %v5515 = vsel %vm2048, %v5391, %v5392
    %v5516 = vsel %vm2048, %v5390, %v5391
    %v5517 = vsel %vm2048, %v5453, %v5390
    %v5518 = vsel %vm2113, %v5455, 0.0
    %v5519 = vsel %vm2114, %v5454, 0.0
    %v5520 = vsel %vm2115, %v5517, 0.0
    %v5521 = vsel %vm2116, %v5516, 0.0
    %v5522 = vsel %vm2117, %v5515, 0.0
    %v5523 = vsel %vm2118, %v5514, 0.0
    %v5524 = vsel %vm2119, %v5513, 0.0
    %v5525 = vsel %vm2120, %v5512, 0.0
    %v5526 = vsel %vm2121, %v5511, 0.0
    %v5527 = vsel %vm2122, %v5510, 0.0
    %v5528 = vsel %vm2123, %v5509, 0.0
    %v5529 = vsel %vm2124, %v5508, 0.0
    %v5530 = vsel %vm2125, %v5507, 0.0
    %v5531 = vsel %vm2126, %v5506, 0.0
    %v5532 = vsel %vm2127, %v5505, 0.0
    %v5533 = vsel %vm2128, %v5504, 0.0
    %v5534 = vsel %vm2129, %v5503, 0.0
    %v5535 = vsel %vm2130, %v5502, 0.0
    %v5536 = vsel %vm2131, %v5501, 0.0
    %v5537 = vsel %vm2132, %v5500, 0.0
    %v5538 = vsel %vm2133, %v5499, 0.0
    %v5539 = vsel %vm2134, %v5498, 0.0
    %v5540 = vsel %vm2135, %v5497, 0.0
    %v5541 = vsel %vm2136, %v5496, 0.0
    %v5542 = vsel %vm2137, %v5495, 0.0
    %v5543 = vsel %vm2138, %v5494, 0.0
    %v5544 = vsel %vm2139, %v5493, 0.0
    %v5545 = vsel %vm2140, %v5492, 0.0
    %v5546 = vsel %vm2141, %v5491, 0.0
    %v5547 = vsel %vm2142, %v5490, 0.0
    %v5548 = vsel %vm2143, %v5489, 0.0
    %v5549 = vsel %vm2144, %v5488, 0.0
    %v5550 = vsel %vm2145, %v5487, 0.0
    %v5551 = vsel %vm2146, %v5486, 0.0
    %v5552 = vsel %vm2147, %v5485, 0.0
    %v5553 = vsel %vm2148, %v5484, 0.0
    %v5554 = vsel %vm2149, %v5483, 0.0
    %v5555 = vsel %vm2150, %v5482, 0.0
    %v5556 = vsel %vm2151, %v5481, 0.0
    %v5557 = vsel %vm2152, %v5480, 0.0
    %v5558 = vsel %vm2153, %v5479, 0.0
    %v5559 = vsel %vm2154, %v5478, 0.0
    %v5560 = vsel %vm2155, %v5477, 0.0
    %v5561 = vsel %vm2156, %v5476, 0.0
    %v5562 = vsel %vm2157, %v5475, 0.0
    %v5563 = vsel %vm2158, %v5474, 0.0
    %v5564 = vsel %vm2159, %v5473, 0.0
    %v5565 = vsel %vm2160, %v5472, 0.0
    %v5566 = vsel %vm2161, %v5471, 0.0
    %v5567 = vsel %vm2162, %v5470, 0.0
    %v5568 = vsel %vm2163, %v5469, 0.0
    %v5569 = vsel %vm2164, %v5468, 0.0
    %v5570 = vsel %vm2165, %v5467, 0.0
    %v5571 = vsel %vm2166, %v5466, 0.0
    %v5572 = vsel %vm2167, %v5465, 0.0
    %v5573 = vsel %vm2168, %v5464, 0.0
    %v5574 = vsel %vm2169, %v5463, 0.0
    %v5575 = vsel %vm2170, %v5462, 0.0
    %v5576 = vsel %vm2171, %v5461, 0.0
    %v5577 = vsel %vm2172, %v5460, 0.0
    %v5578 = vsel %vm2173, %v5459, 0.0
    %v5579 = vsel %vm2174, %v5458, 0.0
    %v5580 = vsel %vm2175, %v5457, 0.0
    %v5581 = vsel %vm2176, %v5456, 0.0
    %v5582 = vpack.c.bf16 %v5519, %v5518
    %v5583 = vpack.c.bf16 %v5521, %v5520
    %v5584 = vpack.c.bf16 %v5523, %v5522
    %v5585 = vpack.c.bf16 %v5525, %v5524
    %v5586 = vpack.c.bf16 %v5527, %v5526
    %v5587 = vpack.c.bf16 %v5529, %v5528
    %v5588 = vpack.c.bf16 %v5531, %v5530
    %v5589 = vpack.c.bf16 %v5533, %v5532
    %v5590 = vpack.c.bf16 %v5535, %v5534
    %v5591 = vpack.c.bf16 %v5537, %v5536
    %v5592 = vpack.c.bf16 %v5539, %v5538
    %v5593 = vpack.c.bf16 %v5541, %v5540
    %v5594 = vpack.c.bf16 %v5543, %v5542
    %v5595 = vpack.c.bf16 %v5545, %v5544
    %v5596 = vpack.c.bf16 %v5547, %v5546
    %v5597 = vpack.c.bf16 %v5549, %v5548
    %v5598 = vpack.c.bf16 %v5551, %v5550
    %v5599 = vpack.c.bf16 %v5553, %v5552
    %v5600 = vpack.c.bf16 %v5555, %v5554
    %v5601 = vpack.c.bf16 %v5557, %v5556
    %v5602 = vpack.c.bf16 %v5559, %v5558
    %v5603 = vpack.c.bf16 %v5561, %v5560
    %v5604 = vpack.c.bf16 %v5563, %v5562
    %v5605 = vpack.c.bf16 %v5565, %v5564
    %v5606 = vpack.c.bf16 %v5567, %v5566
    %v5607 = vpack.c.bf16 %v5569, %v5568
    %v5608 = vpack.c.bf16 %v5571, %v5570
    %v5609 = vpack.c.bf16 %v5573, %v5572
    %v5610 = vpack.c.bf16 %v5575, %v5574
    %v5611 = vpack.c.bf16 %v5577, %v5576
    %v5612 = vpack.c.bf16 %v5579, %v5578
    %v5613 = vpack.c.bf16 %v5581, %v5580
    %v5614 = vsel %vm1728, %v5388, 0.0
    %v5615 = vsel %vm1729, %v5389, 0.0
    %v5616 = vsel %vm1730, %v5326, 0.0
    %v5617 = vsel %vm1731, %v5327, 0.0
    %v5618 = vsel %vm1732, %v5328, 0.0
    %v5619 = vsel %vm1733, %v5329, 0.0
    %v5620 = vsel %vm1734, %v5330, 0.0
    %v5621 = vsel %vm1735, %v5331, 0.0
    %v5622 = vsel %vm1736, %v5332, 0.0
    %v5623 = vsel %vm1737, %v5333, 0.0
    %v5624 = vsel %vm1738, %v5334, 0.0
    %v5625 = vsel %vm1739, %v5335, 0.0
    %v5626 = vsel %vm1740, %v5336, 0.0
    %v5627 = vsel %vm1741, %v5337, 0.0
    %v5628 = vsel %vm1742, %v5338, 0.0
    %v5629 = vsel %vm1743, %v5339, 0.0
    %v5630 = vsel %vm1744, %v5340, 0.0
    %v5631 = vsel %vm1745, %v5341, 0.0
    %v5632 = vsel %vm1746, %v5342, 0.0
    %v5633 = vsel %vm1747, %v5343, 0.0
    %v5634 = vsel %vm1748, %v5344, 0.0
    %v5635 = vsel %vm1749, %v5345, 0.0
    %v5636 = vsel %vm1750, %v5346, 0.0
    %v5637 = vsel %vm1751, %v5347, 0.0
    %v5638 = vsel %vm1752, %v5348, 0.0
    %v5639 = vsel %vm1753, %v5349, 0.0
    %v5640 = vsel %vm1754, %v5350, 0.0
    %v5641 = vsel %vm1755, %v5351, 0.0
    %v5642 = vsel %vm1756, %v5352, 0.0
    %v5643 = vsel %vm1757, %v5353, 0.0
    %v5644 = vsel %vm1758, %v5354, 0.0
    %v5645 = vsel %vm1759, %v5355, 0.0
    %v5646 = vsel %vm1760, %v5356, 0.0
    %v5647 = vsel %vm1761, %v5357, 0.0
    %v5648 = vsel %vm1762, %v5358, 0.0
    %v5649 = vsel %vm1763, %v5359, 0.0
    %v5650 = vsel %vm1764, %v5360, 0.0
    %v5651 = vsel %vm1765, %v5361, 0.0
    %v5652 = vsel %vm1766, %v5362, 0.0
    %v5653 = vsel %vm1767, %v5363, 0.0
    %v5654 = vsel %vm1768, %v5364, 0.0
    %v5655 = vsel %vm1769, %v5365, 0.0
    %v5656 = vsel %vm1770, %v5366, 0.0
    %v5657 = vsel %vm1771, %v5367, 0.0
    %v5658 = vsel %vm1772, %v5368, 0.0
    %v5659 = vsel %vm1773, %v5369, 0.0
    %v5660 = vsel %vm1774, %v5370, 0.0
    %v5661 = vsel %vm1775, %v5371, 0.0
    %v5662 = vsel %vm1776, %v5372, 0.0
    %v5663 = vsel %vm1777, %v5373, 0.0
    %v5664 = vsel %vm1778, %v5374, 0.0
    %v5665 = vsel %vm1779, %v5375, 0.0
    %v5666 = vsel %vm1780, %v5376, 0.0
    %v5667 = vsel %vm1781, %v5377, 0.0
    %v5668 = vsel %vm1782, %v5378, 0.0
    %v5669 = vsel %vm1783, %v5379, 0.0
    %v5670 = vsel %vm1784, %v5380, 0.0
    %v5671 = vsel %vm1785, %v5381, 0.0
    %v5672 = vsel %vm1786, %v5382, 0.0
    %v5673 = vsel %vm1787, %v5383, 0.0
    %v5674 = vsel %vm1788, %v5384, 0.0
    %v5675 = vsel %vm1789, %v5385, 0.0
    %v5676 = vsel %vm1790, %v5386, 0.0
    %v5677 = vsel %vm1791, %v5387, 0.0
    %v5678 = vpack.c.bf16 %v5615, %v5614
    %v5679 = vpack.c.bf16 %v5617, %v5616
    %v5680 = vpack.c.bf16 %v5619, %v5618
    %v5681 = vpack.c.bf16 %v5621, %v5620
    %v5682 = vpack.c.bf16 %v5623, %v5622
    %v5683 = vpack.c.bf16 %v5625, %v5624
    %v5684 = vpack.c.bf16 %v5627, %v5626
    %v5685 = vpack.c.bf16 %v5629, %v5628
    %v5686 = vpack.c.bf16 %v5631, %v5630
    %v5687 = vpack.c.bf16 %v5633, %v5632
    %v5688 = vpack.c.bf16 %v5635, %v5634
    %v5689 = vpack.c.bf16 %v5637, %v5636
    %v5690 = vpack.c.bf16 %v5639, %v5638
    %v5691 = vpack.c.bf16 %v5641, %v5640
    %v5692 = vpack.c.bf16 %v5643, %v5642
    %v5693 = vpack.c.bf16 %v5645, %v5644
    %v5694 = vpack.c.bf16 %v5647, %v5646
    %v5695 = vpack.c.bf16 %v5649, %v5648
    %v5696 = vpack.c.bf16 %v5651, %v5650
    %v5697 = vpack.c.bf16 %v5653, %v5652
    %v5698 = vpack.c.bf16 %v5655, %v5654
    %v5699 = vpack.c.bf16 %v5657, %v5656
    %v5700 = vpack.c.bf16 %v5659, %v5658
    %v5701 = vpack.c.bf16 %v5661, %v5660
    %v5702 = vpack.c.bf16 %v5663, %v5662
    %v5703 = vpack.c.bf16 %v5665, %v5664
    %v5704 = vpack.c.bf16 %v5667, %v5666
    %v5705 = vpack.c.bf16 %v5669, %v5668
    %v5706 = vpack.c.bf16 %v5671, %v5670
    %v5707 = vpack.c.bf16 %v5673, %v5672
    %v5708 = vpack.c.bf16 %v5675, %v5674
    %v5709 = vpack.c.bf16 %v5677, %v5676
    %v5710 = vrot.slane %v5326, 1
    %v5711 = vrot.slane %v5327, 1
    %v5712 = vrot.slane %v5328, 1
    %v5713 = vrot.slane %v5329, 1
    %v5714 = vrot.slane %v5330, 1
    %v5715 = vrot.slane %v5331, 1
    %v5716 = vrot.slane %v5332, 1
    %v5717 = vrot.slane %v5333, 1
    %v5718 = vrot.slane %v5334, 1
    %v5719 = vrot.slane %v5335, 1
    %v5720 = vrot.slane %v5336, 1
    %v5721 = vrot.slane %v5337, 1
    %v5722 = vrot.slane %v5338, 1
    %v5723 = vrot.slane %v5339, 1
    %v5724 = vrot.slane %v5340, 1
    %v5725 = vrot.slane %v5341, 1
    %v5726 = vrot.slane %v5342, 1
    %v5727 = vrot.slane %v5343, 1
    %v5728 = vrot.slane %v5344, 1
    %v5729 = vrot.slane %v5345, 1
    %v5730 = vrot.slane %v5346, 1
    %v5731 = vrot.slane %v5347, 1
    %v5732 = vrot.slane %v5348, 1
    %v5733 = vrot.slane %v5349, 1
    %v5734 = vrot.slane %v5350, 1
    %v5735 = vrot.slane %v5351, 1
    %v5736 = vrot.slane %v5352, 1
    %v5737 = vrot.slane %v5353, 1
    %v5738 = vrot.slane %v5354, 1
    %v5739 = vrot.slane %v5355, 1
    %v5740 = vrot.slane %v5356, 1
    %v5741 = vrot.slane %v5357, 1
    %v5742 = vrot.slane %v5358, 1
    %v5743 = vrot.slane %v5359, 1
    %v5744 = vrot.slane %v5360, 1
    %v5745 = vrot.slane %v5361, 1
    %v5746 = vrot.slane %v5362, 1
    %v5747 = vrot.slane %v5363, 1
    %v5748 = vrot.slane %v5364, 1
    %v5749 = vrot.slane %v5365, 1
    %v5750 = vrot.slane %v5366, 1
    %v5751 = vrot.slane %v5367, 1
    %v5752 = vrot.slane %v5368, 1
    %v5753 = vrot.slane %v5369, 1
    %v5754 = vrot.slane %v5370, 1
    %v5755 = vrot.slane %v5371, 1
    %v5756 = vrot.slane %v5372, 1
    %v5757 = vrot.slane %v5373, 1
    %v5758 = vrot.slane %v5374, 1
    %v5759 = vrot.slane %v5375, 1
    %v5760 = vrot.slane %v5376, 1
    %v5761 = vrot.slane %v5377, 1
    %v5762 = vrot.slane %v5378, 1
    %v5763 = vrot.slane %v5379, 1
    %v5764 = vrot.slane %v5380, 1
    %v5765 = vrot.slane %v5381, 1
    %v5766 = vrot.slane %v5382, 1
    %v5767 = vrot.slane %v5383, 1
    %v5768 = vrot.slane %v5384, 1
    %v5769 = vrot.slane %v5385, 1
    %v5770 = vrot.slane %v5386, 1
    %v5771 = vrot.slane %v5387, 1
    %v5772 = vrot.slane %v5388, 1
    %v5773 = vrot.slane %v5389, 1
    %v5774 = vsel %vm2433, %v5772, %v5773
    %v5775 = vsel %vm2433, %v5771, %v5772
    %v5776 = vsel %vm2433, %v5770, %v5771
    %v5777 = vsel %vm2433, %v5769, %v5770
    %v5778 = vsel %vm2433, %v5768, %v5769
    %v5779 = vsel %vm2433, %v5767, %v5768
    %v5780 = vsel %vm2433, %v5766, %v5767
    %v5781 = vsel %vm2433, %v5765, %v5766
    %v5782 = vsel %vm2433, %v5764, %v5765
    %v5783 = vsel %vm2433, %v5763, %v5764
    %v5784 = vsel %vm2433, %v5762, %v5763
    %v5785 = vsel %vm2433, %v5761, %v5762
    %v5786 = vsel %vm2433, %v5760, %v5761
    %v5787 = vsel %vm2433, %v5759, %v5760
    %v5788 = vsel %vm2433, %v5758, %v5759
    %v5789 = vsel %vm2433, %v5757, %v5758
    %v5790 = vsel %vm2433, %v5756, %v5757
    %v5791 = vsel %vm2433, %v5755, %v5756
    %v5792 = vsel %vm2433, %v5754, %v5755
    %v5793 = vsel %vm2433, %v5753, %v5754
    %v5794 = vsel %vm2433, %v5752, %v5753
    %v5795 = vsel %vm2433, %v5751, %v5752
    %v5796 = vsel %vm2433, %v5750, %v5751
    %v5797 = vsel %vm2433, %v5749, %v5750
    %v5798 = vsel %vm2433, %v5748, %v5749
    %v5799 = vsel %vm2433, %v5747, %v5748
    %v5800 = vsel %vm2433, %v5746, %v5747
    %v5801 = vsel %vm2433, %v5745, %v5746
    %v5802 = vsel %vm2433, %v5744, %v5745
    %v5803 = vsel %vm2433, %v5743, %v5744
    %v5804 = vsel %vm2433, %v5742, %v5743
    %v5805 = vsel %vm2433, %v5741, %v5742
    %v5806 = vsel %vm2433, %v5740, %v5741
    %v5807 = vsel %vm2433, %v5739, %v5740
    %v5808 = vsel %vm2433, %v5738, %v5739
    %v5809 = vsel %vm2433, %v5737, %v5738
    %v5810 = vsel %vm2433, %v5736, %v5737
    %v5811 = vsel %vm2433, %v5735, %v5736
    %v5812 = vsel %vm2433, %v5734, %v5735
    %v5813 = vsel %vm2433, %v5733, %v5734
    %v5814 = vsel %vm2433, %v5732, %v5733
    %v5815 = vsel %vm2433, %v5731, %v5732
    %v5816 = vsel %vm2433, %v5730, %v5731
    %v5817 = vsel %vm2433, %v5729, %v5730
    %v5818 = vsel %vm2433, %v5728, %v5729
    %v5819 = vsel %vm2433, %v5727, %v5728
    %v5820 = vsel %vm2433, %v5726, %v5727
    %v5821 = vsel %vm2433, %v5725, %v5726
    %v5822 = vsel %vm2433, %v5724, %v5725
    %v5823 = vsel %vm2433, %v5723, %v5724
    %v5824 = vsel %vm2433, %v5722, %v5723
    %v5825 = vsel %vm2433, %v5721, %v5722
    %v5826 = vsel %vm2433, %v5720, %v5721
    %v5827 = vsel %vm2433, %v5719, %v5720
    %v5828 = vsel %vm2433, %v5718, %v5719
    %v5829 = vsel %vm2433, %v5717, %v5718
    %v5830 = vsel %vm2433, %v5716, %v5717
    %v5831 = vsel %vm2433, %v5715, %v5716
    %v5832 = vsel %vm2433, %v5714, %v5715
    %v5833 = vsel %vm2433, %v5713, %v5714
    %v5834 = vsel %vm2433, %v5712, %v5713
    %v5835 = vsel %vm2433, %v5711, %v5712
    %v5836 = vsel %vm2433, %v5710, %v5711
    %v5837 = vsel %vm2433, %v5773, %v5710
    %v5838 = vsel %vm2498, %v5774, 0.0
    %v5839 = vsel %vm2499, %v5837, 0.0
    %v5840 = vsel %vm2500, %v5836, 0.0
    %v5841 = vsel %vm2501, %v5835, 0.0
    %v5842 = vsel %vm2502, %v5834, 0.0
    %v5843 = vsel %vm2503, %v5833, 0.0
    %v5844 = vsel %vm2504, %v5832, 0.0
    %v5845 = vsel %vm2505, %v5831, 0.0
    %v5846 = vsel %vm2506, %v5830, 0.0
    %v5847 = vsel %vm2507, %v5829, 0.0
    %v5848 = vsel %vm2508, %v5828, 0.0
    %v5849 = vsel %vm2509, %v5827, 0.0
    %v5850 = vsel %vm2510, %v5826, 0.0
    %v5851 = vsel %vm2511, %v5825, 0.0
    %v5852 = vsel %vm2512, %v5824, 0.0
    %v5853 = vsel %vm2513, %v5823, 0.0
    %v5854 = vsel %vm2514, %v5822, 0.0
    %v5855 = vsel %vm2515, %v5821, 0.0
    %v5856 = vsel %vm2516, %v5820, 0.0
    %v5857 = vsel %vm2517, %v5819, 0.0
    %v5858 = vsel %vm2518, %v5818, 0.0
    %v5859 = vsel %vm2519, %v5817, 0.0
    %v5860 = vsel %vm2520, %v5816, 0.0
    %v5861 = vsel %vm2521, %v5815, 0.0
    %v5862 = vsel %vm2522, %v5814, 0.0
    %v5863 = vsel %vm2523, %v5813, 0.0
    %v5864 = vsel %vm2524, %v5812, 0.0
    %v5865 = vsel %vm2525, %v5811, 0.0
    %v5866 = vsel %vm2526, %v5810, 0.0
    %v5867 = vsel %vm2527, %v5809, 0.0
    %v5868 = vsel %vm2528, %v5808, 0.0
    %v5869 = vsel %vm2529, %v5807, 0.0
    %v5870 = vsel %vm2530, %v5806, 0.0
    %v5871 = vsel %vm2531, %v5805, 0.0
    %v5872 = vsel %vm2532, %v5804, 0.0
    %v5873 = vsel %vm2533, %v5803, 0.0
    %v5874 = vsel %vm2534, %v5802, 0.0
    %v5875 = vsel %vm2535, %v5801, 0.0
    %v5876 = vsel %vm2536, %v5800, 0.0
    %v5877 = vsel %vm2537, %v5799, 0.0
    %v5878 = vsel %vm2538, %v5798, 0.0
    %v5879 = vsel %vm2539, %v5797, 0.0
    %v5880 = vsel %vm2540, %v5796, 0.0
    %v5881 = vsel %vm2541, %v5795, 0.0
    %v5882 = vsel %vm2542, %v5794, 0.0
    %v5883 = vsel %vm2543, %v5793, 0.0
    %v5884 = vsel %vm2544, %v5792, 0.0
    %v5885 = vsel %vm2545, %v5791, 0.0
    %v5886 = vsel %vm2546, %v5790, 0.0
    %v5887 = vsel %vm2547, %v5789, 0.0
    %v5888 = vsel %vm2548, %v5788, 0.0
    %v5889 = vsel %vm2549, %v5787, 0.0
    %v5890 = vsel %vm2550, %v5786, 0.0
    %v5891 = vsel %vm2551, %v5785, 0.0
    %v5892 = vsel %vm2552, %v5784, 0.0
    %v5893 = vsel %vm2553, %v5783, 0.0
    %v5894 = vsel %vm2554, %v5782, 0.0
    %v5895 = vsel %vm2555, %v5781, 0.0
    %v5896 = vsel %vm2556, %v5780, 0.0
    %v5897 = vsel %vm2557, %v5779, 0.0
    %v5898 = vsel %vm2558, %v5778, 0.0
    %v5899 = vsel %vm2559, %v5777, 0.0
    %v5900 = vsel %vm2560, %v5776, 0.0
    %v5901 = vsel %vm2561, %v5775, 0.0
    %v5902 = vpack.c.bf16 %v5839, %v5838
    %v5903 = vpack.c.bf16 %v5841, %v5840
    %v5904 = vpack.c.bf16 %v5843, %v5842
    %v5905 = vpack.c.bf16 %v5845, %v5844
    %v5906 = vpack.c.bf16 %v5847, %v5846
    %v5907 = vpack.c.bf16 %v5849, %v5848
    %v5908 = vpack.c.bf16 %v5851, %v5850
    %v5909 = vpack.c.bf16 %v5853, %v5852
    %v5910 = vpack.c.bf16 %v5855, %v5854
    %v5911 = vpack.c.bf16 %v5857, %v5856
    %v5912 = vpack.c.bf16 %v5859, %v5858
    %v5913 = vpack.c.bf16 %v5861, %v5860
    %v5914 = vpack.c.bf16 %v5863, %v5862
    %v5915 = vpack.c.bf16 %v5865, %v5864
    %v5916 = vpack.c.bf16 %v5867, %v5866
    %v5917 = vpack.c.bf16 %v5869, %v5868
    %v5918 = vpack.c.bf16 %v5871, %v5870
    %v5919 = vpack.c.bf16 %v5873, %v5872
    %v5920 = vpack.c.bf16 %v5875, %v5874
    %v5921 = vpack.c.bf16 %v5877, %v5876
    %v5922 = vpack.c.bf16 %v5879, %v5878
    %v5923 = vpack.c.bf16 %v5881, %v5880
    %v5924 = vpack.c.bf16 %v5883, %v5882
    %v5925 = vpack.c.bf16 %v5885, %v5884
    %v5926 = vpack.c.bf16 %v5887, %v5886
    %v5927 = vpack.c.bf16 %v5889, %v5888
    %v5928 = vpack.c.bf16 %v5891, %v5890
    %v5929 = vpack.c.bf16 %v5893, %v5892
    %v5930 = vpack.c.bf16 %v5895, %v5894
    %v5931 = vpack.c.bf16 %v5897, %v5896
    %v5932 = vpack.c.bf16 %v5899, %v5898
    %v5933 = vpack.c.bf16 %v5901, %v5900
    %v5934 = vsel %vm1856, %v5517, 0.0
    %v5935 = vsel %vm1857, %v5516, 0.0
    %v5936 = vsel %vm1858, %v5515, 0.0
    %v5937 = vsel %vm1859, %v5514, 0.0
    %v5938 = vsel %vm1860, %v5513, 0.0
    %v5939 = vsel %vm1861, %v5512, 0.0
    %v5940 = vsel %vm1862, %v5511, 0.0
    %v5941 = vsel %vm1863, %v5510, 0.0
    %v5942 = vsel %vm1864, %v5509, 0.0
    %v5943 = vsel %vm1865, %v5508, 0.0
    %v5944 = vsel %vm1866, %v5507, 0.0
    %v5945 = vsel %vm1867, %v5506, 0.0
    %v5946 = vsel %vm1868, %v5505, 0.0
    %v5947 = vsel %vm1869, %v5504, 0.0
    %v5948 = vsel %vm1870, %v5503, 0.0
    %v5949 = vsel %vm1871, %v5502, 0.0
    %v5950 = vsel %vm1872, %v5501, 0.0
    %v5951 = vsel %vm1873, %v5500, 0.0
    %v5952 = vsel %vm1874, %v5499, 0.0
    %v5953 = vsel %vm1875, %v5498, 0.0
    %v5954 = vsel %vm1876, %v5497, 0.0
    %v5955 = vsel %vm1877, %v5496, 0.0
    %v5956 = vsel %vm1878, %v5495, 0.0
    %v5957 = vsel %vm1879, %v5494, 0.0
    %v5958 = vsel %vm1880, %v5493, 0.0
    %v5959 = vsel %vm1881, %v5492, 0.0
    %v5960 = vsel %vm1882, %v5491, 0.0
    %v5961 = vsel %vm1883, %v5490, 0.0
    %v5962 = vsel %vm1884, %v5489, 0.0
    %v5963 = vsel %vm1885, %v5488, 0.0
    %v5964 = vsel %vm1886, %v5487, 0.0
    %v5965 = vsel %vm1887, %v5486, 0.0
    %v5966 = vsel %vm1888, %v5485, 0.0
    %v5967 = vsel %vm1889, %v5484, 0.0
    %v5968 = vsel %vm1890, %v5483, 0.0
    %v5969 = vsel %vm1891, %v5482, 0.0
    %v5970 = vsel %vm1892, %v5481, 0.0
    %v5971 = vsel %vm1893, %v5480, 0.0
    %v5972 = vsel %vm1894, %v5479, 0.0
    %v5973 = vsel %vm1895, %v5478, 0.0
    %v5974 = vsel %vm1896, %v5477, 0.0
    %v5975 = vsel %vm1897, %v5476, 0.0
    %v5976 = vsel %vm1898, %v5475, 0.0
    %v5977 = vsel %vm1899, %v5474, 0.0
    %v5978 = vsel %vm1900, %v5473, 0.0
    %v5979 = vsel %vm1901, %v5472, 0.0
    %v5980 = vsel %vm1902, %v5471, 0.0
    %v5981 = vsel %vm1903, %v5470, 0.0
    %v5982 = vsel %vm1904, %v5469, 0.0
    %v5983 = vsel %vm1905, %v5468, 0.0
    %v5984 = vsel %vm1906, %v5467, 0.0
    %v5985 = vsel %vm1907, %v5466, 0.0
    %v5986 = vsel %vm1908, %v5465, 0.0
    %v5987 = vsel %vm1909, %v5464, 0.0
    %v5988 = vsel %vm1910, %v5463, 0.0
    %v5989 = vsel %vm1911, %v5462, 0.0
    %v5990 = vsel %vm1912, %v5461, 0.0
    %v5991 = vsel %vm1913, %v5460, 0.0
    %v5992 = vsel %vm1914, %v5459, 0.0
    %v5993 = vsel %vm1915, %v5458, 0.0
    %v5994 = vsel %vm1916, %v5457, 0.0
    %v5995 = vsel %vm1917, %v5456, 0.0
    %v5996 = vsel %vm1918, %v5455, 0.0
    %v5997 = vsel %vm1919, %v5454, 0.0
    %v5998 = vpack.c.bf16 %v5935, %v5934
    %v5999 = vpack.c.bf16 %v5937, %v5936
    %v6000 = vpack.c.bf16 %v5939, %v5938
    %v6001 = vpack.c.bf16 %v5941, %v5940
    %v6002 = vpack.c.bf16 %v5943, %v5942
    %v6003 = vpack.c.bf16 %v5945, %v5944
    %v6004 = vpack.c.bf16 %v5947, %v5946
    %v6005 = vpack.c.bf16 %v5949, %v5948
    %v6006 = vpack.c.bf16 %v5951, %v5950
    %v6007 = vpack.c.bf16 %v5953, %v5952
    %v6008 = vpack.c.bf16 %v5955, %v5954
    %v6009 = vpack.c.bf16 %v5957, %v5956
    %v6010 = vpack.c.bf16 %v5959, %v5958
    %v6011 = vpack.c.bf16 %v5961, %v5960
    %v6012 = vpack.c.bf16 %v5963, %v5962
    %v6013 = vpack.c.bf16 %v5965, %v5964
    %v6014 = vpack.c.bf16 %v5967, %v5966
    %v6015 = vpack.c.bf16 %v5969, %v5968
    %v6016 = vpack.c.bf16 %v5971, %v5970
    %v6017 = vpack.c.bf16 %v5973, %v5972
    %v6018 = vpack.c.bf16 %v5975, %v5974
    %v6019 = vpack.c.bf16 %v5977, %v5976
    %v6020 = vpack.c.bf16 %v5979, %v5978
    %v6021 = vpack.c.bf16 %v5981, %v5980
    %v6022 = vpack.c.bf16 %v5983, %v5982
    %v6023 = vpack.c.bf16 %v5985, %v5984
    %v6024 = vpack.c.bf16 %v5987, %v5986
    %v6025 = vpack.c.bf16 %v5989, %v5988
    %v6026 = vpack.c.bf16 %v5991, %v5990
    %v6027 = vpack.c.bf16 %v5993, %v5992
    %v6028 = vpack.c.bf16 %v5995, %v5994
    %v6029 = vpack.c.bf16 %v5997, %v5996
    %v6030 = vpack.c.bf16 %v5327, %v5326
    %v6031 = vpack.c.bf16 %v5329, %v5328
    %v6032 = vpack.c.bf16 %v5331, %v5330
    %v6033 = vpack.c.bf16 %v5333, %v5332
    %v6034 = vpack.c.bf16 %v5335, %v5334
    %v6035 = vpack.c.bf16 %v5337, %v5336
    %v6036 = vpack.c.bf16 %v5339, %v5338
    %v6037 = vpack.c.bf16 %v5341, %v5340
    %v6038 = vpack.c.bf16 %v5343, %v5342
    %v6039 = vpack.c.bf16 %v5345, %v5344
    %v6040 = vpack.c.bf16 %v5347, %v5346
    %v6041 = vpack.c.bf16 %v5349, %v5348
    %v6042 = vpack.c.bf16 %v5351, %v5350
    %v6043 = vpack.c.bf16 %v5353, %v5352
    %v6044 = vpack.c.bf16 %v5355, %v5354
    %v6045 = vpack.c.bf16 %v5357, %v5356
    %v6046 = vpack.c.bf16 %v5359, %v5358
    %v6047 = vpack.c.bf16 %v5361, %v5360
    %v6048 = vpack.c.bf16 %v5363, %v5362
    %v6049 = vpack.c.bf16 %v5365, %v5364
    %v6050 = vpack.c.bf16 %v5367, %v5366
    %v6051 = vpack.c.bf16 %v5369, %v5368
    %v6052 = vpack.c.bf16 %v5371, %v5370
    %v6053 = vpack.c.bf16 %v5373, %v5372
    %v6054 = vpack.c.bf16 %v5375, %v5374
    %v6055 = vpack.c.bf16 %v5377, %v5376
    %v6056 = vpack.c.bf16 %v5379, %v5378
    %v6057 = vpack.c.bf16 %v5381, %v5380
    %v6058 = vpack.c.bf16 %v5383, %v5382
    %v6059 = vpack.c.bf16 %v5385, %v5384
    %v6060 = vpack.c.bf16 %v5387, %v5386
    %v6061 = vpack.c.bf16 %v5389, %v5388
    %v6062 = vsel %vm1920, %v5836, 0.0
    %v6063 = vsel %vm1921, %v5835, 0.0
    %v6064 = vsel %vm1922, %v5834, 0.0
    %v6065 = vsel %vm1923, %v5833, 0.0
    %v6066 = vsel %vm1924, %v5832, 0.0
    %v6067 = vsel %vm1925, %v5831, 0.0
    %v6068 = vsel %vm1926, %v5830, 0.0
    %v6069 = vsel %vm1927, %v5829, 0.0
    %v6070 = vsel %vm1928, %v5828, 0.0
    %v6071 = vsel %vm1929, %v5827, 0.0
    %v6072 = vsel %vm1930, %v5826, 0.0
    %v6073 = vsel %vm1931, %v5825, 0.0
    %v6074 = vsel %vm1932, %v5824, 0.0
    %v6075 = vsel %vm1933, %v5823, 0.0
    %v6076 = vsel %vm1934, %v5822, 0.0
    %v6077 = vsel %vm1935, %v5821, 0.0
    %v6078 = vsel %vm1936, %v5820, 0.0
    %v6079 = vsel %vm1937, %v5819, 0.0
    %v6080 = vsel %vm1938, %v5818, 0.0
    %v6081 = vsel %vm1939, %v5817, 0.0
    %v6082 = vsel %vm1940, %v5816, 0.0
    %v6083 = vsel %vm1941, %v5815, 0.0
    %v6084 = vsel %vm1942, %v5814, 0.0
    %v6085 = vsel %vm1943, %v5813, 0.0
    %v6086 = vsel %vm1944, %v5812, 0.0
    %v6087 = vsel %vm1945, %v5811, 0.0
    %v6088 = vsel %vm1946, %v5810, 0.0
    %v6089 = vsel %vm1947, %v5809, 0.0
    %v6090 = vsel %vm1948, %v5808, 0.0
    %v6091 = vsel %vm1949, %v5807, 0.0
    %v6092 = vsel %vm1950, %v5806, 0.0
    %v6093 = vsel %vm1951, %v5805, 0.0
    %v6094 = vsel %vm1952, %v5804, 0.0
    %v6095 = vsel %vm1953, %v5803, 0.0
    %v6096 = vsel %vm1954, %v5802, 0.0
    %v6097 = vsel %vm1955, %v5801, 0.0
    %v6098 = vsel %vm1956, %v5800, 0.0
    %v6099 = vsel %vm1957, %v5799, 0.0
    %v6100 = vsel %vm1958, %v5798, 0.0
    %v6101 = vsel %vm1959, %v5797, 0.0
    %v6102 = vsel %vm1960, %v5796, 0.0
    %v6103 = vsel %vm1961, %v5795, 0.0
    %v6104 = vsel %vm1962, %v5794, 0.0
    %v6105 = vsel %vm1963, %v5793, 0.0
    %v6106 = vsel %vm1964, %v5792, 0.0
    %v6107 = vsel %vm1965, %v5791, 0.0
    %v6108 = vsel %vm1966, %v5790, 0.0
    %v6109 = vsel %vm1967, %v5789, 0.0
    %v6110 = vsel %vm1968, %v5788, 0.0
    %v6111 = vsel %vm1969, %v5787, 0.0
    %v6112 = vsel %vm1970, %v5786, 0.0
    %v6113 = vsel %vm1971, %v5785, 0.0
    %v6114 = vsel %vm1972, %v5784, 0.0
    %v6115 = vsel %vm1973, %v5783, 0.0
    %v6116 = vsel %vm1974, %v5782, 0.0
    %v6117 = vsel %vm1975, %v5781, 0.0
    %v6118 = vsel %vm1976, %v5780, 0.0
    %v6119 = vsel %vm1977, %v5779, 0.0
    %v6120 = vsel %vm1978, %v5778, 0.0
    %v6121 = vsel %vm1979, %v5777, 0.0
    %v6122 = vsel %vm1980, %v5776, 0.0
    %v6123 = vsel %vm1981, %v5775, 0.0
    %v6124 = vsel %vm1982, %v5774, 0.0
    %v6125 = vsel %vm1983, %v5837, 0.0
    %v6126 = vpack.c.bf16 %v6063, %v6062
    %v6127 = vpack.c.bf16 %v6065, %v6064
    %v6128 = vpack.c.bf16 %v6067, %v6066
    %v6129 = vpack.c.bf16 %v6069, %v6068
    %v6130 = vpack.c.bf16 %v6071, %v6070
    %v6131 = vpack.c.bf16 %v6073, %v6072
    %v6132 = vpack.c.bf16 %v6075, %v6074
    %v6133 = vpack.c.bf16 %v6077, %v6076
    %v6134 = vpack.c.bf16 %v6079, %v6078
    %v6135 = vpack.c.bf16 %v6081, %v6080
    %v6136 = vpack.c.bf16 %v6083, %v6082
    %v6137 = vpack.c.bf16 %v6085, %v6084
    %v6138 = vpack.c.bf16 %v6087, %v6086
    %v6139 = vpack.c.bf16 %v6089, %v6088
    %v6140 = vpack.c.bf16 %v6091, %v6090
    %v6141 = vpack.c.bf16 %v6093, %v6092
    %v6142 = vpack.c.bf16 %v6095, %v6094
    %v6143 = vpack.c.bf16 %v6097, %v6096
    %v6144 = vpack.c.bf16 %v6099, %v6098
    %v6145 = vpack.c.bf16 %v6101, %v6100
    %v6146 = vpack.c.bf16 %v6103, %v6102
    %v6147 = vpack.c.bf16 %v6105, %v6104
    %v6148 = vpack.c.bf16 %v6107, %v6106
    %v6149 = vpack.c.bf16 %v6109, %v6108
    %v6150 = vpack.c.bf16 %v6111, %v6110
    %v6151 = vpack.c.bf16 %v6113, %v6112
    %v6152 = vpack.c.bf16 %v6115, %v6114
    %v6153 = vpack.c.bf16 %v6117, %v6116
    %v6154 = vpack.c.bf16 %v6119, %v6118
    %v6155 = vpack.c.bf16 %v6121, %v6120
    %v6156 = vpack.c.bf16 %v6123, %v6122
    %v6157 = vpack.c.bf16 %v6125, %v6124
    %v6158 = vsel %vm2882, %v5515, 0.0
    %v6159 = vsel %vm2883, %v5514, 0.0
    %v6160 = vsel %vm2884, %v5513, 0.0
    %v6161 = vsel %vm2885, %v5512, 0.0
    %v6162 = vsel %vm2886, %v5511, 0.0
    %v6163 = vsel %vm2887, %v5510, 0.0
    %v6164 = vsel %vm2888, %v5509, 0.0
    %v6165 = vsel %vm2889, %v5508, 0.0
    %v6166 = vsel %vm2890, %v5507, 0.0
    %v6167 = vsel %vm2891, %v5506, 0.0
    %v6168 = vsel %vm2892, %v5505, 0.0
    %v6169 = vsel %vm2893, %v5504, 0.0
    %v6170 = vsel %vm2894, %v5503, 0.0
    %v6171 = vsel %vm2895, %v5502, 0.0
    %v6172 = vsel %vm2896, %v5501, 0.0
    %v6173 = vsel %vm2897, %v5500, 0.0
    %v6174 = vsel %vm2898, %v5499, 0.0
    %v6175 = vsel %vm2899, %v5498, 0.0
    %v6176 = vsel %vm2900, %v5497, 0.0
    %v6177 = vsel %vm2901, %v5496, 0.0
    %v6178 = vsel %vm2902, %v5495, 0.0
    %v6179 = vsel %vm2903, %v5494, 0.0
    %v6180 = vsel %vm2904, %v5493, 0.0
    %v6181 = vsel %vm2905, %v5492, 0.0
    %v6182 = vsel %vm2906, %v5491, 0.0
    %v6183 = vsel %vm2907, %v5490, 0.0
    %v6184 = vsel %vm2908, %v5489, 0.0
    %v6185 = vsel %vm2909, %v5488, 0.0
    %v6186 = vsel %vm2910, %v5487, 0.0
    %v6187 = vsel %vm2911, %v5486, 0.0
    %v6188 = vsel %vm2912, %v5485, 0.0
    %v6189 = vsel %vm2913, %v5484, 0.0
    %v6190 = vsel %vm2914, %v5483, 0.0
    %v6191 = vsel %vm2915, %v5482, 0.0
    %v6192 = vsel %vm2916, %v5481, 0.0
    %v6193 = vsel %vm2917, %v5480, 0.0
    %v6194 = vsel %vm2918, %v5479, 0.0
    %v6195 = vsel %vm2919, %v5478, 0.0
    %v6196 = vsel %vm2920, %v5477, 0.0
    %v6197 = vsel %vm2921, %v5476, 0.0
    %v6198 = vsel %vm2922, %v5475, 0.0
    %v6199 = vsel %vm2923, %v5474, 0.0
    %v6200 = vsel %vm2924, %v5473, 0.0
    %v6201 = vsel %vm2925, %v5472, 0.0
    %v6202 = vsel %vm2926, %v5471, 0.0
    %v6203 = vsel %vm2927, %v5470, 0.0
    %v6204 = vsel %vm2928, %v5469, 0.0
    %v6205 = vsel %vm2929, %v5468, 0.0
    %v6206 = vsel %vm2930, %v5467, 0.0
    %v6207 = vsel %vm2931, %v5466, 0.0
    %v6208 = vsel %vm2932, %v5465, 0.0
    %v6209 = vsel %vm2933, %v5464, 0.0
    %v6210 = vsel %vm2934, %v5463, 0.0
    %v6211 = vsel %vm2935, %v5462, 0.0
    %v6212 = vsel %vm2936, %v5461, 0.0
    %v6213 = vsel %vm2937, %v5460, 0.0
    %v6214 = vsel %vm2938, %v5459, 0.0
    %v6215 = vsel %vm2939, %v5458, 0.0
    %v6216 = vsel %vm2940, %v5457, 0.0
    %v6217 = vsel %vm2941, %v5456, 0.0
    %v6218 = vsel %vm2942, %v5455, 0.0
    %v6219 = vsel %vm2943, %v5454, 0.0
    %v6220 = vsel %vm2944, %v5517, 0.0
    %v6221 = vsel %vm2945, %v5516, 0.0
    %v6222 = vpack.c.bf16 %v6159, %v6158
    %v6223 = vpack.c.bf16 %v6161, %v6160
    %v6224 = vpack.c.bf16 %v6163, %v6162
    %v6225 = vpack.c.bf16 %v6165, %v6164
    %v6226 = vpack.c.bf16 %v6167, %v6166
    %v6227 = vpack.c.bf16 %v6169, %v6168
    %v6228 = vpack.c.bf16 %v6171, %v6170
    %v6229 = vpack.c.bf16 %v6173, %v6172
    %v6230 = vpack.c.bf16 %v6175, %v6174
    %v6231 = vpack.c.bf16 %v6177, %v6176
    %v6232 = vpack.c.bf16 %v6179, %v6178
    %v6233 = vpack.c.bf16 %v6181, %v6180
    %v6234 = vpack.c.bf16 %v6183, %v6182
    %v6235 = vpack.c.bf16 %v6185, %v6184
    %v6236 = vpack.c.bf16 %v6187, %v6186
    %v6237 = vpack.c.bf16 %v6189, %v6188
    %v6238 = vpack.c.bf16 %v6191, %v6190
    %v6239 = vpack.c.bf16 %v6193, %v6192
    %v6240 = vpack.c.bf16 %v6195, %v6194
    %v6241 = vpack.c.bf16 %v6197, %v6196
    %v6242 = vpack.c.bf16 %v6199, %v6198
    %v6243 = vpack.c.bf16 %v6201, %v6200
    %v6244 = vpack.c.bf16 %v6203, %v6202
    %v6245 = vpack.c.bf16 %v6205, %v6204
    %v6246 = vpack.c.bf16 %v6207, %v6206
    %v6247 = vpack.c.bf16 %v6209, %v6208
    %v6248 = vpack.c.bf16 %v6211, %v6210
    %v6249 = vpack.c.bf16 %v6213, %v6212
    %v6250 = vpack.c.bf16 %v6215, %v6214
    %v6251 = vpack.c.bf16 %v6217, %v6216
    %v6252 = vpack.c.bf16 %v6219, %v6218
    %v6253 = vpack.c.bf16 %v6221, %v6220
    %v6254 = vsel %vm1792, %v5328, 0.0
    %v6255 = vsel %vm1793, %v5329, 0.0
    %v6256 = vsel %vm1794, %v5330, 0.0
    %v6257 = vsel %vm1795, %v5331, 0.0
    %v6258 = vsel %vm1796, %v5332, 0.0
    %v6259 = vsel %vm1797, %v5333, 0.0
    %v6260 = vsel %vm1798, %v5334, 0.0
    %v6261 = vsel %vm1799, %v5335, 0.0
    %v6262 = vsel %vm1800, %v5336, 0.0
    %v6263 = vsel %vm1801, %v5337, 0.0
    %v6264 = vsel %vm1802, %v5338, 0.0
    %v6265 = vsel %vm1803, %v5339, 0.0
    %v6266 = vsel %vm1804, %v5340, 0.0
    %v6267 = vsel %vm1805, %v5341, 0.0
    %v6268 = vsel %vm1806, %v5342, 0.0
    %v6269 = vsel %vm1807, %v5343, 0.0
    %v6270 = vsel %vm1808, %v5344, 0.0
    %v6271 = vsel %vm1809, %v5345, 0.0
    %v6272 = vsel %vm1810, %v5346, 0.0
    %v6273 = vsel %vm1811, %v5347, 0.0
    %v6274 = vsel %vm1812, %v5348, 0.0
    %v6275 = vsel %vm1813, %v5349, 0.0
    %v6276 = vsel %vm1814, %v5350, 0.0
    %v6277 = vsel %vm1815, %v5351, 0.0
    %v6278 = vsel %vm1816, %v5352, 0.0
    %v6279 = vsel %vm1817, %v5353, 0.0
    %v6280 = vsel %vm1818, %v5354, 0.0
    %v6281 = vsel %vm1819, %v5355, 0.0
    %v6282 = vsel %vm1820, %v5356, 0.0
    %v6283 = vsel %vm1821, %v5357, 0.0
    %v6284 = vsel %vm1822, %v5358, 0.0
    %v6285 = vsel %vm1823, %v5359, 0.0
    %v6286 = vsel %vm1824, %v5360, 0.0
    %v6287 = vsel %vm1825, %v5361, 0.0
    %v6288 = vsel %vm1826, %v5362, 0.0
    %v6289 = vsel %vm1827, %v5363, 0.0
    %v6290 = vsel %vm1828, %v5364, 0.0
    %v6291 = vsel %vm1829, %v5365, 0.0
    %v6292 = vsel %vm1830, %v5366, 0.0
    %v6293 = vsel %vm1831, %v5367, 0.0
    %v6294 = vsel %vm1832, %v5368, 0.0
    %v6295 = vsel %vm1833, %v5369, 0.0
    %v6296 = vsel %vm1834, %v5370, 0.0
    %v6297 = vsel %vm1835, %v5371, 0.0
    %v6298 = vsel %vm1836, %v5372, 0.0
    %v6299 = vsel %vm1837, %v5373, 0.0
    %v6300 = vsel %vm1838, %v5374, 0.0
    %v6301 = vsel %vm1839, %v5375, 0.0
    %v6302 = vsel %vm1840, %v5376, 0.0
    %v6303 = vsel %vm1841, %v5377, 0.0
    %v6304 = vsel %vm1842, %v5378, 0.0
    %v6305 = vsel %vm1843, %v5379, 0.0
    %v6306 = vsel %vm1844, %v5380, 0.0
    %v6307 = vsel %vm1845, %v5381, 0.0
    %v6308 = vsel %vm1846, %v5382, 0.0
    %v6309 = vsel %vm1847, %v5383, 0.0
    %v6310 = vsel %vm1848, %v5384, 0.0
    %v6311 = vsel %vm1849, %v5385, 0.0
    %v6312 = vsel %vm1850, %v5386, 0.0
    %v6313 = vsel %vm1851, %v5387, 0.0
    %v6314 = vsel %vm1852, %v5388, 0.0
    %v6315 = vsel %vm1853, %v5389, 0.0
    %v6316 = vsel %vm1854, %v5326, 0.0
    %v6317 = vsel %vm1855, %v5327, 0.0
    %v6318 = vpack.c.bf16 %v6255, %v6254
    %v6319 = vpack.c.bf16 %v6257, %v6256
    %v6320 = vpack.c.bf16 %v6259, %v6258
    %v6321 = vpack.c.bf16 %v6261, %v6260
    %v6322 = vpack.c.bf16 %v6263, %v6262
    %v6323 = vpack.c.bf16 %v6265, %v6264
    %v6324 = vpack.c.bf16 %v6267, %v6266
    %v6325 = vpack.c.bf16 %v6269, %v6268
    %v6326 = vpack.c.bf16 %v6271, %v6270
    %v6327 = vpack.c.bf16 %v6273, %v6272
    %v6328 = vpack.c.bf16 %v6275, %v6274
    %v6329 = vpack.c.bf16 %v6277, %v6276
    %v6330 = vpack.c.bf16 %v6279, %v6278
    %v6331 = vpack.c.bf16 %v6281, %v6280
    %v6332 = vpack.c.bf16 %v6283, %v6282
    %v6333 = vpack.c.bf16 %v6285, %v6284
    %v6334 = vpack.c.bf16 %v6287, %v6286
    %v6335 = vpack.c.bf16 %v6289, %v6288
    %v6336 = vpack.c.bf16 %v6291, %v6290
    %v6337 = vpack.c.bf16 %v6293, %v6292
    %v6338 = vpack.c.bf16 %v6295, %v6294
    %v6339 = vpack.c.bf16 %v6297, %v6296
    %v6340 = vpack.c.bf16 %v6299, %v6298
    %v6341 = vpack.c.bf16 %v6301, %v6300
    %v6342 = vpack.c.bf16 %v6303, %v6302
    %v6343 = vpack.c.bf16 %v6305, %v6304
    %v6344 = vpack.c.bf16 %v6307, %v6306
    %v6345 = vpack.c.bf16 %v6309, %v6308
    %v6346 = vpack.c.bf16 %v6311, %v6310
    %v6347 = vpack.c.bf16 %v6313, %v6312
    %v6348 = vpack.c.bf16 %v6315, %v6314
    %v6349 = vpack.c.bf16 %v6317, %v6316
    %v6350 = vsel %vm3138, %v5834, 0.0
    %v6351 = vsel %vm3139, %v5833, 0.0
    %v6352 = vsel %vm3140, %v5832, 0.0
    %v6353 = vsel %vm3141, %v5831, 0.0
    %v6354 = vsel %vm3142, %v5830, 0.0
    %v6355 = vsel %vm3143, %v5829, 0.0
    %v6356 = vsel %vm3144, %v5828, 0.0
    %v6357 = vsel %vm3145, %v5827, 0.0
    %v6358 = vsel %vm3146, %v5826, 0.0
    %v6359 = vsel %vm3147, %v5825, 0.0
    %v6360 = vsel %vm3148, %v5824, 0.0
    %v6361 = vsel %vm3149, %v5823, 0.0
    %v6362 = vsel %vm3150, %v5822, 0.0
    %v6363 = vsel %vm3151, %v5821, 0.0
    %v6364 = vsel %vm3152, %v5820, 0.0
    %v6365 = vsel %vm3153, %v5819, 0.0
    %v6366 = vsel %vm3154, %v5818, 0.0
    %v6367 = vsel %vm3155, %v5817, 0.0
    %v6368 = vsel %vm3156, %v5816, 0.0
    %v6369 = vsel %vm3157, %v5815, 0.0
    %v6370 = vsel %vm3158, %v5814, 0.0
    %v6371 = vsel %vm3159, %v5813, 0.0
    %v6372 = vsel %vm3160, %v5812, 0.0
    %v6373 = vsel %vm3161, %v5811, 0.0
    %v6374 = vsel %vm3162, %v5810, 0.0
    %v6375 = vsel %vm3163, %v5809, 0.0
    %v6376 = vsel %vm3164, %v5808, 0.0
    %v6377 = vsel %vm3165, %v5807, 0.0
    %v6378 = vsel %vm3166, %v5806, 0.0
    %v6379 = vsel %vm3167, %v5805, 0.0
    %v6380 = vsel %vm3168, %v5804, 0.0
    %v6381 = vsel %vm3169, %v5803, 0.0
    %v6382 = vsel %vm3170, %v5802, 0.0
    %v6383 = vsel %vm3171, %v5801, 0.0
    %v6384 = vsel %vm3172, %v5800, 0.0
    %v6385 = vsel %vm3173, %v5799, 0.0
    %v6386 = vsel %vm3174, %v5798, 0.0
    %v6387 = vsel %vm3175, %v5797, 0.0
    %v6388 = vsel %vm3176, %v5796, 0.0
    %v6389 = vsel %vm3177, %v5795, 0.0
    %v6390 = vsel %vm3178, %v5794, 0.0
    %v6391 = vsel %vm3179, %v5793, 0.0
    %v6392 = vsel %vm3180, %v5792, 0.0
    %v6393 = vsel %vm3181, %v5791, 0.0
    %v6394 = vsel %vm3182, %v5790, 0.0
    %v6395 = vsel %vm3183, %v5789, 0.0
    %v6396 = vsel %vm3184, %v5788, 0.0
    %v6397 = vsel %vm3185, %v5787, 0.0
    %v6398 = vsel %vm3186, %v5786, 0.0
    %v6399 = vsel %vm3187, %v5785, 0.0
    %v6400 = vsel %vm3188, %v5784, 0.0
    %v6401 = vsel %vm3189, %v5783, 0.0
    %v6402 = vsel %vm3190, %v5782, 0.0
    %v6403 = vsel %vm3191, %v5781, 0.0
    %v6404 = vsel %vm3192, %v5780, 0.0
    %v6405 = vsel %vm3193, %v5779, 0.0
    %v6406 = vsel %vm3194, %v5778, 0.0
    %v6407 = vsel %vm3195, %v5777, 0.0
    %v6408 = vsel %vm3196, %v5776, 0.0
    %v6409 = vsel %vm3197, %v5775, 0.0
    %v6410 = vsel %vm3198, %v5774, 0.0
    %v6411 = vsel %vm3199, %v5837, 0.0
    %v6412 = vsel %vm3200, %v5836, 0.0
    %v6413 = vsel %vm3201, %v5835, 0.0
    %v6414 = vpack.c.bf16 %v6351, %v6350
    %v6415 = vpack.c.bf16 %v6353, %v6352
    %v6416 = vpack.c.bf16 %v6355, %v6354
    %v6417 = vpack.c.bf16 %v6357, %v6356
    %v6418 = vpack.c.bf16 %v6359, %v6358
    %v6419 = vpack.c.bf16 %v6361, %v6360
    %v6420 = vpack.c.bf16 %v6363, %v6362
    %v6421 = vpack.c.bf16 %v6365, %v6364
    %v6422 = vpack.c.bf16 %v6367, %v6366
    %v6423 = vpack.c.bf16 %v6369, %v6368
    %v6424 = vpack.c.bf16 %v6371, %v6370
    %v6425 = vpack.c.bf16 %v6373, %v6372
    %v6426 = vpack.c.bf16 %v6375, %v6374
    %v6427 = vpack.c.bf16 %v6377, %v6376
    %v6428 = vpack.c.bf16 %v6379, %v6378
    %v6429 = vpack.c.bf16 %v6381, %v6380
    %v6430 = vpack.c.bf16 %v6383, %v6382
    %v6431 = vpack.c.bf16 %v6385, %v6384
    %v6432 = vpack.c.bf16 %v6387, %v6386
    %v6433 = vpack.c.bf16 %v6389, %v6388
    %v6434 = vpack.c.bf16 %v6391, %v6390
    %v6435 = vpack.c.bf16 %v6393, %v6392
    %v6436 = vpack.c.bf16 %v6395, %v6394
    %v6437 = vpack.c.bf16 %v6397, %v6396
    %v6438 = vpack.c.bf16 %v6399, %v6398
    %v6439 = vpack.c.bf16 %v6401, %v6400
    %v6440 = vpack.c.bf16 %v6403, %v6402
    %v6441 = vpack.c.bf16 %v6405, %v6404
    %v6442 = vpack.c.bf16 %v6407, %v6406
    %v6443 = vpack.c.bf16 %v6409, %v6408
    %v6444 = vpack.c.bf16 %v6411, %v6410
    %v6445 = vpack.c.bf16 %v6413, %v6412
    %v6446 = vld [vmem:[#allocation7] sm:$0xf]
    %v6447 = vld [vmem:[#allocation7 + $0x4] sm:$0xf]
    %v6448 = vld [vmem:[#allocation7 + $0x8] sm:$0xf]
    %v6449 = vld [vmem:[#allocation7 + $0xc] sm:$0xf]
    %v6450 = vld [vmem:[#allocation7 + $0x10] sm:$0xf]
    %v6451 = vld [vmem:[#allocation7 + $0x14] sm:$0xf]
    %v6452 = vld [vmem:[#allocation7 + $0x18] sm:$0xf]
    %v6453 = vld [vmem:[#allocation7 + $0x1c] sm:$0xf]
    %v6454 = vld [vmem:[#allocation7 + $0x20] sm:$0xf]
    %v6455 = vld [vmem:[#allocation7 + $0x24] sm:$0xf]
    %v6456 = vld [vmem:[#allocation7 + $0x28] sm:$0xf]
    %v6457 = vld [vmem:[#allocation7 + $0x2c] sm:$0xf]
    %v6458 = vld [vmem:[#allocation7 + $0x30] sm:$0xf]
    %v6459 = vld [vmem:[#allocation7 + $0x34] sm:$0xf]
    %v6460 = vld [vmem:[#allocation7 + $0x38] sm:$0xf]
    %v6461 = vld [vmem:[#allocation7 + $0x3c] sm:$0xf]
    %v6462 = vld [vmem:[#allocation7 + $0x40] sm:$0xf]
    %v6463 = vld [vmem:[#allocation7 + $0x44] sm:$0xf]
    %v6464 = vld [vmem:[#allocation7 + $0x48] sm:$0xf]
    %v6465 = vld [vmem:[#allocation7 + $0x4c] sm:$0xf]
    %v6466 = vld [vmem:[#allocation7 + $0x50] sm:$0xf]
    %v6467 = vld [vmem:[#allocation7 + $0x54] sm:$0xf]
    %v6468 = vld [vmem:[#allocation7 + $0x58] sm:$0xf]
    %v6469 = vld [vmem:[#allocation7 + $0x5c] sm:$0xf]
    %v6470 = vld [vmem:[#allocation7 + $0x60] sm:$0xf]
    %v6471 = vld [vmem:[#allocation7 + $0x64] sm:$0xf]
    %v6472 = vld [vmem:[#allocation7 + $0x68] sm:$0xf]
    %v6473 = vld [vmem:[#allocation7 + $0x6c] sm:$0xf]
    %v6474 = vld [vmem:[#allocation7 + $0x70] sm:$0xf]
    %v6475 = vld [vmem:[#allocation7 + $0x74] sm:$0xf]
    %v6476 = vld [vmem:[#allocation7 + $0x78] sm:$0xf]
    %v6477 = vld [vmem:[#allocation7 + $0x7c] sm:$0xf]
    %v6478 = vld [vmem:[#allocation7 + $0x80] sm:$0xf]
    %v6479 = vld [vmem:[#allocation7 + $0x84] sm:$0xf]
    %v6480 = vld [vmem:[#allocation7 + $0x88] sm:$0xf]
    %v6481 = vld [vmem:[#allocation7 + $0x8c] sm:$0xf]
    %v6482 = vld [vmem:[#allocation7 + $0x90] sm:$0xf]
    %v6483 = vld [vmem:[#allocation7 + $0x94] sm:$0xf]
    %v6484 = vld [vmem:[#allocation7 + $0x98] sm:$0xf]
    %v6485 = vld [vmem:[#allocation7 + $0x9c] sm:$0xf]
    %v6486 = vld [vmem:[#allocation7 + $0xa0] sm:$0xf]
    %v6487 = vld [vmem:[#allocation7 + $0xa4] sm:$0xf]
    %v6488 = vld [vmem:[#allocation7 + $0xa8] sm:$0xf]
    %v6489 = vld [vmem:[#allocation7 + $0xac] sm:$0xf]
    %v6490 = vld [vmem:[#allocation7 + $0xb0] sm:$0xf]
    %v6491 = vld [vmem:[#allocation7 + $0xb4] sm:$0xf]
    %v6492 = vld [vmem:[#allocation7 + $0xb8] sm:$0xf]
    %v6493 = vld [vmem:[#allocation7 + $0xbc] sm:$0xf]
    %v6494 = vld [vmem:[#allocation7 + $0xc0] sm:$0xf]
    %v6495 = vld [vmem:[#allocation7 + $0xc4] sm:$0xf]
    %v6496 = vld [vmem:[#allocation7 + $0xc8] sm:$0xf]
    %v6497 = vld [vmem:[#allocation7 + $0xcc] sm:$0xf]
    %v6498 = vld [vmem:[#allocation7 + $0xd0] sm:$0xf]
    %v6499 = vld [vmem:[#allocation7 + $0xd4] sm:$0xf]
    %v6500 = vld [vmem:[#allocation7 + $0xd8] sm:$0xf]
    %v6501 = vld [vmem:[#allocation7 + $0xdc] sm:$0xf]
    %v6502 = vld [vmem:[#allocation7 + $0xe0] sm:$0xf]
    %v6503 = vld [vmem:[#allocation7 + $0xe4] sm:$0xf]
    %v6504 = vld [vmem:[#allocation7 + $0xe8] sm:$0xf]
    %v6505 = vld [vmem:[#allocation7 + $0xec] sm:$0xf]
    %v6506 = vld [vmem:[#allocation7 + $0xf0] sm:$0xf]
    %v6507 = vld [vmem:[#allocation7 + $0xf4] sm:$0xf]
    %v6508 = vld [vmem:[#allocation7 + $0xf8] sm:$0xf]
    %v6509 = vld [vmem:[#allocation7 + $0xfc] sm:$0xf]
    %v6510 = vld [vmem:[#allocation7 + $0x100] sm:$0xf]
    %v6511 = vld [vmem:[#allocation7 + $0x104] sm:$0xf]
    %v6512 = vld [vmem:[#allocation7 + $0x108] sm:$0xf]
    %v6513 = vld [vmem:[#allocation7 + $0x10c] sm:$0xf]
    %v6514 = vld [vmem:[#allocation7 + $0x110] sm:$0xf]
    %v6515 = vld [vmem:[#allocation7 + $0x114] sm:$0xf]
    %v6516 = vld [vmem:[#allocation7 + $0x118] sm:$0xf]
    %v6517 = vld [vmem:[#allocation7 + $0x11c] sm:$0xf]
    %v6518 = vld [vmem:[#allocation7 + $0x120] sm:$0xf]
    %v6519 = vld [vmem:[#allocation7 + $0x124] sm:$0xf]
    %v6520 = vld [vmem:[#allocation7 + $0x128] sm:$0xf]
    %v6521 = vld [vmem:[#allocation7 + $0x12c] sm:$0xf]
    %v6522 = vld [vmem:[#allocation7 + $0x130] sm:$0xf]
    %v6523 = vld [vmem:[#allocation7 + $0x134] sm:$0xf]
    %v6524 = vld [vmem:[#allocation7 + $0x138] sm:$0xf]
    %v6525 = vld [vmem:[#allocation7 + $0x13c] sm:$0xf]
    %v6526 = vld [vmem:[#allocation7 + $0x140] sm:$0xf]
    %v6527 = vld [vmem:[#allocation7 + $0x144] sm:$0xf]
    %v6528 = vld [vmem:[#allocation7 + $0x148] sm:$0xf]
    %v6529 = vld [vmem:[#allocation7 + $0x14c] sm:$0xf]
    %v6530 = vld [vmem:[#allocation7 + $0x150] sm:$0xf]
    %v6531 = vld [vmem:[#allocation7 + $0x154] sm:$0xf]
    %v6532 = vld [vmem:[#allocation7 + $0x158] sm:$0xf]
    %v6533 = vld [vmem:[#allocation7 + $0x15c] sm:$0xf]
    %v6534 = vld [vmem:[#allocation7 + $0x160] sm:$0xf]
    %v6535 = vld [vmem:[#allocation7 + $0x164] sm:$0xf]
    %v6536 = vld [vmem:[#allocation7 + $0x168] sm:$0xf]
    %v6537 = vld [vmem:[#allocation7 + $0x16c] sm:$0xf]
    %v6538 = vld [vmem:[#allocation7 + $0x170] sm:$0xf]
    %v6539 = vld [vmem:[#allocation7 + $0x174] sm:$0xf]
    %v6540 = vld [vmem:[#allocation7 + $0x178] sm:$0xf]
    %v6541 = vld [vmem:[#allocation7 + $0x17c] sm:$0xf]
    %v6542 = vld [vmem:[#allocation7 + $0x180] sm:$0xf]
    %v6543 = vld [vmem:[#allocation7 + $0x184] sm:$0xf]
    %v6544 = vld [vmem:[#allocation7 + $0x188] sm:$0xf]
    %v6545 = vld [vmem:[#allocation7 + $0x18c] sm:$0xf]
    %v6546 = vld [vmem:[#allocation7 + $0x190] sm:$0xf]
    %v6547 = vld [vmem:[#allocation7 + $0x194] sm:$0xf]
    %v6548 = vld [vmem:[#allocation7 + $0x198] sm:$0xf]
    %v6549 = vld [vmem:[#allocation7 + $0x19c] sm:$0xf]
    %v6550 = vld [vmem:[#allocation7 + $0x1a0] sm:$0xf]
    %v6551 = vld [vmem:[#allocation7 + $0x1a4] sm:$0xf]
    %v6552 = vld [vmem:[#allocation7 + $0x1a8] sm:$0xf]
    %v6553 = vld [vmem:[#allocation7 + $0x1ac] sm:$0xf]
    %v6554 = vld [vmem:[#allocation7 + $0x1b0] sm:$0xf]
    %v6555 = vld [vmem:[#allocation7 + $0x1b4] sm:$0xf]
    %v6556 = vld [vmem:[#allocation7 + $0x1b8] sm:$0xf]
    %v6557 = vld [vmem:[#allocation7 + $0x1bc] sm:$0xf]
    %v6558 = vld [vmem:[#allocation7 + $0x1c0] sm:$0xf]
    %v6559 = vld [vmem:[#allocation7 + $0x1c4] sm:$0xf]
    %v6560 = vld [vmem:[#allocation7 + $0x1c8] sm:$0xf]
    %v6561 = vld [vmem:[#allocation7 + $0x1cc] sm:$0xf]
    %v6562 = vld [vmem:[#allocation7 + $0x1d0] sm:$0xf]
    %v6563 = vld [vmem:[#allocation7 + $0x1d4] sm:$0xf]
    %v6564 = vld [vmem:[#allocation7 + $0x1d8] sm:$0xf]
    %v6565 = vld [vmem:[#allocation7 + $0x1dc] sm:$0xf]
    %v6566 = vld [vmem:[#allocation7 + $0x1e0] sm:$0xf]
    %v6567 = vld [vmem:[#allocation7 + $0x1e4] sm:$0xf]
    %v6568 = vld [vmem:[#allocation7 + $0x1e8] sm:$0xf]
    %v6569 = vld [vmem:[#allocation7 + $0x1ec] sm:$0xf]
    %v6570 = vld [vmem:[#allocation7 + $0x1f0] sm:$0xf]
    %v6571 = vld [vmem:[#allocation7 + $0x1f4] sm:$0xf]
    %v6572 = vld [vmem:[#allocation7 + $0x1f8] sm:$0xf]
    %v6573 = vld [vmem:[#allocation7 + $0x1fc] sm:$0xf]
    %v6574 = vld [vmem:[#allocation7 + $0x200] sm:$0xf]
    %v6575 = vld [vmem:[#allocation7 + $0x204] sm:$0xf]
    %v6576 = vld [vmem:[#allocation7 + $0x208] sm:$0xf]
    %v6577 = vld [vmem:[#allocation7 + $0x20c] sm:$0xf]
    %v6578 = vld [vmem:[#allocation7 + $0x210] sm:$0xf]
    %v6579 = vld [vmem:[#allocation7 + $0x214] sm:$0xf]
    %v6580 = vld [vmem:[#allocation7 + $0x218] sm:$0xf]
    %v6581 = vld [vmem:[#allocation7 + $0x21c] sm:$0xf]
    %v6582 = vld [vmem:[#allocation7 + $0x220] sm:$0xf]
    %v6583 = vld [vmem:[#allocation7 + $0x224] sm:$0xf]
    %v6584 = vld [vmem:[#allocation7 + $0x228] sm:$0xf]
    %v6585 = vld [vmem:[#allocation7 + $0x22c] sm:$0xf]
    %v6586 = vld [vmem:[#allocation7 + $0x230] sm:$0xf]
    %v6587 = vld [vmem:[#allocation7 + $0x234] sm:$0xf]
    %v6588 = vld [vmem:[#allocation7 + $0x238] sm:$0xf]
    %v6589 = vld [vmem:[#allocation7 + $0x23c] sm:$0xf]
    %v6590 = vld [vmem:[%s4] sm:$0x1]
    %v6592 = vlaneseq
    %v6593 = vshrl.u32 %v6592, 7
    %v6594 = vsub.s32 0, %v6593
    %v6595 = vrot.slane %v6590, %v6594
    %v6741 = vunpack.c.l.b16 %v6446
    %v6742 = vunpack.c.l.b16 %v6447
    %v6743 = vunpack.c.l.b16 %v6448
    %v6744 = vunpack.c.l.b16 %v6449
    %v6745 = vunpack.c.l.b16 %v6450
    %v6746 = vunpack.c.l.b16 %v6451
    %v6747 = vunpack.c.l.b16 %v6452
    %v6748 = vunpack.c.l.b16 %v6453
    %v6749 = vunpack.c.l.b16 %v6454
    %v6750 = vunpack.c.l.b16 %v6455
    %v6751 = vunpack.c.l.b16 %v6456
    %v6752 = vunpack.c.l.b16 %v6457
    %v6753 = vunpack.c.l.b16 %v6458
    %v6754 = vunpack.c.l.b16 %v6459
    %v6755 = vunpack.c.l.b16 %v6460
    %v6756 = vunpack.c.l.b16 %v6461
    %v6757 = vunpack.c.l.b16 %v6462
    %v6758 = vunpack.c.l.b16 %v6463
    %v6759 = vunpack.c.l.b16 %v6464
    %v6760 = vunpack.c.l.b16 %v6465
    %v6761 = vunpack.c.l.b16 %v6466
    %v6762 = vunpack.c.l.b16 %v6467
    %v6763 = vunpack.c.l.b16 %v6468
    %v6764 = vunpack.c.l.b16 %v6469
    %v6765 = vunpack.c.l.b16 %v6470
    %v6766 = vunpack.c.l.b16 %v6471
    %v6767 = vunpack.c.l.b16 %v6472
    %v6768 = vunpack.c.l.b16 %v6473
    %v6769 = vunpack.c.l.b16 %v6474
    %v6770 = vunpack.c.l.b16 %v6475
    %v6771 = vunpack.c.l.b16 %v6476
    %v6772 = vunpack.c.l.b16 %v6477
    %v6773 = vunpack.c.l.b16 %v6478
    %v6774 = vunpack.c.l.b16 %v6479
    %v6775 = vunpack.c.l.b16 %v6480
    %v6776 = vunpack.c.l.b16 %v6481
    %v6777 = vunpack.c.l.b16 %v6482
    %v6778 = vunpack.c.l.b16 %v6483
    %v6779 = vunpack.c.l.b16 %v6484
    %v6780 = vunpack.c.l.b16 %v6485
    %v6781 = vunpack.c.l.b16 %v6486
    %v6782 = vunpack.c.l.b16 %v6487
    %v6783 = vunpack.c.l.b16 %v6488
    %v6784 = vunpack.c.l.b16 %v6489
    %v6785 = vunpack.c.l.b16 %v6490
    %v6786 = vunpack.c.l.b16 %v6491
    %v6787 = vunpack.c.l.b16 %v6492
    %v6788 = vunpack.c.l.b16 %v6493
    %v6789 = vunpack.c.l.b16 %v6494
    %v6790 = vunpack.c.l.b16 %v6495
    %v6791 = vunpack.c.l.b16 %v6496
    %v6792 = vunpack.c.l.b16 %v6497
    %v6793 = vunpack.c.l.b16 %v6498
    %v6794 = vunpack.c.l.b16 %v6499
    %v6795 = vunpack.c.l.b16 %v6500
    %v6796 = vunpack.c.l.b16 %v6501
    %v6797 = vunpack.c.l.b16 %v6502
    %v6798 = vunpack.c.l.b16 %v6503
    %v6799 = vunpack.c.l.b16 %v6504
    %v6800 = vunpack.c.l.b16 %v6505
    %v6801 = vunpack.c.l.b16 %v6506
    %v6802 = vunpack.c.l.b16 %v6507
    %v6803 = vunpack.c.l.b16 %v6508
    %v6804 = vunpack.c.l.b16 %v6509
    %v6805 = vunpack.c.l.b16 %v6510
    %v6806 = vunpack.c.l.b16 %v6511
    %v6807 = vunpack.c.l.b16 %v6512
    %v6808 = vunpack.c.l.b16 %v6513
    %v6809 = vunpack.c.l.b16 %v6514
    %v6810 = vunpack.c.l.b16 %v6515
    %v6811 = vunpack.c.l.b16 %v6516
    %v6812 = vunpack.c.l.b16 %v6517
    %v6813 = vunpack.c.l.b16 %v6518
    %v6814 = vunpack.c.l.b16 %v6519
    %v6815 = vunpack.c.l.b16 %v6520
    %v6816 = vunpack.c.l.b16 %v6521
    %v6817 = vunpack.c.l.b16 %v6522
    %v6818 = vunpack.c.l.b16 %v6523
    %v6819 = vunpack.c.l.b16 %v6524
    %v6820 = vunpack.c.l.b16 %v6525
    %v6821 = vunpack.c.l.b16 %v6526
    %v6822 = vunpack.c.l.b16 %v6527
    %v6823 = vunpack.c.l.b16 %v6528
    %v6824 = vunpack.c.l.b16 %v6529
    %v6825 = vunpack.c.l.b16 %v6530
    %v6826 = vunpack.c.l.b16 %v6531
    %v6827 = vunpack.c.l.b16 %v6532
    %v6828 = vunpack.c.l.b16 %v6533
    %v6829 = vunpack.c.l.b16 %v6534
    %v6830 = vunpack.c.l.b16 %v6535
    %v6831 = vunpack.c.l.b16 %v6536
    %v6832 = vunpack.c.l.b16 %v6537
    %v6833 = vunpack.c.l.b16 %v6538
    %v6834 = vunpack.c.l.b16 %v6539
    %v6835 = vunpack.c.l.b16 %v6540
    %v6836 = vunpack.c.l.b16 %v6541
    %v6837 = vunpack.c.l.b16 %v6542
    %v6838 = vunpack.c.l.b16 %v6543
    %v6839 = vunpack.c.l.b16 %v6544
    %v6840 = vunpack.c.l.b16 %v6545
    %v6841 = vunpack.c.l.b16 %v6546
    %v6842 = vunpack.c.l.b16 %v6547
    %v6843 = vunpack.c.l.b16 %v6548
    %v6844 = vunpack.c.l.b16 %v6549
    %v6845 = vunpack.c.l.b16 %v6550
    %v6846 = vunpack.c.l.b16 %v6551
    %v6847 = vunpack.c.l.b16 %v6552
    %v6848 = vunpack.c.l.b16 %v6553
    %v6849 = vunpack.c.l.b16 %v6554
    %v6850 = vunpack.c.l.b16 %v6555
    %v6851 = vunpack.c.l.b16 %v6556
    %v6852 = vunpack.c.l.b16 %v6557
    %v6853 = vunpack.c.l.b16 %v6558
    %v6854 = vunpack.c.l.b16 %v6559
    %v6855 = vunpack.c.l.b16 %v6560
    %v6856 = vunpack.c.l.b16 %v6561
    %v6857 = vunpack.c.l.b16 %v6562
    %v6858 = vunpack.c.l.b16 %v6563
    %v6859 = vunpack.c.l.b16 %v6564
    %v6860 = vunpack.c.l.b16 %v6565
    %v6861 = vunpack.c.l.b16 %v6566
    %v6862 = vunpack.c.l.b16 %v6567
    %v6863 = vunpack.c.l.b16 %v6568
    %v6864 = vunpack.c.l.b16 %v6569
    %v6865 = vunpack.c.l.b16 %v6570
    %v6866 = vunpack.c.l.b16 %v6571
    %v6867 = vunpack.c.l.b16 %v6572
    %v6868 = vunpack.c.l.b16 %v6573
    %v6869 = vunpack.c.l.b16 %v6574
    %v6870 = vunpack.c.l.b16 %v6575
    %v6871 = vunpack.c.l.b16 %v6576
    %v6872 = vunpack.c.l.b16 %v6577
    %v6873 = vunpack.c.l.b16 %v6578
    %v6874 = vunpack.c.l.b16 %v6579
    %v6875 = vunpack.c.l.b16 %v6580
    %v6876 = vunpack.c.l.b16 %v6581
    %v6877 = vunpack.c.l.b16 %v6582
    %v6878 = vunpack.c.l.b16 %v6583
    %v6879 = vunpack.c.l.b16 %v6584
    %v6880 = vunpack.c.l.b16 %v6585
    %v6881 = vunpack.c.l.b16 %v6586
    %v6882 = vunpack.c.l.b16 %v6587
    %v6883 = vunpack.c.l.b16 %v6588
    %v6884 = vunpack.c.l.b16 %v6589
    %v6885 = vpack.c.b16 %v6742, %v6741
    %v6886 = vpack.c.b16 %v6744, %v6743
    %v6887 = vpack.c.b16 %v6746, %v6745
    %v6888 = vpack.c.b16 %v6748, %v6747
    %v6889 = vpack.c.b16 %v6750, %v6749
    %v6890 = vpack.c.b16 %v6752, %v6751
    %v6891 = vpack.c.b16 %v6754, %v6753
    %v6892 = vpack.c.b16 %v6756, %v6755
    %v6893 = vpack.c.b16 %v6758, %v6757
    %v6894 = vpack.c.b16 %v6760, %v6759
    %v6895 = vpack.c.b16 %v6762, %v6761
    %v6896 = vpack.c.b16 %v6764, %v6763
    %v6897 = vpack.c.b16 %v6766, %v6765
    %v6898 = vpack.c.b16 %v6768, %v6767
    %v6899 = vpack.c.b16 %v6770, %v6769
    %v6900 = vpack.c.b16 %v6772, %v6771
    %v6901 = vpack.c.b16 %v6774, %v6773
    %v6902 = vpack.c.b16 %v6776, %v6775
    %v6903 = vpack.c.b16 %v6778, %v6777
    %v6904 = vpack.c.b16 %v6780, %v6779
    %v6905 = vpack.c.b16 %v6782, %v6781
    %v6906 = vpack.c.b16 %v6784, %v6783
    %v6907 = vpack.c.b16 %v6786, %v6785
    %v6908 = vpack.c.b16 %v6788, %v6787
    %v6909 = vpack.c.b16 %v6790, %v6789
    %v6910 = vpack.c.b16 %v6792, %v6791
    %v6911 = vpack.c.b16 %v6794, %v6793
    %v6912 = vpack.c.b16 %v6796, %v6795
    %v6913 = vpack.c.b16 %v6798, %v6797
    %v6914 = vpack.c.b16 %v6800, %v6799
    %v6915 = vpack.c.b16 %v6802, %v6801
    %v6916 = vpack.c.b16 %v6804, %v6803
    %v6917 = vpack.c.b16 %v6806, %v6805
    %v6918 = vpack.c.b16 %v6808, %v6807
    %v6919 = vpack.c.b16 %v6810, %v6809
    %v6920 = vpack.c.b16 %v6812, %v6811
    %v6921 = vpack.c.b16 %v6814, %v6813
    %v6922 = vpack.c.b16 %v6816, %v6815
    %v6923 = vpack.c.b16 %v6818, %v6817
    %v6924 = vpack.c.b16 %v6820, %v6819
    %v6925 = vpack.c.b16 %v6822, %v6821
    %v6926 = vpack.c.b16 %v6824, %v6823
    %v6927 = vpack.c.b16 %v6826, %v6825
    %v6928 = vpack.c.b16 %v6828, %v6827
    %v6929 = vpack.c.b16 %v6830, %v6829
    %v6930 = vpack.c.b16 %v6832, %v6831
    %v6931 = vpack.c.b16 %v6834, %v6833
    %v6932 = vpack.c.b16 %v6836, %v6835
    %v6933 = vpack.c.b16 %v6838, %v6837
    %v6934 = vpack.c.b16 %v6840, %v6839
    %v6935 = vpack.c.b16 %v6842, %v6841
    %v6936 = vpack.c.b16 %v6844, %v6843
    %v6937 = vpack.c.b16 %v6846, %v6845
    %v6938 = vpack.c.b16 %v6848, %v6847
    %v6939 = vpack.c.b16 %v6850, %v6849
    %v6940 = vpack.c.b16 %v6852, %v6851
    %v6941 = vpack.c.b16 %v6854, %v6853
    %v6942 = vpack.c.b16 %v6856, %v6855
    %v6943 = vpack.c.b16 %v6858, %v6857
    %v6944 = vpack.c.b16 %v6860, %v6859
    %v6945 = vpack.c.b16 %v6862, %v6861
    %v6946 = vpack.c.b16 %v6864, %v6863
    %v6947 = vpack.c.b16 %v6866, %v6865
    %v6948 = vpack.c.b16 %v6868, %v6867
    %v6949 = vpack.c.b16 %v6870, %v6869
    %v6950 = vpack.c.b16 %v6872, %v6871
    %v6951 = vpack.c.b16 %v6874, %v6873
    %v6952 = vpack.c.b16 %v6876, %v6875
    %v6953 = vpack.c.b16 %v6878, %v6877
    %v6954 = vpack.c.b16 %v6880, %v6879
    %v6955 = vpack.c.b16 %v6882, %v6881
    %v6956 = vpack.c.b16 %v6884, %v6883
    %7029 = vmatprep.subr.bf16.mxu0 0
    %7030 = vmatpush1.bf16.msra.mxu0 %v6892
    %7031 = vmatprep.subr.bf16.mxu0 0
    %7032 = vmatpush1.bf16.msra.mxu0 %v6891
    %7033 = vmatprep.subr.bf16.mxu0 0
    %7034 = vmatpush1.bf16.msra.mxu0 %v6890
    %7035 = vmatprep.subr.bf16.mxu0 0
    %7036 = vmatpush1.bf16.msra.mxu0 %v6889
    %7037 = vmatprep.subr.bf16.mxu0 0
    %7038 = vmatpush1.bf16.msra.mxu0 %v6888
    %7039 = vmatprep.subr.bf16.mxu0 0
    %7040 = vmatpush1.bf16.msra.mxu0 %v6887
    %7041 = vmatprep.subr.bf16.mxu0 0
    %7042 = vmatpush1.bf16.msra.mxu0 %v6886
    %7043 = vmatprep.subr.bf16.mxu0 0
    %7044 = vmatpush1.bf16.msra.mxu0 %v6885
    %7045 = vmatprep.subr.bf16.mxu0 0
    %7046 = vmatpush2.bf16.msra.mxu0 %v6900
    %7047 = vmatprep.subr.bf16.mxu0 0
    %7048 = vmatpush2.bf16.msra.mxu0 %v6899
    %7049 = vmatprep.subr.bf16.mxu0 0
    %7050 = vmatpush2.bf16.msra.mxu0 %v6898
    %7051 = vmatprep.subr.bf16.mxu0 0
    %7052 = vmatpush2.bf16.msra.mxu0 %v6897
    %7053 = vmatprep.subr.bf16.mxu0 0
    %7054 = vmatpush2.bf16.msra.mxu0 %v6896
    %7055 = vmatprep.subr.bf16.mxu0 0
    %7056 = vmatpush2.bf16.msra.mxu0 %v6895
    %7057 = vmatprep.subr.bf16.mxu0 0
    %7058 = vmatpush2.bf16.msra.mxu0 %v6894
    %7059 = vmatprep.subr.bf16.mxu0 0
    %7060 = vmatpush2.bf16.msra.mxu0 %v6893
    %7061 = vmatprep.mubr.bf16.mxu0 %v5678
    %7062 = vmatmul.mubr.bf16.gmra.mxu0 %v5582
    %v7063 = vpop.f32.mrf.mxu0
    %v7064 = vadd.f32 %v6595, %v7063
    %v7065 = vpop.f32.mrf.mxu0
    %v7066 = vpop.f32.mrf.mxu0
    %v7067 = vadd.f32 %v6595, %v7066
    %v7068 = vpop.f32.mrf.mxu0
    %7069 = vmatprep.mubr.bf16.mxu0 %v5679
    %7070 = vmatmul.mubr.bf16.gmra.mxu0 %v5583
    %v7071 = vpop.f32.mrf.mxu0
    %v7072 = vadd.f32 %v6595, %v7071
    %v7073 = vpop.f32.mrf.mxu0
    %v7074 = vpop.f32.mrf.mxu0
    %v7075 = vadd.f32 %v6595, %v7074
    %v7076 = vpop.f32.mrf.mxu0
    %7077 = vmatprep.mubr.bf16.mxu0 %v5680
    %7078 = vmatmul.mubr.bf16.gmra.mxu0 %v5584
    %v7079 = vpop.f32.mrf.mxu0
    %v7080 = vadd.f32 %v6595, %v7079
    %v7081 = vpop.f32.mrf.mxu0
    %v7082 = vpop.f32.mrf.mxu0
    %v7083 = vadd.f32 %v6595, %v7082
    %v7084 = vpop.f32.mrf.mxu0
    %7085 = vmatprep.mubr.bf16.mxu0 %v5681
    %7086 = vmatmul.mubr.bf16.gmra.mxu0 %v5585
    %v7087 = vpop.f32.mrf.mxu0
    %v7088 = vadd.f32 %v6595, %v7087
    %v7089 = vpop.f32.mrf.mxu0
    %v7090 = vpop.f32.mrf.mxu0
    %v7091 = vadd.f32 %v6595, %v7090
    %v7092 = vpop.f32.mrf.mxu0
    %7093 = vmatprep.mubr.bf16.mxu0 %v5682
    %7094 = vmatmul.mubr.bf16.gmra.mxu0 %v5586
    %v7095 = vpop.f32.mrf.mxu0
    %v7096 = vadd.f32 %v6595, %v7095
    %v7097 = vpop.f32.mrf.mxu0
    %v7098 = vpop.f32.mrf.mxu0
    %v7099 = vadd.f32 %v6595, %v7098
    %v7100 = vpop.f32.mrf.mxu0
    %7101 = vmatprep.mubr.bf16.mxu0 %v5683
    %7102 = vmatmul.mubr.bf16.gmra.mxu0 %v5587
    %v7103 = vpop.f32.mrf.mxu0
    %v7104 = vadd.f32 %v6595, %v7103
    %v7105 = vpop.f32.mrf.mxu0
    %v7106 = vpop.f32.mrf.mxu0
    %v7107 = vadd.f32 %v6595, %v7106
    %v7108 = vpop.f32.mrf.mxu0
    %7109 = vmatprep.mubr.bf16.mxu0 %v5684
    %7110 = vmatmul.mubr.bf16.gmra.mxu0 %v5588
    %v7111 = vpop.f32.mrf.mxu0
    %v7112 = vadd.f32 %v6595, %v7111
    %v7113 = vpop.f32.mrf.mxu0
    %v7114 = vpop.f32.mrf.mxu0
    %v7115 = vadd.f32 %v6595, %v7114
    %v7116 = vpop.f32.mrf.mxu0
    %7117 = vmatprep.mubr.bf16.mxu0 %v5685
    %7118 = vmatmul.mubr.bf16.gmra.mxu0 %v5589
    %v7119 = vpop.f32.mrf.mxu0
    %v7120 = vadd.f32 %v6595, %v7119
    %v7121 = vpop.f32.mrf.mxu0
    %v7122 = vpop.f32.mrf.mxu0
    %v7123 = vadd.f32 %v6595, %v7122
    %v7124 = vpop.f32.mrf.mxu0
    %7125 = vmatprep.mubr.bf16.mxu0 %v5686
    %7126 = vmatmul.mubr.bf16.gmra.mxu0 %v5590
    %v7127 = vpop.f32.mrf.mxu0
    %v7128 = vadd.f32 %v6595, %v7127
    %v7129 = vpop.f32.mrf.mxu0
    %v7130 = vpop.f32.mrf.mxu0
    %v7131 = vadd.f32 %v6595, %v7130
    %v7132 = vpop.f32.mrf.mxu0
    %7133 = vmatprep.mubr.bf16.mxu0 %v5687
    %7134 = vmatmul.mubr.bf16.gmra.mxu0 %v5591
    %v7135 = vpop.f32.mrf.mxu0
    %v7136 = vadd.f32 %v6595, %v7135
    %v7137 = vpop.f32.mrf.mxu0
    %v7138 = vpop.f32.mrf.mxu0
    %v7139 = vadd.f32 %v6595, %v7138
    %v7140 = vpop.f32.mrf.mxu0
    %7141 = vmatprep.mubr.bf16.mxu0 %v5688
    %7142 = vmatmul.mubr.bf16.gmra.mxu0 %v5592
    %v7143 = vpop.f32.mrf.mxu0
    %v7144 = vadd.f32 %v6595, %v7143
    %v7145 = vpop.f32.mrf.mxu0
    %v7146 = vpop.f32.mrf.mxu0
    %v7147 = vadd.f32 %v6595, %v7146
    %v7148 = vpop.f32.mrf.mxu0
    %7149 = vmatprep.mubr.bf16.mxu0 %v5689
    %7150 = vmatmul.mubr.bf16.gmra.mxu0 %v5593
    %v7151 = vpop.f32.mrf.mxu0
    %v7152 = vadd.f32 %v6595, %v7151
    %v7153 = vpop.f32.mrf.mxu0
    %v7154 = vpop.f32.mrf.mxu0
    %v7155 = vadd.f32 %v6595, %v7154
    %v7156 = vpop.f32.mrf.mxu0
    %7157 = vmatprep.mubr.bf16.mxu0 %v5690
    %7158 = vmatmul.mubr.bf16.gmra.mxu0 %v5594
    %v7159 = vpop.f32.mrf.mxu0
    %v7160 = vadd.f32 %v6595, %v7159
    %v7161 = vpop.f32.mrf.mxu0
    %v7162 = vpop.f32.mrf.mxu0
    %v7163 = vadd.f32 %v6595, %v7162
    %v7164 = vpop.f32.mrf.mxu0
    %7165 = vmatprep.mubr.bf16.mxu0 %v5691
    %7166 = vmatmul.mubr.bf16.gmra.mxu0 %v5595
    %v7167 = vpop.f32.mrf.mxu0
    %v7168 = vadd.f32 %v6595, %v7167
    %v7169 = vpop.f32.mrf.mxu0
    %v7170 = vpop.f32.mrf.mxu0
    %v7171 = vadd.f32 %v6595, %v7170
    %v7172 = vpop.f32.mrf.mxu0
    %7173 = vmatprep.mubr.bf16.mxu0 %v5692
    %7174 = vmatmul.mubr.bf16.gmra.mxu0 %v5596
    %v7175 = vpop.f32.mrf.mxu0
    %v7176 = vadd.f32 %v6595, %v7175
    %v7177 = vpop.f32.mrf.mxu0
    %v7178 = vpop.f32.mrf.mxu0
    %v7179 = vadd.f32 %v6595, %v7178
    %v7180 = vpop.f32.mrf.mxu0
    %7181 = vmatprep.mubr.bf16.mxu0 %v5693
    %7182 = vmatmul.mubr.bf16.gmra.mxu0 %v5597
    %v7183 = vpop.f32.mrf.mxu0
    %v7184 = vadd.f32 %v6595, %v7183
    %v7185 = vpop.f32.mrf.mxu0
    %v7186 = vpop.f32.mrf.mxu0
    %v7187 = vadd.f32 %v6595, %v7186
    %v7188 = vpop.f32.mrf.mxu0
    %7189 = vmatprep.mubr.bf16.mxu0 %v5694
    %7190 = vmatmul.mubr.bf16.gmra.mxu0 %v5598
    %v7191 = vpop.f32.mrf.mxu0
    %v7192 = vadd.f32 %v6595, %v7191
    %v7193 = vpop.f32.mrf.mxu0
    %v7194 = vpop.f32.mrf.mxu0
    %v7195 = vadd.f32 %v6595, %v7194
    %v7196 = vpop.f32.mrf.mxu0
    %7197 = vmatprep.mubr.bf16.mxu0 %v5695
    %7198 = vmatmul.mubr.bf16.gmra.mxu0 %v5599
    %v7199 = vpop.f32.mrf.mxu0
    %v7200 = vadd.f32 %v6595, %v7199
    %v7201 = vpop.f32.mrf.mxu0
    %v7202 = vpop.f32.mrf.mxu0
    %v7203 = vadd.f32 %v6595, %v7202
    %v7204 = vpop.f32.mrf.mxu0
    %7205 = vmatprep.mubr.bf16.mxu0 %v5696
    %7206 = vmatmul.mubr.bf16.gmra.mxu0 %v5600
    %v7207 = vpop.f32.mrf.mxu0
    %v7208 = vadd.f32 %v6595, %v7207
    %v7209 = vpop.f32.mrf.mxu0
    %v7210 = vpop.f32.mrf.mxu0
    %v7211 = vadd.f32 %v6595, %v7210
    %v7212 = vpop.f32.mrf.mxu0
    %7213 = vmatprep.mubr.bf16.mxu0 %v5697
    %7214 = vmatmul.mubr.bf16.gmra.mxu0 %v5601
    %v7215 = vpop.f32.mrf.mxu0
    %v7216 = vadd.f32 %v6595, %v7215
    %v7217 = vpop.f32.mrf.mxu0
    %v7218 = vpop.f32.mrf.mxu0
    %v7219 = vadd.f32 %v6595, %v7218
    %v7220 = vpop.f32.mrf.mxu0
    %7221 = vmatprep.mubr.bf16.mxu0 %v5698
    %7222 = vmatmul.mubr.bf16.gmra.mxu0 %v5602
    %v7223 = vpop.f32.mrf.mxu0
    %v7224 = vadd.f32 %v6595, %v7223
    %v7225 = vpop.f32.mrf.mxu0
    %v7226 = vpop.f32.mrf.mxu0
    %v7227 = vadd.f32 %v6595, %v7226
    %v7228 = vpop.f32.mrf.mxu0
    %7229 = vmatprep.mubr.bf16.mxu0 %v5699
    %7230 = vmatmul.mubr.bf16.gmra.mxu0 %v5603
    %v7231 = vpop.f32.mrf.mxu0
    %v7232 = vadd.f32 %v6595, %v7231
    %v7233 = vpop.f32.mrf.mxu0
    %v7234 = vpop.f32.mrf.mxu0
    %v7235 = vadd.f32 %v6595, %v7234
    %v7236 = vpop.f32.mrf.mxu0
    %7237 = vmatprep.mubr.bf16.mxu0 %v5700
    %7238 = vmatmul.mubr.bf16.gmra.mxu0 %v5604
    %v7239 = vpop.f32.mrf.mxu0
    %v7240 = vadd.f32 %v6595, %v7239
    %v7241 = vpop.f32.mrf.mxu0
    %v7242 = vpop.f32.mrf.mxu0
    %v7243 = vadd.f32 %v6595, %v7242
    %v7244 = vpop.f32.mrf.mxu0
    %7245 = vmatprep.mubr.bf16.mxu0 %v5701
    %7246 = vmatmul.mubr.bf16.gmra.mxu0 %v5605
    %v7247 = vpop.f32.mrf.mxu0
    %v7248 = vadd.f32 %v6595, %v7247
    %v7249 = vpop.f32.mrf.mxu0
    %v7250 = vpop.f32.mrf.mxu0
    %v7251 = vadd.f32 %v6595, %v7250
    %v7252 = vpop.f32.mrf.mxu0
    %7253 = vmatprep.mubr.bf16.mxu0 %v5702
    %7254 = vmatmul.mubr.bf16.gmra.mxu0 %v5606
    %v7255 = vpop.f32.mrf.mxu0
    %v7256 = vadd.f32 %v6595, %v7255
    %v7257 = vpop.f32.mrf.mxu0
    %v7258 = vpop.f32.mrf.mxu0
    %v7259 = vadd.f32 %v6595, %v7258
    %v7260 = vpop.f32.mrf.mxu0
    %7261 = vmatprep.mubr.bf16.mxu0 %v5703
    %7262 = vmatmul.mubr.bf16.gmra.mxu0 %v5607
    %v7263 = vpop.f32.mrf.mxu0
    %v7264 = vadd.f32 %v6595, %v7263
    %v7265 = vpop.f32.mrf.mxu0
    %v7266 = vpop.f32.mrf.mxu0
    %v7267 = vadd.f32 %v6595, %v7266
    %v7268 = vpop.f32.mrf.mxu0
    %7269 = vmatprep.mubr.bf16.mxu0 %v5704
    %7270 = vmatmul.mubr.bf16.gmra.mxu0 %v5608
    %v7271 = vpop.f32.mrf.mxu0
    %v7272 = vadd.f32 %v6595, %v7271
    %v7273 = vpop.f32.mrf.mxu0
    %v7274 = vpop.f32.mrf.mxu0
    %v7275 = vadd.f32 %v6595, %v7274
    %v7276 = vpop.f32.mrf.mxu0
    %7277 = vmatprep.mubr.bf16.mxu0 %v5705
    %7278 = vmatmul.mubr.bf16.gmra.mxu0 %v5609
    %v7279 = vpop.f32.mrf.mxu0
    %v7280 = vadd.f32 %v6595, %v7279
    %v7281 = vpop.f32.mrf.mxu0
    %v7282 = vpop.f32.mrf.mxu0
    %v7283 = vadd.f32 %v6595, %v7282
    %v7284 = vpop.f32.mrf.mxu0
    %7285 = vmatprep.mubr.bf16.mxu0 %v5706
    %7286 = vmatmul.mubr.bf16.gmra.mxu0 %v5610
    %v7287 = vpop.f32.mrf.mxu0
    %v7288 = vadd.f32 %v6595, %v7287
    %v7289 = vpop.f32.mrf.mxu0
    %v7290 = vpop.f32.mrf.mxu0
    %v7291 = vadd.f32 %v6595, %v7290
    %v7292 = vpop.f32.mrf.mxu0
    %7293 = vmatprep.mubr.bf16.mxu0 %v5707
    %7294 = vmatmul.mubr.bf16.gmra.mxu0 %v5611
    %v7295 = vpop.f32.mrf.mxu0
    %v7296 = vadd.f32 %v6595, %v7295
    %v7297 = vpop.f32.mrf.mxu0
    %v7298 = vpop.f32.mrf.mxu0
    %v7299 = vadd.f32 %v6595, %v7298
    %v7300 = vpop.f32.mrf.mxu0
    %7301 = vmatprep.mubr.bf16.mxu0 %v5708
    %7302 = vmatmul.mubr.bf16.gmra.mxu0 %v5612
    %v7303 = vpop.f32.mrf.mxu0
    %v7304 = vadd.f32 %v6595, %v7303
    %v7305 = vpop.f32.mrf.mxu0
    %v7306 = vpop.f32.mrf.mxu0
    %v7307 = vadd.f32 %v6595, %v7306
    %v7308 = vpop.f32.mrf.mxu0
    %7309 = vmatprep.mubr.bf16.mxu0 %v5709
    %7310 = vmatmul.mubr.bf16.gmra.mxu0 %v5613
    %v7311 = vpop.f32.mrf.mxu0
    %v7312 = vadd.f32 %v6595, %v7311
    %v7313 = vpop.f32.mrf.mxu0
    %v7314 = vpop.f32.mrf.mxu0
    %v7315 = vadd.f32 %v6595, %v7314
    %v7316 = vpop.f32.mrf.mxu0
    %7317 = vdwg.mxu0
    %7318 = vmatprep.subr.bf16.mxu0 0
    %7319 = vmatpush1.bf16.msra.mxu0 %v6908
    %7320 = vmatprep.subr.bf16.mxu0 0
    %7321 = vmatpush1.bf16.msra.mxu0 %v6907
    %7322 = vmatprep.subr.bf16.mxu0 0
    %7323 = vmatpush1.bf16.msra.mxu0 %v6906
    %7324 = vmatprep.subr.bf16.mxu0 0
    %7325 = vmatpush1.bf16.msra.mxu0 %v6905
    %7326 = vmatprep.subr.bf16.mxu0 0
    %7327 = vmatpush1.bf16.msra.mxu0 %v6904
    %7328 = vmatprep.subr.bf16.mxu0 0
    %7329 = vmatpush1.bf16.msra.mxu0 %v6903
    %7330 = vmatprep.subr.bf16.mxu0 0
    %7331 = vmatpush1.bf16.msra.mxu0 %v6902
    %7332 = vmatprep.subr.bf16.mxu0 0
    %7333 = vmatpush1.bf16.msra.mxu0 %v6901
    %7334 = vmatprep.subr.bf16.mxu0 0
    %7335 = vmatpush2.bf16.msra.mxu0 %v6916
    %7336 = vmatprep.subr.bf16.mxu0 0
    %7337 = vmatpush2.bf16.msra.mxu0 %v6915
    %7338 = vmatprep.subr.bf16.mxu0 0
    %7339 = vmatpush2.bf16.msra.mxu0 %v6914
    %7340 = vmatprep.subr.bf16.mxu0 0
    %7341 = vmatpush2.bf16.msra.mxu0 %v6913
    %7342 = vmatprep.subr.bf16.mxu0 0
    %7343 = vmatpush2.bf16.msra.mxu0 %v6912
    %7344 = vmatprep.subr.bf16.mxu0 0
    %7345 = vmatpush2.bf16.msra.mxu0 %v6911
    %7346 = vmatprep.subr.bf16.mxu0 0
    %7347 = vmatpush2.bf16.msra.mxu0 %v6910
    %7348 = vmatprep.subr.bf16.mxu0 0
    %7349 = vmatpush2.bf16.msra.mxu0 %v6909
    %7350 = vmatprep.mubr.bf16.mxu0 %v5998
    %7351 = vmatmul.mubr.bf16.gmra.mxu0 %v5902
    %v7352 = vpop.f32.mrf.mxu0
    %v7353 = vadd.f32 %v7064, %v7352
    %v7354 = vpop.f32.mrf.mxu0
    %v7355 = vpop.f32.mrf.mxu0
    %v7356 = vadd.f32 %v7067, %v7355
    %v7357 = vpop.f32.mrf.mxu0
    %7358 = vmatprep.mubr.bf16.mxu0 %v5999
    %7359 = vmatmul.mubr.bf16.gmra.mxu0 %v5903
    %v7360 = vpop.f32.mrf.mxu0
    %v7361 = vadd.f32 %v7072, %v7360
    %v7362 = vpop.f32.mrf.mxu0
    %v7363 = vpop.f32.mrf.mxu0
    %v7364 = vadd.f32 %v7075, %v7363
    %v7365 = vpop.f32.mrf.mxu0
    %7366 = vmatprep.mubr.bf16.mxu0 %v6000
    %7367 = vmatmul.mubr.bf16.gmra.mxu0 %v5904
    %v7368 = vpop.f32.mrf.mxu0
    %v7369 = vadd.f32 %v7080, %v7368
    %v7370 = vpop.f32.mrf.mxu0
    %v7371 = vpop.f32.mrf.mxu0
    %v7372 = vadd.f32 %v7083, %v7371
    %v7373 = vpop.f32.mrf.mxu0
    %7374 = vmatprep.mubr.bf16.mxu0 %v6001
    %7375 = vmatmul.mubr.bf16.gmra.mxu0 %v5905
    %v7376 = vpop.f32.mrf.mxu0
    %v7377 = vadd.f32 %v7088, %v7376
    %v7378 = vpop.f32.mrf.mxu0
    %v7379 = vpop.f32.mrf.mxu0
    %v7380 = vadd.f32 %v7091, %v7379
    %v7381 = vpop.f32.mrf.mxu0
    %7382 = vmatprep.mubr.bf16.mxu0 %v6002
    %7383 = vmatmul.mubr.bf16.gmra.mxu0 %v5906
    %v7384 = vpop.f32.mrf.mxu0
    %v7385 = vadd.f32 %v7096, %v7384
    %v7386 = vpop.f32.mrf.mxu0
    %v7387 = vpop.f32.mrf.mxu0
    %v7388 = vadd.f32 %v7099, %v7387
    %v7389 = vpop.f32.mrf.mxu0
    %7390 = vmatprep.mubr.bf16.mxu0 %v6003
    %7391 = vmatmul.mubr.bf16.gmra.mxu0 %v5907
    %v7392 = vpop.f32.mrf.mxu0
    %v7393 = vadd.f32 %v7104, %v7392
    %v7394 = vpop.f32.mrf.mxu0
    %v7395 = vpop.f32.mrf.mxu0
    %v7396 = vadd.f32 %v7107, %v7395
    %v7397 = vpop.f32.mrf.mxu0
    %7398 = vmatprep.mubr.bf16.mxu0 %v6004
    %7399 = vmatmul.mubr.bf16.gmra.mxu0 %v5908
    %v7400 = vpop.f32.mrf.mxu0
    %v7401 = vadd.f32 %v7112, %v7400
    %v7402 = vpop.f32.mrf.mxu0
    %v7403 = vpop.f32.mrf.mxu0
    %v7404 = vadd.f32 %v7115, %v7403
    %v7405 = vpop.f32.mrf.mxu0
    %7406 = vmatprep.mubr.bf16.mxu0 %v6005
    %7407 = vmatmul.mubr.bf16.gmra.mxu0 %v5909
    %v7408 = vpop.f32.mrf.mxu0
    %v7409 = vadd.f32 %v7120, %v7408
    %v7410 = vpop.f32.mrf.mxu0
    %v7411 = vpop.f32.mrf.mxu0
    %v7412 = vadd.f32 %v7123, %v7411
    %v7413 = vpop.f32.mrf.mxu0
    %7414 = vmatprep.mubr.bf16.mxu0 %v6006
    %7415 = vmatmul.mubr.bf16.gmra.mxu0 %v5910
    %v7416 = vpop.f32.mrf.mxu0
    %v7417 = vadd.f32 %v7128, %v7416
    %v7418 = vpop.f32.mrf.mxu0
    %v7419 = vpop.f32.mrf.mxu0
    %v7420 = vadd.f32 %v7131, %v7419
    %v7421 = vpop.f32.mrf.mxu0
    %7422 = vmatprep.mubr.bf16.mxu0 %v6007
    %7423 = vmatmul.mubr.bf16.gmra.mxu0 %v5911
    %v7424 = vpop.f32.mrf.mxu0
    %v7425 = vadd.f32 %v7136, %v7424
    %v7426 = vpop.f32.mrf.mxu0
    %v7427 = vpop.f32.mrf.mxu0
    %v7428 = vadd.f32 %v7139, %v7427
    %v7429 = vpop.f32.mrf.mxu0
    %7430 = vmatprep.mubr.bf16.mxu0 %v6008
    %7431 = vmatmul.mubr.bf16.gmra.mxu0 %v5912
    %v7432 = vpop.f32.mrf.mxu0
    %v7433 = vadd.f32 %v7144, %v7432
    %v7434 = vpop.f32.mrf.mxu0
    %v7435 = vpop.f32.mrf.mxu0
    %v7436 = vadd.f32 %v7147, %v7435
    %v7437 = vpop.f32.mrf.mxu0
    %7438 = vmatprep.mubr.bf16.mxu0 %v6009
    %7439 = vmatmul.mubr.bf16.gmra.mxu0 %v5913
    %v7440 = vpop.f32.mrf.mxu0
    %v7441 = vadd.f32 %v7152, %v7440
    %v7442 = vpop.f32.mrf.mxu0
    %v7443 = vpop.f32.mrf.mxu0
    %v7444 = vadd.f32 %v7155, %v7443
    %v7445 = vpop.f32.mrf.mxu0
    %7446 = vmatprep.mubr.bf16.mxu0 %v6010
    %7447 = vmatmul.mubr.bf16.gmra.mxu0 %v5914
    %v7448 = vpop.f32.mrf.mxu0
    %v7449 = vadd.f32 %v7160, %v7448
    %v7450 = vpop.f32.mrf.mxu0
    %v7451 = vpop.f32.mrf.mxu0
    %v7452 = vadd.f32 %v7163, %v7451
    %v7453 = vpop.f32.mrf.mxu0
    %7454 = vmatprep.mubr.bf16.mxu0 %v6011
    %7455 = vmatmul.mubr.bf16.gmra.mxu0 %v5915
    %v7456 = vpop.f32.mrf.mxu0
    %v7457 = vadd.f32 %v7168, %v7456
    %v7458 = vpop.f32.mrf.mxu0
    %v7459 = vpop.f32.mrf.mxu0
    %v7460 = vadd.f32 %v7171, %v7459
    %v7461 = vpop.f32.mrf.mxu0
    %7462 = vmatprep.mubr.bf16.mxu0 %v6012
    %7463 = vmatmul.mubr.bf16.gmra.mxu0 %v5916
    %v7464 = vpop.f32.mrf.mxu0
    %v7465 = vadd.f32 %v7176, %v7464
    %v7466 = vpop.f32.mrf.mxu0
    %v7467 = vpop.f32.mrf.mxu0
    %v7468 = vadd.f32 %v7179, %v7467
    %v7469 = vpop.f32.mrf.mxu0
    %7470 = vmatprep.mubr.bf16.mxu0 %v6013
    %7471 = vmatmul.mubr.bf16.gmra.mxu0 %v5917
    %v7472 = vpop.f32.mrf.mxu0
    %v7473 = vadd.f32 %v7184, %v7472
    %v7474 = vpop.f32.mrf.mxu0
    %v7475 = vpop.f32.mrf.mxu0
    %v7476 = vadd.f32 %v7187, %v7475
    %v7477 = vpop.f32.mrf.mxu0
    %7478 = vmatprep.mubr.bf16.mxu0 %v6014
    %7479 = vmatmul.mubr.bf16.gmra.mxu0 %v5918
    %v7480 = vpop.f32.mrf.mxu0
    %v7481 = vadd.f32 %v7192, %v7480
    %v7482 = vpop.f32.mrf.mxu0
    %v7483 = vpop.f32.mrf.mxu0
    %v7484 = vadd.f32 %v7195, %v7483
    %v7485 = vpop.f32.mrf.mxu0
    %7486 = vmatprep.mubr.bf16.mxu0 %v6015
    %7487 = vmatmul.mubr.bf16.gmra.mxu0 %v5919
    %v7488 = vpop.f32.mrf.mxu0
    %v7489 = vadd.f32 %v7200, %v7488
    %v7490 = vpop.f32.mrf.mxu0
    %v7491 = vpop.f32.mrf.mxu0
    %v7492 = vadd.f32 %v7203, %v7491
    %v7493 = vpop.f32.mrf.mxu0
    %7494 = vmatprep.mubr.bf16.mxu0 %v6016
    %7495 = vmatmul.mubr.bf16.gmra.mxu0 %v5920
    %v7496 = vpop.f32.mrf.mxu0
    %v7497 = vadd.f32 %v7208, %v7496
    %v7498 = vpop.f32.mrf.mxu0
    %v7499 = vpop.f32.mrf.mxu0
    %v7500 = vadd.f32 %v7211, %v7499
    %v7501 = vpop.f32.mrf.mxu0
    %7502 = vmatprep.mubr.bf16.mxu0 %v6017
    %7503 = vmatmul.mubr.bf16.gmra.mxu0 %v5921
    %v7504 = vpop.f32.mrf.mxu0
    %v7505 = vadd.f32 %v7216, %v7504
    %v7506 = vpop.f32.mrf.mxu0
    %v7507 = vpop.f32.mrf.mxu0
    %v7508 = vadd.f32 %v7219, %v7507
    %v7509 = vpop.f32.mrf.mxu0
    %7510 = vmatprep.mubr.bf16.mxu0 %v6018
    %7511 = vmatmul.mubr.bf16.gmra.mxu0 %v5922
    %v7512 = vpop.f32.mrf.mxu0
    %v7513 = vadd.f32 %v7224, %v7512
    %v7514 = vpop.f32.mrf.mxu0
    %v7515 = vpop.f32.mrf.mxu0
    %v7516 = vadd.f32 %v7227, %v7515
    %v7517 = vpop.f32.mrf.mxu0
    %7518 = vmatprep.mubr.bf16.mxu0 %v6019
    %7519 = vmatmul.mubr.bf16.gmra.mxu0 %v5923
    %v7520 = vpop.f32.mrf.mxu0
    %v7521 = vadd.f32 %v7232, %v7520
    %v7522 = vpop.f32.mrf.mxu0
    %v7523 = vpop.f32.mrf.mxu0
    %v7524 = vadd.f32 %v7235, %v7523
    %v7525 = vpop.f32.mrf.mxu0
    %7526 = vmatprep.mubr.bf16.mxu0 %v6020
    %7527 = vmatmul.mubr.bf16.gmra.mxu0 %v5924
    %v7528 = vpop.f32.mrf.mxu0
    %v7529 = vadd.f32 %v7240, %v7528
    %v7530 = vpop.f32.mrf.mxu0
    %v7531 = vpop.f32.mrf.mxu0
    %v7532 = vadd.f32 %v7243, %v7531
    %v7533 = vpop.f32.mrf.mxu0
    %7534 = vmatprep.mubr.bf16.mxu0 %v6021
    %7535 = vmatmul.mubr.bf16.gmra.mxu0 %v5925
    %v7536 = vpop.f32.mrf.mxu0
    %v7537 = vadd.f32 %v7248, %v7536
    %v7538 = vpop.f32.mrf.mxu0
    %v7539 = vpop.f32.mrf.mxu0
    %v7540 = vadd.f32 %v7251, %v7539
    %v7541 = vpop.f32.mrf.mxu0
    %7542 = vmatprep.mubr.bf16.mxu0 %v6022
    %7543 = vmatmul.mubr.bf16.gmra.mxu0 %v5926
    %v7544 = vpop.f32.mrf.mxu0
    %v7545 = vadd.f32 %v7256, %v7544
    %v7546 = vpop.f32.mrf.mxu0
    %v7547 = vpop.f32.mrf.mxu0
    %v7548 = vadd.f32 %v7259, %v7547
    %v7549 = vpop.f32.mrf.mxu0
    %7550 = vmatprep.mubr.bf16.mxu0 %v6023
    %7551 = vmatmul.mubr.bf16.gmra.mxu0 %v5927
    %v7552 = vpop.f32.mrf.mxu0
    %v7553 = vadd.f32 %v7264, %v7552
    %v7554 = vpop.f32.mrf.mxu0
    %v7555 = vpop.f32.mrf.mxu0
    %v7556 = vadd.f32 %v7267, %v7555
    %v7557 = vpop.f32.mrf.mxu0
    %7558 = vmatprep.mubr.bf16.mxu0 %v6024
    %7559 = vmatmul.mubr.bf16.gmra.mxu0 %v5928
    %v7560 = vpop.f32.mrf.mxu0
    %v7561 = vadd.f32 %v7272, %v7560
    %v7562 = vpop.f32.mrf.mxu0
    %v7563 = vpop.f32.mrf.mxu0
    %v7564 = vadd.f32 %v7275, %v7563
    %v7565 = vpop.f32.mrf.mxu0
    %7566 = vmatprep.mubr.bf16.mxu0 %v6025
    %7567 = vmatmul.mubr.bf16.gmra.mxu0 %v5929
    %v7568 = vpop.f32.mrf.mxu0
    %v7569 = vadd.f32 %v7280, %v7568
    %v7570 = vpop.f32.mrf.mxu0
    %v7571 = vpop.f32.mrf.mxu0
    %v7572 = vadd.f32 %v7283, %v7571
    %v7573 = vpop.f32.mrf.mxu0
    %7574 = vmatprep.mubr.bf16.mxu0 %v6026
    %7575 = vmatmul.mubr.bf16.gmra.mxu0 %v5930
    %v7576 = vpop.f32.mrf.mxu0
    %v7577 = vadd.f32 %v7288, %v7576
    %v7578 = vpop.f32.mrf.mxu0
    %v7579 = vpop.f32.mrf.mxu0
    %v7580 = vadd.f32 %v7291, %v7579
    %v7581 = vpop.f32.mrf.mxu0
    %7582 = vmatprep.mubr.bf16.mxu0 %v6027
    %7583 = vmatmul.mubr.bf16.gmra.mxu0 %v5931
    %v7584 = vpop.f32.mrf.mxu0
    %v7585 = vadd.f32 %v7296, %v7584
    %v7586 = vpop.f32.mrf.mxu0
    %v7587 = vpop.f32.mrf.mxu0
    %v7588 = vadd.f32 %v7299, %v7587
    %v7589 = vpop.f32.mrf.mxu0
    %7590 = vmatprep.mubr.bf16.mxu0 %v6028
    %7591 = vmatmul.mubr.bf16.gmra.mxu0 %v5932
    %v7592 = vpop.f32.mrf.mxu0
    %v7593 = vadd.f32 %v7304, %v7592
    %v7594 = vpop.f32.mrf.mxu0
    %v7595 = vpop.f32.mrf.mxu0
    %v7596 = vadd.f32 %v7307, %v7595
    %v7597 = vpop.f32.mrf.mxu0
    %7598 = vmatprep.mubr.bf16.mxu0 %v6029
    %7599 = vmatmul.mubr.bf16.gmra.mxu0 %v5933
    %v7600 = vpop.f32.mrf.mxu0
    %v7601 = vadd.f32 %v7312, %v7600
    %v7602 = vpop.f32.mrf.mxu0
    %v7603 = vpop.f32.mrf.mxu0
    %v7604 = vadd.f32 %v7315, %v7603
    %v7605 = vpop.f32.mrf.mxu0
    %7606 = vdwg.mxu0
    %7607 = vmatprep.subr.bf16.mxu0 0
    %7608 = vmatpush1.bf16.msra.mxu0 %v6924
    %7609 = vmatprep.subr.bf16.mxu0 0
    %7610 = vmatpush1.bf16.msra.mxu0 %v6923
    %7611 = vmatprep.subr.bf16.mxu0 0
    %7612 = vmatpush1.bf16.msra.mxu0 %v6922
    %7613 = vmatprep.subr.bf16.mxu0 0
    %7614 = vmatpush1.bf16.msra.mxu0 %v6921
    %7615 = vmatprep.subr.bf16.mxu0 0
    %7616 = vmatpush1.bf16.msra.mxu0 %v6920
    %7617 = vmatprep.subr.bf16.mxu0 0
    %7618 = vmatpush1.bf16.msra.mxu0 %v6919
    %7619 = vmatprep.subr.bf16.mxu0 0
    %7620 = vmatpush1.bf16.msra.mxu0 %v6918
    %7621 = vmatprep.subr.bf16.mxu0 0
    %7622 = vmatpush1.bf16.msra.mxu0 %v6917
    %7623 = vmatprep.subr.bf16.mxu0 0
    %7624 = vmatpush2.bf16.msra.mxu0 %v6932
    %7625 = vmatprep.subr.bf16.mxu0 0
    %7626 = vmatpush2.bf16.msra.mxu0 %v6931
    %7627 = vmatprep.subr.bf16.mxu0 0
    %7628 = vmatpush2.bf16.msra.mxu0 %v6930
    %7629 = vmatprep.subr.bf16.mxu0 0
    %7630 = vmatpush2.bf16.msra.mxu0 %v6929
    %7631 = vmatprep.subr.bf16.mxu0 0
    %7632 = vmatpush2.bf16.msra.mxu0 %v6928
    %7633 = vmatprep.subr.bf16.mxu0 0
    %7634 = vmatpush2.bf16.msra.mxu0 %v6927
    %7635 = vmatprep.subr.bf16.mxu0 0
    %7636 = vmatpush2.bf16.msra.mxu0 %v6926
    %7637 = vmatprep.subr.bf16.mxu0 0
    %7638 = vmatpush2.bf16.msra.mxu0 %v6925
    %7639 = vmatprep.mubr.bf16.mxu0 %v6126
    %7640 = vmatmul.mubr.bf16.gmra.mxu0 %v6030
    %v7641 = vpop.f32.mrf.mxu0
    %v7642 = vadd.f32 %v7353, %v7641
    %v7643 = vpop.f32.mrf.mxu0
    %v7644 = vpop.f32.mrf.mxu0
    %v7645 = vadd.f32 %v7356, %v7644
    %v7646 = vpop.f32.mrf.mxu0
    %7647 = vmatprep.mubr.bf16.mxu0 %v6127
    %7648 = vmatmul.mubr.bf16.gmra.mxu0 %v6031
    %v7649 = vpop.f32.mrf.mxu0
    %v7650 = vadd.f32 %v7361, %v7649
    %v7651 = vpop.f32.mrf.mxu0
    %v7652 = vpop.f32.mrf.mxu0
    %v7653 = vadd.f32 %v7364, %v7652
    %v7654 = vpop.f32.mrf.mxu0
    %7655 = vmatprep.mubr.bf16.mxu0 %v6128
    %7656 = vmatmul.mubr.bf16.gmra.mxu0 %v6032
    %v7657 = vpop.f32.mrf.mxu0
    %v7658 = vadd.f32 %v7369, %v7657
    %v7659 = vpop.f32.mrf.mxu0
    %v7660 = vpop.f32.mrf.mxu0
    %v7661 = vadd.f32 %v7372, %v7660
    %v7662 = vpop.f32.mrf.mxu0
    %7663 = vmatprep.mubr.bf16.mxu0 %v6129
    %7664 = vmatmul.mubr.bf16.gmra.mxu0 %v6033
    %v7665 = vpop.f32.mrf.mxu0
    %v7666 = vadd.f32 %v7377, %v7665
    %v7667 = vpop.f32.mrf.mxu0
    %v7668 = vpop.f32.mrf.mxu0
    %v7669 = vadd.f32 %v7380, %v7668
    %v7670 = vpop.f32.mrf.mxu0
    %7671 = vmatprep.mubr.bf16.mxu0 %v6130
    %7672 = vmatmul.mubr.bf16.gmra.mxu0 %v6034
    %v7673 = vpop.f32.mrf.mxu0
    %v7674 = vadd.f32 %v7385, %v7673
    %v7675 = vpop.f32.mrf.mxu0
    %v7676 = vpop.f32.mrf.mxu0
    %v7677 = vadd.f32 %v7388, %v7676
    %v7678 = vpop.f32.mrf.mxu0
    %7679 = vmatprep.mubr.bf16.mxu0 %v6131
    %7680 = vmatmul.mubr.bf16.gmra.mxu0 %v6035
    %v7681 = vpop.f32.mrf.mxu0
    %v7682 = vadd.f32 %v7393, %v7681
    %v7683 = vpop.f32.mrf.mxu0
    %v7684 = vpop.f32.mrf.mxu0
    %v7685 = vadd.f32 %v7396, %v7684
    %v7686 = vpop.f32.mrf.mxu0
    %7687 = vmatprep.mubr.bf16.mxu0 %v6132
    %7688 = vmatmul.mubr.bf16.gmra.mxu0 %v6036
    %v7689 = vpop.f32.mrf.mxu0
    %v7690 = vadd.f32 %v7401, %v7689
    %v7691 = vpop.f32.mrf.mxu0
    %v7692 = vpop.f32.mrf.mxu0
    %v7693 = vadd.f32 %v7404, %v7692
    %v7694 = vpop.f32.mrf.mxu0
    %7695 = vmatprep.mubr.bf16.mxu0 %v6133
    %7696 = vmatmul.mubr.bf16.gmra.mxu0 %v6037
    %v7697 = vpop.f32.mrf.mxu0
    %v7698 = vadd.f32 %v7409, %v7697
    %v7699 = vpop.f32.mrf.mxu0
    %v7700 = vpop.f32.mrf.mxu0
    %v7701 = vadd.f32 %v7412, %v7700
    %v7702 = vpop.f32.mrf.mxu0
    %7703 = vmatprep.mubr.bf16.mxu0 %v6134
    %7704 = vmatmul.mubr.bf16.gmra.mxu0 %v6038
    %v7705 = vpop.f32.mrf.mxu0
    %v7706 = vadd.f32 %v7417, %v7705
    %v7707 = vpop.f32.mrf.mxu0
    %v7708 = vpop.f32.mrf.mxu0
    %v7709 = vadd.f32 %v7420, %v7708
    %v7710 = vpop.f32.mrf.mxu0
    %7711 = vmatprep.mubr.bf16.mxu0 %v6135
    %7712 = vmatmul.mubr.bf16.gmra.mxu0 %v6039
    %v7713 = vpop.f32.mrf.mxu0
    %v7714 = vadd.f32 %v7425, %v7713
    %v7715 = vpop.f32.mrf.mxu0
    %v7716 = vpop.f32.mrf.mxu0
    %v7717 = vadd.f32 %v7428, %v7716
    %v7718 = vpop.f32.mrf.mxu0
    %7719 = vmatprep.mubr.bf16.mxu0 %v6136
    %7720 = vmatmul.mubr.bf16.gmra.mxu0 %v6040
    %v7721 = vpop.f32.mrf.mxu0
    %v7722 = vadd.f32 %v7433, %v7721
    %v7723 = vpop.f32.mrf.mxu0
    %v7724 = vpop.f32.mrf.mxu0
    %v7725 = vadd.f32 %v7436, %v7724
    %v7726 = vpop.f32.mrf.mxu0
    %7727 = vmatprep.mubr.bf16.mxu0 %v6137
    %7728 = vmatmul.mubr.bf16.gmra.mxu0 %v6041
    %v7729 = vpop.f32.mrf.mxu0
    %v7730 = vadd.f32 %v7441, %v7729
    %v7731 = vpop.f32.mrf.mxu0
    %v7732 = vpop.f32.mrf.mxu0
    %v7733 = vadd.f32 %v7444, %v7732
    %v7734 = vpop.f32.mrf.mxu0
    %7735 = vmatprep.mubr.bf16.mxu0 %v6138
    %7736 = vmatmul.mubr.bf16.gmra.mxu0 %v6042
    %v7737 = vpop.f32.mrf.mxu0
    %v7738 = vadd.f32 %v7449, %v7737
    %v7739 = vpop.f32.mrf.mxu0
    %v7740 = vpop.f32.mrf.mxu0
    %v7741 = vadd.f32 %v7452, %v7740
    %v7742 = vpop.f32.mrf.mxu0
    %7743 = vmatprep.mubr.bf16.mxu0 %v6139
    %7744 = vmatmul.mubr.bf16.gmra.mxu0 %v6043
    %v7745 = vpop.f32.mrf.mxu0
    %v7746 = vadd.f32 %v7457, %v7745
    %v7747 = vpop.f32.mrf.mxu0
    %v7748 = vpop.f32.mrf.mxu0
    %v7749 = vadd.f32 %v7460, %v7748
    %v7750 = vpop.f32.mrf.mxu0
    %7751 = vmatprep.mubr.bf16.mxu0 %v6140
    %7752 = vmatmul.mubr.bf16.gmra.mxu0 %v6044
    %v7753 = vpop.f32.mrf.mxu0
    %v7754 = vadd.f32 %v7465, %v7753
    %v7755 = vpop.f32.mrf.mxu0
    %v7756 = vpop.f32.mrf.mxu0
    %v7757 = vadd.f32 %v7468, %v7756
    %v7758 = vpop.f32.mrf.mxu0
    %7759 = vmatprep.mubr.bf16.mxu0 %v6141
    %7760 = vmatmul.mubr.bf16.gmra.mxu0 %v6045
    %v7761 = vpop.f32.mrf.mxu0
    %v7762 = vadd.f32 %v7473, %v7761
    %v7763 = vpop.f32.mrf.mxu0
    %v7764 = vpop.f32.mrf.mxu0
    %v7765 = vadd.f32 %v7476, %v7764
    %v7766 = vpop.f32.mrf.mxu0
    %7767 = vmatprep.mubr.bf16.mxu0 %v6142
    %7768 = vmatmul.mubr.bf16.gmra.mxu0 %v6046
    %v7769 = vpop.f32.mrf.mxu0
    %v7770 = vadd.f32 %v7481, %v7769
    %v7771 = vpop.f32.mrf.mxu0
    %v7772 = vpop.f32.mrf.mxu0
    %v7773 = vadd.f32 %v7484, %v7772
    %v7774 = vpop.f32.mrf.mxu0
    %7775 = vmatprep.mubr.bf16.mxu0 %v6143
    %7776 = vmatmul.mubr.bf16.gmra.mxu0 %v6047
    %v7777 = vpop.f32.mrf.mxu0
    %v7778 = vadd.f32 %v7489, %v7777
    %v7779 = vpop.f32.mrf.mxu0
    %v7780 = vpop.f32.mrf.mxu0
    %v7781 = vadd.f32 %v7492, %v7780
    %v7782 = vpop.f32.mrf.mxu0
    %7783 = vmatprep.mubr.bf16.mxu0 %v6144
    %7784 = vmatmul.mubr.bf16.gmra.mxu0 %v6048
    %v7785 = vpop.f32.mrf.mxu0
    %v7786 = vadd.f32 %v7497, %v7785
    %v7787 = vpop.f32.mrf.mxu0
    %v7788 = vpop.f32.mrf.mxu0
    %v7789 = vadd.f32 %v7500, %v7788
    %v7790 = vpop.f32.mrf.mxu0
    %7791 = vmatprep.mubr.bf16.mxu0 %v6145
    %7792 = vmatmul.mubr.bf16.gmra.mxu0 %v6049
    %v7793 = vpop.f32.mrf.mxu0
    %v7794 = vadd.f32 %v7505, %v7793
    %v7795 = vpop.f32.mrf.mxu0
    %v7796 = vpop.f32.mrf.mxu0
    %v7797 = vadd.f32 %v7508, %v7796
    %v7798 = vpop.f32.mrf.mxu0
    %7799 = vmatprep.mubr.bf16.mxu0 %v6146
    %7800 = vmatmul.mubr.bf16.gmra.mxu0 %v6050
    %v7801 = vpop.f32.mrf.mxu0
    %v7802 = vadd.f32 %v7513, %v7801
    %v7803 = vpop.f32.mrf.mxu0
    %v7804 = vpop.f32.mrf.mxu0
    %v7805 = vadd.f32 %v7516, %v7804
    %v7806 = vpop.f32.mrf.mxu0
    %7807 = vmatprep.mubr.bf16.mxu0 %v6147
    %7808 = vmatmul.mubr.bf16.gmra.mxu0 %v6051
    %v7809 = vpop.f32.mrf.mxu0
    %v7810 = vadd.f32 %v7521, %v7809
    %v7811 = vpop.f32.mrf.mxu0
    %v7812 = vpop.f32.mrf.mxu0
    %v7813 = vadd.f32 %v7524, %v7812
    %v7814 = vpop.f32.mrf.mxu0
    %7815 = vmatprep.mubr.bf16.mxu0 %v6148
    %7816 = vmatmul.mubr.bf16.gmra.mxu0 %v6052
    %v7817 = vpop.f32.mrf.mxu0
    %v7818 = vadd.f32 %v7529, %v7817
    %v7819 = vpop.f32.mrf.mxu0
    %v7820 = vpop.f32.mrf.mxu0
    %v7821 = vadd.f32 %v7532, %v7820
    %v7822 = vpop.f32.mrf.mxu0
    %7823 = vmatprep.mubr.bf16.mxu0 %v6149
    %7824 = vmatmul.mubr.bf16.gmra.mxu0 %v6053
    %v7825 = vpop.f32.mrf.mxu0
    %v7826 = vadd.f32 %v7537, %v7825
    %v7827 = vpop.f32.mrf.mxu0
    %v7828 = vpop.f32.mrf.mxu0
    %v7829 = vadd.f32 %v7540, %v7828
    %v7830 = vpop.f32.mrf.mxu0
    %7831 = vmatprep.mubr.bf16.mxu0 %v6150
    %7832 = vmatmul.mubr.bf16.gmra.mxu0 %v6054
    %v7833 = vpop.f32.mrf.mxu0
    %v7834 = vadd.f32 %v7545, %v7833
    %v7835 = vpop.f32.mrf.mxu0
    %v7836 = vpop.f32.mrf.mxu0
    %v7837 = vadd.f32 %v7548, %v7836
    %v7838 = vpop.f32.mrf.mxu0
    %7839 = vmatprep.mubr.bf16.mxu0 %v6151
    %7840 = vmatmul.mubr.bf16.gmra.mxu0 %v6055
    %v7841 = vpop.f32.mrf.mxu0
    %v7842 = vadd.f32 %v7553, %v7841
    %v7843 = vpop.f32.mrf.mxu0
    %v7844 = vpop.f32.mrf.mxu0
    %v7845 = vadd.f32 %v7556, %v7844
    %v7846 = vpop.f32.mrf.mxu0
    %7847 = vmatprep.mubr.bf16.mxu0 %v6152
    %7848 = vmatmul.mubr.bf16.gmra.mxu0 %v6056
    %v7849 = vpop.f32.mrf.mxu0
    %v7850 = vadd.f32 %v7561, %v7849
    %v7851 = vpop.f32.mrf.mxu0
    %v7852 = vpop.f32.mrf.mxu0
    %v7853 = vadd.f32 %v7564, %v7852
    %v7854 = vpop.f32.mrf.mxu0
    %7855 = vmatprep.mubr.bf16.mxu0 %v6153
    %7856 = vmatmul.mubr.bf16.gmra.mxu0 %v6057
    %v7857 = vpop.f32.mrf.mxu0
    %v7858 = vadd.f32 %v7569, %v7857
    %v7859 = vpop.f32.mrf.mxu0
    %v7860 = vpop.f32.mrf.mxu0
    %v7861 = vadd.f32 %v7572, %v7860
    %v7862 = vpop.f32.mrf.mxu0
    %7863 = vmatprep.mubr.bf16.mxu0 %v6154
    %7864 = vmatmul.mubr.bf16.gmra.mxu0 %v6058
    %v7865 = vpop.f32.mrf.mxu0
    %v7866 = vadd.f32 %v7577, %v7865
    %v7867 = vpop.f32.mrf.mxu0
    %v7868 = vpop.f32.mrf.mxu0
    %v7869 = vadd.f32 %v7580, %v7868
    %v7870 = vpop.f32.mrf.mxu0
    %7871 = vmatprep.mubr.bf16.mxu0 %v6155
    %7872 = vmatmul.mubr.bf16.gmra.mxu0 %v6059
    %v7873 = vpop.f32.mrf.mxu0
    %v7874 = vadd.f32 %v7585, %v7873
    %v7875 = vpop.f32.mrf.mxu0
    %v7876 = vpop.f32.mrf.mxu0
    %v7877 = vadd.f32 %v7588, %v7876
    %v7878 = vpop.f32.mrf.mxu0
    %7879 = vmatprep.mubr.bf16.mxu0 %v6156
    %7880 = vmatmul.mubr.bf16.gmra.mxu0 %v6060
    %v7881 = vpop.f32.mrf.mxu0
    %v7882 = vadd.f32 %v7593, %v7881
    %v7883 = vpop.f32.mrf.mxu0
    %v7884 = vpop.f32.mrf.mxu0
    %v7885 = vadd.f32 %v7596, %v7884
    %v7886 = vpop.f32.mrf.mxu0
    %7887 = vmatprep.mubr.bf16.mxu0 %v6157
    %7888 = vmatmul.mubr.bf16.gmra.mxu0 %v6061
    %v7889 = vpop.f32.mrf.mxu0
    %v7890 = vadd.f32 %v7601, %v7889
    %v7891 = vpop.f32.mrf.mxu0
    %v7892 = vpop.f32.mrf.mxu0
    %v7893 = vadd.f32 %v7604, %v7892
    %v7894 = vpop.f32.mrf.mxu0
    %7895 = vdwg.mxu0
    %7896 = vmatprep.subr.bf16.mxu0 0
    %7897 = vmatpush1.bf16.msra.mxu0 %v6940
    %7898 = vmatprep.subr.bf16.mxu0 0
    %7899 = vmatpush1.bf16.msra.mxu0 %v6939
    %7900 = vmatprep.subr.bf16.mxu0 0
    %7901 = vmatpush1.bf16.msra.mxu0 %v6938
    %7902 = vmatprep.subr.bf16.mxu0 0
    %7903 = vmatpush1.bf16.msra.mxu0 %v6937
    %7904 = vmatprep.subr.bf16.mxu0 0
    %7905 = vmatpush1.bf16.msra.mxu0 %v6936
    %7906 = vmatprep.subr.bf16.mxu0 0
    %7907 = vmatpush1.bf16.msra.mxu0 %v6935
    %7908 = vmatprep.subr.bf16.mxu0 0
    %7909 = vmatpush1.bf16.msra.mxu0 %v6934
    %7910 = vmatprep.subr.bf16.mxu0 0
    %7911 = vmatpush1.bf16.msra.mxu0 %v6933
    %7912 = vmatprep.subr.bf16.mxu0 0
    %7913 = vmatpush2.bf16.msra.mxu0 %v6948
    %7914 = vmatprep.subr.bf16.mxu0 0
    %7915 = vmatpush2.bf16.msra.mxu0 %v6947
    %7916 = vmatprep.subr.bf16.mxu0 0
    %7917 = vmatpush2.bf16.msra.mxu0 %v6946
    %7918 = vmatprep.subr.bf16.mxu0 0
    %7919 = vmatpush2.bf16.msra.mxu0 %v6945
    %7920 = vmatprep.subr.bf16.mxu0 0
    %7921 = vmatpush2.bf16.msra.mxu0 %v6944
    %7922 = vmatprep.subr.bf16.mxu0 0
    %7923 = vmatpush2.bf16.msra.mxu0 %v6943
    %7924 = vmatprep.subr.bf16.mxu0 0
    %7925 = vmatpush2.bf16.msra.mxu0 %v6942
    %7926 = vmatprep.subr.bf16.mxu0 0
    %7927 = vmatpush2.bf16.msra.mxu0 %v6941
    %7928 = vmatprep.mubr.bf16.mxu0 %v6318
    %7929 = vmatmul.mubr.bf16.gmra.mxu0 %v6222
    %v7930 = vpop.f32.mrf.mxu0
    %v7931 = vadd.f32 %v7642, %v7930
    %v7932 = vpop.f32.mrf.mxu0
    %v7933 = vpop.f32.mrf.mxu0
    %v7934 = vadd.f32 %v7645, %v7933
    %v7935 = vpop.f32.mrf.mxu0
    %7936 = vmatprep.mubr.bf16.mxu0 %v6319
    %7937 = vmatmul.mubr.bf16.gmra.mxu0 %v6223
    %v7938 = vpop.f32.mrf.mxu0
    %v7939 = vadd.f32 %v7650, %v7938
    %v7940 = vpop.f32.mrf.mxu0
    %v7941 = vpop.f32.mrf.mxu0
    %v7942 = vadd.f32 %v7653, %v7941
    %v7943 = vpop.f32.mrf.mxu0
    %7944 = vmatprep.mubr.bf16.mxu0 %v6320
    %7945 = vmatmul.mubr.bf16.gmra.mxu0 %v6224
    %v7946 = vpop.f32.mrf.mxu0
    %v7947 = vadd.f32 %v7658, %v7946
    %v7948 = vpop.f32.mrf.mxu0
    %v7949 = vpop.f32.mrf.mxu0
    %v7950 = vadd.f32 %v7661, %v7949
    %v7951 = vpop.f32.mrf.mxu0
    %7952 = vmatprep.mubr.bf16.mxu0 %v6321
    %7953 = vmatmul.mubr.bf16.gmra.mxu0 %v6225
    %v7954 = vpop.f32.mrf.mxu0
    %v7955 = vadd.f32 %v7666, %v7954
    %v7956 = vpop.f32.mrf.mxu0
    %v7957 = vpop.f32.mrf.mxu0
    %v7958 = vadd.f32 %v7669, %v7957
    %v7959 = vpop.f32.mrf.mxu0
    %7960 = vmatprep.mubr.bf16.mxu0 %v6322
    %7961 = vmatmul.mubr.bf16.gmra.mxu0 %v6226
    %v7962 = vpop.f32.mrf.mxu0
    %v7963 = vadd.f32 %v7674, %v7962
    %v7964 = vpop.f32.mrf.mxu0
    %v7965 = vpop.f32.mrf.mxu0
    %v7966 = vadd.f32 %v7677, %v7965
    %v7967 = vpop.f32.mrf.mxu0
    %7968 = vmatprep.mubr.bf16.mxu0 %v6323
    %7969 = vmatmul.mubr.bf16.gmra.mxu0 %v6227
    %v7970 = vpop.f32.mrf.mxu0
    %v7971 = vadd.f32 %v7682, %v7970
    %v7972 = vpop.f32.mrf.mxu0
    %v7973 = vpop.f32.mrf.mxu0
    %v7974 = vadd.f32 %v7685, %v7973
    %v7975 = vpop.f32.mrf.mxu0
    %7976 = vmatprep.mubr.bf16.mxu0 %v6324
    %7977 = vmatmul.mubr.bf16.gmra.mxu0 %v6228
    %v7978 = vpop.f32.mrf.mxu0
    %v7979 = vadd.f32 %v7690, %v7978
    %v7980 = vpop.f32.mrf.mxu0
    %v7981 = vpop.f32.mrf.mxu0
    %v7982 = vadd.f32 %v7693, %v7981
    %v7983 = vpop.f32.mrf.mxu0
    %7984 = vmatprep.mubr.bf16.mxu0 %v6325
    %7985 = vmatmul.mubr.bf16.gmra.mxu0 %v6229
    %v7986 = vpop.f32.mrf.mxu0
    %v7987 = vadd.f32 %v7698, %v7986
    %v7988 = vpop.f32.mrf.mxu0
    %v7989 = vpop.f32.mrf.mxu0
    %v7990 = vadd.f32 %v7701, %v7989
    %v7991 = vpop.f32.mrf.mxu0
    %7992 = vmatprep.mubr.bf16.mxu0 %v6326
    %7993 = vmatmul.mubr.bf16.gmra.mxu0 %v6230
    %v7994 = vpop.f32.mrf.mxu0
    %v7995 = vadd.f32 %v7706, %v7994
    %v7996 = vpop.f32.mrf.mxu0
    %v7997 = vpop.f32.mrf.mxu0
    %v7998 = vadd.f32 %v7709, %v7997
    %v7999 = vpop.f32.mrf.mxu0
    %8000 = vmatprep.mubr.bf16.mxu0 %v6327
    %8001 = vmatmul.mubr.bf16.gmra.mxu0 %v6231
    %v8002 = vpop.f32.mrf.mxu0
    %v8003 = vadd.f32 %v7714, %v8002
    %v8004 = vpop.f32.mrf.mxu0
    %v8005 = vpop.f32.mrf.mxu0
    %v8006 = vadd.f32 %v7717, %v8005
    %v8007 = vpop.f32.mrf.mxu0
    %8008 = vmatprep.mubr.bf16.mxu0 %v6328
    %8009 = vmatmul.mubr.bf16.gmra.mxu0 %v6232
    %v8010 = vpop.f32.mrf.mxu0
    %v8011 = vadd.f32 %v7722, %v8010
    %v8012 = vpop.f32.mrf.mxu0
    %v8013 = vpop.f32.mrf.mxu0
    %v8014 = vadd.f32 %v7725, %v8013
    %v8015 = vpop.f32.mrf.mxu0
    %8016 = vmatprep.mubr.bf16.mxu0 %v6329
    %8017 = vmatmul.mubr.bf16.gmra.mxu0 %v6233
    %v8018 = vpop.f32.mrf.mxu0
    %v8019 = vadd.f32 %v7730, %v8018
    %v8020 = vpop.f32.mrf.mxu0
    %v8021 = vpop.f32.mrf.mxu0
    %v8022 = vadd.f32 %v7733, %v8021
    %v8023 = vpop.f32.mrf.mxu0
    %8024 = vmatprep.mubr.bf16.mxu0 %v6330
    %8025 = vmatmul.mubr.bf16.gmra.mxu0 %v6234
    %v8026 = vpop.f32.mrf.mxu0
    %v8027 = vadd.f32 %v7738, %v8026
    %v8028 = vpop.f32.mrf.mxu0
    %v8029 = vpop.f32.mrf.mxu0
    %v8030 = vadd.f32 %v7741, %v8029
    %v8031 = vpop.f32.mrf.mxu0
    %8032 = vmatprep.mubr.bf16.mxu0 %v6331
    %8033 = vmatmul.mubr.bf16.gmra.mxu0 %v6235
    %v8034 = vpop.f32.mrf.mxu0
    %v8035 = vadd.f32 %v7746, %v8034
    %v8036 = vpop.f32.mrf.mxu0
    %v8037 = vpop.f32.mrf.mxu0
    %v8038 = vadd.f32 %v7749, %v8037
    %v8039 = vpop.f32.mrf.mxu0
    %8040 = vmatprep.mubr.bf16.mxu0 %v6332
    %8041 = vmatmul.mubr.bf16.gmra.mxu0 %v6236
    %v8042 = vpop.f32.mrf.mxu0
    %v8043 = vadd.f32 %v7754, %v8042
    %v8044 = vpop.f32.mrf.mxu0
    %v8045 = vpop.f32.mrf.mxu0
    %v8046 = vadd.f32 %v7757, %v8045
    %v8047 = vpop.f32.mrf.mxu0
    %8048 = vmatprep.mubr.bf16.mxu0 %v6333
    %8049 = vmatmul.mubr.bf16.gmra.mxu0 %v6237
    %v8050 = vpop.f32.mrf.mxu0
    %v8051 = vadd.f32 %v7762, %v8050
    %v8052 = vpop.f32.mrf.mxu0
    %v8053 = vpop.f32.mrf.mxu0
    %v8054 = vadd.f32 %v7765, %v8053
    %v8055 = vpop.f32.mrf.mxu0
    %8056 = vmatprep.mubr.bf16.mxu0 %v6334
    %8057 = vmatmul.mubr.bf16.gmra.mxu0 %v6238
    %v8058 = vpop.f32.mrf.mxu0
    %v8059 = vadd.f32 %v7770, %v8058
    %v8060 = vpop.f32.mrf.mxu0
    %v8061 = vpop.f32.mrf.mxu0
    %v8062 = vadd.f32 %v7773, %v8061
    %v8063 = vpop.f32.mrf.mxu0
    %8064 = vmatprep.mubr.bf16.mxu0 %v6335
    %8065 = vmatmul.mubr.bf16.gmra.mxu0 %v6239
    %v8066 = vpop.f32.mrf.mxu0
    %v8067 = vadd.f32 %v7778, %v8066
    %v8068 = vpop.f32.mrf.mxu0
    %v8069 = vpop.f32.mrf.mxu0
    %v8070 = vadd.f32 %v7781, %v8069
    %v8071 = vpop.f32.mrf.mxu0
    %8072 = vmatprep.mubr.bf16.mxu0 %v6336
    %8073 = vmatmul.mubr.bf16.gmra.mxu0 %v6240
    %v8074 = vpop.f32.mrf.mxu0
    %v8075 = vadd.f32 %v7786, %v8074
    %v8076 = vpop.f32.mrf.mxu0
    %v8077 = vpop.f32.mrf.mxu0
    %v8078 = vadd.f32 %v7789, %v8077
    %v8079 = vpop.f32.mrf.mxu0
    %8080 = vmatprep.mubr.bf16.mxu0 %v6337
    %8081 = vmatmul.mubr.bf16.gmra.mxu0 %v6241
    %v8082 = vpop.f32.mrf.mxu0
    %v8083 = vadd.f32 %v7794, %v8082
    %v8084 = vpop.f32.mrf.mxu0
    %v8085 = vpop.f32.mrf.mxu0
    %v8086 = vadd.f32 %v7797, %v8085
    %v8087 = vpop.f32.mrf.mxu0
    %8088 = vmatprep.mubr.bf16.mxu0 %v6338
    %8089 = vmatmul.mubr.bf16.gmra.mxu0 %v6242
    %v8090 = vpop.f32.mrf.mxu0
    %v8091 = vadd.f32 %v7802, %v8090
    %v8092 = vpop.f32.mrf.mxu0
    %v8093 = vpop.f32.mrf.mxu0
    %v8094 = vadd.f32 %v7805, %v8093
    %v8095 = vpop.f32.mrf.mxu0
    %8096 = vmatprep.mubr.bf16.mxu0 %v6339
    %8097 = vmatmul.mubr.bf16.gmra.mxu0 %v6243
    %v8098 = vpop.f32.mrf.mxu0
    %v8099 = vadd.f32 %v7810, %v8098
    %v8100 = vpop.f32.mrf.mxu0
    %v8101 = vpop.f32.mrf.mxu0
    %v8102 = vadd.f32 %v7813, %v8101
    %v8103 = vpop.f32.mrf.mxu0
    %8104 = vmatprep.mubr.bf16.mxu0 %v6340
    %8105 = vmatmul.mubr.bf16.gmra.mxu0 %v6244
    %v8106 = vpop.f32.mrf.mxu0
    %v8107 = vadd.f32 %v7818, %v8106
    %v8108 = vpop.f32.mrf.mxu0
    %v8109 = vpop.f32.mrf.mxu0
    %v8110 = vadd.f32 %v7821, %v8109
    %v8111 = vpop.f32.mrf.mxu0
    %8112 = vmatprep.mubr.bf16.mxu0 %v6341
    %8113 = vmatmul.mubr.bf16.gmra.mxu0 %v6245
    %v8114 = vpop.f32.mrf.mxu0
    %v8115 = vadd.f32 %v7826, %v8114
    %v8116 = vpop.f32.mrf.mxu0
    %v8117 = vpop.f32.mrf.mxu0
    %v8118 = vadd.f32 %v7829, %v8117
    %v8119 = vpop.f32.mrf.mxu0
    %8120 = vmatprep.mubr.bf16.mxu0 %v6342
    %8121 = vmatmul.mubr.bf16.gmra.mxu0 %v6246
    %v8122 = vpop.f32.mrf.mxu0
    %v8123 = vadd.f32 %v7834, %v8122
    %v8124 = vpop.f32.mrf.mxu0
    %v8125 = vpop.f32.mrf.mxu0
    %v8126 = vadd.f32 %v7837, %v8125
    %v8127 = vpop.f32.mrf.mxu0
    %8128 = vmatprep.mubr.bf16.mxu0 %v6343
    %8129 = vmatmul.mubr.bf16.gmra.mxu0 %v6247
    %v8130 = vpop.f32.mrf.mxu0
    %v8131 = vadd.f32 %v7842, %v8130
    %v8132 = vpop.f32.mrf.mxu0
    %v8133 = vpop.f32.mrf.mxu0
    %v8134 = vadd.f32 %v7845, %v8133
    %v8135 = vpop.f32.mrf.mxu0
    %8136 = vmatprep.mubr.bf16.mxu0 %v6344
    %8137 = vmatmul.mubr.bf16.gmra.mxu0 %v6248
    %v8138 = vpop.f32.mrf.mxu0
    %v8139 = vadd.f32 %v7850, %v8138
    %v8140 = vpop.f32.mrf.mxu0
    %v8141 = vpop.f32.mrf.mxu0
    %v8142 = vadd.f32 %v7853, %v8141
    %v8143 = vpop.f32.mrf.mxu0
    %8144 = vmatprep.mubr.bf16.mxu0 %v6345
    %8145 = vmatmul.mubr.bf16.gmra.mxu0 %v6249
    %v8146 = vpop.f32.mrf.mxu0
    %v8147 = vadd.f32 %v7858, %v8146
    %v8148 = vpop.f32.mrf.mxu0
    %v8149 = vpop.f32.mrf.mxu0
    %v8150 = vadd.f32 %v7861, %v8149
    %v8151 = vpop.f32.mrf.mxu0
    %8152 = vmatprep.mubr.bf16.mxu0 %v6346
    %8153 = vmatmul.mubr.bf16.gmra.mxu0 %v6250
    %v8154 = vpop.f32.mrf.mxu0
    %v8155 = vadd.f32 %v7866, %v8154
    %v8156 = vpop.f32.mrf.mxu0
    %v8157 = vpop.f32.mrf.mxu0
    %v8158 = vadd.f32 %v7869, %v8157
    %v8159 = vpop.f32.mrf.mxu0
    %8160 = vmatprep.mubr.bf16.mxu0 %v6347
    %8161 = vmatmul.mubr.bf16.gmra.mxu0 %v6251
    %v8162 = vpop.f32.mrf.mxu0
    %v8163 = vadd.f32 %v7874, %v8162
    %v8164 = vpop.f32.mrf.mxu0
    %v8165 = vpop.f32.mrf.mxu0
    %v8166 = vadd.f32 %v7877, %v8165
    %v8167 = vpop.f32.mrf.mxu0
    %8168 = vmatprep.mubr.bf16.mxu0 %v6348
    %8169 = vmatmul.mubr.bf16.gmra.mxu0 %v6252
    %v8170 = vpop.f32.mrf.mxu0
    %v8171 = vadd.f32 %v7882, %v8170
    %v8172 = vpop.f32.mrf.mxu0
    %v8173 = vpop.f32.mrf.mxu0
    %v8174 = vadd.f32 %v7885, %v8173
    %v8175 = vpop.f32.mrf.mxu0
    %8176 = vmatprep.mubr.bf16.mxu0 %v6349
    %8177 = vmatmul.mubr.bf16.gmra.mxu0 %v6253
    %v8178 = vpop.f32.mrf.mxu0
    %v8179 = vadd.f32 %v7890, %v8178
    %v8180 = vpop.f32.mrf.mxu0
    %v8181 = vpop.f32.mrf.mxu0
    %v8182 = vadd.f32 %v7893, %v8181
    %v8183 = vpop.f32.mrf.mxu0
    %8184 = vdwg.mxu0
    %8185 = vmatprep.subr.bf16.mxu0 0
    %8186 = vmatpush1.bf16.msra.mxu0 %v6956
    %8187 = vmatprep.subr.bf16.mxu0 0
    %8188 = vmatpush1.bf16.msra.mxu0 %v6955
    %8189 = vmatprep.subr.bf16.mxu0 0
    %8190 = vmatpush1.bf16.msra.mxu0 %v6954
    %8191 = vmatprep.subr.bf16.mxu0 0
    %8192 = vmatpush1.bf16.msra.mxu0 %v6953
    %8193 = vmatprep.subr.bf16.mxu0 0
    %8194 = vmatpush1.bf16.msra.mxu0 %v6952
    %8195 = vmatprep.subr.bf16.mxu0 0
    %8196 = vmatpush1.bf16.msra.mxu0 %v6951
    %8197 = vmatprep.subr.bf16.mxu0 0
    %8198 = vmatpush1.bf16.msra.mxu0 %v6950
    %8199 = vmatprep.subr.bf16.mxu0 0
    %8200 = vmatpush1.bf16.msra.mxu0 %v6949
    %8201 = vmatprep.subr.bf16.mxu0 0
    %8202 = vmatpush2.bf16.msra.mxu0 0
    %8203 = vmatprep.subr.bf16.mxu0 0
    %8204 = vmatpush2.bf16.msra.mxu0 0
    %8205 = vmatprep.subr.bf16.mxu0 0
    %8206 = vmatpush2.bf16.msra.mxu0 0
    %8207 = vmatprep.subr.bf16.mxu0 0
    %8208 = vmatpush2.bf16.msra.mxu0 0
    %8209 = vmatprep.subr.bf16.mxu0 0
    %8210 = vmatpush2.bf16.msra.mxu0 0
    %8211 = vmatprep.subr.bf16.mxu0 0
    %8212 = vmatpush2.bf16.msra.mxu0 0
    %8213 = vmatprep.subr.bf16.mxu0 0
    %8214 = vmatpush2.bf16.msra.mxu0 0
    %8215 = vmatprep.subr.bf16.mxu0 0
    %8216 = vmatpush2.bf16.msra.mxu0 0
    %8217 = vmatprep.mubr.bf16.mxu0 0
    %8218 = vmatmul.mubr.bf16.gmra.mxu0 %v6414
    %v8219 = vpop.f32.mrf.mxu0
    %v8220 = vadd.f32 %v7931, %v8219
    %v8221 = vpop.f32.mrf.mxu0
    %v8222 = vpop.f32.mrf.mxu0
    %v8223 = vadd.f32 %v7934, %v8222
    %v8224 = vpop.f32.mrf.mxu0
    %8225 = vmatprep.mubr.bf16.mxu0 0
    %8226 = vmatmul.mubr.bf16.gmra.mxu0 %v6415
    %v8227 = vpop.f32.mrf.mxu0
    %v8228 = vadd.f32 %v7939, %v8227
    %v8229 = vpop.f32.mrf.mxu0
    %v8230 = vpop.f32.mrf.mxu0
    %v8231 = vadd.f32 %v7942, %v8230
    %v8232 = vpop.f32.mrf.mxu0
    %8233 = vmatprep.mubr.bf16.mxu0 0
    %8234 = vmatmul.mubr.bf16.gmra.mxu0 %v6416
    %v8235 = vpop.f32.mrf.mxu0
    %v8236 = vadd.f32 %v7947, %v8235
    %v8237 = vpop.f32.mrf.mxu0
    %v8238 = vpop.f32.mrf.mxu0
    %v8239 = vadd.f32 %v7950, %v8238
    %v8240 = vpop.f32.mrf.mxu0
    %8241 = vmatprep.mubr.bf16.mxu0 0
    %8242 = vmatmul.mubr.bf16.gmra.mxu0 %v6417
    %v8243 = vpop.f32.mrf.mxu0
    %v8244 = vadd.f32 %v7955, %v8243
    %v8245 = vpop.f32.mrf.mxu0
    %v8246 = vpop.f32.mrf.mxu0
    %v8247 = vadd.f32 %v7958, %v8246
    %v8248 = vpop.f32.mrf.mxu0
    %8249 = vmatprep.mubr.bf16.mxu0 0
    %8250 = vmatmul.mubr.bf16.gmra.mxu0 %v6418
    %v8251 = vpop.f32.mrf.mxu0
    %v8252 = vadd.f32 %v7963, %v8251
    %v8253 = vpop.f32.mrf.mxu0
    %v8254 = vpop.f32.mrf.mxu0
    %v8255 = vadd.f32 %v7966, %v8254
    %v8256 = vpop.f32.mrf.mxu0
    %8257 = vmatprep.mubr.bf16.mxu0 0
    %8258 = vmatmul.mubr.bf16.gmra.mxu0 %v6419
    %v8259 = vpop.f32.mrf.mxu0
    %v8260 = vadd.f32 %v7971, %v8259
    %v8261 = vpop.f32.mrf.mxu0
    %v8262 = vpop.f32.mrf.mxu0
    %v8263 = vadd.f32 %v7974, %v8262
    %v8264 = vpop.f32.mrf.mxu0
    %8265 = vmatprep.mubr.bf16.mxu0 0
    %8266 = vmatmul.mubr.bf16.gmra.mxu0 %v6420
    %v8267 = vpop.f32.mrf.mxu0
    %v8268 = vadd.f32 %v7979, %v8267
    %v8269 = vpop.f32.mrf.mxu0
    %v8270 = vpop.f32.mrf.mxu0
    %v8271 = vadd.f32 %v7982, %v8270
    %v8272 = vpop.f32.mrf.mxu0
    %8273 = vmatprep.mubr.bf16.mxu0 0
    %8274 = vmatmul.mubr.bf16.gmra.mxu0 %v6421
    %v8275 = vpop.f32.mrf.mxu0
    %v8276 = vadd.f32 %v7987, %v8275
    %v8277 = vpop.f32.mrf.mxu0
    %v8278 = vpop.f32.mrf.mxu0
    %v8279 = vadd.f32 %v7990, %v8278
    %v8280 = vpop.f32.mrf.mxu0
    %8281 = vmatprep.mubr.bf16.mxu0 0
    %8282 = vmatmul.mubr.bf16.gmra.mxu0 %v6422
    %v8283 = vpop.f32.mrf.mxu0
    %v8284 = vadd.f32 %v7995, %v8283
    %v8285 = vpop.f32.mrf.mxu0
    %v8286 = vpop.f32.mrf.mxu0
    %v8287 = vadd.f32 %v7998, %v8286
    %v8288 = vpop.f32.mrf.mxu0
    %8289 = vmatprep.mubr.bf16.mxu0 0
    %8290 = vmatmul.mubr.bf16.gmra.mxu0 %v6423
    %v8291 = vpop.f32.mrf.mxu0
    %v8292 = vadd.f32 %v8003, %v8291
    %v8293 = vpop.f32.mrf.mxu0
    %v8294 = vpop.f32.mrf.mxu0
    %v8295 = vadd.f32 %v8006, %v8294
    %v8296 = vpop.f32.mrf.mxu0
    %8297 = vmatprep.mubr.bf16.mxu0 0
    %8298 = vmatmul.mubr.bf16.gmra.mxu0 %v6424
    %v8299 = vpop.f32.mrf.mxu0
    %v8300 = vadd.f32 %v8011, %v8299
    %v8301 = vpop.f32.mrf.mxu0
    %v8302 = vpop.f32.mrf.mxu0
    %v8303 = vadd.f32 %v8014, %v8302
    %v8304 = vpop.f32.mrf.mxu0
    %8305 = vmatprep.mubr.bf16.mxu0 0
    %8306 = vmatmul.mubr.bf16.gmra.mxu0 %v6425
    %v8307 = vpop.f32.mrf.mxu0
    %v8308 = vadd.f32 %v8019, %v8307
    %v8309 = vpop.f32.mrf.mxu0
    %v8310 = vpop.f32.mrf.mxu0
    %v8311 = vadd.f32 %v8022, %v8310
    %v8312 = vpop.f32.mrf.mxu0
    %8313 = vmatprep.mubr.bf16.mxu0 0
    %8314 = vmatmul.mubr.bf16.gmra.mxu0 %v6426
    %v8315 = vpop.f32.mrf.mxu0
    %v8316 = vadd.f32 %v8027, %v8315
    %v8317 = vpop.f32.mrf.mxu0
    %v8318 = vpop.f32.mrf.mxu0
    %v8319 = vadd.f32 %v8030, %v8318
    %v8320 = vpop.f32.mrf.mxu0
    %8321 = vmatprep.mubr.bf16.mxu0 0
    %8322 = vmatmul.mubr.bf16.gmra.mxu0 %v6427
    %v8323 = vpop.f32.mrf.mxu0
    %v8324 = vadd.f32 %v8035, %v8323
    %v8325 = vpop.f32.mrf.mxu0
    %v8326 = vpop.f32.mrf.mxu0
    %v8327 = vadd.f32 %v8038, %v8326
    %v8328 = vpop.f32.mrf.mxu0
    %8329 = vmatprep.mubr.bf16.mxu0 0
    %8330 = vmatmul.mubr.bf16.gmra.mxu0 %v6428
    %v8331 = vpop.f32.mrf.mxu0
    %v8332 = vadd.f32 %v8043, %v8331
    %v8333 = vpop.f32.mrf.mxu0
    %v8334 = vpop.f32.mrf.mxu0
    %v8335 = vadd.f32 %v8046, %v8334
    %v8336 = vpop.f32.mrf.mxu0
    %8337 = vmatprep.mubr.bf16.mxu0 0
    %8338 = vmatmul.mubr.bf16.gmra.mxu0 %v6429
    %v8339 = vpop.f32.mrf.mxu0
    %v8340 = vadd.f32 %v8051, %v8339
    %v8341 = vpop.f32.mrf.mxu0
    %v8342 = vpop.f32.mrf.mxu0
    %v8343 = vadd.f32 %v8054, %v8342
    %v8344 = vpop.f32.mrf.mxu0
    %8345 = vmatprep.mubr.bf16.mxu0 0
    %8346 = vmatmul.mubr.bf16.gmra.mxu0 %v6430
    %v8347 = vpop.f32.mrf.mxu0
    %v8348 = vadd.f32 %v8059, %v8347
    %v8349 = vpop.f32.mrf.mxu0
    %v8350 = vpop.f32.mrf.mxu0
    %v8351 = vadd.f32 %v8062, %v8350
    %v8352 = vpop.f32.mrf.mxu0
    %8353 = vmatprep.mubr.bf16.mxu0 0
    %8354 = vmatmul.mubr.bf16.gmra.mxu0 %v6431
    %v8355 = vpop.f32.mrf.mxu0
    %v8356 = vadd.f32 %v8067, %v8355
    %v8357 = vpop.f32.mrf.mxu0
    %v8358 = vpop.f32.mrf.mxu0
    %v8359 = vadd.f32 %v8070, %v8358
    %v8360 = vpop.f32.mrf.mxu0
    %8361 = vmatprep.mubr.bf16.mxu0 0
    %8362 = vmatmul.mubr.bf16.gmra.mxu0 %v6432
    %v8363 = vpop.f32.mrf.mxu0
    %v8364 = vadd.f32 %v8075, %v8363
    %v8365 = vpop.f32.mrf.mxu0
    %v8366 = vpop.f32.mrf.mxu0
    %v8367 = vadd.f32 %v8078, %v8366
    %v8368 = vpop.f32.mrf.mxu0
    %8369 = vmatprep.mubr.bf16.mxu0 0
    %8370 = vmatmul.mubr.bf16.gmra.mxu0 %v6433
    %v8371 = vpop.f32.mrf.mxu0
    %v8372 = vadd.f32 %v8083, %v8371
    %v8373 = vpop.f32.mrf.mxu0
    %v8374 = vpop.f32.mrf.mxu0
    %v8375 = vadd.f32 %v8086, %v8374
    %v8376 = vpop.f32.mrf.mxu0
    %8377 = vmatprep.mubr.bf16.mxu0 0
    %8378 = vmatmul.mubr.bf16.gmra.mxu0 %v6434
    %v8379 = vpop.f32.mrf.mxu0
    %v8380 = vadd.f32 %v8091, %v8379
    %v8381 = vpop.f32.mrf.mxu0
    %v8382 = vpop.f32.mrf.mxu0
    %v8383 = vadd.f32 %v8094, %v8382
    %v8384 = vpop.f32.mrf.mxu0
    %8385 = vmatprep.mubr.bf16.mxu0 0
    %8386 = vmatmul.mubr.bf16.gmra.mxu0 %v6435
    %v8387 = vpop.f32.mrf.mxu0
    %v8388 = vadd.f32 %v8099, %v8387
    %v8389 = vpop.f32.mrf.mxu0
    %v8390 = vpop.f32.mrf.mxu0
    %v8391 = vadd.f32 %v8102, %v8390
    %v8392 = vpop.f32.mrf.mxu0
    %8393 = vmatprep.mubr.bf16.mxu0 0
    %8394 = vmatmul.mubr.bf16.gmra.mxu0 %v6436
    %v8395 = vpop.f32.mrf.mxu0
    %v8396 = vadd.f32 %v8107, %v8395
    %v8397 = vpop.f32.mrf.mxu0
    %v8398 = vpop.f32.mrf.mxu0
    %v8399 = vadd.f32 %v8110, %v8398
    %v8400 = vpop.f32.mrf.mxu0
    %8401 = vmatprep.mubr.bf16.mxu0 0
    %8402 = vmatmul.mubr.bf16.gmra.mxu0 %v6437
    %v8403 = vpop.f32.mrf.mxu0
    %v8404 = vadd.f32 %v8115, %v8403
    %v8405 = vpop.f32.mrf.mxu0
    %v8406 = vpop.f32.mrf.mxu0
    %v8407 = vadd.f32 %v8118, %v8406
    %v8408 = vpop.f32.mrf.mxu0
    %8409 = vmatprep.mubr.bf16.mxu0 0
    %8410 = vmatmul.mubr.bf16.gmra.mxu0 %v6438
    %v8411 = vpop.f32.mrf.mxu0
    %v8412 = vadd.f32 %v8123, %v8411
    %v8413 = vpop.f32.mrf.mxu0
    %v8414 = vpop.f32.mrf.mxu0
    %v8415 = vadd.f32 %v8126, %v8414
    %v8416 = vpop.f32.mrf.mxu0
    %8417 = vmatprep.mubr.bf16.mxu0 0
    %8418 = vmatmul.mubr.bf16.gmra.mxu0 %v6439
    %v8419 = vpop.f32.mrf.mxu0
    %v8420 = vadd.f32 %v8131, %v8419
    %v8421 = vpop.f32.mrf.mxu0
    %v8422 = vpop.f32.mrf.mxu0
    %v8423 = vadd.f32 %v8134, %v8422
    %v8424 = vpop.f32.mrf.mxu0
    %8425 = vmatprep.mubr.bf16.mxu0 0
    %8426 = vmatmul.mubr.bf16.gmra.mxu0 %v6440
    %v8427 = vpop.f32.mrf.mxu0
    %v8428 = vadd.f32 %v8139, %v8427
    %v8429 = vpop.f32.mrf.mxu0
    %v8430 = vpop.f32.mrf.mxu0
    %v8431 = vadd.f32 %v8142, %v8430
    %v8432 = vpop.f32.mrf.mxu0
    %8433 = vmatprep.mubr.bf16.mxu0 0
    %8434 = vmatmul.mubr.bf16.gmra.mxu0 %v6441
    %v8435 = vpop.f32.mrf.mxu0
    %v8436 = vadd.f32 %v8147, %v8435
    %v8437 = vpop.f32.mrf.mxu0
    %v8438 = vpop.f32.mrf.mxu0
    %v8439 = vadd.f32 %v8150, %v8438
    %v8440 = vpop.f32.mrf.mxu0
    %8441 = vmatprep.mubr.bf16.mxu0 0
    %8442 = vmatmul.mubr.bf16.gmra.mxu0 %v6442
    %v8443 = vpop.f32.mrf.mxu0
    %v8444 = vadd.f32 %v8155, %v8443
    %v8445 = vpop.f32.mrf.mxu0
    %v8446 = vpop.f32.mrf.mxu0
    %v8447 = vadd.f32 %v8158, %v8446
    %v8448 = vpop.f32.mrf.mxu0
    %8449 = vmatprep.mubr.bf16.mxu0 0
    %8450 = vmatmul.mubr.bf16.gmra.mxu0 %v6443
    %v8451 = vpop.f32.mrf.mxu0
    %v8452 = vadd.f32 %v8163, %v8451
    %v8453 = vpop.f32.mrf.mxu0
    %v8454 = vpop.f32.mrf.mxu0
    %v8455 = vadd.f32 %v8166, %v8454
    %v8456 = vpop.f32.mrf.mxu0
    %8457 = vmatprep.mubr.bf16.mxu0 0
    %8458 = vmatmul.mubr.bf16.gmra.mxu0 %v6444
    %v8459 = vpop.f32.mrf.mxu0
    %v8460 = vadd.f32 %v8171, %v8459
    %v8461 = vpop.f32.mrf.mxu0
    %v8462 = vpop.f32.mrf.mxu0
    %v8463 = vadd.f32 %v8174, %v8462
    %v8464 = vpop.f32.mrf.mxu0
    %8465 = vmatprep.mubr.bf16.mxu0 0
    %8466 = vmatmul.mubr.bf16.gmra.mxu0 %v6445
    %v8467 = vpop.f32.mrf.mxu0
    %v8468 = vadd.f32 %v8179, %v8467
    %v8469 = vpop.f32.mrf.mxu0
    %v8470 = vpop.f32.mrf.mxu0
    %v8471 = vadd.f32 %v8182, %v8470
    %v8472 = vpop.f32.mrf.mxu0
    %8473 = vdwg.mxu0
    %v8474 = vadd.f32 %v8220, %v63
    %v8475 = vadd.f32 %v8223, %v64
    %v8476 = vadd.f32 %v8228, %v65
    %v8477 = vadd.f32 %v8231, %v66
    %v8478 = vadd.f32 %v8236, %v67
    %v8479 = vadd.f32 %v8239, %v68
    %v8480 = vadd.f32 %v8244, %v69
    %v8481 = vadd.f32 %v8247, %v70
    %v8482 = vadd.f32 %v8252, %v71
    %v8483 = vadd.f32 %v8255, %v72
    %v8484 = vadd.f32 %v8260, %v73
    %v8485 = vadd.f32 %v8263, %v74
    %v8486 = vadd.f32 %v8268, %v75
    %v8487 = vadd.f32 %v8271, %v76
    %v8488 = vadd.f32 %v8276, %v77
    %v8489 = vadd.f32 %v8279, %v78
    %v8490 = vadd.f32 %v8284, %v79
    %v8491 = vadd.f32 %v8287, %v80
    %v8492 = vadd.f32 %v8292, %v81
    %v8493 = vadd.f32 %v8295, %v82
    %v8494 = vadd.f32 %v8300, %v83
    %v8495 = vadd.f32 %v8303, %v84
    %v8496 = vadd.f32 %v8308, %v85
    %v8497 = vadd.f32 %v8311, %v86
    %v8498 = vadd.f32 %v8316, %v87
    %v8499 = vadd.f32 %v8319, %v88
    %v8500 = vadd.f32 %v8324, %v89
    %v8501 = vadd.f32 %v8327, %v90
    %v8502 = vadd.f32 %v8332, %v91
    %v8503 = vadd.f32 %v8335, %v92
    %v8504 = vadd.f32 %v8340, %v93
    %v8505 = vadd.f32 %v8343, %v94
    %v8506 = vadd.f32 %v8348, %v95
    %v8507 = vadd.f32 %v8351, %v96
    %v8508 = vadd.f32 %v8356, %v97
    %v8509 = vadd.f32 %v8359, %v98
    %v8510 = vadd.f32 %v8364, %v99
    %v8511 = vadd.f32 %v8367, %v100
    %v8512 = vadd.f32 %v8372, %v101
    %v8513 = vadd.f32 %v8375, %v102
    %v8514 = vadd.f32 %v8380, %v103
    %v8515 = vadd.f32 %v8383, %v104
    %v8516 = vadd.f32 %v8388, %v105
    %v8517 = vadd.f32 %v8391, %v106
    %v8518 = vadd.f32 %v8396, %v107
    %v8519 = vadd.f32 %v8399, %v108
    %v8520 = vadd.f32 %v8404, %v109
    %v8521 = vadd.f32 %v8407, %v110
    %v8522 = vadd.f32 %v8412, %v111
    %v8523 = vadd.f32 %v8415, %v112
    %v8524 = vadd.f32 %v8420, %v113
    %v8525 = vadd.f32 %v8423, %v114
    %v8526 = vadd.f32 %v8428, %v115
    %v8527 = vadd.f32 %v8431, %v116
    %v8528 = vadd.f32 %v8436, %v117
    %v8529 = vadd.f32 %v8439, %v118
    %v8530 = vadd.f32 %v8444, %v119
    %v8531 = vadd.f32 %v8447, %v120
    %v8532 = vadd.f32 %v8452, %v121
    %v8533 = vadd.f32 %v8455, %v122
    %v8534 = vadd.f32 %v8460, %v123
    %v8535 = vadd.f32 %v8463, %v124
    %v8536 = vadd.f32 %v8468, %v125
    %v8537 = vadd.f32 %v8471, %v126
    %8538 = vst [vmem:[#allocation8] sm:$0xff] %v8474
    %8539 = vst [vmem:[#allocation8 + $0x8] sm:$0xff] %v8475
    %8540 = vst [vmem:[#allocation8 + $0x10] sm:$0xff] %v8476
    %8541 = vst [vmem:[#allocation8 + $0x18] sm:$0xff] %v8477
    %8542 = vst [vmem:[#allocation8 + $0x20] sm:$0xff] %v8478
    %8543 = vst [vmem:[#allocation8 + $0x28] sm:$0xff] %v8479
    %8544 = vst [vmem:[#allocation8 + $0x30] sm:$0xff] %v8480
    %8545 = vst [vmem:[#allocation8 + $0x38] sm:$0xff] %v8481
    %8546 = vst [vmem:[#allocation8 + $0x40] sm:$0xff] %v8482
    %8547 = vst [vmem:[#allocation8 + $0x48] sm:$0xff] %v8483
    %8548 = vst [vmem:[#allocation8 + $0x50] sm:$0xff] %v8484
    %8549 = vst [vmem:[#allocation8 + $0x58] sm:$0xff] %v8485
    %8550 = vst [vmem:[#allocation8 + $0x60] sm:$0xff] %v8486
    %8551 = vst [vmem:[#allocation8 + $0x68] sm:$0xff] %v8487
    %8552 = vst [vmem:[#allocation8 + $0x70] sm:$0xff] %v8488
    %8553 = vst [vmem:[#allocation8 + $0x78] sm:$0xff] %v8489
    %8554 = vst [vmem:[#allocation8 + $0x80] sm:$0xff] %v8490
    %8555 = vst [vmem:[#allocation8 + $0x88] sm:$0xff] %v8491
    %8556 = vst [vmem:[#allocation8 + $0x90] sm:$0xff] %v8492
    %8557 = vst [vmem:[#allocation8 + $0x98] sm:$0xff] %v8493
    %8558 = vst [vmem:[#allocation8 + $0xa0] sm:$0xff] %v8494
    %8559 = vst [vmem:[#allocation8 + $0xa8] sm:$0xff] %v8495
    %8560 = vst [vmem:[#allocation8 + $0xb0] sm:$0xff] %v8496
    %8561 = vst [vmem:[#allocation8 + $0xb8] sm:$0xff] %v8497
    %8562 = vst [vmem:[#allocation8 + $0xc0] sm:$0xff] %v8498
    %8563 = vst [vmem:[#allocation8 + $0xc8] sm:$0xff] %v8499
    %8564 = vst [vmem:[#allocation8 + $0xd0] sm:$0xff] %v8500
    %8565 = vst [vmem:[#allocation8 + $0xd8] sm:$0xff] %v8501
    %8566 = vst [vmem:[#allocation8 + $0xe0] sm:$0xff] %v8502
    %8567 = vst [vmem:[#allocation8 + $0xe8] sm:$0xff] %v8503
    %8568 = vst [vmem:[#allocation8 + $0xf0] sm:$0xff] %v8504
    %8569 = vst [vmem:[#allocation8 + $0xf8] sm:$0xff] %v8505
    %8570 = vst [vmem:[#allocation8 + $0x100] sm:$0xff] %v8506
    %8571 = vst [vmem:[#allocation8 + $0x108] sm:$0xff] %v8507
    %8572 = vst [vmem:[#allocation8 + $0x110] sm:$0xff] %v8508
    %8573 = vst [vmem:[#allocation8 + $0x118] sm:$0xff] %v8509
    %8574 = vst [vmem:[#allocation8 + $0x120] sm:$0xff] %v8510
    %8575 = vst [vmem:[#allocation8 + $0x128] sm:$0xff] %v8511
    %8576 = vst [vmem:[#allocation8 + $0x130] sm:$0xff] %v8512
    %8577 = vst [vmem:[#allocation8 + $0x138] sm:$0xff] %v8513
    %8578 = vst [vmem:[#allocation8 + $0x140] sm:$0xff] %v8514
    %8579 = vst [vmem:[#allocation8 + $0x148] sm:$0xff] %v8515
    %8580 = vst [vmem:[#allocation8 + $0x150] sm:$0xff] %v8516
    %8581 = vst [vmem:[#allocation8 + $0x158] sm:$0xff] %v8517
    %8582 = vst [vmem:[#allocation8 + $0x160] sm:$0xff] %v8518
    %8583 = vst [vmem:[#allocation8 + $0x168] sm:$0xff] %v8519
    %8584 = vst [vmem:[#allocation8 + $0x170] sm:$0xff] %v8520
    %8585 = vst [vmem:[#allocation8 + $0x178] sm:$0xff] %v8521
    %8586 = vst [vmem:[#allocation8 + $0x180] sm:$0xff] %v8522
    %8587 = vst [vmem:[#allocation8 + $0x188] sm:$0xff] %v8523
    %8588 = vst [vmem:[#allocation8 + $0x190] sm:$0xff] %v8524
    %8589 = vst [vmem:[#allocation8 + $0x198] sm:$0xff] %v8525
    %8590 = vst [vmem:[#allocation8 + $0x1a0] sm:$0xff] %v8526
    %8591 = vst [vmem:[#allocation8 + $0x1a8] sm:$0xff] %v8527
    %8592 = vst [vmem:[#allocation8 + $0x1b0] sm:$0xff] %v8528
    %8593 = vst [vmem:[#allocation8 + $0x1b8] sm:$0xff] %v8529
    %8594 = vst [vmem:[#allocation8 + $0x1c0] sm:$0xff] %v8530
    %8595 = vst [vmem:[#allocation8 + $0x1c8] sm:$0xff] %v8531
    %8596 = vst [vmem:[#allocation8 + $0x1d0] sm:$0xff] %v8532
    %8597 = vst [vmem:[#allocation8 + $0x1d8] sm:$0xff] %v8533
    %8598 = vst [vmem:[#allocation8 + $0x1e0] sm:$0xff] %v8534
    %8599 = vst [vmem:[#allocation8 + $0x1e8] sm:$0xff] %v8535
    %8600 = vst [vmem:[#allocation8 + $0x1f0] sm:$0xff] %v8536
    %8601 = vst [vmem:[#allocation8 + $0x1f8] sm:$0xff] %v8537
    // Predicated region
    $region34: #{tpu_custom_call.1} parent=1 // pred_check
      _
    $region35: #{tpu_custom_call.1} parent=1 // pred_check_branch
      %8603 = sbr.rel (0) target = $region37
    $region36: #{tpu_custom_call.1} parent=1 // pred_region
      %s8605 = ssub.s32 8192, 8192
      %8606 = vsyncadd [#allocation4], %s8605
      %s8607 = sshll.u32 [#allocation8], 4
      %s8608 = int_to_ptr.vmem [resolvable:$true] %s8607
      %8613 = dma.vmem_to_hbm [thread:$0]  %s8608, 8192, %s5, [#allocation4], 128, 128, 8
    $region37: #{tpu_custom_call.1} parent=1 // pred_fallthru
      _
    // Predicated region
    $region38: #{tpu_custom_call.1} parent=1 // pred_check
      _
    $region39: #{tpu_custom_call.1} parent=1 // pred_check_branch
      %8615 = sbr.rel (0) target = $region41
    $region40: #{tpu_custom_call.1} parent=1 // pred_region
      %8616 = dma.done [#allocation4], 8192
    $region41: #{tpu_custom_call.1} parent=1 // pred_fallthru
      _
    %8617 = vsyncpa [#allocation3], 1
    %8618 = vsyncpa [#allocation6], 1
    %8619 = vsyncpa [#allocation4], 1

</llo_original>
